<compile_context>
chip_gen: v6e
topology: v6e:2x2x1
jax: 0.10.0
libtpu: 0.0.40
codegen_flags: <defaults>
</compile_context>

<pallas_src>
import jax
import jax.numpy as jnp
from jax.experimental import pallas as pl
from jax.experimental.pallas import tpu as pltpu


# ----------------------------------------------------------------------------
# One LSTM cell update.  gates: (B, 4H) f32, column order (i, f, o, g).
# sigmoid(x) = 0.5 * tanh(0.5 * x) + 0.5  -> one EUP pass over the (B,3H) slab.
# ----------------------------------------------------------------------------
def _lstm_cell(gates, c, H):
    ifo = 0.5 * jnp.tanh(0.5 * gates[:, :3 * H]) + 0.5
    g = jnp.tanh(gates[:, 3 * H:])
    c_new = ifo[:, H:2 * H] * c + ifo[:, :H] * g
    h_new = ifo[:, 2 * H:3 * H] * jnp.tanh(c_new)
    return h_new, c_new


# ----------------------------------------------------------------------------
# Fused decoder kernel: 3 LSTM layers (wavefront-pipelined) + dense head.
# x_ref: (T*Bc, D) bf16 time-major (row t*Bc + b = batch b, time t).
# ----------------------------------------------------------------------------
def _decoder_kernel(x_ref,
                    w1i_ref, w1h_ref, b1_ref,
                    w2i_ref, w2h_ref, b2_ref,
                    w3i_ref, w3h_ref, b3_ref,
                    wd_ref, bd_ref,
                    o_ref):
    TB, D = x_ref.shape
    B = o_ref.shape[0]                 # batch rows in this chunk
    T = TB // B
    H12 = w1h_ref.shape[0]             # = D
    H3 = w3h_ref.shape[0]              # = 2 * D
    bf = jnp.bfloat16

    # ---- hoisted layer-1 input projection: one (T*B, D) @ (D, 4D) MXU matmul.
    xg1 = jnp.dot(x_ref[...], w1i_ref[...],
                  preferred_element_type=jnp.float32) + b1_ref[...]

    w1h = w1h_ref[...]
    w2i, w2h, b2 = w2i_ref[...], w2h_ref[...], b2_ref[...]
    w3i, w3h, b3 = w3i_ref[...], w3h_ref[...], b3_ref[...]

    zeros = lambda h: jnp.zeros((B, h), jnp.float32)
    h1, c1 = zeros(H12), zeros(H12)
    h2, c2 = zeros(H12), zeros(H12)
    h3, c3 = zeros(H3), zeros(H3)

    # ---- wavefront over layers: super-step s runs layer1@t=s, layer2@t=s-1,
    # layer3@t=s-2.  All three use ONLY state from the previous super-step, so
    # their MXU/EUP work is mutually independent within a step.
    for s in range(T + 2):
        h1_p, c1_p = h1, c1
        h2_p, c2_p = h2, c2
        h3_p, c3_p = h3, c3

        if s < T:                                   # lstm1 layer 0 (D -> D)
            g1 = (xg1[s * B:(s + 1) * B, :]
                  + jnp.dot(h1_p.astype(bf), w1h,
                            preferred_element_type=jnp.float32))
            h1, c1 = _lstm_cell(g1, c1_p, H12)

        if 1 <= s <= T:                             # lstm1 layer 1 (D -> D)
            # nn.LSTM inter-layer dropout (p=0.5) is train-only -> identity.
            g2 = (jnp.dot(h1_p.astype(bf), w2i,
                          preferred_element_type=jnp.float32)
                  + jnp.dot(h2_p.astype(bf), w2h,
                            preferred_element_type=jnp.float32)
                  + b2)
            h2, c2 = _lstm_cell(g2, c2_p, H12)

        if 2 <= s <= T + 1:                         # lstm2 (D -> 2D)
            g3 = (jnp.dot(h2_p.astype(bf), w3i,
                          preferred_element_type=jnp.float32)
                  + jnp.dot(h3_p.astype(bf), w3h,
                            preferred_element_type=jnp.float32)
                  + b3)
            h3, c3 = _lstm_cell(g3, c3_p, H3)

    # ---- dense head on the last-timestep hidden state of lstm2.
    # Weights are lane-padded to 128 outputs in the wrapper -> unmasked store.
    o_ref[...] = (jnp.dot(h3.astype(bf), wd_ref[...],
                          preferred_element_type=jnp.float32) + bd_ref[...])


# ----------------------------------------------------------------------------
# Wrapper: layout plumbing in JAX, single pallas_call, weights VMEM-resident.
# ----------------------------------------------------------------------------
def decoder_forward(params, x, *, batch_chunks=1):
    """x: (batch, seq_len, input_dim) — batch_first, like the PyTorch module."""
    B, T, D = x.shape
    out_dim = params["dense_w"].shape[1]
    assert B % batch_chunks == 0
    Bc = B // batch_chunks
    assert Bc % 8 == 0, "batch chunk must be a multiple of 8 (sublane tile)"
    nc = batch_chunks

    # Batch-major -> per-chunk time-major (nc, T*Bc, D) + bf16 cast, done here
    # (free at the XLA level) so the kernel starts straight on the MXU.
    x_tm = (x.reshape(nc, Bc, T, D)
             .transpose(0, 2, 1, 3)
             .reshape(nc, T * Bc, D)
             .astype(jnp.bfloat16))

    # Lane-pad the dense head to a multiple of 128 output lanes.
    wd, bd = params["dense_w"], params["dense_b"]
    n_pad = pl.cdiv(out_dim, 128) * 128
    wd_p = jnp.zeros((wd.shape[0], n_pad), wd.dtype).at[:, :out_dim].set(wd)
    bd_p = jnp.zeros((1, n_pad), bd.dtype).at[:, :out_dim].set(bd)

    w1i, w1h, b1 = params["lstm1_l0"]
    w2i, w2h, b2 = params["lstm1_l1"]
    w3i, w3h, b3 = params["lstm2_l0"]

    def full(arr):  # whole-array VMEM-resident, same block every grid step
        return pl.BlockSpec(arr.shape, lambda i, _nd=arr.ndim: (0,) * _nd)

    out = pl.pallas_call(
        _decoder_kernel,
        out_shape=jax.ShapeDtypeStruct((B, n_pad), jnp.float32),
        grid=(nc,),
        in_specs=[pl.BlockSpec((None, T * Bc, D), lambda i: (i, 0, 0)),
                  full(w1i), full(w1h), full(b1),
                  full(w2i), full(w2h), full(b2),
                  full(w3i), full(w3h), full(b3),
                  full(wd_p), full(bd_p)],
        out_specs=pl.BlockSpec((Bc, n_pad), lambda i: (i, 0)),
        compiler_params=pltpu.CompilerParams(
            dimension_semantics=("parallel",),       # v7x: 2nd TC when nc > 1
            vmem_limit_bytes=32 * 1024 * 1024),      # headroom if D scales
    )(x_tm, w1i, w1h, b1, w2i, w2h, b2, w3i, w3h, b3, wd_p, bd_p)
    return out[:, :out_dim]


# ----------------------------------------------------------------------------
# Deterministic PyTorch-style init, stored pre-transposed:
#   W_ih^T (Din, 4H) bf16, W_hh^T (H, 4H) bf16, bias = b_ih + b_hh (1, 4H) f32.
# Gate column order is (i, f, o, g) (see header).
# TODO(synk): checkpoint import needs transpose + (i,f,g,o)->(i,f,o,g) gate
#             permutation + b_ih+b_hh summation.
# ----------------------------------------------------------------------------
def init_params(key, input_dim, output_dim):
    hidden_dim = 2 * input_dim

    def u(k, shape, bound):
        return jax.random.uniform(k, shape, jnp.float32, -bound, bound)

    def lstm_weights(k, in_dim, hid):
        k_ih, k_hh, k_bi, k_bh = jax.random.split(k, 4)
        bound = 1.0 / (hid ** 0.5)          # PyTorch: U(-1/sqrt(H), 1/sqrt(H))
        w_ih = u(k_ih, (in_dim, 4 * hid), bound).astype(jnp.bfloat16)
        w_hh = u(k_hh, (hid, 4 * hid), bound).astype(jnp.bfloat16)
        bias = u(k_bi, (1, 4 * hid), bound) + u(k_bh, (1, 4 * hid), bound)
        return (w_ih, w_hh, bias)

    k1, k2, k3, kdw, kdb = jax.random.split(key, 5)
    params = {
        "lstm1_l0": lstm_weights(k1, input_dim, input_dim),    # D -> D
        "lstm1_l1": lstm_weights(k2, input_dim, input_dim),    # D -> D
        "lstm2_l0": lstm_weights(k3, input_dim, hidden_dim),   # D -> 2D
    }
    bd = 1.0 / (hidden_dim ** 0.5)
    params["dense_w"] = u(kdw, (hidden_dim, output_dim), bd).astype(jnp.bfloat16)
    params["dense_b"] = u(kdb, (1, output_dim), bd)
    return params


if __name__ == "__main__":
    seq_len, input_dim, output_dim, batch = 8, 128, 1, 8

    key = jax.random.PRNGKey(0)
    pkey, xkey = jax.random.split(key)
    params = init_params(pkey, input_dim, output_dim)
    x = jax.random.normal(xkey, (batch, seq_len, input_dim), jnp.float32)

    out = jax.jit(decoder_forward)(params, x)
    out = jax.block_until_ready(out)
    assert out.shape == (batch, output_dim), out.shape
    assert out.dtype == jnp.float32
    assert bool(jnp.all(jnp.isfinite(out)))
    print("KERNEL_OK")
</pallas_src>

<mosaic_0001>
module attributes {stable_mosaic.version = 11 : i64} {
  func.func @_decoder_kernel(%arg0: i32, %arg1: memref<1x64x128xbf16, #tpu.memory_space<vmem>>, %arg2: memref<128x512xbf16, #tpu.memory_space<vmem>>, %arg3: memref<128x512xbf16, #tpu.memory_space<vmem>>, %arg4: memref<1x512xf32, #tpu.memory_space<vmem>>, %arg5: memref<128x512xbf16, #tpu.memory_space<vmem>>, %arg6: memref<128x512xbf16, #tpu.memory_space<vmem>>, %arg7: memref<1x512xf32, #tpu.memory_space<vmem>>, %arg8: memref<128x1024xbf16, #tpu.memory_space<vmem>>, %arg9: memref<256x1024xbf16, #tpu.memory_space<vmem>>, %arg10: memref<1x1024xf32, #tpu.memory_space<vmem>>, %arg11: memref<256x128xbf16, #tpu.memory_space<vmem>>, %arg12: memref<1x128xf32, #tpu.memory_space<vmem>>, %arg13: memref<8x128xf32, #tpu.memory_space<vmem>>) attributes {dimension_semantics = [#tpu.dimension_semantics<parallel>], iteration_bounds = array<i64: 1>, scalar_prefetch = 0 : i64, scratch_operands = 0 : i64, tpu.core_type = #tpu.core_type<tc>, window_params = [{transform_indices = @transform_0, window_bounds = array<i64: 1, 64, 128>}, {pipeline_mode = #tpu.pipeline_mode<synchronous>, transform_indices = @transform_1, window_bounds = array<i64: 128, 512>}, {pipeline_mode = #tpu.pipeline_mode<synchronous>, transform_indices = @transform_2, window_bounds = array<i64: 128, 512>}, {pipeline_mode = #tpu.pipeline_mode<synchronous>, transform_indices = @transform_3, window_bounds = array<i64: 1, 512>}, {pipeline_mode = #tpu.pipeline_mode<synchronous>, transform_indices = @transform_4, window_bounds = array<i64: 128, 512>}, {pipeline_mode = #tpu.pipeline_mode<synchronous>, transform_indices = @transform_5, window_bounds = array<i64: 128, 512>}, {pipeline_mode = #tpu.pipeline_mode<synchronous>, transform_indices = @transform_6, window_bounds = array<i64: 1, 512>}, {pipeline_mode = #tpu.pipeline_mode<synchronous>, transform_indices = @transform_7, window_bounds = array<i64: 128, 1024>}, {pipeline_mode = #tpu.pipeline_mode<synchronous>, transform_indices = @transform_8, window_bounds = array<i64: 256, 1024>}, {pipeline_mode = #tpu.pipeline_mode<synchronous>, transform_indices = @transform_9, window_bounds = array<i64: 1, 1024>}, {pipeline_mode = #tpu.pipeline_mode<synchronous>, transform_indices = @transform_10, window_bounds = array<i64: 256, 128>}, {pipeline_mode = #tpu.pipeline_mode<synchronous>, transform_indices = @transform_11, window_bounds = array<i64: 1, 128>}, {transform_indices = @transform_12, window_bounds = array<i64: 8, 128>}]} {
    %c0 = arith.constant 0 : index
    %c0_0 = arith.constant 0 : index
    %c0_1 = arith.constant 0 : index
    %0 = vector.load %arg1[%c0, %c0_0, %c0_1] : memref<1x64x128xbf16, #tpu.memory_space<vmem>>, vector<1x64x128xbf16>
    %1 = vector.shape_cast %0 : vector<1x64x128xbf16> to vector<64x128xbf16>
    %c0_2 = arith.constant 0 : index
    %c0_3 = arith.constant 0 : index
    %2 = vector.load %arg2[%c0_2, %c0_3] : memref<128x512xbf16, #tpu.memory_space<vmem>>, vector<128x512xbf16>
    %cst = arith.constant dense<0.000000e+00> : vector<64x512xf32>
    %3 = tpu.matmul %1, %2, %cst {dimension_numbers = #tpu.dot_dimension_numbers<[1], [0], [0], [1], [0, 0, 1, 1], [], []>} : vector<64x128xbf16>, vector<128x512xbf16>, vector<64x512xf32> -> vector<64x512xf32>
    %c0_4 = arith.constant 0 : index
    %c0_5 = arith.constant 0 : index
    %4 = vector.load %arg4[%c0_4, %c0_5] : memref<1x512xf32, #tpu.memory_space<vmem>>, vector<1x512xf32>
    %5 = vector.broadcast %4 : vector<1x512xf32> to vector<64x512xf32>
    %6 = arith.addf %3, %5 : vector<64x512xf32>
    %c0_6 = arith.constant 0 : index
    %c0_7 = arith.constant 0 : index
    %7 = vector.load %arg3[%c0_6, %c0_7] : memref<128x512xbf16, #tpu.memory_space<vmem>>, vector<128x512xbf16>
    %c0_8 = arith.constant 0 : index
    %c0_9 = arith.constant 0 : index
    %8 = vector.load %arg5[%c0_8, %c0_9] : memref<128x512xbf16, #tpu.memory_space<vmem>>, vector<128x512xbf16>
    %c0_10 = arith.constant 0 : index
    %c0_11 = arith.constant 0 : index
    %9 = vector.load %arg6[%c0_10, %c0_11] : memref<128x512xbf16, #tpu.memory_space<vmem>>, vector<128x512xbf16>
    %c0_12 = arith.constant 0 : index
    %c0_13 = arith.constant 0 : index
    %10 = vector.load %arg7[%c0_12, %c0_13] : memref<1x512xf32, #tpu.memory_space<vmem>>, vector<1x512xf32>
    %c0_14 = arith.constant 0 : index
    %c0_15 = arith.constant 0 : index
    %11 = vector.load %arg8[%c0_14, %c0_15] : memref<128x1024xbf16, #tpu.memory_space<vmem>>, vector<128x1024xbf16>
    %c0_16 = arith.constant 0 : index
    %c0_17 = arith.constant 0 : index
    %12 = vector.load %arg9[%c0_16, %c0_17] : memref<256x1024xbf16, #tpu.memory_space<vmem>>, vector<256x1024xbf16>
    %c0_18 = arith.constant 0 : index
    %c0_19 = arith.constant 0 : index
    %13 = vector.load %arg10[%c0_18, %c0_19] : memref<1x1024xf32, #tpu.memory_space<vmem>>, vector<1x1024xf32>
    %cst_20 = arith.constant 0.000000e+00 : f32
    %14 = vector.broadcast %cst_20 : f32 to vector<8x128xf32>
    %cst_21 = arith.constant 0.000000e+00 : f32
    %15 = vector.broadcast %cst_21 : f32 to vector<8x128xf32>
    %cst_22 = arith.constant 0.000000e+00 : f32
    %16 = vector.broadcast %cst_22 : f32 to vector<8x128xf32>
    %cst_23 = arith.constant 0.000000e+00 : f32
    %17 = vector.broadcast %cst_23 : f32 to vector<8x128xf32>
    %cst_24 = arith.constant 0.000000e+00 : f32
    %18 = vector.broadcast %cst_24 : f32 to vector<8x256xf32>
    %cst_25 = arith.constant 0.000000e+00 : f32
    %19 = vector.broadcast %cst_25 : f32 to vector<8x256xf32>
    %20 = vector.extract_strided_slice %6 {offsets = [0, 0], sizes = [8, 512], strides = [1, 1]} : vector<64x512xf32> to vector<8x512xf32>
    %21 = arith.truncf %14 : vector<8x128xf32> to vector<8x128xbf16>
    %cst_26 = arith.constant dense<0.000000e+00> : vector<8x512xf32>
    %22 = tpu.matmul %21, %7, %cst_26 {dimension_numbers = #tpu.dot_dimension_numbers<[1], [0], [0], [1], [0, 0, 1, 1], [], []>} : vector<8x128xbf16>, vector<128x512xbf16>, vector<8x512xf32> -> vector<8x512xf32>
    %23 = arith.addf %20, %22 : vector<8x512xf32>
    %24 = vector.extract_strided_slice %23 {offsets = [0, 0], sizes = [8, 384], strides = [1, 1]} : vector<8x512xf32> to vector<8x384xf32>
    %cst_27 = arith.constant 5.000000e-01 : f32
    %25 = vector.broadcast %cst_27 : f32 to vector<8x384xf32>
    %26 = arith.mulf %25, %24 : vector<8x384xf32>
    %27 = math.tanh %26 : vector<8x384xf32>
    %cst_28 = arith.constant 5.000000e-01 : f32
    %28 = vector.broadcast %cst_28 : f32 to vector<8x384xf32>
    %29 = arith.mulf %28, %27 : vector<8x384xf32>
    %cst_29 = arith.constant 5.000000e-01 : f32
    %30 = vector.broadcast %cst_29 : f32 to vector<8x384xf32>
    %31 = arith.addf %29, %30 : vector<8x384xf32>
    %32 = vector.extract_strided_slice %23 {offsets = [0, 384], sizes = [8, 128], strides = [1, 1]} : vector<8x512xf32> to vector<8x128xf32>
    %33 = math.tanh %32 : vector<8x128xf32>
    %34 = vector.extract_strided_slice %31 {offsets = [0, 128], sizes = [8, 128], strides = [1, 1]} : vector<8x384xf32> to vector<8x128xf32>
    %35 = arith.mulf %34, %15 : vector<8x128xf32>
    %36 = vector.extract_strided_slice %31 {offsets = [0, 0], sizes = [8, 128], strides = [1, 1]} : vector<8x384xf32> to vector<8x128xf32>
    %37 = arith.mulf %36, %33 : vector<8x128xf32>
    %38 = arith.addf %35, %37 : vector<8x128xf32>
    %39 = vector.extract_strided_slice %31 {offsets = [0, 256], sizes = [8, 128], strides = [1, 1]} : vector<8x384xf32> to vector<8x128xf32>
    %40 = math.tanh %38 : vector<8x128xf32>
    %41 = arith.mulf %39, %40 : vector<8x128xf32>
    %42 = vector.extract_strided_slice %6 {offsets = [8, 0], sizes = [8, 512], strides = [1, 1]} : vector<64x512xf32> to vector<8x512xf32>
    %43 = arith.truncf %41 : vector<8x128xf32> to vector<8x128xbf16>
    %cst_30 = arith.constant dense<0.000000e+00> : vector<8x512xf32>
    %44 = tpu.matmul %43, %7, %cst_30 {dimension_numbers = #tpu.dot_dimension_numbers<[1], [0], [0], [1], [0, 0, 1, 1], [], []>} : vector<8x128xbf16>, vector<128x512xbf16>, vector<8x512xf32> -> vector<8x512xf32>
    %45 = arith.addf %42, %44 : vector<8x512xf32>
    %46 = vector.extract_strided_slice %45 {offsets = [0, 0], sizes = [8, 384], strides = [1, 1]} : vector<8x512xf32> to vector<8x384xf32>
    %cst_31 = arith.constant 5.000000e-01 : f32
    %47 = vector.broadcast %cst_31 : f32 to vector<8x384xf32>
    %48 = arith.mulf %47, %46 : vector<8x384xf32>
    %49 = math.tanh %48 : vector<8x384xf32>
    %cst_32 = arith.constant 5.000000e-01 : f32
    %50 = vector.broadcast %cst_32 : f32 to vector<8x384xf32>
    %51 = arith.mulf %50, %49 : vector<8x384xf32>
    %cst_33 = arith.constant 5.000000e-01 : f32
    %52 = vector.broadcast %cst_33 : f32 to vector<8x384xf32>
    %53 = arith.addf %51, %52 : vector<8x384xf32>
    %54 = vector.extract_strided_slice %45 {offsets = [0, 384], sizes = [8, 128], strides = [1, 1]} : vector<8x512xf32> to vector<8x128xf32>
    %55 = math.tanh %54 : vector<8x128xf32>
    %56 = vector.extract_strided_slice %53 {offsets = [0, 128], sizes = [8, 128], strides = [1, 1]} : vector<8x384xf32> to vector<8x128xf32>
    %57 = arith.mulf %56, %38 : vector<8x128xf32>
    %58 = vector.extract_strided_slice %53 {offsets = [0, 0], sizes = [8, 128], strides = [1, 1]} : vector<8x384xf32> to vector<8x128xf32>
    %59 = arith.mulf %58, %55 : vector<8x128xf32>
    %60 = arith.addf %57, %59 : vector<8x128xf32>
    %61 = vector.extract_strided_slice %53 {offsets = [0, 256], sizes = [8, 128], strides = [1, 1]} : vector<8x384xf32> to vector<8x128xf32>
    %62 = math.tanh %60 : vector<8x128xf32>
    %63 = arith.mulf %61, %62 : vector<8x128xf32>
    %64 = arith.truncf %41 : vector<8x128xf32> to vector<8x128xbf16>
    %cst_34 = arith.constant dense<0.000000e+00> : vector<8x512xf32>
    %65 = tpu.matmul %64, %8, %cst_34 {dimension_numbers = #tpu.dot_dimension_numbers<[1], [0], [0], [1], [0, 0, 1, 1], [], []>} : vector<8x128xbf16>, vector<128x512xbf16>, vector<8x512xf32> -> vector<8x512xf32>
    %66 = arith.truncf %16 : vector<8x128xf32> to vector<8x128xbf16>
    %cst_35 = arith.constant dense<0.000000e+00> : vector<8x512xf32>
    %67 = tpu.matmul %66, %9, %cst_35 {dimension_numbers = #tpu.dot_dimension_numbers<[1], [0], [0], [1], [0, 0, 1, 1], [], []>} : vector<8x128xbf16>, vector<128x512xbf16>, vector<8x512xf32> -> vector<8x512xf32>
    %68 = arith.addf %65, %67 : vector<8x512xf32>
    %69 = vector.broadcast %10 : vector<1x512xf32> to vector<8x512xf32>
    %70 = arith.addf %68, %69 : vector<8x512xf32>
    %71 = vector.extract_strided_slice %70 {offsets = [0, 0], sizes = [8, 384], strides = [1, 1]} : vector<8x512xf32> to vector<8x384xf32>
    %cst_36 = arith.constant 5.000000e-01 : f32
    %72 = vector.broadcast %cst_36 : f32 to vector<8x384xf32>
    %73 = arith.mulf %72, %71 : vector<8x384xf32>
    %74 = math.tanh %73 : vector<8x384xf32>
    %cst_37 = arith.constant 5.000000e-01 : f32
    %75 = vector.broadcast %cst_37 : f32 to vector<8x384xf32>
    %76 = arith.mulf %75, %74 : vector<8x384xf32>
    %cst_38 = arith.constant 5.000000e-01 : f32
    %77 = vector.broadcast %cst_38 : f32 to vector<8x384xf32>
    %78 = arith.addf %76, %77 : vector<8x384xf32>
    %79 = vector.extract_strided_slice %70 {offsets = [0, 384], sizes = [8, 128], strides = [1, 1]} : vector<8x512xf32> to vector<8x128xf32>
    %80 = math.tanh %79 : vector<8x128xf32>
    %81 = vector.extract_strided_slice %78 {offsets = [0, 128], sizes = [8, 128], strides = [1, 1]} : vector<8x384xf32> to vector<8x128xf32>
    %82 = arith.mulf %81, %17 : vector<8x128xf32>
    %83 = vector.extract_strided_slice %78 {offsets = [0, 0], sizes = [8, 128], strides = [1, 1]} : vector<8x384xf32> to vector<8x128xf32>
    %84 = arith.mulf %83, %80 : vector<8x128xf32>
    %85 = arith.addf %82, %84 : vector<8x128xf32>
    %86 = vector.extract_strided_slice %78 {offsets = [0, 256], sizes = [8, 128], strides = [1, 1]} : vector<8x384xf32> to vector<8x128xf32>
    %87 = math.tanh %85 : vector<8x128xf32>
    %88 = arith.mulf %86, %87 : vector<8x128xf32>
    %89 = vector.extract_strided_slice %6 {offsets = [16, 0], sizes = [8, 512], strides = [1, 1]} : vector<64x512xf32> to vector<8x512xf32>
    %90 = arith.truncf %63 : vector<8x128xf32> to vector<8x128xbf16>
    %cst_39 = arith.constant dense<0.000000e+00> : vector<8x512xf32>
    %91 = tpu.matmul %90, %7, %cst_39 {dimension_numbers = #tpu.dot_dimension_numbers<[1], [0], [0], [1], [0, 0, 1, 1], [], []>} : vector<8x128xbf16>, vector<128x512xbf16>, vector<8x512xf32> -> vector<8x512xf32>
    %92 = arith.addf %89, %91 : vector<8x512xf32>
    %93 = vector.extract_strided_slice %92 {offsets = [0, 0], sizes = [8, 384], strides = [1, 1]} : vector<8x512xf32> to vector<8x384xf32>
    %cst_40 = arith.constant 5.000000e-01 : f32
    %94 = vector.broadcast %cst_40 : f32 to vector<8x384xf32>
    %95 = arith.mulf %94, %93 : vector<8x384xf32>
    %96 = math.tanh %95 : vector<8x384xf32>
    %cst_41 = arith.constant 5.000000e-01 : f32
    %97 = vector.broadcast %cst_41 : f32 to vector<8x384xf32>
    %98 = arith.mulf %97, %96 : vector<8x384xf32>
    %cst_42 = arith.constant 5.000000e-01 : f32
    %99 = vector.broadcast %cst_42 : f32 to vector<8x384xf32>
    %100 = arith.addf %98, %99 : vector<8x384xf32>
    %101 = vector.extract_strided_slice %92 {offsets = [0, 384], sizes = [8, 128], strides = [1, 1]} : vector<8x512xf32> to vector<8x128xf32>
    %102 = math.tanh %101 : vector<8x128xf32>
    %103 = vector.extract_strided_slice %100 {offsets = [0, 128], sizes = [8, 128], strides = [1, 1]} : vector<8x384xf32> to vector<8x128xf32>
    %104 = arith.mulf %103, %60 : vector<8x128xf32>
    %105 = vector.extract_strided_slice %100 {offsets = [0, 0], sizes = [8, 128], strides = [1, 1]} : vector<8x384xf32> to vector<8x128xf32>
    %106 = arith.mulf %105, %102 : vector<8x128xf32>
    %107 = arith.addf %104, %106 : vector<8x128xf32>
    %108 = vector.extract_strided_slice %100 {offsets = [0, 256], sizes = [8, 128], strides = [1, 1]} : vector<8x384xf32> to vector<8x128xf32>
    %109 = math.tanh %107 : vector<8x128xf32>
    %110 = arith.mulf %108, %109 : vector<8x128xf32>
    %111 = arith.truncf %63 : vector<8x128xf32> to vector<8x128xbf16>
    %cst_43 = arith.constant dense<0.000000e+00> : vector<8x512xf32>
    %112 = tpu.matmul %111, %8, %cst_43 {dimension_numbers = #tpu.dot_dimension_numbers<[1], [0], [0], [1], [0, 0, 1, 1], [], []>} : vector<8x128xbf16>, vector<128x512xbf16>, vector<8x512xf32> -> vector<8x512xf32>
    %113 = arith.truncf %88 : vector<8x128xf32> to vector<8x128xbf16>
    %cst_44 = arith.constant dense<0.000000e+00> : vector<8x512xf32>
    %114 = tpu.matmul %113, %9, %cst_44 {dimension_numbers = #tpu.dot_dimension_numbers<[1], [0], [0], [1], [0, 0, 1, 1], [], []>} : vector<8x128xbf16>, vector<128x512xbf16>, vector<8x512xf32> -> vector<8x512xf32>
    %115 = arith.addf %112, %114 : vector<8x512xf32>
    %116 = vector.broadcast %10 : vector<1x512xf32> to vector<8x512xf32>
    %117 = arith.addf %115, %116 : vector<8x512xf32>
    %118 = vector.extract_strided_slice %117 {offsets = [0, 0], sizes = [8, 384], strides = [1, 1]} : vector<8x512xf32> to vector<8x384xf32>
    %cst_45 = arith.constant 5.000000e-01 : f32
    %119 = vector.broadcast %cst_45 : f32 to vector<8x384xf32>
    %120 = arith.mulf %119, %118 : vector<8x384xf32>
    %121 = math.tanh %120 : vector<8x384xf32>
    %cst_46 = arith.constant 5.000000e-01 : f32
    %122 = vector.broadcast %cst_46 : f32 to vector<8x384xf32>
    %123 = arith.mulf %122, %121 : vector<8x384xf32>
    %cst_47 = arith.constant 5.000000e-01 : f32
    %124 = vector.broadcast %cst_47 : f32 to vector<8x384xf32>
    %125 = arith.addf %123, %124 : vector<8x384xf32>
    %126 = vector.extract_strided_slice %117 {offsets = [0, 384], sizes = [8, 128], strides = [1, 1]} : vector<8x512xf32> to vector<8x128xf32>
    %127 = math.tanh %126 : vector<8x128xf32>
    %128 = vector.extract_strided_slice %125 {offsets = [0, 128], sizes = [8, 128], strides = [1, 1]} : vector<8x384xf32> to vector<8x128xf32>
    %129 = arith.mulf %128, %85 : vector<8x128xf32>
    %130 = vector.extract_strided_slice %125 {offsets = [0, 0], sizes = [8, 128], strides = [1, 1]} : vector<8x384xf32> to vector<8x128xf32>
    %131 = arith.mulf %130, %127 : vector<8x128xf32>
    %132 = arith.addf %129, %131 : vector<8x128xf32>
    %133 = vector.extract_strided_slice %125 {offsets = [0, 256], sizes = [8, 128], strides = [1, 1]} : vector<8x384xf32> to vector<8x128xf32>
    %134 = math.tanh %132 : vector<8x128xf32>
    %135 = arith.mulf %133, %134 : vector<8x128xf32>
    %136 = arith.truncf %88 : vector<8x128xf32> to vector<8x128xbf16>
    %cst_48 = arith.constant dense<0.000000e+00> : vector<8x1024xf32>
    %137 = tpu.matmul %136, %11, %cst_48 {dimension_numbers = #tpu.dot_dimension_numbers<[1], [0], [0], [1], [0, 0, 1, 1], [], []>} : vector<8x128xbf16>, vector<128x1024xbf16>, vector<8x1024xf32> -> vector<8x1024xf32>
    %138 = arith.truncf %18 : vector<8x256xf32> to vector<8x256xbf16>
    %cst_49 = arith.constant dense<0.000000e+00> : vector<8x1024xf32>
    %139 = tpu.matmul %138, %12, %cst_49 {dimension_numbers = #tpu.dot_dimension_numbers<[1], [0], [0], [1], [0, 0, 1, 1], [], []>} : vector<8x256xbf16>, vector<256x1024xbf16>, vector<8x1024xf32> -> vector<8x1024xf32>
    %140 = arith.addf %137, %139 : vector<8x1024xf32>
    %141 = vector.broadcast %13 : vector<1x1024xf32> to vector<8x1024xf32>
    %142 = arith.addf %140, %141 : vector<8x1024xf32>
    %143 = vector.extract_strided_slice %142 {offsets = [0, 0], sizes = [8, 768], strides = [1, 1]} : vector<8x1024xf32> to vector<8x768xf32>
    %cst_50 = arith.constant 5.000000e-01 : f32
    %144 = vector.broadcast %cst_50 : f32 to vector<8x768xf32>
    %145 = arith.mulf %144, %143 : vector<8x768xf32>
    %146 = math.tanh %145 : vector<8x768xf32>
    %cst_51 = arith.constant 5.000000e-01 : f32
    %147 = vector.broadcast %cst_51 : f32 to vector<8x768xf32>
    %148 = arith.mulf %147, %146 : vector<8x768xf32>
    %cst_52 = arith.constant 5.000000e-01 : f32
    %149 = vector.broadcast %cst_52 : f32 to vector<8x768xf32>
    %150 = arith.addf %148, %149 : vector<8x768xf32>
    %151 = vector.extract_strided_slice %142 {offsets = [0, 768], sizes = [8, 256], strides = [1, 1]} : vector<8x1024xf32> to vector<8x256xf32>
    %152 = math.tanh %151 : vector<8x256xf32>
    %153 = vector.extract_strided_slice %150 {offsets = [0, 256], sizes = [8, 256], strides = [1, 1]} : vector<8x768xf32> to vector<8x256xf32>
    %154 = arith.mulf %153, %19 : vector<8x256xf32>
    %155 = vector.extract_strided_slice %150 {offsets = [0, 0], sizes = [8, 256], strides = [1, 1]} : vector<8x768xf32> to vector<8x256xf32>
    %156 = arith.mulf %155, %152 : vector<8x256xf32>
    %157 = arith.addf %154, %156 : vector<8x256xf32>
    %158 = vector.extract_strided_slice %150 {offsets = [0, 512], sizes = [8, 256], strides = [1, 1]} : vector<8x768xf32> to vector<8x256xf32>
    %159 = math.tanh %157 : vector<8x256xf32>
    %160 = arith.mulf %158, %159 : vector<8x256xf32>
    %161 = vector.extract_strided_slice %6 {offsets = [24, 0], sizes = [8, 512], strides = [1, 1]} : vector<64x512xf32> to vector<8x512xf32>
    %162 = arith.truncf %110 : vector<8x128xf32> to vector<8x128xbf16>
    %cst_53 = arith.constant dense<0.000000e+00> : vector<8x512xf32>
    %163 = tpu.matmul %162, %7, %cst_53 {dimension_numbers = #tpu.dot_dimension_numbers<[1], [0], [0], [1], [0, 0, 1, 1], [], []>} : vector<8x128xbf16>, vector<128x512xbf16>, vector<8x512xf32> -> vector<8x512xf32>
    %164 = arith.addf %161, %163 : vector<8x512xf32>
    %165 = vector.extract_strided_slice %164 {offsets = [0, 0], sizes = [8, 384], strides = [1, 1]} : vector<8x512xf32> to vector<8x384xf32>
    %cst_54 = arith.constant 5.000000e-01 : f32
    %166 = vector.broadcast %cst_54 : f32 to vector<8x384xf32>
    %167 = arith.mulf %166, %165 : vector<8x384xf32>
    %168 = math.tanh %167 : vector<8x384xf32>
    %cst_55 = arith.constant 5.000000e-01 : f32
    %169 = vector.broadcast %cst_55 : f32 to vector<8x384xf32>
    %170 = arith.mulf %169, %168 : vector<8x384xf32>
    %cst_56 = arith.constant 5.000000e-01 : f32
    %171 = vector.broadcast %cst_56 : f32 to vector<8x384xf32>
    %172 = arith.addf %170, %171 : vector<8x384xf32>
    %173 = vector.extract_strided_slice %164 {offsets = [0, 384], sizes = [8, 128], strides = [1, 1]} : vector<8x512xf32> to vector<8x128xf32>
    %174 = math.tanh %173 : vector<8x128xf32>
    %175 = vector.extract_strided_slice %172 {offsets = [0, 128], sizes = [8, 128], strides = [1, 1]} : vector<8x384xf32> to vector<8x128xf32>
    %176 = arith.mulf %175, %107 : vector<8x128xf32>
    %177 = vector.extract_strided_slice %172 {offsets = [0, 0], sizes = [8, 128], strides = [1, 1]} : vector<8x384xf32> to vector<8x128xf32>
    %178 = arith.mulf %177, %174 : vector<8x128xf32>
    %179 = arith.addf %176, %178 : vector<8x128xf32>
    %180 = vector.extract_strided_slice %172 {offsets = [0, 256], sizes = [8, 128], strides = [1, 1]} : vector<8x384xf32> to vector<8x128xf32>
    %181 = math.tanh %179 : vector<8x128xf32>
    %182 = arith.mulf %180, %181 : vector<8x128xf32>
    %183 = arith.truncf %110 : vector<8x128xf32> to vector<8x128xbf16>
    %cst_57 = arith.constant dense<0.000000e+00> : vector<8x512xf32>
    %184 = tpu.matmul %183, %8, %cst_57 {dimension_numbers = #tpu.dot_dimension_numbers<[1], [0], [0], [1], [0, 0, 1, 1], [], []>} : vector<8x128xbf16>, vector<128x512xbf16>, vector<8x512xf32> -> vector<8x512xf32>
    %185 = arith.truncf %135 : vector<8x128xf32> to vector<8x128xbf16>
    %cst_58 = arith.constant dense<0.000000e+00> : vector<8x512xf32>
    %186 = tpu.matmul %185, %9, %cst_58 {dimension_numbers = #tpu.dot_dimension_numbers<[1], [0], [0], [1], [0, 0, 1, 1], [], []>} : vector<8x128xbf16>, vector<128x512xbf16>, vector<8x512xf32> -> vector<8x512xf32>
    %187 = arith.addf %184, %186 : vector<8x512xf32>
    %188 = vector.broadcast %10 : vector<1x512xf32> to vector<8x512xf32>
    %189 = arith.addf %187, %188 : vector<8x512xf32>
    %190 = vector.extract_strided_slice %189 {offsets = [0, 0], sizes = [8, 384], strides = [1, 1]} : vector<8x512xf32> to vector<8x384xf32>
    %cst_59 = arith.constant 5.000000e-01 : f32
    %191 = vector.broadcast %cst_59 : f32 to vector<8x384xf32>
    %192 = arith.mulf %191, %190 : vector<8x384xf32>
    %193 = math.tanh %192 : vector<8x384xf32>
    %cst_60 = arith.constant 5.000000e-01 : f32
    %194 = vector.broadcast %cst_60 : f32 to vector<8x384xf32>
    %195 = arith.mulf %194, %193 : vector<8x384xf32>
    %cst_61 = arith.constant 5.000000e-01 : f32
    %196 = vector.broadcast %cst_61 : f32 to vector<8x384xf32>
    %197 = arith.addf %195, %196 : vector<8x384xf32>
    %198 = vector.extract_strided_slice %189 {offsets = [0, 384], sizes = [8, 128], strides = [1, 1]} : vector<8x512xf32> to vector<8x128xf32>
    %199 = math.tanh %198 : vector<8x128xf32>
    %200 = vector.extract_strided_slice %197 {offsets = [0, 128], sizes = [8, 128], strides = [1, 1]} : vector<8x384xf32> to vector<8x128xf32>
    %201 = arith.mulf %200, %132 : vector<8x128xf32>
    %202 = vector.extract_strided_slice %197 {offsets = [0, 0], sizes = [8, 128], strides = [1, 1]} : vector<8x384xf32> to vector<8x128xf32>
    %203 = arith.mulf %202, %199 : vector<8x128xf32>
    %204 = arith.addf %201, %203 : vector<8x128xf32>
    %205 = vector.extract_strided_slice %197 {offsets = [0, 256], sizes = [8, 128], strides = [1, 1]} : vector<8x384xf32> to vector<8x128xf32>
    %206 = math.tanh %204 : vector<8x128xf32>
    %207 = arith.mulf %205, %206 : vector<8x128xf32>
    %208 = arith.truncf %135 : vector<8x128xf32> to vector<8x128xbf16>
    %cst_62 = arith.constant dense<0.000000e+00> : vector<8x1024xf32>
    %209 = tpu.matmul %208, %11, %cst_62 {dimension_numbers = #tpu.dot_dimension_numbers<[1], [0], [0], [1], [0, 0, 1, 1], [], []>} : vector<8x128xbf16>, vector<128x1024xbf16>, vector<8x1024xf32> -> vector<8x1024xf32>
    %210 = arith.truncf %160 : vector<8x256xf32> to vector<8x256xbf16>
    %cst_63 = arith.constant dense<0.000000e+00> : vector<8x1024xf32>
    %211 = tpu.matmul %210, %12, %cst_63 {dimension_numbers = #tpu.dot_dimension_numbers<[1], [0], [0], [1], [0, 0, 1, 1], [], []>} : vector<8x256xbf16>, vector<256x1024xbf16>, vector<8x1024xf32> -> vector<8x1024xf32>
    %212 = arith.addf %209, %211 : vector<8x1024xf32>
    %213 = vector.broadcast %13 : vector<1x1024xf32> to vector<8x1024xf32>
    %214 = arith.addf %212, %213 : vector<8x1024xf32>
    %215 = vector.extract_strided_slice %214 {offsets = [0, 0], sizes = [8, 768], strides = [1, 1]} : vector<8x1024xf32> to vector<8x768xf32>
    %cst_64 = arith.constant 5.000000e-01 : f32
    %216 = vector.broadcast %cst_64 : f32 to vector<8x768xf32>
    %217 = arith.mulf %216, %215 : vector<8x768xf32>
    %218 = math.tanh %217 : vector<8x768xf32>
    %cst_65 = arith.constant 5.000000e-01 : f32
    %219 = vector.broadcast %cst_65 : f32 to vector<8x768xf32>
    %220 = arith.mulf %219, %218 : vector<8x768xf32>
    %cst_66 = arith.constant 5.000000e-01 : f32
    %221 = vector.broadcast %cst_66 : f32 to vector<8x768xf32>
    %222 = arith.addf %220, %221 : vector<8x768xf32>
    %223 = vector.extract_strided_slice %214 {offsets = [0, 768], sizes = [8, 256], strides = [1, 1]} : vector<8x1024xf32> to vector<8x256xf32>
    %224 = math.tanh %223 : vector<8x256xf32>
    %225 = vector.extract_strided_slice %222 {offsets = [0, 256], sizes = [8, 256], strides = [1, 1]} : vector<8x768xf32> to vector<8x256xf32>
    %226 = arith.mulf %225, %157 : vector<8x256xf32>
    %227 = vector.extract_strided_slice %222 {offsets = [0, 0], sizes = [8, 256], strides = [1, 1]} : vector<8x768xf32> to vector<8x256xf32>
    %228 = arith.mulf %227, %224 : vector<8x256xf32>
    %229 = arith.addf %226, %228 : vector<8x256xf32>
    %230 = vector.extract_strided_slice %222 {offsets = [0, 512], sizes = [8, 256], strides = [1, 1]} : vector<8x768xf32> to vector<8x256xf32>
    %231 = math.tanh %229 : vector<8x256xf32>
    %232 = arith.mulf %230, %231 : vector<8x256xf32>
    %233 = vector.extract_strided_slice %6 {offsets = [32, 0], sizes = [8, 512], strides = [1, 1]} : vector<64x512xf32> to vector<8x512xf32>
    %234 = arith.truncf %182 : vector<8x128xf32> to vector<8x128xbf16>
    %cst_67 = arith.constant dense<0.000000e+00> : vector<8x512xf32>
    %235 = tpu.matmul %234, %7, %cst_67 {dimension_numbers = #tpu.dot_dimension_numbers<[1], [0], [0], [1], [0, 0, 1, 1], [], []>} : vector<8x128xbf16>, vector<128x512xbf16>, vector<8x512xf32> -> vector<8x512xf32>
    %236 = arith.addf %233, %235 : vector<8x512xf32>
    %237 = vector.extract_strided_slice %236 {offsets = [0, 0], sizes = [8, 384], strides = [1, 1]} : vector<8x512xf32> to vector<8x384xf32>
    %cst_68 = arith.constant 5.000000e-01 : f32
    %238 = vector.broadcast %cst_68 : f32 to vector<8x384xf32>
    %239 = arith.mulf %238, %237 : vector<8x384xf32>
    %240 = math.tanh %239 : vector<8x384xf32>
    %cst_69 = arith.constant 5.000000e-01 : f32
    %241 = vector.broadcast %cst_69 : f32 to vector<8x384xf32>
    %242 = arith.mulf %241, %240 : vector<8x384xf32>
    %cst_70 = arith.constant 5.000000e-01 : f32
    %243 = vector.broadcast %cst_70 : f32 to vector<8x384xf32>
    %244 = arith.addf %242, %243 : vector<8x384xf32>
    %245 = vector.extract_strided_slice %236 {offsets = [0, 384], sizes = [8, 128], strides = [1, 1]} : vector<8x512xf32> to vector<8x128xf32>
    %246 = math.tanh %245 : vector<8x128xf32>
    %247 = vector.extract_strided_slice %244 {offsets = [0, 128], sizes = [8, 128], strides = [1, 1]} : vector<8x384xf32> to vector<8x128xf32>
    %248 = arith.mulf %247, %179 : vector<8x128xf32>
    %249 = vector.extract_strided_slice %244 {offsets = [0, 0], sizes = [8, 128], strides = [1, 1]} : vector<8x384xf32> to vector<8x128xf32>
    %250 = arith.mulf %249, %246 : vector<8x128xf32>
    %251 = arith.addf %248, %250 : vector<8x128xf32>
    %252 = vector.extract_strided_slice %244 {offsets = [0, 256], sizes = [8, 128], strides = [1, 1]} : vector<8x384xf32> to vector<8x128xf32>
    %253 = math.tanh %251 : vector<8x128xf32>
    %254 = arith.mulf %252, %253 : vector<8x128xf32>
    %255 = arith.truncf %182 : vector<8x128xf32> to vector<8x128xbf16>
    %cst_71 = arith.constant dense<0.000000e+00> : vector<8x512xf32>
    %256 = tpu.matmul %255, %8, %cst_71 {dimension_numbers = #tpu.dot_dimension_numbers<[1], [0], [0], [1], [0, 0, 1, 1], [], []>} : vector<8x128xbf16>, vector<128x512xbf16>, vector<8x512xf32> -> vector<8x512xf32>
    %257 = arith.truncf %207 : vector<8x128xf32> to vector<8x128xbf16>
    %cst_72 = arith.constant dense<0.000000e+00> : vector<8x512xf32>
    %258 = tpu.matmul %257, %9, %cst_72 {dimension_numbers = #tpu.dot_dimension_numbers<[1], [0], [0], [1], [0, 0, 1, 1], [], []>} : vector<8x128xbf16>, vector<128x512xbf16>, vector<8x512xf32> -> vector<8x512xf32>
    %259 = arith.addf %256, %258 : vector<8x512xf32>
    %260 = vector.broadcast %10 : vector<1x512xf32> to vector<8x512xf32>
    %261 = arith.addf %259, %260 : vector<8x512xf32>
    %262 = vector.extract_strided_slice %261 {offsets = [0, 0], sizes = [8, 384], strides = [1, 1]} : vector<8x512xf32> to vector<8x384xf32>
    %cst_73 = arith.constant 5.000000e-01 : f32
    %263 = vector.broadcast %cst_73 : f32 to vector<8x384xf32>
    %264 = arith.mulf %263, %262 : vector<8x384xf32>
    %265 = math.tanh %264 : vector<8x384xf32>
    %cst_74 = arith.constant 5.000000e-01 : f32
    %266 = vector.broadcast %cst_74 : f32 to vector<8x384xf32>
    %267 = arith.mulf %266, %265 : vector<8x384xf32>
    %cst_75 = arith.constant 5.000000e-01 : f32
    %268 = vector.broadcast %cst_75 : f32 to vector<8x384xf32>
    %269 = arith.addf %267, %268 : vector<8x384xf32>
    %270 = vector.extract_strided_slice %261 {offsets = [0, 384], sizes = [8, 128], strides = [1, 1]} : vector<8x512xf32> to vector<8x128xf32>
    %271 = math.tanh %270 : vector<8x128xf32>
    %272 = vector.extract_strided_slice %269 {offsets = [0, 128], sizes = [8, 128], strides = [1, 1]} : vector<8x384xf32> to vector<8x128xf32>
    %273 = arith.mulf %272, %204 : vector<8x128xf32>
    %274 = vector.extract_strided_slice %269 {offsets = [0, 0], sizes = [8, 128], strides = [1, 1]} : vector<8x384xf32> to vector<8x128xf32>
    %275 = arith.mulf %274, %271 : vector<8x128xf32>
    %276 = arith.addf %273, %275 : vector<8x128xf32>
    %277 = vector.extract_strided_slice %269 {offsets = [0, 256], sizes = [8, 128], strides = [1, 1]} : vector<8x384xf32> to vector<8x128xf32>
    %278 = math.tanh %276 : vector<8x128xf32>
    %279 = arith.mulf %277, %278 : vector<8x128xf32>
    %280 = arith.truncf %207 : vector<8x128xf32> to vector<8x128xbf16>
    %cst_76 = arith.constant dense<0.000000e+00> : vector<8x1024xf32>
    %281 = tpu.matmul %280, %11, %cst_76 {dimension_numbers = #tpu.dot_dimension_numbers<[1], [0], [0], [1], [0, 0, 1, 1], [], []>} : vector<8x128xbf16>, vector<128x1024xbf16>, vector<8x1024xf32> -> vector<8x1024xf32>
    %282 = arith.truncf %232 : vector<8x256xf32> to vector<8x256xbf16>
    %cst_77 = arith.constant dense<0.000000e+00> : vector<8x1024xf32>
    %283 = tpu.matmul %282, %12, %cst_77 {dimension_numbers = #tpu.dot_dimension_numbers<[1], [0], [0], [1], [0, 0, 1, 1], [], []>} : vector<8x256xbf16>, vector<256x1024xbf16>, vector<8x1024xf32> -> vector<8x1024xf32>
    %284 = arith.addf %281, %283 : vector<8x1024xf32>
    %285 = vector.broadcast %13 : vector<1x1024xf32> to vector<8x1024xf32>
    %286 = arith.addf %284, %285 : vector<8x1024xf32>
    %287 = vector.extract_strided_slice %286 {offsets = [0, 0], sizes = [8, 768], strides = [1, 1]} : vector<8x1024xf32> to vector<8x768xf32>
    %cst_78 = arith.constant 5.000000e-01 : f32
    %288 = vector.broadcast %cst_78 : f32 to vector<8x768xf32>
    %289 = arith.mulf %288, %287 : vector<8x768xf32>
    %290 = math.tanh %289 : vector<8x768xf32>
    %cst_79 = arith.constant 5.000000e-01 : f32
    %291 = vector.broadcast %cst_79 : f32 to vector<8x768xf32>
    %292 = arith.mulf %291, %290 : vector<8x768xf32>
    %cst_80 = arith.constant 5.000000e-01 : f32
    %293 = vector.broadcast %cst_80 : f32 to vector<8x768xf32>
    %294 = arith.addf %292, %293 : vector<8x768xf32>
    %295 = vector.extract_strided_slice %286 {offsets = [0, 768], sizes = [8, 256], strides = [1, 1]} : vector<8x1024xf32> to vector<8x256xf32>
    %296 = math.tanh %295 : vector<8x256xf32>
    %297 = vector.extract_strided_slice %294 {offsets = [0, 256], sizes = [8, 256], strides = [1, 1]} : vector<8x768xf32> to vector<8x256xf32>
    %298 = arith.mulf %297, %229 : vector<8x256xf32>
    %299 = vector.extract_strided_slice %294 {offsets = [0, 0], sizes = [8, 256], strides = [1, 1]} : vector<8x768xf32> to vector<8x256xf32>
    %300 = arith.mulf %299, %296 : vector<8x256xf32>
    %301 = arith.addf %298, %300 : vector<8x256xf32>
    %302 = vector.extract_strided_slice %294 {offsets = [0, 512], sizes = [8, 256], strides = [1, 1]} : vector<8x768xf32> to vector<8x256xf32>
    %303 = math.tanh %301 : vector<8x256xf32>
    %304 = arith.mulf %302, %303 : vector<8x256xf32>
    %305 = vector.extract_strided_slice %6 {offsets = [40, 0], sizes = [8, 512], strides = [1, 1]} : vector<64x512xf32> to vector<8x512xf32>
    %306 = arith.truncf %254 : vector<8x128xf32> to vector<8x128xbf16>
    %cst_81 = arith.constant dense<0.000000e+00> : vector<8x512xf32>
    %307 = tpu.matmul %306, %7, %cst_81 {dimension_numbers = #tpu.dot_dimension_numbers<[1], [0], [0], [1], [0, 0, 1, 1], [], []>} : vector<8x128xbf16>, vector<128x512xbf16>, vector<8x512xf32> -> vector<8x512xf32>
    %308 = arith.addf %305, %307 : vector<8x512xf32>
    %309 = vector.extract_strided_slice %308 {offsets = [0, 0], sizes = [8, 384], strides = [1, 1]} : vector<8x512xf32> to vector<8x384xf32>
    %cst_82 = arith.constant 5.000000e-01 : f32
    %310 = vector.broadcast %cst_82 : f32 to vector<8x384xf32>
    %311 = arith.mulf %310, %309 : vector<8x384xf32>
    %312 = math.tanh %311 : vector<8x384xf32>
    %cst_83 = arith.constant 5.000000e-01 : f32
    %313 = vector.broadcast %cst_83 : f32 to vector<8x384xf32>
    %314 = arith.mulf %313, %312 : vector<8x384xf32>
    %cst_84 = arith.constant 5.000000e-01 : f32
    %315 = vector.broadcast %cst_84 : f32 to vector<8x384xf32>
    %316 = arith.addf %314, %315 : vector<8x384xf32>
    %317 = vector.extract_strided_slice %308 {offsets = [0, 384], sizes = [8, 128], strides = [1, 1]} : vector<8x512xf32> to vector<8x128xf32>
    %318 = math.tanh %317 : vector<8x128xf32>
    %319 = vector.extract_strided_slice %316 {offsets = [0, 128], sizes = [8, 128], strides = [1, 1]} : vector<8x384xf32> to vector<8x128xf32>
    %320 = arith.mulf %319, %251 : vector<8x128xf32>
    %321 = vector.extract_strided_slice %316 {offsets = [0, 0], sizes = [8, 128], strides = [1, 1]} : vector<8x384xf32> to vector<8x128xf32>
    %322 = arith.mulf %321, %318 : vector<8x128xf32>
    %323 = arith.addf %320, %322 : vector<8x128xf32>
    %324 = vector.extract_strided_slice %316 {offsets = [0, 256], sizes = [8, 128], strides = [1, 1]} : vector<8x384xf32> to vector<8x128xf32>
    %325 = math.tanh %323 : vector<8x128xf32>
    %326 = arith.mulf %324, %325 : vector<8x128xf32>
    %327 = arith.truncf %254 : vector<8x128xf32> to vector<8x128xbf16>
    %cst_85 = arith.constant dense<0.000000e+00> : vector<8x512xf32>
    %328 = tpu.matmul %327, %8, %cst_85 {dimension_numbers = #tpu.dot_dimension_numbers<[1], [0], [0], [1], [0, 0, 1, 1], [], []>} : vector<8x128xbf16>, vector<128x512xbf16>, vector<8x512xf32> -> vector<8x512xf32>
    %329 = arith.truncf %279 : vector<8x128xf32> to vector<8x128xbf16>
    %cst_86 = arith.constant dense<0.000000e+00> : vector<8x512xf32>
    %330 = tpu.matmul %329, %9, %cst_86 {dimension_numbers = #tpu.dot_dimension_numbers<[1], [0], [0], [1], [0, 0, 1, 1], [], []>} : vector<8x128xbf16>, vector<128x512xbf16>, vector<8x512xf32> -> vector<8x512xf32>
    %331 = arith.addf %328, %330 : vector<8x512xf32>
    %332 = vector.broadcast %10 : vector<1x512xf32> to vector<8x512xf32>
    %333 = arith.addf %331, %332 : vector<8x512xf32>
    %334 = vector.extract_strided_slice %333 {offsets = [0, 0], sizes = [8, 384], strides = [1, 1]} : vector<8x512xf32> to vector<8x384xf32>
    %cst_87 = arith.constant 5.000000e-01 : f32
    %335 = vector.broadcast %cst_87 : f32 to vector<8x384xf32>
    %336 = arith.mulf %335, %334 : vector<8x384xf32>
    %337 = math.tanh %336 : vector<8x384xf32>
    %cst_88 = arith.constant 5.000000e-01 : f32
    %338 = vector.broadcast %cst_88 : f32 to vector<8x384xf32>
    %339 = arith.mulf %338, %337 : vector<8x384xf32>
    %cst_89 = arith.constant 5.000000e-01 : f32
    %340 = vector.broadcast %cst_89 : f32 to vector<8x384xf32>
    %341 = arith.addf %339, %340 : vector<8x384xf32>
    %342 = vector.extract_strided_slice %333 {offsets = [0, 384], sizes = [8, 128], strides = [1, 1]} : vector<8x512xf32> to vector<8x128xf32>
    %343 = math.tanh %342 : vector<8x128xf32>
    %344 = vector.extract_strided_slice %341 {offsets = [0, 128], sizes = [8, 128], strides = [1, 1]} : vector<8x384xf32> to vector<8x128xf32>
    %345 = arith.mulf %344, %276 : vector<8x128xf32>
    %346 = vector.extract_strided_slice %341 {offsets = [0, 0], sizes = [8, 128], strides = [1, 1]} : vector<8x384xf32> to vector<8x128xf32>
    %347 = arith.mulf %346, %343 : vector<8x128xf32>
    %348 = arith.addf %345, %347 : vector<8x128xf32>
    %349 = vector.extract_strided_slice %341 {offsets = [0, 256], sizes = [8, 128], strides = [1, 1]} : vector<8x384xf32> to vector<8x128xf32>
    %350 = math.tanh %348 : vector<8x128xf32>
    %351 = arith.mulf %349, %350 : vector<8x128xf32>
    %352 = arith.truncf %279 : vector<8x128xf32> to vector<8x128xbf16>
    %cst_90 = arith.constant dense<0.000000e+00> : vector<8x1024xf32>
    %353 = tpu.matmul %352, %11, %cst_90 {dimension_numbers = #tpu.dot_dimension_numbers<[1], [0], [0], [1], [0, 0, 1, 1], [], []>} : vector<8x128xbf16>, vector<128x1024xbf16>, vector<8x1024xf32> -> vector<8x1024xf32>
    %354 = arith.truncf %304 : vector<8x256xf32> to vector<8x256xbf16>
    %cst_91 = arith.constant dense<0.000000e+00> : vector<8x1024xf32>
    %355 = tpu.matmul %354, %12, %cst_91 {dimension_numbers = #tpu.dot_dimension_numbers<[1], [0], [0], [1], [0, 0, 1, 1], [], []>} : vector<8x256xbf16>, vector<256x1024xbf16>, vector<8x1024xf32> -> vector<8x1024xf32>
    %356 = arith.addf %353, %355 : vector<8x1024xf32>
    %357 = vector.broadcast %13 : vector<1x1024xf32> to vector<8x1024xf32>
    %358 = arith.addf %356, %357 : vector<8x1024xf32>
    %359 = vector.extract_strided_slice %358 {offsets = [0, 0], sizes = [8, 768], strides = [1, 1]} : vector<8x1024xf32> to vector<8x768xf32>
    %cst_92 = arith.constant 5.000000e-01 : f32
    %360 = vector.broadcast %cst_92 : f32 to vector<8x768xf32>
    %361 = arith.mulf %360, %359 : vector<8x768xf32>
    %362 = math.tanh %361 : vector<8x768xf32>
    %cst_93 = arith.constant 5.000000e-01 : f32
    %363 = vector.broadcast %cst_93 : f32 to vector<8x768xf32>
    %364 = arith.mulf %363, %362 : vector<8x768xf32>
    %cst_94 = arith.constant 5.000000e-01 : f32
    %365 = vector.broadcast %cst_94 : f32 to vector<8x768xf32>
    %366 = arith.addf %364, %365 : vector<8x768xf32>
    %367 = vector.extract_strided_slice %358 {offsets = [0, 768], sizes = [8, 256], strides = [1, 1]} : vector<8x1024xf32> to vector<8x256xf32>
    %368 = math.tanh %367 : vector<8x256xf32>
    %369 = vector.extract_strided_slice %366 {offsets = [0, 256], sizes = [8, 256], strides = [1, 1]} : vector<8x768xf32> to vector<8x256xf32>
    %370 = arith.mulf %369, %301 : vector<8x256xf32>
    %371 = vector.extract_strided_slice %366 {offsets = [0, 0], sizes = [8, 256], strides = [1, 1]} : vector<8x768xf32> to vector<8x256xf32>
    %372 = arith.mulf %371, %368 : vector<8x256xf32>
    %373 = arith.addf %370, %372 : vector<8x256xf32>
    %374 = vector.extract_strided_slice %366 {offsets = [0, 512], sizes = [8, 256], strides = [1, 1]} : vector<8x768xf32> to vector<8x256xf32>
    %375 = math.tanh %373 : vector<8x256xf32>
    %376 = arith.mulf %374, %375 : vector<8x256xf32>
    %377 = vector.extract_strided_slice %6 {offsets = [48, 0], sizes = [8, 512], strides = [1, 1]} : vector<64x512xf32> to vector<8x512xf32>
    %378 = arith.truncf %326 : vector<8x128xf32> to vector<8x128xbf16>
    %cst_95 = arith.constant dense<0.000000e+00> : vector<8x512xf32>
    %379 = tpu.matmul %378, %7, %cst_95 {dimension_numbers = #tpu.dot_dimension_numbers<[1], [0], [0], [1], [0, 0, 1, 1], [], []>} : vector<8x128xbf16>, vector<128x512xbf16>, vector<8x512xf32> -> vector<8x512xf32>
    %380 = arith.addf %377, %379 : vector<8x512xf32>
    %381 = vector.extract_strided_slice %380 {offsets = [0, 0], sizes = [8, 384], strides = [1, 1]} : vector<8x512xf32> to vector<8x384xf32>
    %cst_96 = arith.constant 5.000000e-01 : f32
    %382 = vector.broadcast %cst_96 : f32 to vector<8x384xf32>
    %383 = arith.mulf %382, %381 : vector<8x384xf32>
    %384 = math.tanh %383 : vector<8x384xf32>
    %cst_97 = arith.constant 5.000000e-01 : f32
    %385 = vector.broadcast %cst_97 : f32 to vector<8x384xf32>
    %386 = arith.mulf %385, %384 : vector<8x384xf32>
    %cst_98 = arith.constant 5.000000e-01 : f32
    %387 = vector.broadcast %cst_98 : f32 to vector<8x384xf32>
    %388 = arith.addf %386, %387 : vector<8x384xf32>
    %389 = vector.extract_strided_slice %380 {offsets = [0, 384], sizes = [8, 128], strides = [1, 1]} : vector<8x512xf32> to vector<8x128xf32>
    %390 = math.tanh %389 : vector<8x128xf32>
    %391 = vector.extract_strided_slice %388 {offsets = [0, 128], sizes = [8, 128], strides = [1, 1]} : vector<8x384xf32> to vector<8x128xf32>
    %392 = arith.mulf %391, %323 : vector<8x128xf32>
    %393 = vector.extract_strided_slice %388 {offsets = [0, 0], sizes = [8, 128], strides = [1, 1]} : vector<8x384xf32> to vector<8x128xf32>
    %394 = arith.mulf %393, %390 : vector<8x128xf32>
    %395 = arith.addf %392, %394 : vector<8x128xf32>
    %396 = vector.extract_strided_slice %388 {offsets = [0, 256], sizes = [8, 128], strides = [1, 1]} : vector<8x384xf32> to vector<8x128xf32>
    %397 = math.tanh %395 : vector<8x128xf32>
    %398 = arith.mulf %396, %397 : vector<8x128xf32>
    %399 = arith.truncf %326 : vector<8x128xf32> to vector<8x128xbf16>
    %cst_99 = arith.constant dense<0.000000e+00> : vector<8x512xf32>
    %400 = tpu.matmul %399, %8, %cst_99 {dimension_numbers = #tpu.dot_dimension_numbers<[1], [0], [0], [1], [0, 0, 1, 1], [], []>} : vector<8x128xbf16>, vector<128x512xbf16>, vector<8x512xf32> -> vector<8x512xf32>
    %401 = arith.truncf %351 : vector<8x128xf32> to vector<8x128xbf16>
    %cst_100 = arith.constant dense<0.000000e+00> : vector<8x512xf32>
    %402 = tpu.matmul %401, %9, %cst_100 {dimension_numbers = #tpu.dot_dimension_numbers<[1], [0], [0], [1], [0, 0, 1, 1], [], []>} : vector<8x128xbf16>, vector<128x512xbf16>, vector<8x512xf32> -> vector<8x512xf32>
    %403 = arith.addf %400, %402 : vector<8x512xf32>
    %404 = vector.broadcast %10 : vector<1x512xf32> to vector<8x512xf32>
    %405 = arith.addf %403, %404 : vector<8x512xf32>
    %406 = vector.extract_strided_slice %405 {offsets = [0, 0], sizes = [8, 384], strides = [1, 1]} : vector<8x512xf32> to vector<8x384xf32>
    %cst_101 = arith.constant 5.000000e-01 : f32
    %407 = vector.broadcast %cst_101 : f32 to vector<8x384xf32>
    %408 = arith.mulf %407, %406 : vector<8x384xf32>
    %409 = math.tanh %408 : vector<8x384xf32>
    %cst_102 = arith.constant 5.000000e-01 : f32
    %410 = vector.broadcast %cst_102 : f32 to vector<8x384xf32>
    %411 = arith.mulf %410, %409 : vector<8x384xf32>
    %cst_103 = arith.constant 5.000000e-01 : f32
    %412 = vector.broadcast %cst_103 : f32 to vector<8x384xf32>
    %413 = arith.addf %411, %412 : vector<8x384xf32>
    %414 = vector.extract_strided_slice %405 {offsets = [0, 384], sizes = [8, 128], strides = [1, 1]} : vector<8x512xf32> to vector<8x128xf32>
    %415 = math.tanh %414 : vector<8x128xf32>
    %416 = vector.extract_strided_slice %413 {offsets = [0, 128], sizes = [8, 128], strides = [1, 1]} : vector<8x384xf32> to vector<8x128xf32>
    %417 = arith.mulf %416, %348 : vector<8x128xf32>
    %418 = vector.extract_strided_slice %413 {offsets = [0, 0], sizes = [8, 128], strides = [1, 1]} : vector<8x384xf32> to vector<8x128xf32>
    %419 = arith.mulf %418, %415 : vector<8x128xf32>
    %420 = arith.addf %417, %419 : vector<8x128xf32>
    %421 = vector.extract_strided_slice %413 {offsets = [0, 256], sizes = [8, 128], strides = [1, 1]} : vector<8x384xf32> to vector<8x128xf32>
    %422 = math.tanh %420 : vector<8x128xf32>
    %423 = arith.mulf %421, %422 : vector<8x128xf32>
    %424 = arith.truncf %351 : vector<8x128xf32> to vector<8x128xbf16>
    %cst_104 = arith.constant dense<0.000000e+00> : vector<8x1024xf32>
    %425 = tpu.matmul %424, %11, %cst_104 {dimension_numbers = #tpu.dot_dimension_numbers<[1], [0], [0], [1], [0, 0, 1, 1], [], []>} : vector<8x128xbf16>, vector<128x1024xbf16>, vector<8x1024xf32> -> vector<8x1024xf32>
    %426 = arith.truncf %376 : vector<8x256xf32> to vector<8x256xbf16>
    %cst_105 = arith.constant dense<0.000000e+00> : vector<8x1024xf32>
    %427 = tpu.matmul %426, %12, %cst_105 {dimension_numbers = #tpu.dot_dimension_numbers<[1], [0], [0], [1], [0, 0, 1, 1], [], []>} : vector<8x256xbf16>, vector<256x1024xbf16>, vector<8x1024xf32> -> vector<8x1024xf32>
    %428 = arith.addf %425, %427 : vector<8x1024xf32>
    %429 = vector.broadcast %13 : vector<1x1024xf32> to vector<8x1024xf32>
    %430 = arith.addf %428, %429 : vector<8x1024xf32>
    %431 = vector.extract_strided_slice %430 {offsets = [0, 0], sizes = [8, 768], strides = [1, 1]} : vector<8x1024xf32> to vector<8x768xf32>
    %cst_106 = arith.constant 5.000000e-01 : f32
    %432 = vector.broadcast %cst_106 : f32 to vector<8x768xf32>
    %433 = arith.mulf %432, %431 : vector<8x768xf32>
    %434 = math.tanh %433 : vector<8x768xf32>
    %cst_107 = arith.constant 5.000000e-01 : f32
    %435 = vector.broadcast %cst_107 : f32 to vector<8x768xf32>
    %436 = arith.mulf %435, %434 : vector<8x768xf32>
    %cst_108 = arith.constant 5.000000e-01 : f32
    %437 = vector.broadcast %cst_108 : f32 to vector<8x768xf32>
    %438 = arith.addf %436, %437 : vector<8x768xf32>
    %439 = vector.extract_strided_slice %430 {offsets = [0, 768], sizes = [8, 256], strides = [1, 1]} : vector<8x1024xf32> to vector<8x256xf32>
    %440 = math.tanh %439 : vector<8x256xf32>
    %441 = vector.extract_strided_slice %438 {offsets = [0, 256], sizes = [8, 256], strides = [1, 1]} : vector<8x768xf32> to vector<8x256xf32>
    %442 = arith.mulf %441, %373 : vector<8x256xf32>
    %443 = vector.extract_strided_slice %438 {offsets = [0, 0], sizes = [8, 256], strides = [1, 1]} : vector<8x768xf32> to vector<8x256xf32>
    %444 = arith.mulf %443, %440 : vector<8x256xf32>
    %445 = arith.addf %442, %444 : vector<8x256xf32>
    %446 = vector.extract_strided_slice %438 {offsets = [0, 512], sizes = [8, 256], strides = [1, 1]} : vector<8x768xf32> to vector<8x256xf32>
    %447 = math.tanh %445 : vector<8x256xf32>
    %448 = arith.mulf %446, %447 : vector<8x256xf32>
    %449 = vector.extract_strided_slice %6 {offsets = [56, 0], sizes = [8, 512], strides = [1, 1]} : vector<64x512xf32> to vector<8x512xf32>
    %450 = arith.truncf %398 : vector<8x128xf32> to vector<8x128xbf16>
    %cst_109 = arith.constant dense<0.000000e+00> : vector<8x512xf32>
    %451 = tpu.matmul %450, %7, %cst_109 {dimension_numbers = #tpu.dot_dimension_numbers<[1], [0], [0], [1], [0, 0, 1, 1], [], []>} : vector<8x128xbf16>, vector<128x512xbf16>, vector<8x512xf32> -> vector<8x512xf32>
    %452 = arith.addf %449, %451 : vector<8x512xf32>
    %453 = vector.extract_strided_slice %452 {offsets = [0, 0], sizes = [8, 384], strides = [1, 1]} : vector<8x512xf32> to vector<8x384xf32>
    %cst_110 = arith.constant 5.000000e-01 : f32
    %454 = vector.broadcast %cst_110 : f32 to vector<8x384xf32>
    %455 = arith.mulf %454, %453 : vector<8x384xf32>
    %456 = math.tanh %455 : vector<8x384xf32>
    %cst_111 = arith.constant 5.000000e-01 : f32
    %457 = vector.broadcast %cst_111 : f32 to vector<8x384xf32>
    %458 = arith.mulf %457, %456 : vector<8x384xf32>
    %cst_112 = arith.constant 5.000000e-01 : f32
    %459 = vector.broadcast %cst_112 : f32 to vector<8x384xf32>
    %460 = arith.addf %458, %459 : vector<8x384xf32>
    %461 = vector.extract_strided_slice %452 {offsets = [0, 384], sizes = [8, 128], strides = [1, 1]} : vector<8x512xf32> to vector<8x128xf32>
    %462 = math.tanh %461 : vector<8x128xf32>
    %463 = vector.extract_strided_slice %460 {offsets = [0, 128], sizes = [8, 128], strides = [1, 1]} : vector<8x384xf32> to vector<8x128xf32>
    %464 = arith.mulf %463, %395 : vector<8x128xf32>
    %465 = vector.extract_strided_slice %460 {offsets = [0, 0], sizes = [8, 128], strides = [1, 1]} : vector<8x384xf32> to vector<8x128xf32>
    %466 = arith.mulf %465, %462 : vector<8x128xf32>
    %467 = arith.addf %464, %466 : vector<8x128xf32>
    %468 = vector.extract_strided_slice %460 {offsets = [0, 256], sizes = [8, 128], strides = [1, 1]} : vector<8x384xf32> to vector<8x128xf32>
    %469 = math.tanh %467 : vector<8x128xf32>
    %470 = arith.mulf %468, %469 : vector<8x128xf32>
    %471 = arith.truncf %398 : vector<8x128xf32> to vector<8x128xbf16>
    %cst_113 = arith.constant dense<0.000000e+00> : vector<8x512xf32>
    %472 = tpu.matmul %471, %8, %cst_113 {dimension_numbers = #tpu.dot_dimension_numbers<[1], [0], [0], [1], [0, 0, 1, 1], [], []>} : vector<8x128xbf16>, vector<128x512xbf16>, vector<8x512xf32> -> vector<8x512xf32>
    %473 = arith.truncf %423 : vector<8x128xf32> to vector<8x128xbf16>
    %cst_114 = arith.constant dense<0.000000e+00> : vector<8x512xf32>
    %474 = tpu.matmul %473, %9, %cst_114 {dimension_numbers = #tpu.dot_dimension_numbers<[1], [0], [0], [1], [0, 0, 1, 1], [], []>} : vector<8x128xbf16>, vector<128x512xbf16>, vector<8x512xf32> -> vector<8x512xf32>
    %475 = arith.addf %472, %474 : vector<8x512xf32>
    %476 = vector.broadcast %10 : vector<1x512xf32> to vector<8x512xf32>
    %477 = arith.addf %475, %476 : vector<8x512xf32>
    %478 = vector.extract_strided_slice %477 {offsets = [0, 0], sizes = [8, 384], strides = [1, 1]} : vector<8x512xf32> to vector<8x384xf32>
    %cst_115 = arith.constant 5.000000e-01 : f32
    %479 = vector.broadcast %cst_115 : f32 to vector<8x384xf32>
    %480 = arith.mulf %479, %478 : vector<8x384xf32>
    %481 = math.tanh %480 : vector<8x384xf32>
    %cst_116 = arith.constant 5.000000e-01 : f32
    %482 = vector.broadcast %cst_116 : f32 to vector<8x384xf32>
    %483 = arith.mulf %482, %481 : vector<8x384xf32>
    %cst_117 = arith.constant 5.000000e-01 : f32
    %484 = vector.broadcast %cst_117 : f32 to vector<8x384xf32>
    %485 = arith.addf %483, %484 : vector<8x384xf32>
    %486 = vector.extract_strided_slice %477 {offsets = [0, 384], sizes = [8, 128], strides = [1, 1]} : vector<8x512xf32> to vector<8x128xf32>
    %487 = math.tanh %486 : vector<8x128xf32>
    %488 = vector.extract_strided_slice %485 {offsets = [0, 128], sizes = [8, 128], strides = [1, 1]} : vector<8x384xf32> to vector<8x128xf32>
    %489 = arith.mulf %488, %420 : vector<8x128xf32>
    %490 = vector.extract_strided_slice %485 {offsets = [0, 0], sizes = [8, 128], strides = [1, 1]} : vector<8x384xf32> to vector<8x128xf32>
    %491 = arith.mulf %490, %487 : vector<8x128xf32>
    %492 = arith.addf %489, %491 : vector<8x128xf32>
    %493 = vector.extract_strided_slice %485 {offsets = [0, 256], sizes = [8, 128], strides = [1, 1]} : vector<8x384xf32> to vector<8x128xf32>
    %494 = math.tanh %492 : vector<8x128xf32>
    %495 = arith.mulf %493, %494 : vector<8x128xf32>
    %496 = arith.truncf %423 : vector<8x128xf32> to vector<8x128xbf16>
    %cst_118 = arith.constant dense<0.000000e+00> : vector<8x1024xf32>
    %497 = tpu.matmul %496, %11, %cst_118 {dimension_numbers = #tpu.dot_dimension_numbers<[1], [0], [0], [1], [0, 0, 1, 1], [], []>} : vector<8x128xbf16>, vector<128x1024xbf16>, vector<8x1024xf32> -> vector<8x1024xf32>
    %498 = arith.truncf %448 : vector<8x256xf32> to vector<8x256xbf16>
    %cst_119 = arith.constant dense<0.000000e+00> : vector<8x1024xf32>
    %499 = tpu.matmul %498, %12, %cst_119 {dimension_numbers = #tpu.dot_dimension_numbers<[1], [0], [0], [1], [0, 0, 1, 1], [], []>} : vector<8x256xbf16>, vector<256x1024xbf16>, vector<8x1024xf32> -> vector<8x1024xf32>
    %500 = arith.addf %497, %499 : vector<8x1024xf32>
    %501 = vector.broadcast %13 : vector<1x1024xf32> to vector<8x1024xf32>
    %502 = arith.addf %500, %501 : vector<8x1024xf32>
    %503 = vector.extract_strided_slice %502 {offsets = [0, 0], sizes = [8, 768], strides = [1, 1]} : vector<8x1024xf32> to vector<8x768xf32>
    %cst_120 = arith.constant 5.000000e-01 : f32
    %504 = vector.broadcast %cst_120 : f32 to vector<8x768xf32>
    %505 = arith.mulf %504, %503 : vector<8x768xf32>
    %506 = math.tanh %505 : vector<8x768xf32>
    %cst_121 = arith.constant 5.000000e-01 : f32
    %507 = vector.broadcast %cst_121 : f32 to vector<8x768xf32>
    %508 = arith.mulf %507, %506 : vector<8x768xf32>
    %cst_122 = arith.constant 5.000000e-01 : f32
    %509 = vector.broadcast %cst_122 : f32 to vector<8x768xf32>
    %510 = arith.addf %508, %509 : vector<8x768xf32>
    %511 = vector.extract_strided_slice %502 {offsets = [0, 768], sizes = [8, 256], strides = [1, 1]} : vector<8x1024xf32> to vector<8x256xf32>
    %512 = math.tanh %511 : vector<8x256xf32>
    %513 = vector.extract_strided_slice %510 {offsets = [0, 256], sizes = [8, 256], strides = [1, 1]} : vector<8x768xf32> to vector<8x256xf32>
    %514 = arith.mulf %513, %445 : vector<8x256xf32>
    %515 = vector.extract_strided_slice %510 {offsets = [0, 0], sizes = [8, 256], strides = [1, 1]} : vector<8x768xf32> to vector<8x256xf32>
    %516 = arith.mulf %515, %512 : vector<8x256xf32>
    %517 = arith.addf %514, %516 : vector<8x256xf32>
    %518 = vector.extract_strided_slice %510 {offsets = [0, 512], sizes = [8, 256], strides = [1, 1]} : vector<8x768xf32> to vector<8x256xf32>
    %519 = math.tanh %517 : vector<8x256xf32>
    %520 = arith.mulf %518, %519 : vector<8x256xf32>
    %521 = arith.truncf %470 : vector<8x128xf32> to vector<8x128xbf16>
    %cst_123 = arith.constant dense<0.000000e+00> : vector<8x512xf32>
    %522 = tpu.matmul %521, %8, %cst_123 {dimension_numbers = #tpu.dot_dimension_numbers<[1], [0], [0], [1], [0, 0, 1, 1], [], []>} : vector<8x128xbf16>, vector<128x512xbf16>, vector<8x512xf32> -> vector<8x512xf32>
    %523 = arith.truncf %495 : vector<8x128xf32> to vector<8x128xbf16>
    %cst_124 = arith.constant dense<0.000000e+00> : vector<8x512xf32>
    %524 = tpu.matmul %523, %9, %cst_124 {dimension_numbers = #tpu.dot_dimension_numbers<[1], [0], [0], [1], [0, 0, 1, 1], [], []>} : vector<8x128xbf16>, vector<128x512xbf16>, vector<8x512xf32> -> vector<8x512xf32>
    %525 = arith.addf %522, %524 : vector<8x512xf32>
    %526 = vector.broadcast %10 : vector<1x512xf32> to vector<8x512xf32>
    %527 = arith.addf %525, %526 : vector<8x512xf32>
    %528 = vector.extract_strided_slice %527 {offsets = [0, 0], sizes = [8, 384], strides = [1, 1]} : vector<8x512xf32> to vector<8x384xf32>
    %cst_125 = arith.constant 5.000000e-01 : f32
    %529 = vector.broadcast %cst_125 : f32 to vector<8x384xf32>
    %530 = arith.mulf %529, %528 : vector<8x384xf32>
    %531 = math.tanh %530 : vector<8x384xf32>
    %cst_126 = arith.constant 5.000000e-01 : f32
    %532 = vector.broadcast %cst_126 : f32 to vector<8x384xf32>
    %533 = arith.mulf %532, %531 : vector<8x384xf32>
    %cst_127 = arith.constant 5.000000e-01 : f32
    %534 = vector.broadcast %cst_127 : f32 to vector<8x384xf32>
    %535 = arith.addf %533, %534 : vector<8x384xf32>
    %536 = vector.extract_strided_slice %527 {offsets = [0, 384], sizes = [8, 128], strides = [1, 1]} : vector<8x512xf32> to vector<8x128xf32>
    %537 = math.tanh %536 : vector<8x128xf32>
    %538 = vector.extract_strided_slice %535 {offsets = [0, 128], sizes = [8, 128], strides = [1, 1]} : vector<8x384xf32> to vector<8x128xf32>
    %539 = arith.mulf %538, %492 : vector<8x128xf32>
    %540 = vector.extract_strided_slice %535 {offsets = [0, 0], sizes = [8, 128], strides = [1, 1]} : vector<8x384xf32> to vector<8x128xf32>
    %541 = arith.mulf %540, %537 : vector<8x128xf32>
    %542 = arith.addf %539, %541 : vector<8x128xf32>
    %543 = vector.extract_strided_slice %535 {offsets = [0, 256], sizes = [8, 128], strides = [1, 1]} : vector<8x384xf32> to vector<8x128xf32>
    %544 = math.tanh %542 : vector<8x128xf32>
    %545 = arith.mulf %543, %544 : vector<8x128xf32>
    %546 = arith.truncf %495 : vector<8x128xf32> to vector<8x128xbf16>
    %cst_128 = arith.constant dense<0.000000e+00> : vector<8x1024xf32>
    %547 = tpu.matmul %546, %11, %cst_128 {dimension_numbers = #tpu.dot_dimension_numbers<[1], [0], [0], [1], [0, 0, 1, 1], [], []>} : vector<8x128xbf16>, vector<128x1024xbf16>, vector<8x1024xf32> -> vector<8x1024xf32>
    %548 = arith.truncf %520 : vector<8x256xf32> to vector<8x256xbf16>
    %cst_129 = arith.constant dense<0.000000e+00> : vector<8x1024xf32>
    %549 = tpu.matmul %548, %12, %cst_129 {dimension_numbers = #tpu.dot_dimension_numbers<[1], [0], [0], [1], [0, 0, 1, 1], [], []>} : vector<8x256xbf16>, vector<256x1024xbf16>, vector<8x1024xf32> -> vector<8x1024xf32>
    %550 = arith.addf %547, %549 : vector<8x1024xf32>
    %551 = vector.broadcast %13 : vector<1x1024xf32> to vector<8x1024xf32>
    %552 = arith.addf %550, %551 : vector<8x1024xf32>
    %553 = vector.extract_strided_slice %552 {offsets = [0, 0], sizes = [8, 768], strides = [1, 1]} : vector<8x1024xf32> to vector<8x768xf32>
    %cst_130 = arith.constant 5.000000e-01 : f32
    %554 = vector.broadcast %cst_130 : f32 to vector<8x768xf32>
    %555 = arith.mulf %554, %553 : vector<8x768xf32>
    %556 = math.tanh %555 : vector<8x768xf32>
    %cst_131 = arith.constant 5.000000e-01 : f32
    %557 = vector.broadcast %cst_131 : f32 to vector<8x768xf32>
    %558 = arith.mulf %557, %556 : vector<8x768xf32>
    %cst_132 = arith.constant 5.000000e-01 : f32
    %559 = vector.broadcast %cst_132 : f32 to vector<8x768xf32>
    %560 = arith.addf %558, %559 : vector<8x768xf32>
    %561 = vector.extract_strided_slice %552 {offsets = [0, 768], sizes = [8, 256], strides = [1, 1]} : vector<8x1024xf32> to vector<8x256xf32>
    %562 = math.tanh %561 : vector<8x256xf32>
    %563 = vector.extract_strided_slice %560 {offsets = [0, 256], sizes = [8, 256], strides = [1, 1]} : vector<8x768xf32> to vector<8x256xf32>
    %564 = arith.mulf %563, %517 : vector<8x256xf32>
    %565 = vector.extract_strided_slice %560 {offsets = [0, 0], sizes = [8, 256], strides = [1, 1]} : vector<8x768xf32> to vector<8x256xf32>
    %566 = arith.mulf %565, %562 : vector<8x256xf32>
    %567 = arith.addf %564, %566 : vector<8x256xf32>
    %568 = vector.extract_strided_slice %560 {offsets = [0, 512], sizes = [8, 256], strides = [1, 1]} : vector<8x768xf32> to vector<8x256xf32>
    %569 = math.tanh %567 : vector<8x256xf32>
    %570 = arith.mulf %568, %569 : vector<8x256xf32>
    %571 = arith.truncf %545 : vector<8x128xf32> to vector<8x128xbf16>
    %cst_133 = arith.constant dense<0.000000e+00> : vector<8x1024xf32>
    %572 = tpu.matmul %571, %11, %cst_133 {dimension_numbers = #tpu.dot_dimension_numbers<[1], [0], [0], [1], [0, 0, 1, 1], [], []>} : vector<8x128xbf16>, vector<128x1024xbf16>, vector<8x1024xf32> -> vector<8x1024xf32>
    %573 = arith.truncf %570 : vector<8x256xf32> to vector<8x256xbf16>
    %cst_134 = arith.constant dense<0.000000e+00> : vector<8x1024xf32>
    %574 = tpu.matmul %573, %12, %cst_134 {dimension_numbers = #tpu.dot_dimension_numbers<[1], [0], [0], [1], [0, 0, 1, 1], [], []>} : vector<8x256xbf16>, vector<256x1024xbf16>, vector<8x1024xf32> -> vector<8x1024xf32>
    %575 = arith.addf %572, %574 : vector<8x1024xf32>
    %576 = vector.broadcast %13 : vector<1x1024xf32> to vector<8x1024xf32>
    %577 = arith.addf %575, %576 : vector<8x1024xf32>
    %578 = vector.extract_strided_slice %577 {offsets = [0, 0], sizes = [8, 768], strides = [1, 1]} : vector<8x1024xf32> to vector<8x768xf32>
    %cst_135 = arith.constant 5.000000e-01 : f32
    %579 = vector.broadcast %cst_135 : f32 to vector<8x768xf32>
    %580 = arith.mulf %579, %578 : vector<8x768xf32>
    %581 = math.tanh %580 : vector<8x768xf32>
    %cst_136 = arith.constant 5.000000e-01 : f32
    %582 = vector.broadcast %cst_136 : f32 to vector<8x768xf32>
    %583 = arith.mulf %582, %581 : vector<8x768xf32>
    %cst_137 = arith.constant 5.000000e-01 : f32
    %584 = vector.broadcast %cst_137 : f32 to vector<8x768xf32>
    %585 = arith.addf %583, %584 : vector<8x768xf32>
    %586 = vector.extract_strided_slice %577 {offsets = [0, 768], sizes = [8, 256], strides = [1, 1]} : vector<8x1024xf32> to vector<8x256xf32>
    %587 = math.tanh %586 : vector<8x256xf32>
    %588 = vector.extract_strided_slice %585 {offsets = [0, 256], sizes = [8, 256], strides = [1, 1]} : vector<8x768xf32> to vector<8x256xf32>
    %589 = arith.mulf %588, %567 : vector<8x256xf32>
    %590 = vector.extract_strided_slice %585 {offsets = [0, 0], sizes = [8, 256], strides = [1, 1]} : vector<8x768xf32> to vector<8x256xf32>
    %591 = arith.mulf %590, %587 : vector<8x256xf32>
    %592 = arith.addf %589, %591 : vector<8x256xf32>
    %593 = vector.extract_strided_slice %585 {offsets = [0, 512], sizes = [8, 256], strides = [1, 1]} : vector<8x768xf32> to vector<8x256xf32>
    %594 = math.tanh %592 : vector<8x256xf32>
    %595 = arith.mulf %593, %594 : vector<8x256xf32>
    %596 = arith.truncf %595 : vector<8x256xf32> to vector<8x256xbf16>
    %c0_138 = arith.constant 0 : index
    %c0_139 = arith.constant 0 : index
    %597 = vector.load %arg11[%c0_138, %c0_139] : memref<256x128xbf16, #tpu.memory_space<vmem>>, vector<256x128xbf16>
    %cst_140 = arith.constant dense<0.000000e+00> : vector<8x128xf32>
    %598 = tpu.matmul %596, %597, %cst_140 {dimension_numbers = #tpu.dot_dimension_numbers<[1], [0], [0], [1], [0, 0, 1, 1], [], []>} : vector<8x256xbf16>, vector<256x128xbf16>, vector<8x128xf32> -> vector<8x128xf32>
    %c0_141 = arith.constant 0 : index
    %c0_142 = arith.constant 0 : index
    %599 = vector.load %arg12[%c0_141, %c0_142] : memref<1x128xf32, #tpu.memory_space<vmem>>, vector<1x128xf32>
    %600 = vector.broadcast %599 : vector<1x128xf32> to vector<8x128xf32>
    %601 = arith.addf %598, %600 : vector<8x128xf32>
    %c0_143 = arith.constant 0 : index
    %c0_144 = arith.constant 0 : index
    %602 = vector.load %arg13[%c0_143, %c0_144] : memref<8x128xf32, #tpu.memory_space<vmem>>, vector<8x128xf32>
    tpu.vector_store %arg13[%c0_143, %c0_144], %601 {strides = array<i32>} : memref<8x128xf32, #tpu.memory_space<vmem>>, vector<8x128xf32>,
    return
  }
  func.func @transform_0(%arg0: i32) -> (i32, i32, i32) {
    %c0_i32 = arith.constant 0 : i32
    %c0_i32_0 = arith.constant 0 : i32
    %c0_i32_1 = arith.constant 0 : i32
    return %arg0, %c0_i32, %c0_i32_0 : i32, i32, i32
  }
  func.func @transform_1(%arg0: i32) -> (i32, i32) {
    %c0_i32 = arith.constant 0 : i32
    %c0_i32_0 = arith.constant 0 : i32
    %c0_i32_1 = arith.constant 0 : i32
    return %c0_i32, %c0_i32_0 : i32, i32
  }
  func.func @transform_2(%arg0: i32) -> (i32, i32) {
    %c0_i32 = arith.constant 0 : i32
    %c0_i32_0 = arith.constant 0 : i32
    %c0_i32_1 = arith.constant 0 : i32
    return %c0_i32, %c0_i32_0 : i32, i32
  }
  func.func @transform_3(%arg0: i32) -> (i32, i32) {
    %c0_i32 = arith.constant 0 : i32
    %c0_i32_0 = arith.constant 0 : i32
    %c0_i32_1 = arith.constant 0 : i32
    return %c0_i32, %c0_i32_0 : i32, i32
  }
  func.func @transform_4(%arg0: i32) -> (i32, i32) {
    %c0_i32 = arith.constant 0 : i32
    %c0_i32_0 = arith.constant 0 : i32
    %c0_i32_1 = arith.constant 0 : i32
    return %c0_i32, %c0_i32_0 : i32, i32
  }
  func.func @transform_5(%arg0: i32) -> (i32, i32) {
    %c0_i32 = arith.constant 0 : i32
    %c0_i32_0 = arith.constant 0 : i32
    %c0_i32_1 = arith.constant 0 : i32
    return %c0_i32, %c0_i32_0 : i32, i32
  }
  func.func @transform_6(%arg0: i32) -> (i32, i32) {
    %c0_i32 = arith.constant 0 : i32
    %c0_i32_0 = arith.constant 0 : i32
    %c0_i32_1 = arith.constant 0 : i32
    return %c0_i32, %c0_i32_0 : i32, i32
  }
  func.func @transform_7(%arg0: i32) -> (i32, i32) {
    %c0_i32 = arith.constant 0 : i32
    %c0_i32_0 = arith.constant 0 : i32
    %c0_i32_1 = arith.constant 0 : i32
    return %c0_i32, %c0_i32_0 : i32, i32
  }
  func.func @transform_8(%arg0: i32) -> (i32, i32) {
    %c0_i32 = arith.constant 0 : i32
    %c0_i32_0 = arith.constant 0 : i32
    %c0_i32_1 = arith.constant 0 : i32
    return %c0_i32, %c0_i32_0 : i32, i32
  }
  func.func @transform_9(%arg0: i32) -> (i32, i32) {
    %c0_i32 = arith.constant 0 : i32
    %c0_i32_0 = arith.constant 0 : i32
    %c0_i32_1 = arith.constant 0 : i32
    return %c0_i32, %c0_i32_0 : i32, i32
  }
  func.func @transform_10(%arg0: i32) -> (i32, i32) {
    %c0_i32 = arith.constant 0 : i32
    %c0_i32_0 = arith.constant 0 : i32
    %c0_i32_1 = arith.constant 0 : i32
    return %c0_i32, %c0_i32_0 : i32, i32
  }
  func.func @transform_11(%arg0: i32) -> (i32, i32) {
    %c0_i32 = arith.constant 0 : i32
    %c0_i32_0 = arith.constant 0 : i32
    %c0_i32_1 = arith.constant 0 : i32
    return %c0_i32, %c0_i32_0 : i32, i32
  }
  func.func @transform_12(%arg0: i32) -> (i32, i32) {
    %c0_i32 = arith.constant 0 : i32
    %c0_i32_0 = arith.constant 0 : i32
    return %arg0, %c0_i32 : i32, i32
  }
}

</mosaic_0001>

<llo_original>
// kernel: decoder_forward.1
$region0: #{decoder_forward.1}
  #allocation0 [shape = 'u32[]', space=smem, size = 0x4, offset = 0x4, fixed_abs, tag = 'smem constant byte address 0x4 - core index']
  #allocation1 [shape = 'u32[144,128]{1,0:T(1,128)}', space=vmem, size = 0x12000, scoped, tag = 'internal scratch']
  %s0 = inlined_call_operand.vmem [shape: bf16[1,64,128], index: 0, kind: input, shape index: {}]
  %s1 = inlined_call_operand.vmem [shape: bf16[128,512], index: 1, kind: input, shape index: {}]
  %s2 = inlined_call_operand.hbm [shape: bf16[128,512], index: 2, kind: input, shape index: {}]
  %s3 = inlined_call_operand.vmem [shape: f32[1,512], index: 3, kind: input, shape index: {}]
  %s4 = inlined_call_operand.hbm [shape: bf16[128,512], index: 4, kind: input, shape index: {}]
  %s5 = inlined_call_operand.hbm [shape: bf16[128,512], index: 5, kind: input, shape index: {}]
  %s6 = inlined_call_operand.vmem [shape: f32[1,512], index: 6, kind: input, shape index: {}]
  %s7 = inlined_call_operand.vmem [shape: bf16[128,1024], index: 7, kind: input, shape index: {}]
  %s8 = inlined_call_operand.hbm [shape: bf16[256,1024], index: 8, kind: input, shape index: {}]
  %s9 = inlined_call_operand.vmem [shape: f32[1,1024], index: 9, kind: input, shape index: {}]
  %s10 = inlined_call_operand.vmem [shape: bf16[256,128], index: 10, kind: input, shape index: {}]
  %s11 = inlined_call_operand.vmem [shape: f32[1,128], index: 11, kind: input, shape index: {}]
  %s12 = inlined_call_operand.vmem [shape: f32[8,128], index: 12, kind: output, shape index: {}]
  %s13 = sld [smem:[#allocation0]]
  $region74: #{decoder_forward.1} parent=0
    _
  %s15 = ssub.s32 1, %s13
  %s16 = scalar_select 0, %s15, %s13
  $region1: #{decoder_forward.1} parent=0
    #allocation2 [shape = 'u8[131072]{0}', space=vmem, size = 0x20000, scoped, tag = 'input window, operand 2, single buffered']
    #allocation3 [shape = 's32[1]{0}', space=sflag, size = 0x4, scoped, tag = 'scoped memory for decoder_forward.1']
    #allocation4 [shape = 'u8[131072]{0}', space=vmem, size = 0x20000, scoped, tag = 'input window, operand 4, single buffered']
    #allocation5 [shape = 's32[1]{0}', space=sflag, size = 0x4, scoped, tag = 'scoped memory for decoder_forward.1']
    #allocation6 [shape = 'u8[131072]{0}', space=vmem, size = 0x20000, scoped, tag = 'input window, operand 5, single buffered']
    #allocation7 [shape = 'u8[524288]{0}', space=vmem, size = 0x80000, scoped, tag = 'input window, operand 8, single buffered']
    #allocation8 [shape = 's32[1]{0}', space=sflag, size = 0x4, scoped, tag = 'scoped memory for decoder_forward.1']
    %17 = vsyncpa [#allocation3], 0
    %18 = vsyncpa [#allocation5], 0
    %19 = vsyncpa [#allocation8], 0
    // Predicated region
    $region2: #{decoder_forward.1} parent=1 // pred_check
      _
    $region3: #{decoder_forward.1} parent=1 // pred_check_branch
      %21 = sbr.rel (0) target = $region5
    $region4: #{decoder_forward.1} parent=1 // pred_region
      _
    $region5: #{decoder_forward.1} parent=1 // pred_fallthru
      _
    // Predicated region
    $region6: #{decoder_forward.1} parent=1 // pred_check
      _
    $region7: #{decoder_forward.1} parent=1 // pred_check_branch
      %23 = sbr.rel (0) target = $region9
    $region8: #{decoder_forward.1} parent=1 // pred_region
      _
    $region9: #{decoder_forward.1} parent=1 // pred_fallthru
      _
    // Predicated region
    $region10: #{decoder_forward.1} parent=1 // pred_check
      _
    $region11: #{decoder_forward.1} parent=1 // pred_check_branch
      %25 = sbr.rel (0) target = $region13
    $region12: #{decoder_forward.1} parent=1 // pred_region
      %s27 = ssub.s32 4096, 4096
      %28 = vsyncadd [#allocation3], %s27
      %s29 = sshll.u32 [#allocation2], 4
      %s30 = int_to_ptr.vmem [resolvable:$true] %s29
      %35 = dma.hbm_to_vmem [thread:$0]  %s2, 4096, %s30, [#allocation3], 256, 256, 16
    $region13: #{decoder_forward.1} parent=1 // pred_fallthru
      _
    // Predicated region
    $region14: #{decoder_forward.1} parent=1 // pred_check
      _
    $region15: #{decoder_forward.1} parent=1 // pred_check_branch
      %37 = sbr.rel (0) target = $region17
    $region16: #{decoder_forward.1} parent=1 // pred_region
      _
    $region17: #{decoder_forward.1} parent=1 // pred_fallthru
      _
    // Predicated region
    $region18: #{decoder_forward.1} parent=1 // pred_check
      _
    $region19: #{decoder_forward.1} parent=1 // pred_check_branch
      %39 = sbr.rel (0) target = $region21
    $region20: #{decoder_forward.1} parent=1 // pred_region
      %s41 = ssub.s32 4096, 4096
      %42 = vsyncadd [#allocation5], %s41
      %s43 = sshll.u32 [#allocation4], 4
      %s44 = int_to_ptr.vmem [resolvable:$true] %s43
      %49 = dma.hbm_to_vmem [thread:$0]  %s4, 4096, %s44, [#allocation5], 256, 256, 16
    $region21: #{decoder_forward.1} parent=1 // pred_fallthru
      _
    // Predicated region
    $region22: #{decoder_forward.1} parent=1 // pred_check
      _
    $region23: #{decoder_forward.1} parent=1 // pred_check_branch
      %51 = sbr.rel (0) target = $region25
    $region24: #{decoder_forward.1} parent=1 // pred_region
      %s53 = ssub.s32 4096, 4096
      %54 = vsyncadd [#allocation5], %s53
      %s55 = sshll.u32 [#allocation6], 4
      %s56 = int_to_ptr.vmem [resolvable:$true] %s55
      %61 = dma.hbm_to_vmem [thread:$0]  %s5, 4096, %s56, [#allocation5], 256, 256, 16
    $region25: #{decoder_forward.1} parent=1 // pred_fallthru
      _
    // Predicated region
    $region26: #{decoder_forward.1} parent=1 // pred_check
      _
    $region27: #{decoder_forward.1} parent=1 // pred_check_branch
      %63 = sbr.rel (0) target = $region29
    $region28: #{decoder_forward.1} parent=1 // pred_region
      _
    $region29: #{decoder_forward.1} parent=1 // pred_fallthru
      _
    // Predicated region
    $region30: #{decoder_forward.1} parent=1 // pred_check
      _
    $region31: #{decoder_forward.1} parent=1 // pred_check_branch
      %65 = sbr.rel (0) target = $region33
    $region32: #{decoder_forward.1} parent=1 // pred_region
      _
    $region33: #{decoder_forward.1} parent=1 // pred_fallthru
      _
    // Predicated region
    $region34: #{decoder_forward.1} parent=1 // pred_check
      _
    $region35: #{decoder_forward.1} parent=1 // pred_check_branch
      %67 = sbr.rel (0) target = $region37
    $region36: #{decoder_forward.1} parent=1 // pred_region
      %s69 = ssub.s32 16384, 16384
      %70 = vsyncadd [#allocation8], %s69
      %s71 = sshll.u32 [#allocation7], 4
      %s72 = int_to_ptr.vmem [resolvable:$true] %s71
      %77 = dma.hbm_to_vmem [thread:$0]  %s8, 16384, %s72, [#allocation8], 512, 512, 32
    $region37: #{decoder_forward.1} parent=1 // pred_fallthru
      _
    // Predicated region
    $region38: #{decoder_forward.1} parent=1 // pred_check
      _
    $region39: #{decoder_forward.1} parent=1 // pred_check_branch
      %79 = sbr.rel (0) target = $region41
    $region40: #{decoder_forward.1} parent=1 // pred_region
      _
    $region41: #{decoder_forward.1} parent=1 // pred_fallthru
      _
    // Predicated region
    $region42: #{decoder_forward.1} parent=1 // pred_check
      _
    $region43: #{decoder_forward.1} parent=1 // pred_check_branch
      %81 = sbr.rel (0) target = $region45
    $region44: #{decoder_forward.1} parent=1 // pred_region
      _
    $region45: #{decoder_forward.1} parent=1 // pred_fallthru
      _
    // Predicated region
    $region46: #{decoder_forward.1} parent=1 // pred_check
      _
    $region47: #{decoder_forward.1} parent=1 // pred_check_branch
      %83 = sbr.rel (0) target = $region49
    $region48: #{decoder_forward.1} parent=1 // pred_region
      _
    $region49: #{decoder_forward.1} parent=1 // pred_fallthru
      _
    // Predicated region
    $region50: #{decoder_forward.1} parent=1 // pred_check
      _
    $region51: #{decoder_forward.1} parent=1 // pred_check_branch
      %85 = sbr.rel (0) target = $region53
    $region52: #{decoder_forward.1} parent=1 // pred_region
      %86 = dma.done [#allocation3], 4096
    $region53: #{decoder_forward.1} parent=1 // pred_fallthru
      _
    // Predicated region
    $region54: #{decoder_forward.1} parent=1 // pred_check
      _
    $region55: #{decoder_forward.1} parent=1 // pred_check_branch
      %88 = sbr.rel (0) target = $region57
    $region56: #{decoder_forward.1} parent=1 // pred_region
      %89 = dma.done [#allocation5], 4096
    $region57: #{decoder_forward.1} parent=1 // pred_fallthru
      _
    // Predicated region
    $region58: #{decoder_forward.1} parent=1 // pred_check
      _
    $region59: #{decoder_forward.1} parent=1 // pred_check_branch
      %91 = sbr.rel (0) target = $region61
    $region60: #{decoder_forward.1} parent=1 // pred_region
      %92 = dma.done [#allocation5], 4096
    $region61: #{decoder_forward.1} parent=1 // pred_fallthru
      _
    // Predicated region
    $region62: #{decoder_forward.1} parent=1 // pred_check
      _
    $region63: #{decoder_forward.1} parent=1 // pred_check_branch
      %94 = sbr.rel (0) target = $region65
    $region64: #{decoder_forward.1} parent=1 // pred_region
      %95 = dma.done [#allocation8], 16384
    $region65: #{decoder_forward.1} parent=1 // pred_fallthru
      _
    %v97 = vld [vmem:[%s0] sm:$0xf]
    %v98 = vld [vmem:[%s0 + $0x4] sm:$0xf]
    %v99 = vld [vmem:[%s0 + $0x8] sm:$0xf]
    %v100 = vld [vmem:[%s0 + $0xc] sm:$0xf]
    %v101 = vld [vmem:[%s0 + $0x10] sm:$0xf]
    %v102 = vld [vmem:[%s0 + $0x14] sm:$0xf]
    %v103 = vld [vmem:[%s0 + $0x18] sm:$0xf]
    %v104 = vld [vmem:[%s0 + $0x1c] sm:$0xf]
    %v105 = vld [vmem:[%s1] sm:$0xff]
    %v106 = vld [vmem:[%s1 + $0x8] sm:$0xff]
    %v107 = vld [vmem:[%s1 + $0x10] sm:$0xff]
    %v108 = vld [vmem:[%s1 + $0x18] sm:$0xff]
    %v109 = vld [vmem:[%s1 + $0x20] sm:$0xff]
    %v110 = vld [vmem:[%s1 + $0x28] sm:$0xff]
    %v111 = vld [vmem:[%s1 + $0x30] sm:$0xff]
    %v112 = vld [vmem:[%s1 + $0x38] sm:$0xff]
    %v113 = vld [vmem:[%s1 + $0x40] sm:$0xff]
    %v114 = vld [vmem:[%s1 + $0x48] sm:$0xff]
    %v115 = vld [vmem:[%s1 + $0x50] sm:$0xff]
    %v116 = vld [vmem:[%s1 + $0x58] sm:$0xff]
    %v117 = vld [vmem:[%s1 + $0x60] sm:$0xff]
    %v118 = vld [vmem:[%s1 + $0x68] sm:$0xff]
    %v119 = vld [vmem:[%s1 + $0x70] sm:$0xff]
    %v120 = vld [vmem:[%s1 + $0x78] sm:$0xff]
    %v121 = vld [vmem:[%s1 + $0x80] sm:$0xff]
    %v122 = vld [vmem:[%s1 + $0x88] sm:$0xff]
    %v123 = vld [vmem:[%s1 + $0x90] sm:$0xff]
    %v124 = vld [vmem:[%s1 + $0x98] sm:$0xff]
    %v125 = vld [vmem:[%s1 + $0xa0] sm:$0xff]
    %v126 = vld [vmem:[%s1 + $0xa8] sm:$0xff]
    %v127 = vld [vmem:[%s1 + $0xb0] sm:$0xff]
    %v128 = vld [vmem:[%s1 + $0xb8] sm:$0xff]
    %v129 = vld [vmem:[%s1 + $0xc0] sm:$0xff]
    %v130 = vld [vmem:[%s1 + $0xc8] sm:$0xff]
    %v131 = vld [vmem:[%s1 + $0xd0] sm:$0xff]
    %v132 = vld [vmem:[%s1 + $0xd8] sm:$0xff]
    %v133 = vld [vmem:[%s1 + $0xe0] sm:$0xff]
    %v134 = vld [vmem:[%s1 + $0xe8] sm:$0xff]
    %v135 = vld [vmem:[%s1 + $0xf0] sm:$0xff]
    %v136 = vld [vmem:[%s1 + $0xf8] sm:$0xff]
    %v137 = vld [vmem:[%s3] sm:$0xf]
    %v139 = vlaneseq
    %v140 = vshrl.u32 %v139, 7
    %v141 = vsub.s32 0, %v140
    %v142 = vrot.slane %v137, %v141
    %v143 = vlaneseq
    %v144 = vshrl.u32 %v143, 7
    %v145 = vsub.s32 1, %v144
    %v146 = vrot.slane %v137, %v145
    %v147 = vlaneseq
    %v148 = vshrl.u32 %v147, 7
    %v149 = vsub.s32 2, %v148
    %v150 = vrot.slane %v137, %v149
    %v151 = vlaneseq
    %v152 = vshrl.u32 %v151, 7
    %v153 = vsub.s32 3, %v152
    %v154 = vrot.slane %v137, %v153
    %v167 = vunpack.c.l.b16 %v97
    %v168 = vunpack.c.l.b16 %v98
    %v169 = vunpack.c.l.b16 %v99
    %v170 = vunpack.c.l.b16 %v100
    %v171 = vunpack.c.l.b16 %v101
    %v172 = vunpack.c.l.b16 %v102
    %v173 = vunpack.c.l.b16 %v103
    %v174 = vunpack.c.l.b16 %v104
    %v175 = vpack.c.b16 %v168, %v167
    %v176 = vpack.c.b16 %v170, %v169
    %v177 = vpack.c.b16 %v172, %v171
    %v178 = vpack.c.b16 %v174, %v173
    %v215 = vunpack.c.l.b16 %v105
    %v216 = vunpack.c.h.b16 %v105
    %v217 = vunpack.c.l.b16 %v106
    %v218 = vunpack.c.h.b16 %v106
    %v219 = vunpack.c.l.b16 %v107
    %v220 = vunpack.c.h.b16 %v107
    %v221 = vunpack.c.l.b16 %v108
    %v222 = vunpack.c.h.b16 %v108
    %v223 = vunpack.c.l.b16 %v109
    %v224 = vunpack.c.h.b16 %v109
    %v225 = vunpack.c.l.b16 %v110
    %v226 = vunpack.c.h.b16 %v110
    %v227 = vunpack.c.l.b16 %v111
    %v228 = vunpack.c.h.b16 %v111
    %v229 = vunpack.c.l.b16 %v112
    %v230 = vunpack.c.h.b16 %v112
    %v231 = vunpack.c.l.b16 %v113
    %v232 = vunpack.c.h.b16 %v113
    %v233 = vunpack.c.l.b16 %v114
    %v234 = vunpack.c.h.b16 %v114
    %v235 = vunpack.c.l.b16 %v115
    %v236 = vunpack.c.h.b16 %v115
    %v237 = vunpack.c.l.b16 %v116
    %v238 = vunpack.c.h.b16 %v116
    %v239 = vunpack.c.l.b16 %v117
    %v240 = vunpack.c.h.b16 %v117
    %v241 = vunpack.c.l.b16 %v118
    %v242 = vunpack.c.h.b16 %v118
    %v243 = vunpack.c.l.b16 %v119
    %v244 = vunpack.c.h.b16 %v119
    %v245 = vunpack.c.l.b16 %v120
    %v246 = vunpack.c.h.b16 %v120
    %v247 = vunpack.c.l.b16 %v121
    %v248 = vunpack.c.h.b16 %v121
    %v249 = vunpack.c.l.b16 %v122
    %v250 = vunpack.c.h.b16 %v122
    %v251 = vunpack.c.l.b16 %v123
    %v252 = vunpack.c.h.b16 %v123
    %v253 = vunpack.c.l.b16 %v124
    %v254 = vunpack.c.h.b16 %v124
    %v255 = vunpack.c.l.b16 %v125
    %v256 = vunpack.c.h.b16 %v125
    %v257 = vunpack.c.l.b16 %v126
    %v258 = vunpack.c.h.b16 %v126
    %v259 = vunpack.c.l.b16 %v127
    %v260 = vunpack.c.h.b16 %v127
    %v261 = vunpack.c.l.b16 %v128
    %v262 = vunpack.c.h.b16 %v128
    %v263 = vunpack.c.l.b16 %v129
    %v264 = vunpack.c.h.b16 %v129
    %v265 = vunpack.c.l.b16 %v130
    %v266 = vunpack.c.h.b16 %v130
    %v267 = vunpack.c.l.b16 %v131
    %v268 = vunpack.c.h.b16 %v131
    %v269 = vunpack.c.l.b16 %v132
    %v270 = vunpack.c.h.b16 %v132
    %v271 = vunpack.c.l.b16 %v133
    %v272 = vunpack.c.h.b16 %v133
    %v273 = vunpack.c.l.b16 %v134
    %v274 = vunpack.c.h.b16 %v134
    %v275 = vunpack.c.l.b16 %v135
    %v276 = vunpack.c.h.b16 %v135
    %v277 = vunpack.c.l.b16 %v136
    %v278 = vunpack.c.h.b16 %v136
    %v279 = vpack.c.b16 %v219, %v215
    %v280 = vpack.c.b16 %v220, %v216
    %v281 = vpack.c.b16 %v221, %v217
    %v282 = vpack.c.b16 %v222, %v218
    %v283 = vpack.c.b16 %v227, %v223
    %v284 = vpack.c.b16 %v228, %v224
    %v285 = vpack.c.b16 %v229, %v225
    %v286 = vpack.c.b16 %v230, %v226
    %v287 = vpack.c.b16 %v235, %v231
    %v288 = vpack.c.b16 %v236, %v232
    %v289 = vpack.c.b16 %v237, %v233
    %v290 = vpack.c.b16 %v238, %v234
    %v291 = vpack.c.b16 %v243, %v239
    %v292 = vpack.c.b16 %v244, %v240
    %v293 = vpack.c.b16 %v245, %v241
    %v294 = vpack.c.b16 %v246, %v242
    %v295 = vpack.c.b16 %v251, %v247
    %v296 = vpack.c.b16 %v252, %v248
    %v297 = vpack.c.b16 %v253, %v249
    %v298 = vpack.c.b16 %v254, %v250
    %v299 = vpack.c.b16 %v259, %v255
    %v300 = vpack.c.b16 %v260, %v256
    %v301 = vpack.c.b16 %v261, %v257
    %v302 = vpack.c.b16 %v262, %v258
    %v303 = vpack.c.b16 %v267, %v263
    %v304 = vpack.c.b16 %v268, %v264
    %v305 = vpack.c.b16 %v269, %v265
    %v306 = vpack.c.b16 %v270, %v266
    %v307 = vpack.c.b16 %v275, %v271
    %v308 = vpack.c.b16 %v276, %v272
    %v309 = vpack.c.b16 %v277, %v273
    %v310 = vpack.c.b16 %v278, %v274
    %343 = vmatprep.subr.bf16.mxu0 %v308
    %344 = vmatpush1.bf16.msra.mxu0 %v307
    %345 = vmatprep.subr.bf16.mxu0 %v304
    %346 = vmatpush1.bf16.msra.mxu0 %v303
    %347 = vmatprep.subr.bf16.mxu0 %v300
    %348 = vmatpush1.bf16.msra.mxu0 %v299
    %349 = vmatprep.subr.bf16.mxu0 %v296
    %350 = vmatpush1.bf16.msra.mxu0 %v295
    %351 = vmatprep.subr.bf16.mxu0 %v292
    %352 = vmatpush1.bf16.msra.mxu0 %v291
    %353 = vmatprep.subr.bf16.mxu0 %v288
    %354 = vmatpush1.bf16.msra.mxu0 %v287
    %355 = vmatprep.subr.bf16.mxu0 %v284
    %356 = vmatpush1.bf16.msra.mxu0 %v283
    %357 = vmatprep.subr.bf16.mxu0 %v280
    %358 = vmatpush1.bf16.msra.mxu0 %v279
    %359 = vmatprep.subr.bf16.mxu0 0
    %360 = vmatpush2.bf16.msra.mxu0 0
    %361 = vmatprep.subr.bf16.mxu0 0
    %362 = vmatpush2.bf16.msra.mxu0 0
    %363 = vmatprep.subr.bf16.mxu0 0
    %364 = vmatpush2.bf16.msra.mxu0 0
    %365 = vmatprep.subr.bf16.mxu0 0
    %366 = vmatpush2.bf16.msra.mxu0 0
    %367 = vmatprep.subr.bf16.mxu0 0
    %368 = vmatpush2.bf16.msra.mxu0 0
    %369 = vmatprep.subr.bf16.mxu0 0
    %370 = vmatpush2.bf16.msra.mxu0 0
    %371 = vmatprep.subr.bf16.mxu0 0
    %372 = vmatpush2.bf16.msra.mxu0 0
    %373 = vmatprep.subr.bf16.mxu0 0
    %374 = vmatpush2.bf16.msra.mxu0 0
    %375 = vmatprep.mubr.bf16.mxu0 0
    %376 = vmatmul.mubr.bf16.gmra.mxu0 %v175
    %v377 = vpop.f32.mrf.mxu0
    %v378 = vadd.f32 %v142, %v377
    %v379 = vpop.f32.mrf.mxu0
    %v380 = vadd.f32 %v146, %v379
    %v381 = vpop.f32.mrf.mxu0
    %v382 = vadd.f32 %v142, %v381
    %v383 = vpop.f32.mrf.mxu0
    %v384 = vadd.f32 %v146, %v383
    %385 = vmatprep.mubr.bf16.mxu0 0
    %386 = vmatmul.mubr.bf16.gmra.mxu0 %v176
    %v387 = vpop.f32.mrf.mxu0
    %v388 = vadd.f32 %v142, %v387
    %v389 = vpop.f32.mrf.mxu0
    %v390 = vadd.f32 %v146, %v389
    %v391 = vpop.f32.mrf.mxu0
    %v392 = vadd.f32 %v142, %v391
    %v393 = vpop.f32.mrf.mxu0
    %v394 = vadd.f32 %v146, %v393
    %395 = vmatprep.mubr.bf16.mxu0 0
    %396 = vmatmul.mubr.bf16.gmra.mxu0 %v177
    %v397 = vpop.f32.mrf.mxu0
    %v398 = vadd.f32 %v142, %v397
    %v399 = vpop.f32.mrf.mxu0
    %v400 = vadd.f32 %v146, %v399
    %v401 = vpop.f32.mrf.mxu0
    %v402 = vadd.f32 %v142, %v401
    %v403 = vpop.f32.mrf.mxu0
    %v404 = vadd.f32 %v146, %v403
    %405 = vmatprep.mubr.bf16.mxu0 0
    %406 = vmatmul.mubr.bf16.gmra.mxu0 %v178
    %v407 = vpop.f32.mrf.mxu0
    %v408 = vadd.f32 %v142, %v407
    %v409 = vpop.f32.mrf.mxu0
    %v410 = vadd.f32 %v146, %v409
    %v411 = vpop.f32.mrf.mxu0
    %v412 = vadd.f32 %v142, %v411
    %v413 = vpop.f32.mrf.mxu0
    %v414 = vadd.f32 %v146, %v413
    %415 = vdwg.mxu0
    %416 = vmatprep.subr.bf16.mxu0 %v310
    %417 = vmatpush1.bf16.msra.mxu0 %v309
    %418 = vmatprep.subr.bf16.mxu0 %v306
    %419 = vmatpush1.bf16.msra.mxu0 %v305
    %420 = vmatprep.subr.bf16.mxu0 %v302
    %421 = vmatpush1.bf16.msra.mxu0 %v301
    %422 = vmatprep.subr.bf16.mxu0 %v298
    %423 = vmatpush1.bf16.msra.mxu0 %v297
    %424 = vmatprep.subr.bf16.mxu0 %v294
    %425 = vmatpush1.bf16.msra.mxu0 %v293
    %426 = vmatprep.subr.bf16.mxu0 %v290
    %427 = vmatpush1.bf16.msra.mxu0 %v289
    %428 = vmatprep.subr.bf16.mxu0 %v286
    %429 = vmatpush1.bf16.msra.mxu0 %v285
    %430 = vmatprep.subr.bf16.mxu0 %v282
    %431 = vmatpush1.bf16.msra.mxu0 %v281
    %432 = vmatprep.subr.bf16.mxu0 0
    %433 = vmatpush2.bf16.msra.mxu0 0
    %434 = vmatprep.subr.bf16.mxu0 0
    %435 = vmatpush2.bf16.msra.mxu0 0
    %436 = vmatprep.subr.bf16.mxu0 0
    %437 = vmatpush2.bf16.msra.mxu0 0
    %438 = vmatprep.subr.bf16.mxu0 0
    %439 = vmatpush2.bf16.msra.mxu0 0
    %440 = vmatprep.subr.bf16.mxu0 0
    %441 = vmatpush2.bf16.msra.mxu0 0
    %442 = vmatprep.subr.bf16.mxu0 0
    %443 = vmatpush2.bf16.msra.mxu0 0
    %444 = vmatprep.subr.bf16.mxu0 0
    %445 = vmatpush2.bf16.msra.mxu0 0
    %446 = vmatprep.subr.bf16.mxu0 0
    %447 = vmatpush2.bf16.msra.mxu0 0
    %448 = vmatprep.mubr.bf16.mxu0 0
    %449 = vmatmul.mubr.bf16.gmra.mxu0 %v175
    %v450 = vpop.f32.mrf.mxu0
    %v451 = vadd.f32 %v150, %v450
    %v452 = vpop.f32.mrf.mxu0
    %v453 = vadd.f32 %v154, %v452
    %v454 = vpop.f32.mrf.mxu0
    %v455 = vadd.f32 %v150, %v454
    %v456 = vpop.f32.mrf.mxu0
    %v457 = vadd.f32 %v154, %v456
    %458 = vmatprep.mubr.bf16.mxu0 0
    %459 = vmatmul.mubr.bf16.gmra.mxu0 %v176
    %v460 = vpop.f32.mrf.mxu0
    %v461 = vadd.f32 %v150, %v460
    %v462 = vpop.f32.mrf.mxu0
    %v463 = vadd.f32 %v154, %v462
    %v464 = vpop.f32.mrf.mxu0
    %v465 = vadd.f32 %v150, %v464
    %v466 = vpop.f32.mrf.mxu0
    %v467 = vadd.f32 %v154, %v466
    %468 = vmatprep.mubr.bf16.mxu0 0
    %469 = vmatmul.mubr.bf16.gmra.mxu0 %v177
    %v470 = vpop.f32.mrf.mxu0
    %v471 = vadd.f32 %v150, %v470
    %v472 = vpop.f32.mrf.mxu0
    %v473 = vadd.f32 %v154, %v472
    %v474 = vpop.f32.mrf.mxu0
    %v475 = vadd.f32 %v150, %v474
    %v476 = vpop.f32.mrf.mxu0
    %v477 = vadd.f32 %v154, %v476
    %478 = vmatprep.mubr.bf16.mxu0 0
    %479 = vmatmul.mubr.bf16.gmra.mxu0 %v178
    %v480 = vpop.f32.mrf.mxu0
    %v481 = vadd.f32 %v150, %v480
    %v482 = vpop.f32.mrf.mxu0
    %v483 = vadd.f32 %v154, %v482
    %v484 = vpop.f32.mrf.mxu0
    %v485 = vadd.f32 %v150, %v484
    %v486 = vpop.f32.mrf.mxu0
    %v487 = vadd.f32 %v154, %v486
    %488 = vdwg.mxu0
    %v489 = vld [vmem:[#allocation2] sm:$0xff]
    %v490 = vld [vmem:[#allocation2 + $0x8] sm:$0xff]
    %v491 = vld [vmem:[#allocation2 + $0x10] sm:$0xff]
    %v492 = vld [vmem:[#allocation2 + $0x18] sm:$0xff]
    %v493 = vld [vmem:[#allocation2 + $0x20] sm:$0xff]
    %v494 = vld [vmem:[#allocation2 + $0x28] sm:$0xff]
    %v495 = vld [vmem:[#allocation2 + $0x30] sm:$0xff]
    %v496 = vld [vmem:[#allocation2 + $0x38] sm:$0xff]
    %v497 = vld [vmem:[#allocation2 + $0x40] sm:$0xff]
    %v498 = vld [vmem:[#allocation2 + $0x48] sm:$0xff]
    %v499 = vld [vmem:[#allocation2 + $0x50] sm:$0xff]
    %v500 = vld [vmem:[#allocation2 + $0x58] sm:$0xff]
    %v501 = vld [vmem:[#allocation2 + $0x60] sm:$0xff]
    %v502 = vld [vmem:[#allocation2 + $0x68] sm:$0xff]
    %v503 = vld [vmem:[#allocation2 + $0x70] sm:$0xff]
    %v504 = vld [vmem:[#allocation2 + $0x78] sm:$0xff]
    %v505 = vld [vmem:[#allocation2 + $0x80] sm:$0xff]
    %v506 = vld [vmem:[#allocation2 + $0x88] sm:$0xff]
    %v507 = vld [vmem:[#allocation2 + $0x90] sm:$0xff]
    %v508 = vld [vmem:[#allocation2 + $0x98] sm:$0xff]
    %v509 = vld [vmem:[#allocation2 + $0xa0] sm:$0xff]
    %v510 = vld [vmem:[#allocation2 + $0xa8] sm:$0xff]
    %v511 = vld [vmem:[#allocation2 + $0xb0] sm:$0xff]
    %v512 = vld [vmem:[#allocation2 + $0xb8] sm:$0xff]
    %v513 = vld [vmem:[#allocation2 + $0xc0] sm:$0xff]
    %v514 = vld [vmem:[#allocation2 + $0xc8] sm:$0xff]
    %v515 = vld [vmem:[#allocation2 + $0xd0] sm:$0xff]
    %v516 = vld [vmem:[#allocation2 + $0xd8] sm:$0xff]
    %v517 = vld [vmem:[#allocation2 + $0xe0] sm:$0xff]
    %v518 = vld [vmem:[#allocation2 + $0xe8] sm:$0xff]
    %v519 = vld [vmem:[#allocation2 + $0xf0] sm:$0xff]
    %v520 = vld [vmem:[#allocation2 + $0xf8] sm:$0xff]
    %v521 = vld [vmem:[#allocation4] sm:$0xff]
    %v522 = vld [vmem:[#allocation4 + $0x8] sm:$0xff]
    %v523 = vld [vmem:[#allocation4 + $0x10] sm:$0xff]
    %v524 = vld [vmem:[#allocation4 + $0x18] sm:$0xff]
    %v525 = vld [vmem:[#allocation4 + $0x20] sm:$0xff]
    %v526 = vld [vmem:[#allocation4 + $0x28] sm:$0xff]
    %v527 = vld [vmem:[#allocation4 + $0x30] sm:$0xff]
    %v528 = vld [vmem:[#allocation4 + $0x38] sm:$0xff]
    %v529 = vld [vmem:[#allocation4 + $0x40] sm:$0xff]
    %v530 = vld [vmem:[#allocation4 + $0x48] sm:$0xff]
    %v531 = vld [vmem:[#allocation4 + $0x50] sm:$0xff]
    %v532 = vld [vmem:[#allocation4 + $0x58] sm:$0xff]
    %v533 = vld [vmem:[#allocation4 + $0x60] sm:$0xff]
    %v534 = vld [vmem:[#allocation4 + $0x68] sm:$0xff]
    %v535 = vld [vmem:[#allocation4 + $0x70] sm:$0xff]
    %v536 = vld [vmem:[#allocation4 + $0x78] sm:$0xff]
    %v537 = vld [vmem:[#allocation4 + $0x80] sm:$0xff]
    %v538 = vld [vmem:[#allocation4 + $0x88] sm:$0xff]
    %v539 = vld [vmem:[#allocation4 + $0x90] sm:$0xff]
    %v540 = vld [vmem:[#allocation4 + $0x98] sm:$0xff]
    %v541 = vld [vmem:[#allocation4 + $0xa0] sm:$0xff]
    %v542 = vld [vmem:[#allocation4 + $0xa8] sm:$0xff]
    %v543 = vld [vmem:[#allocation4 + $0xb0] sm:$0xff]
    %v544 = vld [vmem:[#allocation4 + $0xb8] sm:$0xff]
    %v545 = vld [vmem:[#allocation4 + $0xc0] sm:$0xff]
    %v546 = vld [vmem:[#allocation4 + $0xc8] sm:$0xff]
    %v547 = vld [vmem:[#allocation4 + $0xd0] sm:$0xff]
    %v548 = vld [vmem:[#allocation4 + $0xd8] sm:$0xff]
    %v549 = vld [vmem:[#allocation4 + $0xe0] sm:$0xff]
    %v550 = vld [vmem:[#allocation4 + $0xe8] sm:$0xff]
    %v551 = vld [vmem:[#allocation4 + $0xf0] sm:$0xff]
    %v552 = vld [vmem:[#allocation4 + $0xf8] sm:$0xff]
    %v553 = vld [vmem:[#allocation6] sm:$0xff]
    %v554 = vld [vmem:[#allocation6 + $0x8] sm:$0xff]
    %v555 = vld [vmem:[#allocation6 + $0x10] sm:$0xff]
    %v556 = vld [vmem:[#allocation6 + $0x18] sm:$0xff]
    %v557 = vld [vmem:[#allocation6 + $0x20] sm:$0xff]
    %v558 = vld [vmem:[#allocation6 + $0x28] sm:$0xff]
    %v559 = vld [vmem:[#allocation6 + $0x30] sm:$0xff]
    %v560 = vld [vmem:[#allocation6 + $0x38] sm:$0xff]
    %v561 = vld [vmem:[#allocation6 + $0x40] sm:$0xff]
    %v562 = vld [vmem:[#allocation6 + $0x48] sm:$0xff]
    %v563 = vld [vmem:[#allocation6 + $0x50] sm:$0xff]
    %v564 = vld [vmem:[#allocation6 + $0x58] sm:$0xff]
    %v565 = vld [vmem:[#allocation6 + $0x60] sm:$0xff]
    %v566 = vld [vmem:[#allocation6 + $0x68] sm:$0xff]
    %v567 = vld [vmem:[#allocation6 + $0x70] sm:$0xff]
    %v568 = vld [vmem:[#allocation6 + $0x78] sm:$0xff]
    %v569 = vld [vmem:[#allocation6 + $0x80] sm:$0xff]
    %v570 = vld [vmem:[#allocation6 + $0x88] sm:$0xff]
    %v571 = vld [vmem:[#allocation6 + $0x90] sm:$0xff]
    %v572 = vld [vmem:[#allocation6 + $0x98] sm:$0xff]
    %v573 = vld [vmem:[#allocation6 + $0xa0] sm:$0xff]
    %v574 = vld [vmem:[#allocation6 + $0xa8] sm:$0xff]
    %v575 = vld [vmem:[#allocation6 + $0xb0] sm:$0xff]
    %v576 = vld [vmem:[#allocation6 + $0xb8] sm:$0xff]
    %v577 = vld [vmem:[#allocation6 + $0xc0] sm:$0xff]
    %v578 = vld [vmem:[#allocation6 + $0xc8] sm:$0xff]
    %v579 = vld [vmem:[#allocation6 + $0xd0] sm:$0xff]
    %v580 = vld [vmem:[#allocation6 + $0xd8] sm:$0xff]
    %v581 = vld [vmem:[#allocation6 + $0xe0] sm:$0xff]
    %v582 = vld [vmem:[#allocation6 + $0xe8] sm:$0xff]
    %v583 = vld [vmem:[#allocation6 + $0xf0] sm:$0xff]
    %v584 = vld [vmem:[#allocation6 + $0xf8] sm:$0xff]
    %v585 = vld [vmem:[%s6] sm:$0xf]
    %v586 = vld [vmem:[%s7] sm:$0xff]
    %v587 = vld [vmem:[%s7 + $0x8] sm:$0xff]
    %v588 = vld [vmem:[%s7 + $0x10] sm:$0xff]
    %v589 = vld [vmem:[%s7 + $0x18] sm:$0xff]
    %v590 = vld [vmem:[%s7 + $0x20] sm:$0xff]
    %v591 = vld [vmem:[%s7 + $0x28] sm:$0xff]
    %v592 = vld [vmem:[%s7 + $0x30] sm:$0xff]
    %v593 = vld [vmem:[%s7 + $0x38] sm:$0xff]
    %v594 = vld [vmem:[%s7 + $0x40] sm:$0xff]
    %v595 = vld [vmem:[%s7 + $0x48] sm:$0xff]
    %v596 = vld [vmem:[%s7 + $0x50] sm:$0xff]
    %v597 = vld [vmem:[%s7 + $0x58] sm:$0xff]
    %v598 = vld [vmem:[%s7 + $0x60] sm:$0xff]
    %v599 = vld [vmem:[%s7 + $0x68] sm:$0xff]
    %v600 = vld [vmem:[%s7 + $0x70] sm:$0xff]
    %v601 = vld [vmem:[%s7 + $0x78] sm:$0xff]
    %v602 = vld [vmem:[%s7 + $0x80] sm:$0xff]
    %v603 = vld [vmem:[%s7 + $0x88] sm:$0xff]
    %v604 = vld [vmem:[%s7 + $0x90] sm:$0xff]
    %v605 = vld [vmem:[%s7 + $0x98] sm:$0xff]
    %v606 = vld [vmem:[%s7 + $0xa0] sm:$0xff]
    %v607 = vld [vmem:[%s7 + $0xa8] sm:$0xff]
    %v608 = vld [vmem:[%s7 + $0xb0] sm:$0xff]
    %v609 = vld [vmem:[%s7 + $0xb8] sm:$0xff]
    %v610 = vld [vmem:[%s7 + $0xc0] sm:$0xff]
    %v611 = vld [vmem:[%s7 + $0xc8] sm:$0xff]
    %v612 = vld [vmem:[%s7 + $0xd0] sm:$0xff]
    %v613 = vld [vmem:[%s7 + $0xd8] sm:$0xff]
    %v614 = vld [vmem:[%s7 + $0xe0] sm:$0xff]
    %v615 = vld [vmem:[%s7 + $0xe8] sm:$0xff]
    %v616 = vld [vmem:[%s7 + $0xf0] sm:$0xff]
    %v617 = vld [vmem:[%s7 + $0xf8] sm:$0xff]
    %v618 = vld [vmem:[%s7 + $0x100] sm:$0xff]
    %v619 = vld [vmem:[%s7 + $0x108] sm:$0xff]
    %v620 = vld [vmem:[%s7 + $0x110] sm:$0xff]
    %v621 = vld [vmem:[%s7 + $0x118] sm:$0xff]
    %v622 = vld [vmem:[%s7 + $0x120] sm:$0xff]
    %v623 = vld [vmem:[%s7 + $0x128] sm:$0xff]
    %v624 = vld [vmem:[%s7 + $0x130] sm:$0xff]
    %v625 = vld [vmem:[%s7 + $0x138] sm:$0xff]
    %v626 = vld [vmem:[%s7 + $0x140] sm:$0xff]
    %v627 = vld [vmem:[%s7 + $0x148] sm:$0xff]
    %v628 = vld [vmem:[%s7 + $0x150] sm:$0xff]
    %v629 = vld [vmem:[%s7 + $0x158] sm:$0xff]
    %v630 = vld [vmem:[%s7 + $0x160] sm:$0xff]
    %v631 = vld [vmem:[%s7 + $0x168] sm:$0xff]
    %v632 = vld [vmem:[%s7 + $0x170] sm:$0xff]
    %v633 = vld [vmem:[%s7 + $0x178] sm:$0xff]
    %v634 = vld [vmem:[%s7 + $0x180] sm:$0xff]
    %v635 = vld [vmem:[%s7 + $0x188] sm:$0xff]
    %v636 = vld [vmem:[%s7 + $0x190] sm:$0xff]
    %v637 = vld [vmem:[%s7 + $0x198] sm:$0xff]
    %v638 = vld [vmem:[%s7 + $0x1a0] sm:$0xff]
    %v639 = vld [vmem:[%s7 + $0x1a8] sm:$0xff]
    %v640 = vld [vmem:[%s7 + $0x1b0] sm:$0xff]
    %v641 = vld [vmem:[%s7 + $0x1b8] sm:$0xff]
    %v642 = vld [vmem:[%s7 + $0x1c0] sm:$0xff]
    %v643 = vld [vmem:[%s7 + $0x1c8] sm:$0xff]
    %v644 = vld [vmem:[%s7 + $0x1d0] sm:$0xff]
    %v645 = vld [vmem:[%s7 + $0x1d8] sm:$0xff]
    %v646 = vld [vmem:[%s7 + $0x1e0] sm:$0xff]
    %v647 = vld [vmem:[%s7 + $0x1e8] sm:$0xff]
    %v648 = vld [vmem:[%s7 + $0x1f0] sm:$0xff]
    %v649 = vld [vmem:[%s7 + $0x1f8] sm:$0xff]
    %v650 = vld [vmem:[#allocation7] sm:$0xff]
    %v651 = vld [vmem:[#allocation7 + $0x8] sm:$0xff]
    %v652 = vld [vmem:[#allocation7 + $0x10] sm:$0xff]
    %v653 = vld [vmem:[#allocation7 + $0x18] sm:$0xff]
    %v654 = vld [vmem:[#allocation7 + $0x20] sm:$0xff]
    %v655 = vld [vmem:[#allocation7 + $0x28] sm:$0xff]
    %v656 = vld [vmem:[#allocation7 + $0x30] sm:$0xff]
    %v657 = vld [vmem:[#allocation7 + $0x38] sm:$0xff]
    %v658 = vld [vmem:[#allocation7 + $0x40] sm:$0xff]
    %v659 = vld [vmem:[#allocation7 + $0x48] sm:$0xff]
    %v660 = vld [vmem:[#allocation7 + $0x50] sm:$0xff]
    %v661 = vld [vmem:[#allocation7 + $0x58] sm:$0xff]
    %v662 = vld [vmem:[#allocation7 + $0x60] sm:$0xff]
    %v663 = vld [vmem:[#allocation7 + $0x68] sm:$0xff]
    %v664 = vld [vmem:[#allocation7 + $0x70] sm:$0xff]
    %v665 = vld [vmem:[#allocation7 + $0x78] sm:$0xff]
    %v666 = vld [vmem:[#allocation7 + $0x80] sm:$0xff]
    %v667 = vld [vmem:[#allocation7 + $0x88] sm:$0xff]
    %v668 = vld [vmem:[#allocation7 + $0x90] sm:$0xff]
    %v669 = vld [vmem:[#allocation7 + $0x98] sm:$0xff]
    %v670 = vld [vmem:[#allocation7 + $0xa0] sm:$0xff]
    %v671 = vld [vmem:[#allocation7 + $0xa8] sm:$0xff]
    %v672 = vld [vmem:[#allocation7 + $0xb0] sm:$0xff]
    %v673 = vld [vmem:[#allocation7 + $0xb8] sm:$0xff]
    %v674 = vld [vmem:[#allocation7 + $0xc0] sm:$0xff]
    %v675 = vld [vmem:[#allocation7 + $0xc8] sm:$0xff]
    %v676 = vld [vmem:[#allocation7 + $0xd0] sm:$0xff]
    %v677 = vld [vmem:[#allocation7 + $0xd8] sm:$0xff]
    %v678 = vld [vmem:[#allocation7 + $0xe0] sm:$0xff]
    %v679 = vld [vmem:[#allocation7 + $0xe8] sm:$0xff]
    %v680 = vld [vmem:[#allocation7 + $0xf0] sm:$0xff]
    %v681 = vld [vmem:[#allocation7 + $0xf8] sm:$0xff]
    %v682 = vld [vmem:[#allocation7 + $0x100] sm:$0xff]
    %v683 = vld [vmem:[#allocation7 + $0x108] sm:$0xff]
    %v684 = vld [vmem:[#allocation7 + $0x110] sm:$0xff]
    %v685 = vld [vmem:[#allocation7 + $0x118] sm:$0xff]
    %v686 = vld [vmem:[#allocation7 + $0x120] sm:$0xff]
    %v687 = vld [vmem:[#allocation7 + $0x128] sm:$0xff]
    %v688 = vld [vmem:[#allocation7 + $0x130] sm:$0xff]
    %v689 = vld [vmem:[#allocation7 + $0x138] sm:$0xff]
    %v690 = vld [vmem:[#allocation7 + $0x140] sm:$0xff]
    %v691 = vld [vmem:[#allocation7 + $0x148] sm:$0xff]
    %v692 = vld [vmem:[#allocation7 + $0x150] sm:$0xff]
    %v693 = vld [vmem:[#allocation7 + $0x158] sm:$0xff]
    %v694 = vld [vmem:[#allocation7 + $0x160] sm:$0xff]
    %v695 = vld [vmem:[#allocation7 + $0x168] sm:$0xff]
    %v696 = vld [vmem:[#allocation7 + $0x170] sm:$0xff]
    %v697 = vld [vmem:[#allocation7 + $0x178] sm:$0xff]
    %v698 = vld [vmem:[#allocation7 + $0x180] sm:$0xff]
    %v699 = vld [vmem:[#allocation7 + $0x188] sm:$0xff]
    %v700 = vld [vmem:[#allocation7 + $0x190] sm:$0xff]
    %v701 = vld [vmem:[#allocation7 + $0x198] sm:$0xff]
    %v702 = vld [vmem:[#allocation7 + $0x1a0] sm:$0xff]
    %v703 = vld [vmem:[#allocation7 + $0x1a8] sm:$0xff]
    %v704 = vld [vmem:[#allocation7 + $0x1b0] sm:$0xff]
    %v705 = vld [vmem:[#allocation7 + $0x1b8] sm:$0xff]
    %v706 = vld [vmem:[#allocation7 + $0x1c0] sm:$0xff]
    %v707 = vld [vmem:[#allocation7 + $0x1c8] sm:$0xff]
    %v708 = vld [vmem:[#allocation7 + $0x1d0] sm:$0xff]
    %v709 = vld [vmem:[#allocation7 + $0x1d8] sm:$0xff]
    %v710 = vld [vmem:[#allocation7 + $0x1e0] sm:$0xff]
    %v711 = vld [vmem:[#allocation7 + $0x1e8] sm:$0xff]
    %v712 = vld [vmem:[#allocation7 + $0x1f0] sm:$0xff]
    %v713 = vld [vmem:[#allocation7 + $0x1f8] sm:$0xff]
    %v714 = vld [vmem:[#allocation7 + $0x200] sm:$0xff]
    %v715 = vld [vmem:[#allocation7 + $0x208] sm:$0xff]
    %v716 = vld [vmem:[#allocation7 + $0x210] sm:$0xff]
    %v717 = vld [vmem:[#allocation7 + $0x218] sm:$0xff]
    %v718 = vld [vmem:[#allocation7 + $0x220] sm:$0xff]
    %v719 = vld [vmem:[#allocation7 + $0x228] sm:$0xff]
    %v720 = vld [vmem:[#allocation7 + $0x230] sm:$0xff]
    %v721 = vld [vmem:[#allocation7 + $0x238] sm:$0xff]
    %v722 = vld [vmem:[#allocation7 + $0x240] sm:$0xff]
    %v723 = vld [vmem:[#allocation7 + $0x248] sm:$0xff]
    %v724 = vld [vmem:[#allocation7 + $0x250] sm:$0xff]
    %v725 = vld [vmem:[#allocation7 + $0x258] sm:$0xff]
    %v726 = vld [vmem:[#allocation7 + $0x260] sm:$0xff]
    %v727 = vld [vmem:[#allocation7 + $0x268] sm:$0xff]
    %v728 = vld [vmem:[#allocation7 + $0x270] sm:$0xff]
    %v729 = vld [vmem:[#allocation7 + $0x278] sm:$0xff]
    %v730 = vld [vmem:[#allocation7 + $0x280] sm:$0xff]
    %v731 = vld [vmem:[#allocation7 + $0x288] sm:$0xff]
    %v732 = vld [vmem:[#allocation7 + $0x290] sm:$0xff]
    %v733 = vld [vmem:[#allocation7 + $0x298] sm:$0xff]
    %v734 = vld [vmem:[#allocation7 + $0x2a0] sm:$0xff]
    %v735 = vld [vmem:[#allocation7 + $0x2a8] sm:$0xff]
    %v736 = vld [vmem:[#allocation7 + $0x2b0] sm:$0xff]
    %v737 = vld [vmem:[#allocation7 + $0x2b8] sm:$0xff]
    %v738 = vld [vmem:[#allocation7 + $0x2c0] sm:$0xff]
    %v739 = vld [vmem:[#allocation7 + $0x2c8] sm:$0xff]
    %v740 = vld [vmem:[#allocation7 + $0x2d0] sm:$0xff]
    %v741 = vld [vmem:[#allocation7 + $0x2d8] sm:$0xff]
    %v742 = vld [vmem:[#allocation7 + $0x2e0] sm:$0xff]
    %v743 = vld [vmem:[#allocation7 + $0x2e8] sm:$0xff]
    %v744 = vld [vmem:[#allocation7 + $0x2f0] sm:$0xff]
    %v745 = vld [vmem:[#allocation7 + $0x2f8] sm:$0xff]
    %v746 = vld [vmem:[#allocation7 + $0x300] sm:$0xff]
    %v747 = vld [vmem:[#allocation7 + $0x308] sm:$0xff]
    %v748 = vld [vmem:[#allocation7 + $0x310] sm:$0xff]
    %v749 = vld [vmem:[#allocation7 + $0x318] sm:$0xff]
    %v750 = vld [vmem:[#allocation7 + $0x320] sm:$0xff]
    %v751 = vld [vmem:[#allocation7 + $0x328] sm:$0xff]
    %v752 = vld [vmem:[#allocation7 + $0x330] sm:$0xff]
    %v753 = vld [vmem:[#allocation7 + $0x338] sm:$0xff]
    %v754 = vld [vmem:[#allocation7 + $0x340] sm:$0xff]
    %v755 = vld [vmem:[#allocation7 + $0x348] sm:$0xff]
    %v756 = vld [vmem:[#allocation7 + $0x350] sm:$0xff]
    %v757 = vld [vmem:[#allocation7 + $0x358] sm:$0xff]
    %v758 = vld [vmem:[#allocation7 + $0x360] sm:$0xff]
    %v759 = vld [vmem:[#allocation7 + $0x368] sm:$0xff]
    %v760 = vld [vmem:[#allocation7 + $0x370] sm:$0xff]
    %v761 = vld [vmem:[#allocation7 + $0x378] sm:$0xff]
    %v762 = vld [vmem:[#allocation7 + $0x380] sm:$0xff]
    %v763 = vld [vmem:[#allocation7 + $0x388] sm:$0xff]
    %v764 = vld [vmem:[#allocation7 + $0x390] sm:$0xff]
    %v765 = vld [vmem:[#allocation7 + $0x398] sm:$0xff]
    %v766 = vld [vmem:[#allocation7 + $0x3a0] sm:$0xff]
    %v767 = vld [vmem:[#allocation7 + $0x3a8] sm:$0xff]
    %v768 = vld [vmem:[#allocation7 + $0x3b0] sm:$0xff]
    %v769 = vld [vmem:[#allocation7 + $0x3b8] sm:$0xff]
    %v770 = vld [vmem:[#allocation7 + $0x3c0] sm:$0xff]
    %v771 = vld [vmem:[#allocation7 + $0x3c8] sm:$0xff]
    %v772 = vld [vmem:[#allocation7 + $0x3d0] sm:$0xff]
    %v773 = vld [vmem:[#allocation7 + $0x3d8] sm:$0xff]
    %v774 = vld [vmem:[#allocation7 + $0x3e0] sm:$0xff]
    %v775 = vld [vmem:[#allocation7 + $0x3e8] sm:$0xff]
    %v776 = vld [vmem:[#allocation7 + $0x3f0] sm:$0xff]
    %v777 = vld [vmem:[#allocation7 + $0x3f8] sm:$0xff]
    %v778 = vld [vmem:[%s9] sm:$0xff]
    %v811 = vunpack.c.l.b16 %v489
    %v812 = vunpack.c.h.b16 %v489
    %v813 = vunpack.c.l.b16 %v490
    %v814 = vunpack.c.h.b16 %v490
    %v815 = vunpack.c.l.b16 %v491
    %v816 = vunpack.c.h.b16 %v491
    %v817 = vunpack.c.l.b16 %v492
    %v818 = vunpack.c.h.b16 %v492
    %v819 = vunpack.c.l.b16 %v493
    %v820 = vunpack.c.h.b16 %v493
    %v821 = vunpack.c.l.b16 %v494
    %v822 = vunpack.c.h.b16 %v494
    %v823 = vunpack.c.l.b16 %v495
    %v824 = vunpack.c.h.b16 %v495
    %v825 = vunpack.c.l.b16 %v496
    %v826 = vunpack.c.h.b16 %v496
    %v827 = vunpack.c.l.b16 %v497
    %v828 = vunpack.c.h.b16 %v497
    %v829 = vunpack.c.l.b16 %v498
    %v830 = vunpack.c.h.b16 %v498
    %v831 = vunpack.c.l.b16 %v499
    %v832 = vunpack.c.h.b16 %v499
    %v833 = vunpack.c.l.b16 %v500
    %v834 = vunpack.c.h.b16 %v500
    %v835 = vunpack.c.l.b16 %v501
    %v836 = vunpack.c.h.b16 %v501
    %v837 = vunpack.c.l.b16 %v502
    %v838 = vunpack.c.h.b16 %v502
    %v839 = vunpack.c.l.b16 %v503
    %v840 = vunpack.c.h.b16 %v503
    %v841 = vunpack.c.l.b16 %v504
    %v842 = vunpack.c.h.b16 %v504
    %v843 = vunpack.c.l.b16 %v505
    %v844 = vunpack.c.h.b16 %v505
    %v845 = vunpack.c.l.b16 %v506
    %v846 = vunpack.c.h.b16 %v506
    %v847 = vunpack.c.l.b16 %v507
    %v848 = vunpack.c.h.b16 %v507
    %v849 = vunpack.c.l.b16 %v508
    %v850 = vunpack.c.h.b16 %v508
    %v851 = vunpack.c.l.b16 %v509
    %v852 = vunpack.c.h.b16 %v509
    %v853 = vunpack.c.l.b16 %v510
    %v854 = vunpack.c.h.b16 %v510
    %v855 = vunpack.c.l.b16 %v511
    %v856 = vunpack.c.h.b16 %v511
    %v857 = vunpack.c.l.b16 %v512
    %v858 = vunpack.c.h.b16 %v512
    %v859 = vunpack.c.l.b16 %v513
    %v860 = vunpack.c.h.b16 %v513
    %v861 = vunpack.c.l.b16 %v514
    %v862 = vunpack.c.h.b16 %v514
    %v863 = vunpack.c.l.b16 %v515
    %v864 = vunpack.c.h.b16 %v515
    %v865 = vunpack.c.l.b16 %v516
    %v866 = vunpack.c.h.b16 %v516
    %v867 = vunpack.c.l.b16 %v517
    %v868 = vunpack.c.h.b16 %v517
    %v869 = vunpack.c.l.b16 %v518
    %v870 = vunpack.c.h.b16 %v518
    %v871 = vunpack.c.l.b16 %v519
    %v872 = vunpack.c.h.b16 %v519
    %v873 = vunpack.c.l.b16 %v520
    %v874 = vunpack.c.h.b16 %v520
    %v875 = vpack.c.b16 %v815, %v811
    %v876 = vpack.c.b16 %v816, %v812
    %v877 = vpack.c.b16 %v817, %v813
    %v878 = vpack.c.b16 %v818, %v814
    %v879 = vpack.c.b16 %v823, %v819
    %v880 = vpack.c.b16 %v824, %v820
    %v881 = vpack.c.b16 %v825, %v821
    %v882 = vpack.c.b16 %v826, %v822
    %v883 = vpack.c.b16 %v831, %v827
    %v884 = vpack.c.b16 %v832, %v828
    %v885 = vpack.c.b16 %v833, %v829
    %v886 = vpack.c.b16 %v834, %v830
    %v887 = vpack.c.b16 %v839, %v835
    %v888 = vpack.c.b16 %v840, %v836
    %v889 = vpack.c.b16 %v841, %v837
    %v890 = vpack.c.b16 %v842, %v838
    %v891 = vpack.c.b16 %v847, %v843
    %v892 = vpack.c.b16 %v848, %v844
    %v893 = vpack.c.b16 %v849, %v845
    %v894 = vpack.c.b16 %v850, %v846
    %v895 = vpack.c.b16 %v855, %v851
    %v896 = vpack.c.b16 %v856, %v852
    %v897 = vpack.c.b16 %v857, %v853
    %v898 = vpack.c.b16 %v858, %v854
    %v899 = vpack.c.b16 %v863, %v859
    %v900 = vpack.c.b16 %v864, %v860
    %v901 = vpack.c.b16 %v865, %v861
    %v902 = vpack.c.b16 %v866, %v862
    %v903 = vpack.c.b16 %v871, %v867
    %v904 = vpack.c.b16 %v872, %v868
    %v905 = vpack.c.b16 %v873, %v869
    %v906 = vpack.c.b16 %v874, %v870
    %939 = vmatprep.subr.bf16.mxu0 %v904
    %940 = vmatpush1.bf16.msra.mxu0 %v903
    %941 = vmatprep.subr.bf16.mxu0 %v900
    %942 = vmatpush1.bf16.msra.mxu0 %v899
    %943 = vmatprep.subr.bf16.mxu0 %v896
    %944 = vmatpush1.bf16.msra.mxu0 %v895
    %945 = vmatprep.subr.bf16.mxu0 %v892
    %946 = vmatpush1.bf16.msra.mxu0 %v891
    %947 = vmatprep.subr.bf16.mxu0 %v888
    %948 = vmatpush1.bf16.msra.mxu0 %v887
    %949 = vmatprep.subr.bf16.mxu0 %v884
    %950 = vmatpush1.bf16.msra.mxu0 %v883
    %951 = vmatprep.subr.bf16.mxu0 %v880
    %952 = vmatpush1.bf16.msra.mxu0 %v879
    %953 = vmatprep.subr.bf16.mxu0 %v876
    %954 = vmatpush1.bf16.msra.mxu0 %v875
    %955 = vmatprep.subr.bf16.mxu0 0
    %956 = vmatpush2.bf16.msra.mxu0 0
    %957 = vmatprep.subr.bf16.mxu0 0
    %958 = vmatpush2.bf16.msra.mxu0 0
    %959 = vmatprep.subr.bf16.mxu0 0
    %960 = vmatpush2.bf16.msra.mxu0 0
    %961 = vmatprep.subr.bf16.mxu0 0
    %962 = vmatpush2.bf16.msra.mxu0 0
    %963 = vmatprep.subr.bf16.mxu0 0
    %964 = vmatpush2.bf16.msra.mxu0 0
    %965 = vmatprep.subr.bf16.mxu0 0
    %966 = vmatpush2.bf16.msra.mxu0 0
    %967 = vmatprep.subr.bf16.mxu0 0
    %968 = vmatpush2.bf16.msra.mxu0 0
    %969 = vmatprep.subr.bf16.mxu0 0
    %970 = vmatpush2.bf16.msra.mxu0 0
    %971 = vmatprep.mubr.bf16.mxu0 0
    %972 = vmatmul.mubr.bf16.gmra.mxu0 0
    %v973 = vpop.f32.mrf.mxu0
    %v974 = vadd.f32 0.0, %v973
    %v975 = vpop.f32.mrf.mxu0
    %v976 = vadd.f32 0.0, %v975
    %v977 = vpop.f32.mrf.mxu0
    %v978 = vpop.f32.mrf.mxu0
    %979 = vdwg.mxu0
    %980 = vmatprep.subr.bf16.mxu0 %v906
    %981 = vmatpush1.bf16.msra.mxu0 %v905
    %982 = vmatprep.subr.bf16.mxu0 %v902
    %983 = vmatpush1.bf16.msra.mxu0 %v901
    %984 = vmatprep.subr.bf16.mxu0 %v898
    %985 = vmatpush1.bf16.msra.mxu0 %v897
    %986 = vmatprep.subr.bf16.mxu0 %v894
    %987 = vmatpush1.bf16.msra.mxu0 %v893
    %988 = vmatprep.subr.bf16.mxu0 %v890
    %989 = vmatpush1.bf16.msra.mxu0 %v889
    %990 = vmatprep.subr.bf16.mxu0 %v886
    %991 = vmatpush1.bf16.msra.mxu0 %v885
    %992 = vmatprep.subr.bf16.mxu0 %v882
    %993 = vmatpush1.bf16.msra.mxu0 %v881
    %994 = vmatprep.subr.bf16.mxu0 %v878
    %995 = vmatpush1.bf16.msra.mxu0 %v877
    %996 = vmatprep.subr.bf16.mxu0 0
    %997 = vmatpush2.bf16.msra.mxu0 0
    %998 = vmatprep.subr.bf16.mxu0 0
    %999 = vmatpush2.bf16.msra.mxu0 0
    %1000 = vmatprep.subr.bf16.mxu0 0
    %1001 = vmatpush2.bf16.msra.mxu0 0
    %1002 = vmatprep.subr.bf16.mxu0 0
    %1003 = vmatpush2.bf16.msra.mxu0 0
    %1004 = vmatprep.subr.bf16.mxu0 0
    %1005 = vmatpush2.bf16.msra.mxu0 0
    %1006 = vmatprep.subr.bf16.mxu0 0
    %1007 = vmatpush2.bf16.msra.mxu0 0
    %1008 = vmatprep.subr.bf16.mxu0 0
    %1009 = vmatpush2.bf16.msra.mxu0 0
    %1010 = vmatprep.subr.bf16.mxu0 0
    %1011 = vmatpush2.bf16.msra.mxu0 0
    %1012 = vmatprep.mubr.bf16.mxu0 0
    %1013 = vmatmul.mubr.bf16.gmra.mxu0 0
    %v1014 = vpop.f32.mrf.mxu0
    %v1015 = vadd.f32 0.0, %v1014
    %v1016 = vpop.f32.mrf.mxu0
    %v1017 = vadd.f32 0.0, %v1016
    %v1018 = vpop.f32.mrf.mxu0
    %v1019 = vpop.f32.mrf.mxu0
    %1020 = vdwg.mxu0
    %v1021 = vadd.f32 %v378, %v974
    %v1022 = vadd.f32 %v380, %v976
    %v1023 = vadd.f32 %v451, %v1015
    %v1024 = vadd.f32 %v453, %v1017
    %v1025 = vmul.f32 %v1021, 0.5
    %v1026 = vmul.f32 %v1022, 0.5
    %v1027 = vmul.f32 %v1023, 0.5
    %v1028 = vtanh.pop %v1025
    %v1029 = vtanh.pop %v1026
    %v1030 = vtanh.pop %v1027
    %v1031 = vmul.f32 %v1028, 0.5
    %v1032 = vmul.f32 %v1029, 0.5
    %v1033 = vmul.f32 %v1030, 0.5
    %v1034 = vadd.f32 %v1031, 0.5
    %v1035 = vadd.f32 %v1032, 0.5
    %v1036 = vadd.f32 %v1033, 0.5
    %v1037 = vtanh.pop %v1024
    %v1038 = vmul.f32 %v1035, 0.0
    %v1039 = vmul.f32 %v1034, %v1037
    %v1040 = vadd.f32 %v1038, %v1039
    %v1041 = vtanh.pop %v1040
    %v1042 = vmul.f32 %v1036, %v1041
    %v1043 = vpack.c.bf16 %v1042, %v1042
    %1044 = vmatprep.subr.bf16.mxu0 %v904
    %1045 = vmatpush1.bf16.msra.mxu0 %v903
    %1046 = vmatprep.subr.bf16.mxu0 %v900
    %1047 = vmatpush1.bf16.msra.mxu0 %v899
    %1048 = vmatprep.subr.bf16.mxu0 %v896
    %1049 = vmatpush1.bf16.msra.mxu0 %v895
    %1050 = vmatprep.subr.bf16.mxu0 %v892
    %1051 = vmatpush1.bf16.msra.mxu0 %v891
    %1052 = vmatprep.subr.bf16.mxu0 %v888
    %1053 = vmatpush1.bf16.msra.mxu0 %v887
    %1054 = vmatprep.subr.bf16.mxu0 %v884
    %1055 = vmatpush1.bf16.msra.mxu0 %v883
    %1056 = vmatprep.subr.bf16.mxu0 %v880
    %1057 = vmatpush1.bf16.msra.mxu0 %v879
    %1058 = vmatprep.subr.bf16.mxu0 %v876
    %1059 = vmatpush1.bf16.msra.mxu0 %v875
    %1060 = vmatprep.subr.bf16.mxu0 0
    %1061 = vmatpush2.bf16.msra.mxu0 0
    %1062 = vmatprep.subr.bf16.mxu0 0
    %1063 = vmatpush2.bf16.msra.mxu0 0
    %1064 = vmatprep.subr.bf16.mxu0 0
    %1065 = vmatpush2.bf16.msra.mxu0 0
    %1066 = vmatprep.subr.bf16.mxu0 0
    %1067 = vmatpush2.bf16.msra.mxu0 0
    %1068 = vmatprep.subr.bf16.mxu0 0
    %1069 = vmatpush2.bf16.msra.mxu0 0
    %1070 = vmatprep.subr.bf16.mxu0 0
    %1071 = vmatpush2.bf16.msra.mxu0 0
    %1072 = vmatprep.subr.bf16.mxu0 0
    %1073 = vmatpush2.bf16.msra.mxu0 0
    %1074 = vmatprep.subr.bf16.mxu0 0
    %1075 = vmatpush2.bf16.msra.mxu0 0
    %1076 = vmatprep.mubr.bf16.mxu0 0
    %1077 = vmatmul.mubr.bf16.gmra.mxu0 %v1043
    %v1078 = vpop.f32.mrf.mxu0
    %v1079 = vadd.f32 0.0, %v1078
    %v1080 = vpop.f32.mrf.mxu0
    %v1081 = vadd.f32 0.0, %v1080
    %v1082 = vpop.f32.mrf.mxu0
    %v1083 = vpop.f32.mrf.mxu0
    %1084 = vdwg.mxu0
    %1085 = vmatprep.subr.bf16.mxu0 %v906
    %1086 = vmatpush1.bf16.msra.mxu0 %v905
    %1087 = vmatprep.subr.bf16.mxu0 %v902
    %1088 = vmatpush1.bf16.msra.mxu0 %v901
    %1089 = vmatprep.subr.bf16.mxu0 %v898
    %1090 = vmatpush1.bf16.msra.mxu0 %v897
    %1091 = vmatprep.subr.bf16.mxu0 %v894
    %1092 = vmatpush1.bf16.msra.mxu0 %v893
    %1093 = vmatprep.subr.bf16.mxu0 %v890
    %1094 = vmatpush1.bf16.msra.mxu0 %v889
    %1095 = vmatprep.subr.bf16.mxu0 %v886
    %1096 = vmatpush1.bf16.msra.mxu0 %v885
    %1097 = vmatprep.subr.bf16.mxu0 %v882
    %1098 = vmatpush1.bf16.msra.mxu0 %v881
    %1099 = vmatprep.subr.bf16.mxu0 %v878
    %1100 = vmatpush1.bf16.msra.mxu0 %v877
    %1101 = vmatprep.subr.bf16.mxu0 0
    %1102 = vmatpush2.bf16.msra.mxu0 0
    %1103 = vmatprep.subr.bf16.mxu0 0
    %1104 = vmatpush2.bf16.msra.mxu0 0
    %1105 = vmatprep.subr.bf16.mxu0 0
    %1106 = vmatpush2.bf16.msra.mxu0 0
    %1107 = vmatprep.subr.bf16.mxu0 0
    %1108 = vmatpush2.bf16.msra.mxu0 0
    %1109 = vmatprep.subr.bf16.mxu0 0
    %1110 = vmatpush2.bf16.msra.mxu0 0
    %1111 = vmatprep.subr.bf16.mxu0 0
    %1112 = vmatpush2.bf16.msra.mxu0 0
    %1113 = vmatprep.subr.bf16.mxu0 0
    %1114 = vmatpush2.bf16.msra.mxu0 0
    %1115 = vmatprep.subr.bf16.mxu0 0
    %1116 = vmatpush2.bf16.msra.mxu0 0
    %1117 = vmatprep.mubr.bf16.mxu0 0
    %1118 = vmatmul.mubr.bf16.gmra.mxu0 %v1043
    %v1119 = vpop.f32.mrf.mxu0
    %v1120 = vadd.f32 0.0, %v1119
    %v1121 = vpop.f32.mrf.mxu0
    %v1122 = vadd.f32 0.0, %v1121
    %v1123 = vpop.f32.mrf.mxu0
    %v1124 = vpop.f32.mrf.mxu0
    %1125 = vdwg.mxu0
    %v1126 = vadd.f32 %v382, %v1079
    %v1127 = vadd.f32 %v384, %v1081
    %v1128 = vadd.f32 %v455, %v1120
    %v1129 = vadd.f32 %v457, %v1122
    %v1130 = vmul.f32 %v1126, 0.5
    %v1131 = vmul.f32 %v1127, 0.5
    %v1132 = vmul.f32 %v1128, 0.5
    %v1133 = vtanh.pop %v1130
    %v1134 = vtanh.pop %v1131
    %v1135 = vtanh.pop %v1132
    %v1136 = vmul.f32 %v1133, 0.5
    %v1137 = vmul.f32 %v1134, 0.5
    %v1138 = vmul.f32 %v1135, 0.5
    %v1139 = vadd.f32 %v1136, 0.5
    %v1140 = vadd.f32 %v1137, 0.5
    %v1141 = vadd.f32 %v1138, 0.5
    %v1142 = vtanh.pop %v1129
    %v1143 = vmul.f32 %v1140, %v1040
    %v1144 = vmul.f32 %v1139, %v1142
    %v1145 = vadd.f32 %v1143, %v1144
    %v1146 = vtanh.pop %v1145
    %v1147 = vmul.f32 %v1141, %v1146
    %v1180 = vunpack.c.l.b16 %v553
    %v1181 = vunpack.c.h.b16 %v553
    %v1182 = vunpack.c.l.b16 %v554
    %v1183 = vunpack.c.h.b16 %v554
    %v1184 = vunpack.c.l.b16 %v555
    %v1185 = vunpack.c.h.b16 %v555
    %v1186 = vunpack.c.l.b16 %v556
    %v1187 = vunpack.c.h.b16 %v556
    %v1188 = vunpack.c.l.b16 %v557
    %v1189 = vunpack.c.h.b16 %v557
    %v1190 = vunpack.c.l.b16 %v558
    %v1191 = vunpack.c.h.b16 %v558
    %v1192 = vunpack.c.l.b16 %v559
    %v1193 = vunpack.c.h.b16 %v559
    %v1194 = vunpack.c.l.b16 %v560
    %v1195 = vunpack.c.h.b16 %v560
    %v1196 = vunpack.c.l.b16 %v561
    %v1197 = vunpack.c.h.b16 %v561
    %v1198 = vunpack.c.l.b16 %v562
    %v1199 = vunpack.c.h.b16 %v562
    %v1200 = vunpack.c.l.b16 %v563
    %v1201 = vunpack.c.h.b16 %v563
    %v1202 = vunpack.c.l.b16 %v564
    %v1203 = vunpack.c.h.b16 %v564
    %v1204 = vunpack.c.l.b16 %v565
    %v1205 = vunpack.c.h.b16 %v565
    %v1206 = vunpack.c.l.b16 %v566
    %v1207 = vunpack.c.h.b16 %v566
    %v1208 = vunpack.c.l.b16 %v567
    %v1209 = vunpack.c.h.b16 %v567
    %v1210 = vunpack.c.l.b16 %v568
    %v1211 = vunpack.c.h.b16 %v568
    %v1212 = vunpack.c.l.b16 %v569
    %v1213 = vunpack.c.h.b16 %v569
    %v1214 = vunpack.c.l.b16 %v570
    %v1215 = vunpack.c.h.b16 %v570
    %v1216 = vunpack.c.l.b16 %v571
    %v1217 = vunpack.c.h.b16 %v571
    %v1218 = vunpack.c.l.b16 %v572
    %v1219 = vunpack.c.h.b16 %v572
    %v1220 = vunpack.c.l.b16 %v573
    %v1221 = vunpack.c.h.b16 %v573
    %v1222 = vunpack.c.l.b16 %v574
    %v1223 = vunpack.c.h.b16 %v574
    %v1224 = vunpack.c.l.b16 %v575
    %v1225 = vunpack.c.h.b16 %v575
    %v1226 = vunpack.c.l.b16 %v576
    %v1227 = vunpack.c.h.b16 %v576
    %v1228 = vunpack.c.l.b16 %v577
    %v1229 = vunpack.c.h.b16 %v577
    %v1230 = vunpack.c.l.b16 %v578
    %v1231 = vunpack.c.h.b16 %v578
    %v1232 = vunpack.c.l.b16 %v579
    %v1233 = vunpack.c.h.b16 %v579
    %v1234 = vunpack.c.l.b16 %v580
    %v1235 = vunpack.c.h.b16 %v580
    %v1236 = vunpack.c.l.b16 %v581
    %v1237 = vunpack.c.h.b16 %v581
    %v1238 = vunpack.c.l.b16 %v582
    %v1239 = vunpack.c.h.b16 %v582
    %v1240 = vunpack.c.l.b16 %v583
    %v1241 = vunpack.c.h.b16 %v583
    %v1242 = vunpack.c.l.b16 %v584
    %v1243 = vunpack.c.h.b16 %v584
    %v1244 = vpack.c.b16 %v1184, %v1180
    %v1245 = vpack.c.b16 %v1185, %v1181
    %v1246 = vpack.c.b16 %v1186, %v1182
    %v1247 = vpack.c.b16 %v1187, %v1183
    %v1248 = vpack.c.b16 %v1192, %v1188
    %v1249 = vpack.c.b16 %v1193, %v1189
    %v1250 = vpack.c.b16 %v1194, %v1190
    %v1251 = vpack.c.b16 %v1195, %v1191
    %v1252 = vpack.c.b16 %v1200, %v1196
    %v1253 = vpack.c.b16 %v1201, %v1197
    %v1254 = vpack.c.b16 %v1202, %v1198
    %v1255 = vpack.c.b16 %v1203, %v1199
    %v1256 = vpack.c.b16 %v1208, %v1204
    %v1257 = vpack.c.b16 %v1209, %v1205
    %v1258 = vpack.c.b16 %v1210, %v1206
    %v1259 = vpack.c.b16 %v1211, %v1207
    %v1260 = vpack.c.b16 %v1216, %v1212
    %v1261 = vpack.c.b16 %v1217, %v1213
    %v1262 = vpack.c.b16 %v1218, %v1214
    %v1263 = vpack.c.b16 %v1219, %v1215
    %v1264 = vpack.c.b16 %v1224, %v1220
    %v1265 = vpack.c.b16 %v1225, %v1221
    %v1266 = vpack.c.b16 %v1226, %v1222
    %v1267 = vpack.c.b16 %v1227, %v1223
    %v1268 = vpack.c.b16 %v1232, %v1228
    %v1269 = vpack.c.b16 %v1233, %v1229
    %v1270 = vpack.c.b16 %v1234, %v1230
    %v1271 = vpack.c.b16 %v1235, %v1231
    %v1272 = vpack.c.b16 %v1240, %v1236
    %v1273 = vpack.c.b16 %v1241, %v1237
    %v1274 = vpack.c.b16 %v1242, %v1238
    %v1275 = vpack.c.b16 %v1243, %v1239
    %1308 = vmatprep.subr.bf16.mxu0 %v1273
    %1309 = vmatpush1.bf16.msra.mxu0 %v1272
    %1310 = vmatprep.subr.bf16.mxu0 %v1269
    %1311 = vmatpush1.bf16.msra.mxu0 %v1268
    %1312 = vmatprep.subr.bf16.mxu0 %v1265
    %1313 = vmatpush1.bf16.msra.mxu0 %v1264
    %1314 = vmatprep.subr.bf16.mxu0 %v1261
    %1315 = vmatpush1.bf16.msra.mxu0 %v1260
    %1316 = vmatprep.subr.bf16.mxu0 %v1257
    %1317 = vmatpush1.bf16.msra.mxu0 %v1256
    %1318 = vmatprep.subr.bf16.mxu0 %v1253
    %1319 = vmatpush1.bf16.msra.mxu0 %v1252
    %1320 = vmatprep.subr.bf16.mxu0 %v1249
    %1321 = vmatpush1.bf16.msra.mxu0 %v1248
    %1322 = vmatprep.subr.bf16.mxu0 %v1245
    %1323 = vmatpush1.bf16.msra.mxu0 %v1244
    %1324 = vmatprep.subr.bf16.mxu0 0
    %1325 = vmatpush2.bf16.msra.mxu0 0
    %1326 = vmatprep.subr.bf16.mxu0 0
    %1327 = vmatpush2.bf16.msra.mxu0 0
    %1328 = vmatprep.subr.bf16.mxu0 0
    %1329 = vmatpush2.bf16.msra.mxu0 0
    %1330 = vmatprep.subr.bf16.mxu0 0
    %1331 = vmatpush2.bf16.msra.mxu0 0
    %1332 = vmatprep.subr.bf16.mxu0 0
    %1333 = vmatpush2.bf16.msra.mxu0 0
    %1334 = vmatprep.subr.bf16.mxu0 0
    %1335 = vmatpush2.bf16.msra.mxu0 0
    %1336 = vmatprep.subr.bf16.mxu0 0
    %1337 = vmatpush2.bf16.msra.mxu0 0
    %1338 = vmatprep.subr.bf16.mxu0 0
    %1339 = vmatpush2.bf16.msra.mxu0 0
    %1340 = vmatprep.mubr.bf16.mxu0 0
    %1341 = vmatmul.mubr.bf16.gmra.mxu0 0
    %v1342 = vpop.f32.mrf.mxu0
    %v1343 = vadd.f32 0.0, %v1342
    %v1344 = vpop.f32.mrf.mxu0
    %v1345 = vadd.f32 0.0, %v1344
    %v1346 = vpop.f32.mrf.mxu0
    %v1347 = vpop.f32.mrf.mxu0
    %1348 = vdwg.mxu0
    %1349 = vmatprep.subr.bf16.mxu0 %v1275
    %1350 = vmatpush1.bf16.msra.mxu0 %v1274
    %1351 = vmatprep.subr.bf16.mxu0 %v1271
    %1352 = vmatpush1.bf16.msra.mxu0 %v1270
    %1353 = vmatprep.subr.bf16.mxu0 %v1267
    %1354 = vmatpush1.bf16.msra.mxu0 %v1266
    %1355 = vmatprep.subr.bf16.mxu0 %v1263
    %1356 = vmatpush1.bf16.msra.mxu0 %v1262
    %1357 = vmatprep.subr.bf16.mxu0 %v1259
    %1358 = vmatpush1.bf16.msra.mxu0 %v1258
    %1359 = vmatprep.subr.bf16.mxu0 %v1255
    %1360 = vmatpush1.bf16.msra.mxu0 %v1254
    %1361 = vmatprep.subr.bf16.mxu0 %v1251
    %1362 = vmatpush1.bf16.msra.mxu0 %v1250
    %1363 = vmatprep.subr.bf16.mxu0 %v1247
    %1364 = vmatpush1.bf16.msra.mxu0 %v1246
    %1365 = vmatprep.subr.bf16.mxu0 0
    %1366 = vmatpush2.bf16.msra.mxu0 0
    %1367 = vmatprep.subr.bf16.mxu0 0
    %1368 = vmatpush2.bf16.msra.mxu0 0
    %1369 = vmatprep.subr.bf16.mxu0 0
    %1370 = vmatpush2.bf16.msra.mxu0 0
    %1371 = vmatprep.subr.bf16.mxu0 0
    %1372 = vmatpush2.bf16.msra.mxu0 0
    %1373 = vmatprep.subr.bf16.mxu0 0
    %1374 = vmatpush2.bf16.msra.mxu0 0
    %1375 = vmatprep.subr.bf16.mxu0 0
    %1376 = vmatpush2.bf16.msra.mxu0 0
    %1377 = vmatprep.subr.bf16.mxu0 0
    %1378 = vmatpush2.bf16.msra.mxu0 0
    %1379 = vmatprep.subr.bf16.mxu0 0
    %1380 = vmatpush2.bf16.msra.mxu0 0
    %1381 = vmatprep.mubr.bf16.mxu0 0
    %1382 = vmatmul.mubr.bf16.gmra.mxu0 0
    %v1383 = vpop.f32.mrf.mxu0
    %v1384 = vadd.f32 0.0, %v1383
    %v1385 = vpop.f32.mrf.mxu0
    %v1386 = vadd.f32 0.0, %v1385
    %v1387 = vpop.f32.mrf.mxu0
    %v1388 = vpop.f32.mrf.mxu0
    %1389 = vdwg.mxu0
    %v1422 = vunpack.c.l.b16 %v521
    %v1423 = vunpack.c.h.b16 %v521
    %v1424 = vunpack.c.l.b16 %v522
    %v1425 = vunpack.c.h.b16 %v522
    %v1426 = vunpack.c.l.b16 %v523
    %v1427 = vunpack.c.h.b16 %v523
    %v1428 = vunpack.c.l.b16 %v524
    %v1429 = vunpack.c.h.b16 %v524
    %v1430 = vunpack.c.l.b16 %v525
    %v1431 = vunpack.c.h.b16 %v525
    %v1432 = vunpack.c.l.b16 %v526
    %v1433 = vunpack.c.h.b16 %v526
    %v1434 = vunpack.c.l.b16 %v527
    %v1435 = vunpack.c.h.b16 %v527
    %v1436 = vunpack.c.l.b16 %v528
    %v1437 = vunpack.c.h.b16 %v528
    %v1438 = vunpack.c.l.b16 %v529
    %v1439 = vunpack.c.h.b16 %v529
    %v1440 = vunpack.c.l.b16 %v530
    %v1441 = vunpack.c.h.b16 %v530
    %v1442 = vunpack.c.l.b16 %v531
    %v1443 = vunpack.c.h.b16 %v531
    %v1444 = vunpack.c.l.b16 %v532
    %v1445 = vunpack.c.h.b16 %v532
    %v1446 = vunpack.c.l.b16 %v533
    %v1447 = vunpack.c.h.b16 %v533
    %v1448 = vunpack.c.l.b16 %v534
    %v1449 = vunpack.c.h.b16 %v534
    %v1450 = vunpack.c.l.b16 %v535
    %v1451 = vunpack.c.h.b16 %v535
    %v1452 = vunpack.c.l.b16 %v536
    %v1453 = vunpack.c.h.b16 %v536
    %v1454 = vunpack.c.l.b16 %v537
    %v1455 = vunpack.c.h.b16 %v537
    %v1456 = vunpack.c.l.b16 %v538
    %v1457 = vunpack.c.h.b16 %v538
    %v1458 = vunpack.c.l.b16 %v539
    %v1459 = vunpack.c.h.b16 %v539
    %v1460 = vunpack.c.l.b16 %v540
    %v1461 = vunpack.c.h.b16 %v540
    %v1462 = vunpack.c.l.b16 %v541
    %v1463 = vunpack.c.h.b16 %v541
    %v1464 = vunpack.c.l.b16 %v542
    %v1465 = vunpack.c.h.b16 %v542
    %v1466 = vunpack.c.l.b16 %v543
    %v1467 = vunpack.c.h.b16 %v543
    %v1468 = vunpack.c.l.b16 %v544
    %v1469 = vunpack.c.h.b16 %v544
    %v1470 = vunpack.c.l.b16 %v545
    %v1471 = vunpack.c.h.b16 %v545
    %v1472 = vunpack.c.l.b16 %v546
    %v1473 = vunpack.c.h.b16 %v546
    %v1474 = vunpack.c.l.b16 %v547
    %v1475 = vunpack.c.h.b16 %v547
    %v1476 = vunpack.c.l.b16 %v548
    %v1477 = vunpack.c.h.b16 %v548
    %v1478 = vunpack.c.l.b16 %v549
    %v1479 = vunpack.c.h.b16 %v549
    %v1480 = vunpack.c.l.b16 %v550
    %v1481 = vunpack.c.h.b16 %v550
    %v1482 = vunpack.c.l.b16 %v551
    %v1483 = vunpack.c.h.b16 %v551
    %v1484 = vunpack.c.l.b16 %v552
    %v1485 = vunpack.c.h.b16 %v552
    %v1486 = vpack.c.b16 %v1426, %v1422
    %v1487 = vpack.c.b16 %v1427, %v1423
    %v1488 = vpack.c.b16 %v1428, %v1424
    %v1489 = vpack.c.b16 %v1429, %v1425
    %v1490 = vpack.c.b16 %v1434, %v1430
    %v1491 = vpack.c.b16 %v1435, %v1431
    %v1492 = vpack.c.b16 %v1436, %v1432
    %v1493 = vpack.c.b16 %v1437, %v1433
    %v1494 = vpack.c.b16 %v1442, %v1438
    %v1495 = vpack.c.b16 %v1443, %v1439
    %v1496 = vpack.c.b16 %v1444, %v1440
    %v1497 = vpack.c.b16 %v1445, %v1441
    %v1498 = vpack.c.b16 %v1450, %v1446
    %v1499 = vpack.c.b16 %v1451, %v1447
    %v1500 = vpack.c.b16 %v1452, %v1448
    %v1501 = vpack.c.b16 %v1453, %v1449
    %v1502 = vpack.c.b16 %v1458, %v1454
    %v1503 = vpack.c.b16 %v1459, %v1455
    %v1504 = vpack.c.b16 %v1460, %v1456
    %v1505 = vpack.c.b16 %v1461, %v1457
    %v1506 = vpack.c.b16 %v1466, %v1462
    %v1507 = vpack.c.b16 %v1467, %v1463
    %v1508 = vpack.c.b16 %v1468, %v1464
    %v1509 = vpack.c.b16 %v1469, %v1465
    %v1510 = vpack.c.b16 %v1474, %v1470
    %v1511 = vpack.c.b16 %v1475, %v1471
    %v1512 = vpack.c.b16 %v1476, %v1472
    %v1513 = vpack.c.b16 %v1477, %v1473
    %v1514 = vpack.c.b16 %v1482, %v1478
    %v1515 = vpack.c.b16 %v1483, %v1479
    %v1516 = vpack.c.b16 %v1484, %v1480
    %v1517 = vpack.c.b16 %v1485, %v1481
    %1550 = vmatprep.subr.bf16.mxu0 %v1515
    %1551 = vmatpush1.bf16.msra.mxu0 %v1514
    %1552 = vmatprep.subr.bf16.mxu0 %v1511
    %1553 = vmatpush1.bf16.msra.mxu0 %v1510
    %1554 = vmatprep.subr.bf16.mxu0 %v1507
    %1555 = vmatpush1.bf16.msra.mxu0 %v1506
    %1556 = vmatprep.subr.bf16.mxu0 %v1503
    %1557 = vmatpush1.bf16.msra.mxu0 %v1502
    %1558 = vmatprep.subr.bf16.mxu0 %v1499
    %1559 = vmatpush1.bf16.msra.mxu0 %v1498
    %1560 = vmatprep.subr.bf16.mxu0 %v1495
    %1561 = vmatpush1.bf16.msra.mxu0 %v1494
    %1562 = vmatprep.subr.bf16.mxu0 %v1491
    %1563 = vmatpush1.bf16.msra.mxu0 %v1490
    %1564 = vmatprep.subr.bf16.mxu0 %v1487
    %1565 = vmatpush1.bf16.msra.mxu0 %v1486
    %1566 = vmatprep.subr.bf16.mxu0 0
    %1567 = vmatpush2.bf16.msra.mxu0 0
    %1568 = vmatprep.subr.bf16.mxu0 0
    %1569 = vmatpush2.bf16.msra.mxu0 0
    %1570 = vmatprep.subr.bf16.mxu0 0
    %1571 = vmatpush2.bf16.msra.mxu0 0
    %1572 = vmatprep.subr.bf16.mxu0 0
    %1573 = vmatpush2.bf16.msra.mxu0 0
    %1574 = vmatprep.subr.bf16.mxu0 0
    %1575 = vmatpush2.bf16.msra.mxu0 0
    %1576 = vmatprep.subr.bf16.mxu0 0
    %1577 = vmatpush2.bf16.msra.mxu0 0
    %1578 = vmatprep.subr.bf16.mxu0 0
    %1579 = vmatpush2.bf16.msra.mxu0 0
    %1580 = vmatprep.subr.bf16.mxu0 0
    %1581 = vmatpush2.bf16.msra.mxu0 0
    %1582 = vmatprep.mubr.bf16.mxu0 0
    %1583 = vmatmul.mubr.bf16.gmra.mxu0 %v1043
    %v1584 = vpop.f32.mrf.mxu0
    %v1585 = vadd.f32 %v1343, %v1584
    %v1586 = vpop.f32.mrf.mxu0
    %v1587 = vadd.f32 %v1345, %v1586
    %v1588 = vpop.f32.mrf.mxu0
    %v1589 = vpop.f32.mrf.mxu0
    %1590 = vdwg.mxu0
    %1591 = vmatprep.subr.bf16.mxu0 %v1517
    %1592 = vmatpush1.bf16.msra.mxu0 %v1516
    %1593 = vmatprep.subr.bf16.mxu0 %v1513
    %1594 = vmatpush1.bf16.msra.mxu0 %v1512
    %1595 = vmatprep.subr.bf16.mxu0 %v1509
    %1596 = vmatpush1.bf16.msra.mxu0 %v1508
    %1597 = vmatprep.subr.bf16.mxu0 %v1505
    %1598 = vmatpush1.bf16.msra.mxu0 %v1504
    %1599 = vmatprep.subr.bf16.mxu0 %v1501
    %1600 = vmatpush1.bf16.msra.mxu0 %v1500
    %1601 = vmatprep.subr.bf16.mxu0 %v1497
    %1602 = vmatpush1.bf16.msra.mxu0 %v1496
    %1603 = vmatprep.subr.bf16.mxu0 %v1493
    %1604 = vmatpush1.bf16.msra.mxu0 %v1492
    %1605 = vmatprep.subr.bf16.mxu0 %v1489
    %1606 = vmatpush1.bf16.msra.mxu0 %v1488
    %1607 = vmatprep.subr.bf16.mxu0 0
    %1608 = vmatpush2.bf16.msra.mxu0 0
    %1609 = vmatprep.subr.bf16.mxu0 0
    %1610 = vmatpush2.bf16.msra.mxu0 0
    %1611 = vmatprep.subr.bf16.mxu0 0
    %1612 = vmatpush2.bf16.msra.mxu0 0
    %1613 = vmatprep.subr.bf16.mxu0 0
    %1614 = vmatpush2.bf16.msra.mxu0 0
    %1615 = vmatprep.subr.bf16.mxu0 0
    %1616 = vmatpush2.bf16.msra.mxu0 0
    %1617 = vmatprep.subr.bf16.mxu0 0
    %1618 = vmatpush2.bf16.msra.mxu0 0
    %1619 = vmatprep.subr.bf16.mxu0 0
    %1620 = vmatpush2.bf16.msra.mxu0 0
    %1621 = vmatprep.subr.bf16.mxu0 0
    %1622 = vmatpush2.bf16.msra.mxu0 0
    %1623 = vmatprep.mubr.bf16.mxu0 0
    %1624 = vmatmul.mubr.bf16.gmra.mxu0 %v1043
    %v1625 = vpop.f32.mrf.mxu0
    %v1626 = vadd.f32 %v1384, %v1625
    %v1627 = vpop.f32.mrf.mxu0
    %v1628 = vadd.f32 %v1386, %v1627
    %v1629 = vpop.f32.mrf.mxu0
    %v1630 = vpop.f32.mrf.mxu0
    %1631 = vdwg.mxu0
    %v1633 = vlaneseq
    %v1634 = vshrl.u32 %v1633, 7
    %v1635 = vsub.s32 0, %v1634
    %v1636 = vrot.slane %v585, %v1635
    %v1637 = vlaneseq
    %v1638 = vshrl.u32 %v1637, 7
    %v1639 = vsub.s32 1, %v1638
    %v1640 = vrot.slane %v585, %v1639
    %v1641 = vlaneseq
    %v1642 = vshrl.u32 %v1641, 7
    %v1643 = vsub.s32 2, %v1642
    %v1644 = vrot.slane %v585, %v1643
    %v1645 = vlaneseq
    %v1646 = vshrl.u32 %v1645, 7
    %v1647 = vsub.s32 3, %v1646
    %v1648 = vrot.slane %v585, %v1647
    %v1653 = vadd.f32 %v1585, %v1636
    %v1654 = vadd.f32 %v1587, %v1640
    %v1655 = vadd.f32 %v1626, %v1644
    %v1656 = vadd.f32 %v1628, %v1648
    %v1657 = vmul.f32 %v1653, 0.5
    %v1658 = vmul.f32 %v1654, 0.5
    %v1659 = vmul.f32 %v1655, 0.5
    %v1660 = vtanh.pop %v1657
    %v1661 = vtanh.pop %v1658
    %v1662 = vtanh.pop %v1659
    %v1663 = vmul.f32 %v1660, 0.5
    %v1664 = vmul.f32 %v1661, 0.5
    %v1665 = vmul.f32 %v1662, 0.5
    %v1666 = vadd.f32 %v1663, 0.5
    %v1667 = vadd.f32 %v1664, 0.5
    %v1668 = vadd.f32 %v1665, 0.5
    %v1669 = vtanh.pop %v1656
    %v1670 = vmul.f32 %v1667, 0.0
    %v1671 = vmul.f32 %v1666, %v1669
    %v1672 = vadd.f32 %v1670, %v1671
    %v1673 = vtanh.pop %v1672
    %v1674 = vmul.f32 %v1668, %v1673
    %v1675 = vpack.c.bf16 %v1147, %v1147
    %1676 = vmatprep.subr.bf16.mxu0 %v904
    %1677 = vmatpush1.bf16.msra.mxu0 %v903
    %1678 = vmatprep.subr.bf16.mxu0 %v900
    %1679 = vmatpush1.bf16.msra.mxu0 %v899
    %1680 = vmatprep.subr.bf16.mxu0 %v896
    %1681 = vmatpush1.bf16.msra.mxu0 %v895
    %1682 = vmatprep.subr.bf16.mxu0 %v892
    %1683 = vmatpush1.bf16.msra.mxu0 %v891
    %1684 = vmatprep.subr.bf16.mxu0 %v888
    %1685 = vmatpush1.bf16.msra.mxu0 %v887
    %1686 = vmatprep.subr.bf16.mxu0 %v884
    %1687 = vmatpush1.bf16.msra.mxu0 %v883
    %1688 = vmatprep.subr.bf16.mxu0 %v880
    %1689 = vmatpush1.bf16.msra.mxu0 %v879
    %1690 = vmatprep.subr.bf16.mxu0 %v876
    %1691 = vmatpush1.bf16.msra.mxu0 %v875
    %1692 = vmatprep.subr.bf16.mxu0 0
    %1693 = vmatpush2.bf16.msra.mxu0 0
    %1694 = vmatprep.subr.bf16.mxu0 0
    %1695 = vmatpush2.bf16.msra.mxu0 0
    %1696 = vmatprep.subr.bf16.mxu0 0
    %1697 = vmatpush2.bf16.msra.mxu0 0
    %1698 = vmatprep.subr.bf16.mxu0 0
    %1699 = vmatpush2.bf16.msra.mxu0 0
    %1700 = vmatprep.subr.bf16.mxu0 0
    %1701 = vmatpush2.bf16.msra.mxu0 0
    %1702 = vmatprep.subr.bf16.mxu0 0
    %1703 = vmatpush2.bf16.msra.mxu0 0
    %1704 = vmatprep.subr.bf16.mxu0 0
    %1705 = vmatpush2.bf16.msra.mxu0 0
    %1706 = vmatprep.subr.bf16.mxu0 0
    %1707 = vmatpush2.bf16.msra.mxu0 0
    %1708 = vmatprep.mubr.bf16.mxu0 0
    %1709 = vmatmul.mubr.bf16.gmra.mxu0 %v1675
    %v1710 = vpop.f32.mrf.mxu0
    %v1711 = vadd.f32 0.0, %v1710
    %v1712 = vpop.f32.mrf.mxu0
    %v1713 = vadd.f32 0.0, %v1712
    %v1714 = vpop.f32.mrf.mxu0
    %v1715 = vpop.f32.mrf.mxu0
    %1716 = vdwg.mxu0
    %1717 = vmatprep.subr.bf16.mxu0 %v906
    %1718 = vmatpush1.bf16.msra.mxu0 %v905
    %1719 = vmatprep.subr.bf16.mxu0 %v902
    %1720 = vmatpush1.bf16.msra.mxu0 %v901
    %1721 = vmatprep.subr.bf16.mxu0 %v898
    %1722 = vmatpush1.bf16.msra.mxu0 %v897
    %1723 = vmatprep.subr.bf16.mxu0 %v894
    %1724 = vmatpush1.bf16.msra.mxu0 %v893
    %1725 = vmatprep.subr.bf16.mxu0 %v890
    %1726 = vmatpush1.bf16.msra.mxu0 %v889
    %1727 = vmatprep.subr.bf16.mxu0 %v886
    %1728 = vmatpush1.bf16.msra.mxu0 %v885
    %1729 = vmatprep.subr.bf16.mxu0 %v882
    %1730 = vmatpush1.bf16.msra.mxu0 %v881
    %1731 = vmatprep.subr.bf16.mxu0 %v878
    %1732 = vmatpush1.bf16.msra.mxu0 %v877
    %1733 = vmatprep.subr.bf16.mxu0 0
    %1734 = vmatpush2.bf16.msra.mxu0 0
    %1735 = vmatprep.subr.bf16.mxu0 0
    %1736 = vmatpush2.bf16.msra.mxu0 0
    %1737 = vmatprep.subr.bf16.mxu0 0
    %1738 = vmatpush2.bf16.msra.mxu0 0
    %1739 = vmatprep.subr.bf16.mxu0 0
    %1740 = vmatpush2.bf16.msra.mxu0 0
    %1741 = vmatprep.subr.bf16.mxu0 0
    %1742 = vmatpush2.bf16.msra.mxu0 0
    %1743 = vmatprep.subr.bf16.mxu0 0
    %1744 = vmatpush2.bf16.msra.mxu0 0
    %1745 = vmatprep.subr.bf16.mxu0 0
    %1746 = vmatpush2.bf16.msra.mxu0 0
    %1747 = vmatprep.subr.bf16.mxu0 0
    %1748 = vmatpush2.bf16.msra.mxu0 0
    %1749 = vmatprep.mubr.bf16.mxu0 0
    %1750 = vmatmul.mubr.bf16.gmra.mxu0 %v1675
    %v1751 = vpop.f32.mrf.mxu0
    %v1752 = vadd.f32 0.0, %v1751
    %v1753 = vpop.f32.mrf.mxu0
    %v1754 = vadd.f32 0.0, %v1753
    %v1755 = vpop.f32.mrf.mxu0
    %v1756 = vpop.f32.mrf.mxu0
    %1757 = vdwg.mxu0
    %v1758 = vadd.f32 %v388, %v1711
    %v1759 = vadd.f32 %v390, %v1713
    %v1760 = vadd.f32 %v461, %v1752
    %v1761 = vadd.f32 %v463, %v1754
    %v1762 = vmul.f32 %v1758, 0.5
    %v1763 = vmul.f32 %v1759, 0.5
    %v1764 = vmul.f32 %v1760, 0.5
    %v1765 = vtanh.pop %v1762
    %v1766 = vtanh.pop %v1763
    %v1767 = vtanh.pop %v1764
    %v1768 = vmul.f32 %v1765, 0.5
    %v1769 = vmul.f32 %v1766, 0.5
    %v1770 = vmul.f32 %v1767, 0.5
    %v1771 = vadd.f32 %v1768, 0.5
    %v1772 = vadd.f32 %v1769, 0.5
    %v1773 = vadd.f32 %v1770, 0.5
    %v1774 = vtanh.pop %v1761
    %v1775 = vmul.f32 %v1772, %v1145
    %v1776 = vmul.f32 %v1771, %v1774
    %v1777 = vadd.f32 %v1775, %v1776
    %v1778 = vtanh.pop %v1777
    %v1779 = vmul.f32 %v1773, %v1778
    %v1780 = vpack.c.bf16 %v1674, %v1674
    %1781 = vmatprep.subr.bf16.mxu0 %v1273
    %1782 = vmatpush1.bf16.msra.mxu0 %v1272
    %1783 = vmatprep.subr.bf16.mxu0 %v1269
    %1784 = vmatpush1.bf16.msra.mxu0 %v1268
    %1785 = vmatprep.subr.bf16.mxu0 %v1265
    %1786 = vmatpush1.bf16.msra.mxu0 %v1264
    %1787 = vmatprep.subr.bf16.mxu0 %v1261
    %1788 = vmatpush1.bf16.msra.mxu0 %v1260
    %1789 = vmatprep.subr.bf16.mxu0 %v1257
    %1790 = vmatpush1.bf16.msra.mxu0 %v1256
    %1791 = vmatprep.subr.bf16.mxu0 %v1253
    %1792 = vmatpush1.bf16.msra.mxu0 %v1252
    %1793 = vmatprep.subr.bf16.mxu0 %v1249
    %1794 = vmatpush1.bf16.msra.mxu0 %v1248
    %1795 = vmatprep.subr.bf16.mxu0 %v1245
    %1796 = vmatpush1.bf16.msra.mxu0 %v1244
    %1797 = vmatprep.subr.bf16.mxu0 0
    %1798 = vmatpush2.bf16.msra.mxu0 0
    %1799 = vmatprep.subr.bf16.mxu0 0
    %1800 = vmatpush2.bf16.msra.mxu0 0
    %1801 = vmatprep.subr.bf16.mxu0 0
    %1802 = vmatpush2.bf16.msra.mxu0 0
    %1803 = vmatprep.subr.bf16.mxu0 0
    %1804 = vmatpush2.bf16.msra.mxu0 0
    %1805 = vmatprep.subr.bf16.mxu0 0
    %1806 = vmatpush2.bf16.msra.mxu0 0
    %1807 = vmatprep.subr.bf16.mxu0 0
    %1808 = vmatpush2.bf16.msra.mxu0 0
    %1809 = vmatprep.subr.bf16.mxu0 0
    %1810 = vmatpush2.bf16.msra.mxu0 0
    %1811 = vmatprep.subr.bf16.mxu0 0
    %1812 = vmatpush2.bf16.msra.mxu0 0
    %1813 = vmatprep.mubr.bf16.mxu0 0
    %1814 = vmatmul.mubr.bf16.gmra.mxu0 %v1780
    %v1815 = vpop.f32.mrf.mxu0
    %v1816 = vadd.f32 0.0, %v1815
    %v1817 = vpop.f32.mrf.mxu0
    %v1818 = vadd.f32 0.0, %v1817
    %v1819 = vpop.f32.mrf.mxu0
    %v1820 = vpop.f32.mrf.mxu0
    %1821 = vdwg.mxu0
    %1822 = vmatprep.subr.bf16.mxu0 %v1275
    %1823 = vmatpush1.bf16.msra.mxu0 %v1274
    %1824 = vmatprep.subr.bf16.mxu0 %v1271
    %1825 = vmatpush1.bf16.msra.mxu0 %v1270
    %1826 = vmatprep.subr.bf16.mxu0 %v1267
    %1827 = vmatpush1.bf16.msra.mxu0 %v1266
    %1828 = vmatprep.subr.bf16.mxu0 %v1263
    %1829 = vmatpush1.bf16.msra.mxu0 %v1262
    %1830 = vmatprep.subr.bf16.mxu0 %v1259
    %1831 = vmatpush1.bf16.msra.mxu0 %v1258
    %1832 = vmatprep.subr.bf16.mxu0 %v1255
    %1833 = vmatpush1.bf16.msra.mxu0 %v1254
    %1834 = vmatprep.subr.bf16.mxu0 %v1251
    %1835 = vmatpush1.bf16.msra.mxu0 %v1250
    %1836 = vmatprep.subr.bf16.mxu0 %v1247
    %1837 = vmatpush1.bf16.msra.mxu0 %v1246
    %1838 = vmatprep.subr.bf16.mxu0 0
    %1839 = vmatpush2.bf16.msra.mxu0 0
    %1840 = vmatprep.subr.bf16.mxu0 0
    %1841 = vmatpush2.bf16.msra.mxu0 0
    %1842 = vmatprep.subr.bf16.mxu0 0
    %1843 = vmatpush2.bf16.msra.mxu0 0
    %1844 = vmatprep.subr.bf16.mxu0 0
    %1845 = vmatpush2.bf16.msra.mxu0 0
    %1846 = vmatprep.subr.bf16.mxu0 0
    %1847 = vmatpush2.bf16.msra.mxu0 0
    %1848 = vmatprep.subr.bf16.mxu0 0
    %1849 = vmatpush2.bf16.msra.mxu0 0
    %1850 = vmatprep.subr.bf16.mxu0 0
    %1851 = vmatpush2.bf16.msra.mxu0 0
    %1852 = vmatprep.subr.bf16.mxu0 0
    %1853 = vmatpush2.bf16.msra.mxu0 0
    %1854 = vmatprep.mubr.bf16.mxu0 0
    %1855 = vmatmul.mubr.bf16.gmra.mxu0 %v1780
    %v1856 = vpop.f32.mrf.mxu0
    %v1857 = vadd.f32 0.0, %v1856
    %v1858 = vpop.f32.mrf.mxu0
    %v1859 = vadd.f32 0.0, %v1858
    %v1860 = vpop.f32.mrf.mxu0
    %v1861 = vpop.f32.mrf.mxu0
    %1862 = vdwg.mxu0
    %1863 = vmatprep.subr.bf16.mxu0 %v1515
    %1864 = vmatpush1.bf16.msra.mxu0 %v1514
    %1865 = vmatprep.subr.bf16.mxu0 %v1511
    %1866 = vmatpush1.bf16.msra.mxu0 %v1510
    %1867 = vmatprep.subr.bf16.mxu0 %v1507
    %1868 = vmatpush1.bf16.msra.mxu0 %v1506
    %1869 = vmatprep.subr.bf16.mxu0 %v1503
    %1870 = vmatpush1.bf16.msra.mxu0 %v1502
    %1871 = vmatprep.subr.bf16.mxu0 %v1499
    %1872 = vmatpush1.bf16.msra.mxu0 %v1498
    %1873 = vmatprep.subr.bf16.mxu0 %v1495
    %1874 = vmatpush1.bf16.msra.mxu0 %v1494
    %1875 = vmatprep.subr.bf16.mxu0 %v1491
    %1876 = vmatpush1.bf16.msra.mxu0 %v1490
    %1877 = vmatprep.subr.bf16.mxu0 %v1487
    %1878 = vmatpush1.bf16.msra.mxu0 %v1486
    %1879 = vmatprep.subr.bf16.mxu0 0
    %1880 = vmatpush2.bf16.msra.mxu0 0
    %1881 = vmatprep.subr.bf16.mxu0 0
    %1882 = vmatpush2.bf16.msra.mxu0 0
    %1883 = vmatprep.subr.bf16.mxu0 0
    %1884 = vmatpush2.bf16.msra.mxu0 0
    %1885 = vmatprep.subr.bf16.mxu0 0
    %1886 = vmatpush2.bf16.msra.mxu0 0
    %1887 = vmatprep.subr.bf16.mxu0 0
    %1888 = vmatpush2.bf16.msra.mxu0 0
    %1889 = vmatprep.subr.bf16.mxu0 0
    %1890 = vmatpush2.bf16.msra.mxu0 0
    %1891 = vmatprep.subr.bf16.mxu0 0
    %1892 = vmatpush2.bf16.msra.mxu0 0
    %1893 = vmatprep.subr.bf16.mxu0 0
    %1894 = vmatpush2.bf16.msra.mxu0 0
    %1895 = vmatprep.mubr.bf16.mxu0 0
    %1896 = vmatmul.mubr.bf16.gmra.mxu0 %v1675
    %v1897 = vpop.f32.mrf.mxu0
    %v1898 = vadd.f32 %v1816, %v1897
    %v1899 = vpop.f32.mrf.mxu0
    %v1900 = vadd.f32 %v1818, %v1899
    %v1901 = vpop.f32.mrf.mxu0
    %v1902 = vpop.f32.mrf.mxu0
    %1903 = vdwg.mxu0
    %1904 = vmatprep.subr.bf16.mxu0 %v1517
    %1905 = vmatpush1.bf16.msra.mxu0 %v1516
    %1906 = vmatprep.subr.bf16.mxu0 %v1513
    %1907 = vmatpush1.bf16.msra.mxu0 %v1512
    %1908 = vmatprep.subr.bf16.mxu0 %v1509
    %1909 = vmatpush1.bf16.msra.mxu0 %v1508
    %1910 = vmatprep.subr.bf16.mxu0 %v1505
    %1911 = vmatpush1.bf16.msra.mxu0 %v1504
    %1912 = vmatprep.subr.bf16.mxu0 %v1501
    %1913 = vmatpush1.bf16.msra.mxu0 %v1500
    %1914 = vmatprep.subr.bf16.mxu0 %v1497
    %1915 = vmatpush1.bf16.msra.mxu0 %v1496
    %1916 = vmatprep.subr.bf16.mxu0 %v1493
    %1917 = vmatpush1.bf16.msra.mxu0 %v1492
    %1918 = vmatprep.subr.bf16.mxu0 %v1489
    %1919 = vmatpush1.bf16.msra.mxu0 %v1488
    %1920 = vmatprep.subr.bf16.mxu0 0
    %1921 = vmatpush2.bf16.msra.mxu0 0
    %1922 = vmatprep.subr.bf16.mxu0 0
    %1923 = vmatpush2.bf16.msra.mxu0 0
    %1924 = vmatprep.subr.bf16.mxu0 0
    %1925 = vmatpush2.bf16.msra.mxu0 0
    %1926 = vmatprep.subr.bf16.mxu0 0
    %1927 = vmatpush2.bf16.msra.mxu0 0
    %1928 = vmatprep.subr.bf16.mxu0 0
    %1929 = vmatpush2.bf16.msra.mxu0 0
    %1930 = vmatprep.subr.bf16.mxu0 0
    %1931 = vmatpush2.bf16.msra.mxu0 0
    %1932 = vmatprep.subr.bf16.mxu0 0
    %1933 = vmatpush2.bf16.msra.mxu0 0
    %1934 = vmatprep.subr.bf16.mxu0 0
    %1935 = vmatpush2.bf16.msra.mxu0 0
    %1936 = vmatprep.mubr.bf16.mxu0 0
    %1937 = vmatmul.mubr.bf16.gmra.mxu0 %v1675
    %v1938 = vpop.f32.mrf.mxu0
    %v1939 = vadd.f32 %v1857, %v1938
    %v1940 = vpop.f32.mrf.mxu0
    %v1941 = vadd.f32 %v1859, %v1940
    %v1942 = vpop.f32.mrf.mxu0
    %v1943 = vpop.f32.mrf.mxu0
    %1944 = vdwg.mxu0
    %v1945 = vadd.f32 %v1898, %v1636
    %v1946 = vadd.f32 %v1900, %v1640
    %v1947 = vadd.f32 %v1939, %v1644
    %v1948 = vadd.f32 %v1941, %v1648
    %v1949 = vmul.f32 %v1945, 0.5
    %v1950 = vmul.f32 %v1946, 0.5
    %v1951 = vmul.f32 %v1947, 0.5
    %v1952 = vtanh.pop %v1949
    %v1953 = vtanh.pop %v1950
    %v1954 = vtanh.pop %v1951
    %v1955 = vmul.f32 %v1952, 0.5
    %v1956 = vmul.f32 %v1953, 0.5
    %v1957 = vmul.f32 %v1954, 0.5
    %v1958 = vadd.f32 %v1955, 0.5
    %v1959 = vadd.f32 %v1956, 0.5
    %v1960 = vadd.f32 %v1957, 0.5
    %v1961 = vtanh.pop %v1948
    %v1962 = vmul.f32 %v1959, %v1672
    %v1963 = vmul.f32 %v1958, %v1961
    %v1964 = vadd.f32 %v1962, %v1963
    %v1965 = vtanh.pop %v1964
    %v1966 = vmul.f32 %v1960, %v1965
    %v2095 = vunpack.c.l.b16 %v650
    %v2096 = vunpack.c.h.b16 %v650
    %v2097 = vunpack.c.l.b16 %v651
    %v2098 = vunpack.c.h.b16 %v651
    %v2099 = vunpack.c.l.b16 %v652
    %v2100 = vunpack.c.h.b16 %v652
    %v2101 = vunpack.c.l.b16 %v653
    %v2102 = vunpack.c.h.b16 %v653
    %v2103 = vunpack.c.l.b16 %v654
    %v2104 = vunpack.c.h.b16 %v654
    %v2105 = vunpack.c.l.b16 %v655
    %v2106 = vunpack.c.h.b16 %v655
    %v2107 = vunpack.c.l.b16 %v656
    %v2108 = vunpack.c.h.b16 %v656
    %v2109 = vunpack.c.l.b16 %v657
    %v2110 = vunpack.c.h.b16 %v657
    %v2111 = vunpack.c.l.b16 %v658
    %v2112 = vunpack.c.h.b16 %v658
    %v2113 = vunpack.c.l.b16 %v659
    %v2114 = vunpack.c.h.b16 %v659
    %v2115 = vunpack.c.l.b16 %v660
    %v2116 = vunpack.c.h.b16 %v660
    %v2117 = vunpack.c.l.b16 %v661
    %v2118 = vunpack.c.h.b16 %v661
    %v2119 = vunpack.c.l.b16 %v662
    %v2120 = vunpack.c.h.b16 %v662
    %v2121 = vunpack.c.l.b16 %v663
    %v2122 = vunpack.c.h.b16 %v663
    %v2123 = vunpack.c.l.b16 %v664
    %v2124 = vunpack.c.h.b16 %v664
    %v2125 = vunpack.c.l.b16 %v665
    %v2126 = vunpack.c.h.b16 %v665
    %v2127 = vunpack.c.l.b16 %v666
    %v2128 = vunpack.c.h.b16 %v666
    %v2129 = vunpack.c.l.b16 %v667
    %v2130 = vunpack.c.h.b16 %v667
    %v2131 = vunpack.c.l.b16 %v668
    %v2132 = vunpack.c.h.b16 %v668
    %v2133 = vunpack.c.l.b16 %v669
    %v2134 = vunpack.c.h.b16 %v669
    %v2135 = vunpack.c.l.b16 %v670
    %v2136 = vunpack.c.h.b16 %v670
    %v2137 = vunpack.c.l.b16 %v671
    %v2138 = vunpack.c.h.b16 %v671
    %v2139 = vunpack.c.l.b16 %v672
    %v2140 = vunpack.c.h.b16 %v672
    %v2141 = vunpack.c.l.b16 %v673
    %v2142 = vunpack.c.h.b16 %v673
    %v2143 = vunpack.c.l.b16 %v674
    %v2144 = vunpack.c.h.b16 %v674
    %v2145 = vunpack.c.l.b16 %v675
    %v2146 = vunpack.c.h.b16 %v675
    %v2147 = vunpack.c.l.b16 %v676
    %v2148 = vunpack.c.h.b16 %v676
    %v2149 = vunpack.c.l.b16 %v677
    %v2150 = vunpack.c.h.b16 %v677
    %v2151 = vunpack.c.l.b16 %v678
    %v2152 = vunpack.c.h.b16 %v678
    %v2153 = vunpack.c.l.b16 %v679
    %v2154 = vunpack.c.h.b16 %v679
    %v2155 = vunpack.c.l.b16 %v680
    %v2156 = vunpack.c.h.b16 %v680
    %v2157 = vunpack.c.l.b16 %v681
    %v2158 = vunpack.c.h.b16 %v681
    %v2159 = vunpack.c.l.b16 %v682
    %v2160 = vunpack.c.h.b16 %v682
    %v2161 = vunpack.c.l.b16 %v683
    %v2162 = vunpack.c.h.b16 %v683
    %v2163 = vunpack.c.l.b16 %v684
    %v2164 = vunpack.c.h.b16 %v684
    %v2165 = vunpack.c.l.b16 %v685
    %v2166 = vunpack.c.h.b16 %v685
    %v2167 = vunpack.c.l.b16 %v686
    %v2168 = vunpack.c.h.b16 %v686
    %v2169 = vunpack.c.l.b16 %v687
    %v2170 = vunpack.c.h.b16 %v687
    %v2171 = vunpack.c.l.b16 %v688
    %v2172 = vunpack.c.h.b16 %v688
    %v2173 = vunpack.c.l.b16 %v689
    %v2174 = vunpack.c.h.b16 %v689
    %v2175 = vunpack.c.l.b16 %v690
    %v2176 = vunpack.c.h.b16 %v690
    %v2177 = vunpack.c.l.b16 %v691
    %v2178 = vunpack.c.h.b16 %v691
    %v2179 = vunpack.c.l.b16 %v692
    %v2180 = vunpack.c.h.b16 %v692
    %v2181 = vunpack.c.l.b16 %v693
    %v2182 = vunpack.c.h.b16 %v693
    %v2183 = vunpack.c.l.b16 %v694
    %v2184 = vunpack.c.h.b16 %v694
    %v2185 = vunpack.c.l.b16 %v695
    %v2186 = vunpack.c.h.b16 %v695
    %v2187 = vunpack.c.l.b16 %v696
    %v2188 = vunpack.c.h.b16 %v696
    %v2189 = vunpack.c.l.b16 %v697
    %v2190 = vunpack.c.h.b16 %v697
    %v2191 = vunpack.c.l.b16 %v698
    %v2192 = vunpack.c.h.b16 %v698
    %v2193 = vunpack.c.l.b16 %v699
    %v2194 = vunpack.c.h.b16 %v699
    %v2195 = vunpack.c.l.b16 %v700
    %v2196 = vunpack.c.h.b16 %v700
    %v2197 = vunpack.c.l.b16 %v701
    %v2198 = vunpack.c.h.b16 %v701
    %v2199 = vunpack.c.l.b16 %v702
    %v2200 = vunpack.c.h.b16 %v702
    %v2201 = vunpack.c.l.b16 %v703
    %v2202 = vunpack.c.h.b16 %v703
    %v2203 = vunpack.c.l.b16 %v704
    %v2204 = vunpack.c.h.b16 %v704
    %v2205 = vunpack.c.l.b16 %v705
    %v2206 = vunpack.c.h.b16 %v705
    %v2207 = vunpack.c.l.b16 %v706
    %v2208 = vunpack.c.h.b16 %v706
    %v2209 = vunpack.c.l.b16 %v707
    %v2210 = vunpack.c.h.b16 %v707
    %v2211 = vunpack.c.l.b16 %v708
    %v2212 = vunpack.c.h.b16 %v708
    %v2213 = vunpack.c.l.b16 %v709
    %v2214 = vunpack.c.h.b16 %v709
    %v2215 = vunpack.c.l.b16 %v710
    %v2216 = vunpack.c.h.b16 %v710
    %v2217 = vunpack.c.l.b16 %v711
    %v2218 = vunpack.c.h.b16 %v711
    %v2219 = vunpack.c.l.b16 %v712
    %v2220 = vunpack.c.h.b16 %v712
    %v2221 = vunpack.c.l.b16 %v713
    %v2222 = vunpack.c.h.b16 %v713
    %v2223 = vunpack.c.l.b16 %v714
    %v2224 = vunpack.c.h.b16 %v714
    %v2225 = vunpack.c.l.b16 %v715
    %v2226 = vunpack.c.h.b16 %v715
    %v2227 = vunpack.c.l.b16 %v716
    %v2228 = vunpack.c.h.b16 %v716
    %v2229 = vunpack.c.l.b16 %v717
    %v2230 = vunpack.c.h.b16 %v717
    %v2231 = vunpack.c.l.b16 %v718
    %v2232 = vunpack.c.h.b16 %v718
    %v2233 = vunpack.c.l.b16 %v719
    %v2234 = vunpack.c.h.b16 %v719
    %v2235 = vunpack.c.l.b16 %v720
    %v2236 = vunpack.c.h.b16 %v720
    %v2237 = vunpack.c.l.b16 %v721
    %v2238 = vunpack.c.h.b16 %v721
    %v2239 = vunpack.c.l.b16 %v722
    %v2240 = vunpack.c.h.b16 %v722
    %v2241 = vunpack.c.l.b16 %v723
    %v2242 = vunpack.c.h.b16 %v723
    %v2243 = vunpack.c.l.b16 %v724
    %v2244 = vunpack.c.h.b16 %v724
    %v2245 = vunpack.c.l.b16 %v725
    %v2246 = vunpack.c.h.b16 %v725
    %v2247 = vunpack.c.l.b16 %v726
    %v2248 = vunpack.c.h.b16 %v726
    %v2249 = vunpack.c.l.b16 %v727
    %v2250 = vunpack.c.h.b16 %v727
    %v2251 = vunpack.c.l.b16 %v728
    %v2252 = vunpack.c.h.b16 %v728
    %v2253 = vunpack.c.l.b16 %v729
    %v2254 = vunpack.c.h.b16 %v729
    %v2255 = vunpack.c.l.b16 %v730
    %v2256 = vunpack.c.h.b16 %v730
    %v2257 = vunpack.c.l.b16 %v731
    %v2258 = vunpack.c.h.b16 %v731
    %v2259 = vunpack.c.l.b16 %v732
    %v2260 = vunpack.c.h.b16 %v732
    %v2261 = vunpack.c.l.b16 %v733
    %v2262 = vunpack.c.h.b16 %v733
    %v2263 = vunpack.c.l.b16 %v734
    %v2264 = vunpack.c.h.b16 %v734
    %v2265 = vunpack.c.l.b16 %v735
    %v2266 = vunpack.c.h.b16 %v735
    %v2267 = vunpack.c.l.b16 %v736
    %v2268 = vunpack.c.h.b16 %v736
    %v2269 = vunpack.c.l.b16 %v737
    %v2270 = vunpack.c.h.b16 %v737
    %v2271 = vunpack.c.l.b16 %v738
    %v2272 = vunpack.c.h.b16 %v738
    %v2273 = vunpack.c.l.b16 %v739
    %v2274 = vunpack.c.h.b16 %v739
    %v2275 = vunpack.c.l.b16 %v740
    %v2276 = vunpack.c.h.b16 %v740
    %v2277 = vunpack.c.l.b16 %v741
    %v2278 = vunpack.c.h.b16 %v741
    %v2279 = vunpack.c.l.b16 %v742
    %v2280 = vunpack.c.h.b16 %v742
    %v2281 = vunpack.c.l.b16 %v743
    %v2282 = vunpack.c.h.b16 %v743
    %v2283 = vunpack.c.l.b16 %v744
    %v2284 = vunpack.c.h.b16 %v744
    %v2285 = vunpack.c.l.b16 %v745
    %v2286 = vunpack.c.h.b16 %v745
    %v2287 = vunpack.c.l.b16 %v746
    %v2288 = vunpack.c.h.b16 %v746
    %v2289 = vunpack.c.l.b16 %v747
    %v2290 = vunpack.c.h.b16 %v747
    %v2291 = vunpack.c.l.b16 %v748
    %v2292 = vunpack.c.h.b16 %v748
    %v2293 = vunpack.c.l.b16 %v749
    %v2294 = vunpack.c.h.b16 %v749
    %v2295 = vunpack.c.l.b16 %v750
    %v2296 = vunpack.c.h.b16 %v750
    %v2297 = vunpack.c.l.b16 %v751
    %v2298 = vunpack.c.h.b16 %v751
    %v2299 = vunpack.c.l.b16 %v752
    %v2300 = vunpack.c.h.b16 %v752
    %v2301 = vunpack.c.l.b16 %v753
    %v2302 = vunpack.c.h.b16 %v753
    %v2303 = vunpack.c.l.b16 %v754
    %v2304 = vunpack.c.h.b16 %v754
    %v2305 = vunpack.c.l.b16 %v755
    %v2306 = vunpack.c.h.b16 %v755
    %v2307 = vunpack.c.l.b16 %v756
    %v2308 = vunpack.c.h.b16 %v756
    %v2309 = vunpack.c.l.b16 %v757
    %v2310 = vunpack.c.h.b16 %v757
    %v2311 = vunpack.c.l.b16 %v758
    %v2312 = vunpack.c.h.b16 %v758
    %v2313 = vunpack.c.l.b16 %v759
    %v2314 = vunpack.c.h.b16 %v759
    %v2315 = vunpack.c.l.b16 %v760
    %v2316 = vunpack.c.h.b16 %v760
    %v2317 = vunpack.c.l.b16 %v761
    %v2318 = vunpack.c.h.b16 %v761
    %v2319 = vunpack.c.l.b16 %v762
    %v2320 = vunpack.c.h.b16 %v762
    %v2321 = vunpack.c.l.b16 %v763
    %v2322 = vunpack.c.h.b16 %v763
    %v2323 = vunpack.c.l.b16 %v764
    %v2324 = vunpack.c.h.b16 %v764
    %v2325 = vunpack.c.l.b16 %v765
    %v2326 = vunpack.c.h.b16 %v765
    %v2327 = vunpack.c.l.b16 %v766
    %v2328 = vunpack.c.h.b16 %v766
    %v2329 = vunpack.c.l.b16 %v767
    %v2330 = vunpack.c.h.b16 %v767
    %v2331 = vunpack.c.l.b16 %v768
    %v2332 = vunpack.c.h.b16 %v768
    %v2333 = vunpack.c.l.b16 %v769
    %v2334 = vunpack.c.h.b16 %v769
    %v2335 = vunpack.c.l.b16 %v770
    %v2336 = vunpack.c.h.b16 %v770
    %v2337 = vunpack.c.l.b16 %v771
    %v2338 = vunpack.c.h.b16 %v771
    %v2339 = vunpack.c.l.b16 %v772
    %v2340 = vunpack.c.h.b16 %v772
    %v2341 = vunpack.c.l.b16 %v773
    %v2342 = vunpack.c.h.b16 %v773
    %v2343 = vunpack.c.l.b16 %v774
    %v2344 = vunpack.c.h.b16 %v774
    %v2345 = vunpack.c.l.b16 %v775
    %v2346 = vunpack.c.h.b16 %v775
    %v2347 = vunpack.c.l.b16 %v776
    %v2348 = vunpack.c.h.b16 %v776
    %v2349 = vunpack.c.l.b16 %v777
    %v2350 = vunpack.c.h.b16 %v777
    %v2351 = vpack.c.b16 %v2103, %v2095
    %v2352 = vpack.c.b16 %v2104, %v2096
    %v2353 = vpack.c.b16 %v2105, %v2097
    %v2354 = vpack.c.b16 %v2106, %v2098
    %v2355 = vpack.c.b16 %v2107, %v2099
    %v2356 = vpack.c.b16 %v2108, %v2100
    %v2357 = vpack.c.b16 %v2109, %v2101
    %v2358 = vpack.c.b16 %v2110, %v2102
    %v2359 = vpack.c.b16 %v2119, %v2111
    %v2360 = vpack.c.b16 %v2120, %v2112
    %v2361 = vpack.c.b16 %v2121, %v2113
    %v2362 = vpack.c.b16 %v2122, %v2114
    %v2363 = vpack.c.b16 %v2123, %v2115
    %v2364 = vpack.c.b16 %v2124, %v2116
    %v2365 = vpack.c.b16 %v2125, %v2117
    %v2366 = vpack.c.b16 %v2126, %v2118
    %v2367 = vpack.c.b16 %v2135, %v2127
    %v2368 = vpack.c.b16 %v2136, %v2128
    %v2369 = vpack.c.b16 %v2137, %v2129
    %v2370 = vpack.c.b16 %v2138, %v2130
    %v2371 = vpack.c.b16 %v2139, %v2131
    %v2372 = vpack.c.b16 %v2140, %v2132
    %v2373 = vpack.c.b16 %v2141, %v2133
    %v2374 = vpack.c.b16 %v2142, %v2134
    %v2375 = vpack.c.b16 %v2151, %v2143
    %v2376 = vpack.c.b16 %v2152, %v2144
    %v2377 = vpack.c.b16 %v2153, %v2145
    %v2378 = vpack.c.b16 %v2154, %v2146
    %v2379 = vpack.c.b16 %v2155, %v2147
    %v2380 = vpack.c.b16 %v2156, %v2148
    %v2381 = vpack.c.b16 %v2157, %v2149
    %v2382 = vpack.c.b16 %v2158, %v2150
    %v2383 = vpack.c.b16 %v2167, %v2159
    %v2384 = vpack.c.b16 %v2168, %v2160
    %v2385 = vpack.c.b16 %v2169, %v2161
    %v2386 = vpack.c.b16 %v2170, %v2162
    %v2387 = vpack.c.b16 %v2171, %v2163
    %v2388 = vpack.c.b16 %v2172, %v2164
    %v2389 = vpack.c.b16 %v2173, %v2165
    %v2390 = vpack.c.b16 %v2174, %v2166
    %v2391 = vpack.c.b16 %v2183, %v2175
    %v2392 = vpack.c.b16 %v2184, %v2176
    %v2393 = vpack.c.b16 %v2185, %v2177
    %v2394 = vpack.c.b16 %v2186, %v2178
    %v2395 = vpack.c.b16 %v2187, %v2179
    %v2396 = vpack.c.b16 %v2188, %v2180
    %v2397 = vpack.c.b16 %v2189, %v2181
    %v2398 = vpack.c.b16 %v2190, %v2182
    %v2399 = vpack.c.b16 %v2199, %v2191
    %v2400 = vpack.c.b16 %v2200, %v2192
    %v2401 = vpack.c.b16 %v2201, %v2193
    %v2402 = vpack.c.b16 %v2202, %v2194
    %v2403 = vpack.c.b16 %v2203, %v2195
    %v2404 = vpack.c.b16 %v2204, %v2196
    %v2405 = vpack.c.b16 %v2205, %v2197
    %v2406 = vpack.c.b16 %v2206, %v2198
    %v2407 = vpack.c.b16 %v2215, %v2207
    %v2408 = vpack.c.b16 %v2216, %v2208
    %v2409 = vpack.c.b16 %v2217, %v2209
    %v2410 = vpack.c.b16 %v2218, %v2210
    %v2411 = vpack.c.b16 %v2219, %v2211
    %v2412 = vpack.c.b16 %v2220, %v2212
    %v2413 = vpack.c.b16 %v2221, %v2213
    %v2414 = vpack.c.b16 %v2222, %v2214
    %v2415 = vpack.c.b16 %v2231, %v2223
    %v2416 = vpack.c.b16 %v2232, %v2224
    %v2417 = vpack.c.b16 %v2233, %v2225
    %v2418 = vpack.c.b16 %v2234, %v2226
    %v2419 = vpack.c.b16 %v2235, %v2227
    %v2420 = vpack.c.b16 %v2236, %v2228
    %v2421 = vpack.c.b16 %v2237, %v2229
    %v2422 = vpack.c.b16 %v2238, %v2230
    %v2423 = vpack.c.b16 %v2247, %v2239
    %v2424 = vpack.c.b16 %v2248, %v2240
    %v2425 = vpack.c.b16 %v2249, %v2241
    %v2426 = vpack.c.b16 %v2250, %v2242
    %v2427 = vpack.c.b16 %v2251, %v2243
    %v2428 = vpack.c.b16 %v2252, %v2244
    %v2429 = vpack.c.b16 %v2253, %v2245
    %v2430 = vpack.c.b16 %v2254, %v2246
    %v2431 = vpack.c.b16 %v2263, %v2255
    %v2432 = vpack.c.b16 %v2264, %v2256
    %v2433 = vpack.c.b16 %v2265, %v2257
    %v2434 = vpack.c.b16 %v2266, %v2258
    %v2435 = vpack.c.b16 %v2267, %v2259
    %v2436 = vpack.c.b16 %v2268, %v2260
    %v2437 = vpack.c.b16 %v2269, %v2261
    %v2438 = vpack.c.b16 %v2270, %v2262
    %v2439 = vpack.c.b16 %v2279, %v2271
    %v2440 = vpack.c.b16 %v2280, %v2272
    %v2441 = vpack.c.b16 %v2281, %v2273
    %v2442 = vpack.c.b16 %v2282, %v2274
    %v2443 = vpack.c.b16 %v2283, %v2275
    %v2444 = vpack.c.b16 %v2284, %v2276
    %v2445 = vpack.c.b16 %v2285, %v2277
    %v2446 = vpack.c.b16 %v2286, %v2278
    %v2447 = vpack.c.b16 %v2295, %v2287
    %v2448 = vpack.c.b16 %v2296, %v2288
    %v2449 = vpack.c.b16 %v2297, %v2289
    %v2450 = vpack.c.b16 %v2298, %v2290
    %v2451 = vpack.c.b16 %v2299, %v2291
    %v2452 = vpack.c.b16 %v2300, %v2292
    %v2453 = vpack.c.b16 %v2301, %v2293
    %v2454 = vpack.c.b16 %v2302, %v2294
    %v2455 = vpack.c.b16 %v2311, %v2303
    %v2456 = vpack.c.b16 %v2312, %v2304
    %v2457 = vpack.c.b16 %v2313, %v2305
    %v2458 = vpack.c.b16 %v2314, %v2306
    %v2459 = vpack.c.b16 %v2315, %v2307
    %v2460 = vpack.c.b16 %v2316, %v2308
    %v2461 = vpack.c.b16 %v2317, %v2309
    %v2462 = vpack.c.b16 %v2318, %v2310
    %v2463 = vpack.c.b16 %v2327, %v2319
    %v2464 = vpack.c.b16 %v2328, %v2320
    %v2465 = vpack.c.b16 %v2329, %v2321
    %v2466 = vpack.c.b16 %v2330, %v2322
    %v2467 = vpack.c.b16 %v2331, %v2323
    %v2468 = vpack.c.b16 %v2332, %v2324
    %v2469 = vpack.c.b16 %v2333, %v2325
    %v2470 = vpack.c.b16 %v2334, %v2326
    %v2471 = vpack.c.b16 %v2343, %v2335
    %v2472 = vpack.c.b16 %v2344, %v2336
    %v2473 = vpack.c.b16 %v2345, %v2337
    %v2474 = vpack.c.b16 %v2346, %v2338
    %v2475 = vpack.c.b16 %v2347, %v2339
    %v2476 = vpack.c.b16 %v2348, %v2340
    %v2477 = vpack.c.b16 %v2349, %v2341
    %v2478 = vpack.c.b16 %v2350, %v2342
    %2607 = vmatprep.subr.bf16.mxu0 %v2408
    %2608 = vmatpush1.bf16.msra.mxu0 %v2407
    %2609 = vmatprep.subr.bf16.mxu0 %v2400
    %2610 = vmatpush1.bf16.msra.mxu0 %v2399
    %2611 = vmatprep.subr.bf16.mxu0 %v2392
    %2612 = vmatpush1.bf16.msra.mxu0 %v2391
    %2613 = vmatprep.subr.bf16.mxu0 %v2384
    %2614 = vmatpush1.bf16.msra.mxu0 %v2383
    %2615 = vmatprep.subr.bf16.mxu0 %v2376
    %2616 = vmatpush1.bf16.msra.mxu0 %v2375
    %2617 = vmatprep.subr.bf16.mxu0 %v2368
    %2618 = vmatpush1.bf16.msra.mxu0 %v2367
    %2619 = vmatprep.subr.bf16.mxu0 %v2360
    %2620 = vmatpush1.bf16.msra.mxu0 %v2359
    %2621 = vmatprep.subr.bf16.mxu0 %v2352
    %2622 = vmatpush1.bf16.msra.mxu0 %v2351
    %2623 = vmatprep.subr.bf16.mxu0 %v2472
    %2624 = vmatpush2.bf16.msra.mxu0 %v2471
    %2625 = vmatprep.subr.bf16.mxu0 %v2464
    %2626 = vmatpush2.bf16.msra.mxu0 %v2463
    %2627 = vmatprep.subr.bf16.mxu0 %v2456
    %2628 = vmatpush2.bf16.msra.mxu0 %v2455
    %2629 = vmatprep.subr.bf16.mxu0 %v2448
    %2630 = vmatpush2.bf16.msra.mxu0 %v2447
    %2631 = vmatprep.subr.bf16.mxu0 %v2440
    %2632 = vmatpush2.bf16.msra.mxu0 %v2439
    %2633 = vmatprep.subr.bf16.mxu0 %v2432
    %2634 = vmatpush2.bf16.msra.mxu0 %v2431
    %2635 = vmatprep.subr.bf16.mxu0 %v2424
    %2636 = vmatpush2.bf16.msra.mxu0 %v2423
    %2637 = vmatprep.subr.bf16.mxu0 %v2416
    %2638 = vmatpush2.bf16.msra.mxu0 %v2415
    %2639 = vmatprep.mubr.bf16.mxu0 0
    %2640 = vmatmul.mubr.bf16.gmra.mxu0 0
    %v2641 = vpop.f32.mrf.mxu0
    %v2642 = vadd.f32 0.0, %v2641
    %v2643 = vpop.f32.mrf.mxu0
    %v2644 = vadd.f32 0.0, %v2643
    %v2645 = vpop.f32.mrf.mxu0
    %v2646 = vpop.f32.mrf.mxu0
    %2647 = vdwg.mxu0
    %2648 = vmatprep.subr.bf16.mxu0 %v2410
    %2649 = vmatpush1.bf16.msra.mxu0 %v2409
    %2650 = vmatprep.subr.bf16.mxu0 %v2402
    %2651 = vmatpush1.bf16.msra.mxu0 %v2401
    %2652 = vmatprep.subr.bf16.mxu0 %v2394
    %2653 = vmatpush1.bf16.msra.mxu0 %v2393
    %2654 = vmatprep.subr.bf16.mxu0 %v2386
    %2655 = vmatpush1.bf16.msra.mxu0 %v2385
    %2656 = vmatprep.subr.bf16.mxu0 %v2378
    %2657 = vmatpush1.bf16.msra.mxu0 %v2377
    %2658 = vmatprep.subr.bf16.mxu0 %v2370
    %2659 = vmatpush1.bf16.msra.mxu0 %v2369
    %2660 = vmatprep.subr.bf16.mxu0 %v2362
    %2661 = vmatpush1.bf16.msra.mxu0 %v2361
    %2662 = vmatprep.subr.bf16.mxu0 %v2354
    %2663 = vmatpush1.bf16.msra.mxu0 %v2353
    %2664 = vmatprep.subr.bf16.mxu0 %v2474
    %2665 = vmatpush2.bf16.msra.mxu0 %v2473
    %2666 = vmatprep.subr.bf16.mxu0 %v2466
    %2667 = vmatpush2.bf16.msra.mxu0 %v2465
    %2668 = vmatprep.subr.bf16.mxu0 %v2458
    %2669 = vmatpush2.bf16.msra.mxu0 %v2457
    %2670 = vmatprep.subr.bf16.mxu0 %v2450
    %2671 = vmatpush2.bf16.msra.mxu0 %v2449
    %2672 = vmatprep.subr.bf16.mxu0 %v2442
    %2673 = vmatpush2.bf16.msra.mxu0 %v2441
    %2674 = vmatprep.subr.bf16.mxu0 %v2434
    %2675 = vmatpush2.bf16.msra.mxu0 %v2433
    %2676 = vmatprep.subr.bf16.mxu0 %v2426
    %2677 = vmatpush2.bf16.msra.mxu0 %v2425
    %2678 = vmatprep.subr.bf16.mxu0 %v2418
    %2679 = vmatpush2.bf16.msra.mxu0 %v2417
    %2680 = vmatprep.mubr.bf16.mxu0 0
    %2681 = vmatmul.mubr.bf16.gmra.mxu0 0
    %v2682 = vpop.f32.mrf.mxu0
    %v2683 = vadd.f32 0.0, %v2682
    %v2684 = vpop.f32.mrf.mxu0
    %v2685 = vadd.f32 0.0, %v2684
    %v2686 = vpop.f32.mrf.mxu0
    %v2687 = vpop.f32.mrf.mxu0
    %2688 = vdwg.mxu0
    %2689 = vmatprep.subr.bf16.mxu0 %v2412
    %2690 = vmatpush1.bf16.msra.mxu0 %v2411
    %2691 = vmatprep.subr.bf16.mxu0 %v2404
    %2692 = vmatpush1.bf16.msra.mxu0 %v2403
    %2693 = vmatprep.subr.bf16.mxu0 %v2396
    %2694 = vmatpush1.bf16.msra.mxu0 %v2395
    %2695 = vmatprep.subr.bf16.mxu0 %v2388
    %2696 = vmatpush1.bf16.msra.mxu0 %v2387
    %2697 = vmatprep.subr.bf16.mxu0 %v2380
    %2698 = vmatpush1.bf16.msra.mxu0 %v2379
    %2699 = vmatprep.subr.bf16.mxu0 %v2372
    %2700 = vmatpush1.bf16.msra.mxu0 %v2371
    %2701 = vmatprep.subr.bf16.mxu0 %v2364
    %2702 = vmatpush1.bf16.msra.mxu0 %v2363
    %2703 = vmatprep.subr.bf16.mxu0 %v2356
    %2704 = vmatpush1.bf16.msra.mxu0 %v2355
    %2705 = vmatprep.subr.bf16.mxu0 %v2476
    %2706 = vmatpush2.bf16.msra.mxu0 %v2475
    %2707 = vmatprep.subr.bf16.mxu0 %v2468
    %2708 = vmatpush2.bf16.msra.mxu0 %v2467
    %2709 = vmatprep.subr.bf16.mxu0 %v2460
    %2710 = vmatpush2.bf16.msra.mxu0 %v2459
    %2711 = vmatprep.subr.bf16.mxu0 %v2452
    %2712 = vmatpush2.bf16.msra.mxu0 %v2451
    %2713 = vmatprep.subr.bf16.mxu0 %v2444
    %2714 = vmatpush2.bf16.msra.mxu0 %v2443
    %2715 = vmatprep.subr.bf16.mxu0 %v2436
    %2716 = vmatpush2.bf16.msra.mxu0 %v2435
    %2717 = vmatprep.subr.bf16.mxu0 %v2428
    %2718 = vmatpush2.bf16.msra.mxu0 %v2427
    %2719 = vmatprep.subr.bf16.mxu0 %v2420
    %2720 = vmatpush2.bf16.msra.mxu0 %v2419
    %2721 = vmatprep.mubr.bf16.mxu0 0
    %2722 = vmatmul.mubr.bf16.gmra.mxu0 0
    %v2723 = vpop.f32.mrf.mxu0
    %v2724 = vadd.f32 0.0, %v2723
    %v2725 = vpop.f32.mrf.mxu0
    %v2726 = vadd.f32 0.0, %v2725
    %v2727 = vpop.f32.mrf.mxu0
    %v2728 = vpop.f32.mrf.mxu0
    %2729 = vdwg.mxu0
    %2730 = vmatprep.subr.bf16.mxu0 %v2414
    %2731 = vmatpush1.bf16.msra.mxu0 %v2413
    %2732 = vmatprep.subr.bf16.mxu0 %v2406
    %2733 = vmatpush1.bf16.msra.mxu0 %v2405
    %2734 = vmatprep.subr.bf16.mxu0 %v2398
    %2735 = vmatpush1.bf16.msra.mxu0 %v2397
    %2736 = vmatprep.subr.bf16.mxu0 %v2390
    %2737 = vmatpush1.bf16.msra.mxu0 %v2389
    %2738 = vmatprep.subr.bf16.mxu0 %v2382
    %2739 = vmatpush1.bf16.msra.mxu0 %v2381
    %2740 = vmatprep.subr.bf16.mxu0 %v2374
    %2741 = vmatpush1.bf16.msra.mxu0 %v2373
    %2742 = vmatprep.subr.bf16.mxu0 %v2366
    %2743 = vmatpush1.bf16.msra.mxu0 %v2365
    %2744 = vmatprep.subr.bf16.mxu0 %v2358
    %2745 = vmatpush1.bf16.msra.mxu0 %v2357
    %2746 = vmatprep.subr.bf16.mxu0 %v2478
    %2747 = vmatpush2.bf16.msra.mxu0 %v2477
    %2748 = vmatprep.subr.bf16.mxu0 %v2470
    %2749 = vmatpush2.bf16.msra.mxu0 %v2469
    %2750 = vmatprep.subr.bf16.mxu0 %v2462
    %2751 = vmatpush2.bf16.msra.mxu0 %v2461
    %2752 = vmatprep.subr.bf16.mxu0 %v2454
    %2753 = vmatpush2.bf16.msra.mxu0 %v2453
    %2754 = vmatprep.subr.bf16.mxu0 %v2446
    %2755 = vmatpush2.bf16.msra.mxu0 %v2445
    %2756 = vmatprep.subr.bf16.mxu0 %v2438
    %2757 = vmatpush2.bf16.msra.mxu0 %v2437
    %2758 = vmatprep.subr.bf16.mxu0 %v2430
    %2759 = vmatpush2.bf16.msra.mxu0 %v2429
    %2760 = vmatprep.subr.bf16.mxu0 %v2422
    %2761 = vmatpush2.bf16.msra.mxu0 %v2421
    %2762 = vmatprep.mubr.bf16.mxu0 0
    %2763 = vmatmul.mubr.bf16.gmra.mxu0 0
    %v2764 = vpop.f32.mrf.mxu0
    %v2765 = vadd.f32 0.0, %v2764
    %v2766 = vpop.f32.mrf.mxu0
    %v2767 = vadd.f32 0.0, %v2766
    %v2768 = vpop.f32.mrf.mxu0
    %v2769 = vpop.f32.mrf.mxu0
    %2770 = vdwg.mxu0
    %v2835 = vunpack.c.l.b16 %v586
    %v2836 = vunpack.c.h.b16 %v586
    %v2837 = vunpack.c.l.b16 %v587
    %v2838 = vunpack.c.h.b16 %v587
    %v2839 = vunpack.c.l.b16 %v588
    %v2840 = vunpack.c.h.b16 %v588
    %v2841 = vunpack.c.l.b16 %v589
    %v2842 = vunpack.c.h.b16 %v589
    %v2843 = vunpack.c.l.b16 %v590
    %v2844 = vunpack.c.h.b16 %v590
    %v2845 = vunpack.c.l.b16 %v591
    %v2846 = vunpack.c.h.b16 %v591
    %v2847 = vunpack.c.l.b16 %v592
    %v2848 = vunpack.c.h.b16 %v592
    %v2849 = vunpack.c.l.b16 %v593
    %v2850 = vunpack.c.h.b16 %v593
    %v2851 = vunpack.c.l.b16 %v594
    %v2852 = vunpack.c.h.b16 %v594
    %v2853 = vunpack.c.l.b16 %v595
    %v2854 = vunpack.c.h.b16 %v595
    %v2855 = vunpack.c.l.b16 %v596
    %v2856 = vunpack.c.h.b16 %v596
    %v2857 = vunpack.c.l.b16 %v597
    %v2858 = vunpack.c.h.b16 %v597
    %v2859 = vunpack.c.l.b16 %v598
    %v2860 = vunpack.c.h.b16 %v598
    %v2861 = vunpack.c.l.b16 %v599
    %v2862 = vunpack.c.h.b16 %v599
    %v2863 = vunpack.c.l.b16 %v600
    %v2864 = vunpack.c.h.b16 %v600
    %v2865 = vunpack.c.l.b16 %v601
    %v2866 = vunpack.c.h.b16 %v601
    %v2867 = vunpack.c.l.b16 %v602
    %v2868 = vunpack.c.h.b16 %v602
    %v2869 = vunpack.c.l.b16 %v603
    %v2870 = vunpack.c.h.b16 %v603
    %v2871 = vunpack.c.l.b16 %v604
    %v2872 = vunpack.c.h.b16 %v604
    %v2873 = vunpack.c.l.b16 %v605
    %v2874 = vunpack.c.h.b16 %v605
    %v2875 = vunpack.c.l.b16 %v606
    %v2876 = vunpack.c.h.b16 %v606
    %v2877 = vunpack.c.l.b16 %v607
    %v2878 = vunpack.c.h.b16 %v607
    %v2879 = vunpack.c.l.b16 %v608
    %v2880 = vunpack.c.h.b16 %v608
    %v2881 = vunpack.c.l.b16 %v609
    %v2882 = vunpack.c.h.b16 %v609
    %v2883 = vunpack.c.l.b16 %v610
    %v2884 = vunpack.c.h.b16 %v610
    %v2885 = vunpack.c.l.b16 %v611
    %v2886 = vunpack.c.h.b16 %v611
    %v2887 = vunpack.c.l.b16 %v612
    %v2888 = vunpack.c.h.b16 %v612
    %v2889 = vunpack.c.l.b16 %v613
    %v2890 = vunpack.c.h.b16 %v613
    %v2891 = vunpack.c.l.b16 %v614
    %v2892 = vunpack.c.h.b16 %v614
    %v2893 = vunpack.c.l.b16 %v615
    %v2894 = vunpack.c.h.b16 %v615
    %v2895 = vunpack.c.l.b16 %v616
    %v2896 = vunpack.c.h.b16 %v616
    %v2897 = vunpack.c.l.b16 %v617
    %v2898 = vunpack.c.h.b16 %v617
    %v2899 = vunpack.c.l.b16 %v618
    %v2900 = vunpack.c.h.b16 %v618
    %v2901 = vunpack.c.l.b16 %v619
    %v2902 = vunpack.c.h.b16 %v619
    %v2903 = vunpack.c.l.b16 %v620
    %v2904 = vunpack.c.h.b16 %v620
    %v2905 = vunpack.c.l.b16 %v621
    %v2906 = vunpack.c.h.b16 %v621
    %v2907 = vunpack.c.l.b16 %v622
    %v2908 = vunpack.c.h.b16 %v622
    %v2909 = vunpack.c.l.b16 %v623
    %v2910 = vunpack.c.h.b16 %v623
    %v2911 = vunpack.c.l.b16 %v624
    %v2912 = vunpack.c.h.b16 %v624
    %v2913 = vunpack.c.l.b16 %v625
    %v2914 = vunpack.c.h.b16 %v625
    %v2915 = vunpack.c.l.b16 %v626
    %v2916 = vunpack.c.h.b16 %v626
    %v2917 = vunpack.c.l.b16 %v627
    %v2918 = vunpack.c.h.b16 %v627
    %v2919 = vunpack.c.l.b16 %v628
    %v2920 = vunpack.c.h.b16 %v628
    %v2921 = vunpack.c.l.b16 %v629
    %v2922 = vunpack.c.h.b16 %v629
    %v2923 = vunpack.c.l.b16 %v630
    %v2924 = vunpack.c.h.b16 %v630
    %v2925 = vunpack.c.l.b16 %v631
    %v2926 = vunpack.c.h.b16 %v631
    %v2927 = vunpack.c.l.b16 %v632
    %v2928 = vunpack.c.h.b16 %v632
    %v2929 = vunpack.c.l.b16 %v633
    %v2930 = vunpack.c.h.b16 %v633
    %v2931 = vunpack.c.l.b16 %v634
    %v2932 = vunpack.c.h.b16 %v634
    %v2933 = vunpack.c.l.b16 %v635
    %v2934 = vunpack.c.h.b16 %v635
    %v2935 = vunpack.c.l.b16 %v636
    %v2936 = vunpack.c.h.b16 %v636
    %v2937 = vunpack.c.l.b16 %v637
    %v2938 = vunpack.c.h.b16 %v637
    %v2939 = vunpack.c.l.b16 %v638
    %v2940 = vunpack.c.h.b16 %v638
    %v2941 = vunpack.c.l.b16 %v639
    %v2942 = vunpack.c.h.b16 %v639
    %v2943 = vunpack.c.l.b16 %v640
    %v2944 = vunpack.c.h.b16 %v640
    %v2945 = vunpack.c.l.b16 %v641
    %v2946 = vunpack.c.h.b16 %v641
    %v2947 = vunpack.c.l.b16 %v642
    %v2948 = vunpack.c.h.b16 %v642
    %v2949 = vunpack.c.l.b16 %v643
    %v2950 = vunpack.c.h.b16 %v643
    %v2951 = vunpack.c.l.b16 %v644
    %v2952 = vunpack.c.h.b16 %v644
    %v2953 = vunpack.c.l.b16 %v645
    %v2954 = vunpack.c.h.b16 %v645
    %v2955 = vunpack.c.l.b16 %v646
    %v2956 = vunpack.c.h.b16 %v646
    %v2957 = vunpack.c.l.b16 %v647
    %v2958 = vunpack.c.h.b16 %v647
    %v2959 = vunpack.c.l.b16 %v648
    %v2960 = vunpack.c.h.b16 %v648
    %v2961 = vunpack.c.l.b16 %v649
    %v2962 = vunpack.c.h.b16 %v649
    %v2963 = vpack.c.b16 %v2843, %v2835
    %v2964 = vpack.c.b16 %v2844, %v2836
    %v2965 = vpack.c.b16 %v2845, %v2837
    %v2966 = vpack.c.b16 %v2846, %v2838
    %v2967 = vpack.c.b16 %v2847, %v2839
    %v2968 = vpack.c.b16 %v2848, %v2840
    %v2969 = vpack.c.b16 %v2849, %v2841
    %v2970 = vpack.c.b16 %v2850, %v2842
    %v2971 = vpack.c.b16 %v2859, %v2851
    %v2972 = vpack.c.b16 %v2860, %v2852
    %v2973 = vpack.c.b16 %v2861, %v2853
    %v2974 = vpack.c.b16 %v2862, %v2854
    %v2975 = vpack.c.b16 %v2863, %v2855
    %v2976 = vpack.c.b16 %v2864, %v2856
    %v2977 = vpack.c.b16 %v2865, %v2857
    %v2978 = vpack.c.b16 %v2866, %v2858
    %v2979 = vpack.c.b16 %v2875, %v2867
    %v2980 = vpack.c.b16 %v2876, %v2868
    %v2981 = vpack.c.b16 %v2877, %v2869
    %v2982 = vpack.c.b16 %v2878, %v2870
    %v2983 = vpack.c.b16 %v2879, %v2871
    %v2984 = vpack.c.b16 %v2880, %v2872
    %v2985 = vpack.c.b16 %v2881, %v2873
    %v2986 = vpack.c.b16 %v2882, %v2874
    %v2987 = vpack.c.b16 %v2891, %v2883
    %v2988 = vpack.c.b16 %v2892, %v2884
    %v2989 = vpack.c.b16 %v2893, %v2885
    %v2990 = vpack.c.b16 %v2894, %v2886
    %v2991 = vpack.c.b16 %v2895, %v2887
    %v2992 = vpack.c.b16 %v2896, %v2888
    %v2993 = vpack.c.b16 %v2897, %v2889
    %v2994 = vpack.c.b16 %v2898, %v2890
    %v2995 = vpack.c.b16 %v2907, %v2899
    %v2996 = vpack.c.b16 %v2908, %v2900
    %v2997 = vpack.c.b16 %v2909, %v2901
    %v2998 = vpack.c.b16 %v2910, %v2902
    %v2999 = vpack.c.b16 %v2911, %v2903
    %v3000 = vpack.c.b16 %v2912, %v2904
    %v3001 = vpack.c.b16 %v2913, %v2905
    %v3002 = vpack.c.b16 %v2914, %v2906
    %v3003 = vpack.c.b16 %v2923, %v2915
    %v3004 = vpack.c.b16 %v2924, %v2916
    %v3005 = vpack.c.b16 %v2925, %v2917
    %v3006 = vpack.c.b16 %v2926, %v2918
    %v3007 = vpack.c.b16 %v2927, %v2919
    %v3008 = vpack.c.b16 %v2928, %v2920
    %v3009 = vpack.c.b16 %v2929, %v2921
    %v3010 = vpack.c.b16 %v2930, %v2922
    %v3011 = vpack.c.b16 %v2939, %v2931
    %v3012 = vpack.c.b16 %v2940, %v2932
    %v3013 = vpack.c.b16 %v2941, %v2933
    %v3014 = vpack.c.b16 %v2942, %v2934
    %v3015 = vpack.c.b16 %v2943, %v2935
    %v3016 = vpack.c.b16 %v2944, %v2936
    %v3017 = vpack.c.b16 %v2945, %v2937
    %v3018 = vpack.c.b16 %v2946, %v2938
    %v3019 = vpack.c.b16 %v2955, %v2947
    %v3020 = vpack.c.b16 %v2956, %v2948
    %v3021 = vpack.c.b16 %v2957, %v2949
    %v3022 = vpack.c.b16 %v2958, %v2950
    %v3023 = vpack.c.b16 %v2959, %v2951
    %v3024 = vpack.c.b16 %v2960, %v2952
    %v3025 = vpack.c.b16 %v2961, %v2953
    %v3026 = vpack.c.b16 %v2962, %v2954
    %3091 = vmatprep.subr.bf16.mxu0 %v3020
    %3092 = vmatpush1.bf16.msra.mxu0 %v3019
    %3093 = vmatprep.subr.bf16.mxu0 %v3012
    %3094 = vmatpush1.bf16.msra.mxu0 %v3011
    %3095 = vmatprep.subr.bf16.mxu0 %v3004
    %3096 = vmatpush1.bf16.msra.mxu0 %v3003
    %3097 = vmatprep.subr.bf16.mxu0 %v2996
    %3098 = vmatpush1.bf16.msra.mxu0 %v2995
    %3099 = vmatprep.subr.bf16.mxu0 %v2988
    %3100 = vmatpush1.bf16.msra.mxu0 %v2987
    %3101 = vmatprep.subr.bf16.mxu0 %v2980
    %3102 = vmatpush1.bf16.msra.mxu0 %v2979
    %3103 = vmatprep.subr.bf16.mxu0 %v2972
    %3104 = vmatpush1.bf16.msra.mxu0 %v2971
    %3105 = vmatprep.subr.bf16.mxu0 %v2964
    %3106 = vmatpush1.bf16.msra.mxu0 %v2963
    %3107 = vmatprep.subr.bf16.mxu0 0
    %3108 = vmatpush2.bf16.msra.mxu0 0
    %3109 = vmatprep.subr.bf16.mxu0 0
    %3110 = vmatpush2.bf16.msra.mxu0 0
    %3111 = vmatprep.subr.bf16.mxu0 0
    %3112 = vmatpush2.bf16.msra.mxu0 0
    %3113 = vmatprep.subr.bf16.mxu0 0
    %3114 = vmatpush2.bf16.msra.mxu0 0
    %3115 = vmatprep.subr.bf16.mxu0 0
    %3116 = vmatpush2.bf16.msra.mxu0 0
    %3117 = vmatprep.subr.bf16.mxu0 0
    %3118 = vmatpush2.bf16.msra.mxu0 0
    %3119 = vmatprep.subr.bf16.mxu0 0
    %3120 = vmatpush2.bf16.msra.mxu0 0
    %3121 = vmatprep.subr.bf16.mxu0 0
    %3122 = vmatpush2.bf16.msra.mxu0 0
    %3123 = vmatprep.mubr.bf16.mxu0 0
    %3124 = vmatmul.mubr.bf16.gmra.mxu0 %v1780
    %v3125 = vpop.f32.mrf.mxu0
    %v3126 = vadd.f32 %v2642, %v3125
    %v3127 = vpop.f32.mrf.mxu0
    %v3128 = vadd.f32 %v2644, %v3127
    %v3129 = vpop.f32.mrf.mxu0
    %v3130 = vpop.f32.mrf.mxu0
    %3131 = vdwg.mxu0
    %3132 = vmatprep.subr.bf16.mxu0 %v3022
    %3133 = vmatpush1.bf16.msra.mxu0 %v3021
    %3134 = vmatprep.subr.bf16.mxu0 %v3014
    %3135 = vmatpush1.bf16.msra.mxu0 %v3013
    %3136 = vmatprep.subr.bf16.mxu0 %v3006
    %3137 = vmatpush1.bf16.msra.mxu0 %v3005
    %3138 = vmatprep.subr.bf16.mxu0 %v2998
    %3139 = vmatpush1.bf16.msra.mxu0 %v2997
    %3140 = vmatprep.subr.bf16.mxu0 %v2990
    %3141 = vmatpush1.bf16.msra.mxu0 %v2989
    %3142 = vmatprep.subr.bf16.mxu0 %v2982
    %3143 = vmatpush1.bf16.msra.mxu0 %v2981
    %3144 = vmatprep.subr.bf16.mxu0 %v2974
    %3145 = vmatpush1.bf16.msra.mxu0 %v2973
    %3146 = vmatprep.subr.bf16.mxu0 %v2966
    %3147 = vmatpush1.bf16.msra.mxu0 %v2965
    %3148 = vmatprep.subr.bf16.mxu0 0
    %3149 = vmatpush2.bf16.msra.mxu0 0
    %3150 = vmatprep.subr.bf16.mxu0 0
    %3151 = vmatpush2.bf16.msra.mxu0 0
    %3152 = vmatprep.subr.bf16.mxu0 0
    %3153 = vmatpush2.bf16.msra.mxu0 0
    %3154 = vmatprep.subr.bf16.mxu0 0
    %3155 = vmatpush2.bf16.msra.mxu0 0
    %3156 = vmatprep.subr.bf16.mxu0 0
    %3157 = vmatpush2.bf16.msra.mxu0 0
    %3158 = vmatprep.subr.bf16.mxu0 0
    %3159 = vmatpush2.bf16.msra.mxu0 0
    %3160 = vmatprep.subr.bf16.mxu0 0
    %3161 = vmatpush2.bf16.msra.mxu0 0
    %3162 = vmatprep.subr.bf16.mxu0 0
    %3163 = vmatpush2.bf16.msra.mxu0 0
    %3164 = vmatprep.mubr.bf16.mxu0 0
    %3165 = vmatmul.mubr.bf16.gmra.mxu0 %v1780
    %v3166 = vpop.f32.mrf.mxu0
    %v3167 = vadd.f32 %v2683, %v3166
    %v3168 = vpop.f32.mrf.mxu0
    %v3169 = vadd.f32 %v2685, %v3168
    %v3170 = vpop.f32.mrf.mxu0
    %v3171 = vpop.f32.mrf.mxu0
    %3172 = vdwg.mxu0
    %3173 = vmatprep.subr.bf16.mxu0 %v3024
    %3174 = vmatpush1.bf16.msra.mxu0 %v3023
    %3175 = vmatprep.subr.bf16.mxu0 %v3016
    %3176 = vmatpush1.bf16.msra.mxu0 %v3015
    %3177 = vmatprep.subr.bf16.mxu0 %v3008
    %3178 = vmatpush1.bf16.msra.mxu0 %v3007
    %3179 = vmatprep.subr.bf16.mxu0 %v3000
    %3180 = vmatpush1.bf16.msra.mxu0 %v2999
    %3181 = vmatprep.subr.bf16.mxu0 %v2992
    %3182 = vmatpush1.bf16.msra.mxu0 %v2991
    %3183 = vmatprep.subr.bf16.mxu0 %v2984
    %3184 = vmatpush1.bf16.msra.mxu0 %v2983
    %3185 = vmatprep.subr.bf16.mxu0 %v2976
    %3186 = vmatpush1.bf16.msra.mxu0 %v2975
    %3187 = vmatprep.subr.bf16.mxu0 %v2968
    %3188 = vmatpush1.bf16.msra.mxu0 %v2967
    %3189 = vmatprep.subr.bf16.mxu0 0
    %3190 = vmatpush2.bf16.msra.mxu0 0
    %3191 = vmatprep.subr.bf16.mxu0 0
    %3192 = vmatpush2.bf16.msra.mxu0 0
    %3193 = vmatprep.subr.bf16.mxu0 0
    %3194 = vmatpush2.bf16.msra.mxu0 0
    %3195 = vmatprep.subr.bf16.mxu0 0
    %3196 = vmatpush2.bf16.msra.mxu0 0
    %3197 = vmatprep.subr.bf16.mxu0 0
    %3198 = vmatpush2.bf16.msra.mxu0 0
    %3199 = vmatprep.subr.bf16.mxu0 0
    %3200 = vmatpush2.bf16.msra.mxu0 0
    %3201 = vmatprep.subr.bf16.mxu0 0
    %3202 = vmatpush2.bf16.msra.mxu0 0
    %3203 = vmatprep.subr.bf16.mxu0 0
    %3204 = vmatpush2.bf16.msra.mxu0 0
    %3205 = vmatprep.mubr.bf16.mxu0 0
    %3206 = vmatmul.mubr.bf16.gmra.mxu0 %v1780
    %v3207 = vpop.f32.mrf.mxu0
    %v3208 = vadd.f32 %v2724, %v3207
    %v3209 = vpop.f32.mrf.mxu0
    %v3210 = vadd.f32 %v2726, %v3209
    %v3211 = vpop.f32.mrf.mxu0
    %v3212 = vpop.f32.mrf.mxu0
    %3213 = vdwg.mxu0
    %3214 = vmatprep.subr.bf16.mxu0 %v3026
    %3215 = vmatpush1.bf16.msra.mxu0 %v3025
    %3216 = vmatprep.subr.bf16.mxu0 %v3018
    %3217 = vmatpush1.bf16.msra.mxu0 %v3017
    %3218 = vmatprep.subr.bf16.mxu0 %v3010
    %3219 = vmatpush1.bf16.msra.mxu0 %v3009
    %3220 = vmatprep.subr.bf16.mxu0 %v3002
    %3221 = vmatpush1.bf16.msra.mxu0 %v3001
    %3222 = vmatprep.subr.bf16.mxu0 %v2994
    %3223 = vmatpush1.bf16.msra.mxu0 %v2993
    %3224 = vmatprep.subr.bf16.mxu0 %v2986
    %3225 = vmatpush1.bf16.msra.mxu0 %v2985
    %3226 = vmatprep.subr.bf16.mxu0 %v2978
    %3227 = vmatpush1.bf16.msra.mxu0 %v2977
    %3228 = vmatprep.subr.bf16.mxu0 %v2970
    %3229 = vmatpush1.bf16.msra.mxu0 %v2969
    %3230 = vmatprep.subr.bf16.mxu0 0
    %3231 = vmatpush2.bf16.msra.mxu0 0
    %3232 = vmatprep.subr.bf16.mxu0 0
    %3233 = vmatpush2.bf16.msra.mxu0 0
    %3234 = vmatprep.subr.bf16.mxu0 0
    %3235 = vmatpush2.bf16.msra.mxu0 0
    %3236 = vmatprep.subr.bf16.mxu0 0
    %3237 = vmatpush2.bf16.msra.mxu0 0
    %3238 = vmatprep.subr.bf16.mxu0 0
    %3239 = vmatpush2.bf16.msra.mxu0 0
    %3240 = vmatprep.subr.bf16.mxu0 0
    %3241 = vmatpush2.bf16.msra.mxu0 0
    %3242 = vmatprep.subr.bf16.mxu0 0
    %3243 = vmatpush2.bf16.msra.mxu0 0
    %3244 = vmatprep.subr.bf16.mxu0 0
    %3245 = vmatpush2.bf16.msra.mxu0 0
    %3246 = vmatprep.mubr.bf16.mxu0 0
    %3247 = vmatmul.mubr.bf16.gmra.mxu0 %v1780
    %v3248 = vpop.f32.mrf.mxu0
    %v3249 = vadd.f32 %v2765, %v3248
    %v3250 = vpop.f32.mrf.mxu0
    %v3251 = vadd.f32 %v2767, %v3250
    %v3252 = vpop.f32.mrf.mxu0
    %v3253 = vpop.f32.mrf.mxu0
    %3254 = vdwg.mxu0
    %v3256 = vlaneseq
    %v3257 = vshrl.u32 %v3256, 7
    %v3258 = vsub.s32 0, %v3257
    %v3259 = vrot.slane %v778, %v3258
    %v3260 = vlaneseq
    %v3261 = vshrl.u32 %v3260, 7
    %v3262 = vsub.s32 1, %v3261
    %v3263 = vrot.slane %v778, %v3262
    %v3264 = vlaneseq
    %v3265 = vshrl.u32 %v3264, 7
    %v3266 = vsub.s32 2, %v3265
    %v3267 = vrot.slane %v778, %v3266
    %v3268 = vlaneseq
    %v3269 = vshrl.u32 %v3268, 7
    %v3270 = vsub.s32 3, %v3269
    %v3271 = vrot.slane %v778, %v3270
    %v3272 = vlaneseq
    %v3273 = vshrl.u32 %v3272, 7
    %v3274 = vsub.s32 4, %v3273
    %v3275 = vrot.slane %v778, %v3274
    %v3276 = vlaneseq
    %v3277 = vshrl.u32 %v3276, 7
    %v3278 = vsub.s32 5, %v3277
    %v3279 = vrot.slane %v778, %v3278
    %v3280 = vlaneseq
    %v3281 = vshrl.u32 %v3280, 7
    %v3282 = vsub.s32 6, %v3281
    %v3283 = vrot.slane %v778, %v3282
    %v3284 = vlaneseq
    %v3285 = vshrl.u32 %v3284, 7
    %v3286 = vsub.s32 7, %v3285
    %v3287 = vrot.slane %v778, %v3286
    %v3296 = vadd.f32 %v3126, %v3259
    %v3297 = vadd.f32 %v3128, %v3263
    %v3298 = vadd.f32 %v3167, %v3267
    %v3299 = vadd.f32 %v3169, %v3271
    %v3300 = vadd.f32 %v3208, %v3275
    %v3301 = vadd.f32 %v3210, %v3279
    %v3302 = vadd.f32 %v3249, %v3283
    %v3303 = vadd.f32 %v3251, %v3287
    %v3304 = vmul.f32 %v3296, 0.5
    %v3305 = vmul.f32 %v3297, 0.5
    %v3306 = vmul.f32 %v3298, 0.5
    %v3307 = vmul.f32 %v3299, 0.5
    %v3308 = vmul.f32 %v3300, 0.5
    %v3309 = vmul.f32 %v3301, 0.5
    %v3310 = vtanh.pop %v3304
    %v3311 = vtanh.pop %v3305
    %v3312 = vtanh.pop %v3306
    %v3313 = vtanh.pop %v3307
    %v3314 = vtanh.pop %v3308
    %v3315 = vtanh.pop %v3309
    %v3316 = vmul.f32 %v3310, 0.5
    %v3317 = vmul.f32 %v3311, 0.5
    %v3318 = vmul.f32 %v3312, 0.5
    %v3319 = vmul.f32 %v3313, 0.5
    %v3320 = vmul.f32 %v3314, 0.5
    %v3321 = vmul.f32 %v3315, 0.5
    %v3322 = vadd.f32 %v3316, 0.5
    %v3323 = vadd.f32 %v3317, 0.5
    %v3324 = vadd.f32 %v3318, 0.5
    %v3325 = vadd.f32 %v3319, 0.5
    %v3326 = vadd.f32 %v3320, 0.5
    %v3327 = vadd.f32 %v3321, 0.5
    %v3328 = vtanh.pop %v3302
    %v3329 = vtanh.pop %v3303
    %v3330 = vmul.f32 %v3324, 0.0
    %v3331 = vmul.f32 %v3325, 0.0
    %v3332 = vmul.f32 %v3322, %v3328
    %v3333 = vmul.f32 %v3323, %v3329
    %v3334 = vadd.f32 %v3330, %v3332
    %v3335 = vadd.f32 %v3331, %v3333
    %v3336 = vtanh.pop %v3334
    %v3337 = vtanh.pop %v3335
    %v3338 = vmul.f32 %v3326, %v3336
    %v3339 = vmul.f32 %v3327, %v3337
    %v3340 = vpack.c.bf16 %v1779, %v1779
    %3341 = vmatprep.subr.bf16.mxu0 %v904
    %3342 = vmatpush1.bf16.msra.mxu0 %v903
    %3343 = vmatprep.subr.bf16.mxu0 %v900
    %3344 = vmatpush1.bf16.msra.mxu0 %v899
    %3345 = vmatprep.subr.bf16.mxu0 %v896
    %3346 = vmatpush1.bf16.msra.mxu0 %v895
    %3347 = vmatprep.subr.bf16.mxu0 %v892
    %3348 = vmatpush1.bf16.msra.mxu0 %v891
    %3349 = vmatprep.subr.bf16.mxu0 %v888
    %3350 = vmatpush1.bf16.msra.mxu0 %v887
    %3351 = vmatprep.subr.bf16.mxu0 %v884
    %3352 = vmatpush1.bf16.msra.mxu0 %v883
    %3353 = vmatprep.subr.bf16.mxu0 %v880
    %3354 = vmatpush1.bf16.msra.mxu0 %v879
    %3355 = vmatprep.subr.bf16.mxu0 %v876
    %3356 = vmatpush1.bf16.msra.mxu0 %v875
    %3357 = vmatprep.subr.bf16.mxu0 0
    %3358 = vmatpush2.bf16.msra.mxu0 0
    %3359 = vmatprep.subr.bf16.mxu0 0
    %3360 = vmatpush2.bf16.msra.mxu0 0
    %3361 = vmatprep.subr.bf16.mxu0 0
    %3362 = vmatpush2.bf16.msra.mxu0 0
    %3363 = vmatprep.subr.bf16.mxu0 0
    %3364 = vmatpush2.bf16.msra.mxu0 0
    %3365 = vmatprep.subr.bf16.mxu0 0
    %3366 = vmatpush2.bf16.msra.mxu0 0
    %3367 = vmatprep.subr.bf16.mxu0 0
    %3368 = vmatpush2.bf16.msra.mxu0 0
    %3369 = vmatprep.subr.bf16.mxu0 0
    %3370 = vmatpush2.bf16.msra.mxu0 0
    %3371 = vmatprep.subr.bf16.mxu0 0
    %3372 = vmatpush2.bf16.msra.mxu0 0
    %3373 = vmatprep.mubr.bf16.mxu0 0
    %3374 = vmatmul.mubr.bf16.gmra.mxu0 %v3340
    %v3375 = vpop.f32.mrf.mxu0
    %v3376 = vadd.f32 0.0, %v3375
    %v3377 = vpop.f32.mrf.mxu0
    %v3378 = vadd.f32 0.0, %v3377
    %v3379 = vpop.f32.mrf.mxu0
    %v3380 = vpop.f32.mrf.mxu0
    %3381 = vdwg.mxu0
    %3382 = vmatprep.subr.bf16.mxu0 %v906
    %3383 = vmatpush1.bf16.msra.mxu0 %v905
    %3384 = vmatprep.subr.bf16.mxu0 %v902
    %3385 = vmatpush1.bf16.msra.mxu0 %v901
    %3386 = vmatprep.subr.bf16.mxu0 %v898
    %3387 = vmatpush1.bf16.msra.mxu0 %v897
    %3388 = vmatprep.subr.bf16.mxu0 %v894
    %3389 = vmatpush1.bf16.msra.mxu0 %v893
    %3390 = vmatprep.subr.bf16.mxu0 %v890
    %3391 = vmatpush1.bf16.msra.mxu0 %v889
    %3392 = vmatprep.subr.bf16.mxu0 %v886
    %3393 = vmatpush1.bf16.msra.mxu0 %v885
    %3394 = vmatprep.subr.bf16.mxu0 %v882
    %3395 = vmatpush1.bf16.msra.mxu0 %v881
    %3396 = vmatprep.subr.bf16.mxu0 %v878
    %3397 = vmatpush1.bf16.msra.mxu0 %v877
    %3398 = vmatprep.subr.bf16.mxu0 0
    %3399 = vmatpush2.bf16.msra.mxu0 0
    %3400 = vmatprep.subr.bf16.mxu0 0
    %3401 = vmatpush2.bf16.msra.mxu0 0
    %3402 = vmatprep.subr.bf16.mxu0 0
    %3403 = vmatpush2.bf16.msra.mxu0 0
    %3404 = vmatprep.subr.bf16.mxu0 0
    %3405 = vmatpush2.bf16.msra.mxu0 0
    %3406 = vmatprep.subr.bf16.mxu0 0
    %3407 = vmatpush2.bf16.msra.mxu0 0
    %3408 = vmatprep.subr.bf16.mxu0 0
    %3409 = vmatpush2.bf16.msra.mxu0 0
    %3410 = vmatprep.subr.bf16.mxu0 0
    %3411 = vmatpush2.bf16.msra.mxu0 0
    %3412 = vmatprep.subr.bf16.mxu0 0
    %3413 = vmatpush2.bf16.msra.mxu0 0
    %3414 = vmatprep.mubr.bf16.mxu0 0
    %3415 = vmatmul.mubr.bf16.gmra.mxu0 %v3340
    %v3416 = vpop.f32.mrf.mxu0
    %v3417 = vadd.f32 0.0, %v3416
    %v3418 = vpop.f32.mrf.mxu0
    %v3419 = vadd.f32 0.0, %v3418
    %v3420 = vpop.f32.mrf.mxu0
    %v3421 = vpop.f32.mrf.mxu0
    %3422 = vdwg.mxu0
    %v3423 = vadd.f32 %v392, %v3376
    %v3424 = vadd.f32 %v394, %v3378
    %v3425 = vadd.f32 %v465, %v3417
    %v3426 = vadd.f32 %v467, %v3419
    %v3427 = vmul.f32 %v3423, 0.5
    %v3428 = vmul.f32 %v3424, 0.5
    %v3429 = vmul.f32 %v3425, 0.5
    %v3430 = vtanh.pop %v3427
    %v3431 = vtanh.pop %v3428
    %v3432 = vtanh.pop %v3429
    %v3433 = vmul.f32 %v3430, 0.5
    %v3434 = vmul.f32 %v3431, 0.5
    %v3435 = vmul.f32 %v3432, 0.5
    %v3436 = vadd.f32 %v3433, 0.5
    %v3437 = vadd.f32 %v3434, 0.5
    %v3438 = vadd.f32 %v3435, 0.5
    %v3439 = vtanh.pop %v3426
    %v3440 = vmul.f32 %v3437, %v1777
    %v3441 = vmul.f32 %v3436, %v3439
    %v3442 = vadd.f32 %v3440, %v3441
    %v3443 = vtanh.pop %v3442
    %v3444 = vmul.f32 %v3438, %v3443
    %v3445 = vpack.c.bf16 %v1966, %v1966
    %3446 = vmatprep.subr.bf16.mxu0 %v1273
    %3447 = vmatpush1.bf16.msra.mxu0 %v1272
    %3448 = vmatprep.subr.bf16.mxu0 %v1269
    %3449 = vmatpush1.bf16.msra.mxu0 %v1268
    %3450 = vmatprep.subr.bf16.mxu0 %v1265
    %3451 = vmatpush1.bf16.msra.mxu0 %v1264
    %3452 = vmatprep.subr.bf16.mxu0 %v1261
    %3453 = vmatpush1.bf16.msra.mxu0 %v1260
    %3454 = vmatprep.subr.bf16.mxu0 %v1257
    %3455 = vmatpush1.bf16.msra.mxu0 %v1256
    %3456 = vmatprep.subr.bf16.mxu0 %v1253
    %3457 = vmatpush1.bf16.msra.mxu0 %v1252
    %3458 = vmatprep.subr.bf16.mxu0 %v1249
    %3459 = vmatpush1.bf16.msra.mxu0 %v1248
    %3460 = vmatprep.subr.bf16.mxu0 %v1245
    %3461 = vmatpush1.bf16.msra.mxu0 %v1244
    %3462 = vmatprep.subr.bf16.mxu0 0
    %3463 = vmatpush2.bf16.msra.mxu0 0
    %3464 = vmatprep.subr.bf16.mxu0 0
    %3465 = vmatpush2.bf16.msra.mxu0 0
    %3466 = vmatprep.subr.bf16.mxu0 0
    %3467 = vmatpush2.bf16.msra.mxu0 0
    %3468 = vmatprep.subr.bf16.mxu0 0
    %3469 = vmatpush2.bf16.msra.mxu0 0
    %3470 = vmatprep.subr.bf16.mxu0 0
    %3471 = vmatpush2.bf16.msra.mxu0 0
    %3472 = vmatprep.subr.bf16.mxu0 0
    %3473 = vmatpush2.bf16.msra.mxu0 0
    %3474 = vmatprep.subr.bf16.mxu0 0
    %3475 = vmatpush2.bf16.msra.mxu0 0
    %3476 = vmatprep.subr.bf16.mxu0 0
    %3477 = vmatpush2.bf16.msra.mxu0 0
    %3478 = vmatprep.mubr.bf16.mxu0 0
    %3479 = vmatmul.mubr.bf16.gmra.mxu0 %v3445
    %v3480 = vpop.f32.mrf.mxu0
    %v3481 = vadd.f32 0.0, %v3480
    %v3482 = vpop.f32.mrf.mxu0
    %v3483 = vadd.f32 0.0, %v3482
    %v3484 = vpop.f32.mrf.mxu0
    %v3485 = vpop.f32.mrf.mxu0
    %3486 = vdwg.mxu0
    %3487 = vmatprep.subr.bf16.mxu0 %v1275
    %3488 = vmatpush1.bf16.msra.mxu0 %v1274
    %3489 = vmatprep.subr.bf16.mxu0 %v1271
    %3490 = vmatpush1.bf16.msra.mxu0 %v1270
    %3491 = vmatprep.subr.bf16.mxu0 %v1267
    %3492 = vmatpush1.bf16.msra.mxu0 %v1266
    %3493 = vmatprep.subr.bf16.mxu0 %v1263
    %3494 = vmatpush1.bf16.msra.mxu0 %v1262
    %3495 = vmatprep.subr.bf16.mxu0 %v1259
    %3496 = vmatpush1.bf16.msra.mxu0 %v1258
    %3497 = vmatprep.subr.bf16.mxu0 %v1255
    %3498 = vmatpush1.bf16.msra.mxu0 %v1254
    %3499 = vmatprep.subr.bf16.mxu0 %v1251
    %3500 = vmatpush1.bf16.msra.mxu0 %v1250
    %3501 = vmatprep.subr.bf16.mxu0 %v1247
    %3502 = vmatpush1.bf16.msra.mxu0 %v1246
    %3503 = vmatprep.subr.bf16.mxu0 0
    %3504 = vmatpush2.bf16.msra.mxu0 0
    %3505 = vmatprep.subr.bf16.mxu0 0
    %3506 = vmatpush2.bf16.msra.mxu0 0
    %3507 = vmatprep.subr.bf16.mxu0 0
    %3508 = vmatpush2.bf16.msra.mxu0 0
    %3509 = vmatprep.subr.bf16.mxu0 0
    %3510 = vmatpush2.bf16.msra.mxu0 0
    %3511 = vmatprep.subr.bf16.mxu0 0
    %3512 = vmatpush2.bf16.msra.mxu0 0
    %3513 = vmatprep.subr.bf16.mxu0 0
    %3514 = vmatpush2.bf16.msra.mxu0 0
    %3515 = vmatprep.subr.bf16.mxu0 0
    %3516 = vmatpush2.bf16.msra.mxu0 0
    %3517 = vmatprep.subr.bf16.mxu0 0
    %3518 = vmatpush2.bf16.msra.mxu0 0
    %3519 = vmatprep.mubr.bf16.mxu0 0
    %3520 = vmatmul.mubr.bf16.gmra.mxu0 %v3445
    %v3521 = vpop.f32.mrf.mxu0
    %v3522 = vadd.f32 0.0, %v3521
    %v3523 = vpop.f32.mrf.mxu0
    %v3524 = vadd.f32 0.0, %v3523
    %v3525 = vpop.f32.mrf.mxu0
    %v3526 = vpop.f32.mrf.mxu0
    %3527 = vdwg.mxu0
    %3528 = vmatprep.subr.bf16.mxu0 %v1515
    %3529 = vmatpush1.bf16.msra.mxu0 %v1514
    %3530 = vmatprep.subr.bf16.mxu0 %v1511
    %3531 = vmatpush1.bf16.msra.mxu0 %v1510
    %3532 = vmatprep.subr.bf16.mxu0 %v1507
    %3533 = vmatpush1.bf16.msra.mxu0 %v1506
    %3534 = vmatprep.subr.bf16.mxu0 %v1503
    %3535 = vmatpush1.bf16.msra.mxu0 %v1502
    %3536 = vmatprep.subr.bf16.mxu0 %v1499
    %3537 = vmatpush1.bf16.msra.mxu0 %v1498
    %3538 = vmatprep.subr.bf16.mxu0 %v1495
    %3539 = vmatpush1.bf16.msra.mxu0 %v1494
    %3540 = vmatprep.subr.bf16.mxu0 %v1491
    %3541 = vmatpush1.bf16.msra.mxu0 %v1490
    %3542 = vmatprep.subr.bf16.mxu0 %v1487
    %3543 = vmatpush1.bf16.msra.mxu0 %v1486
    %3544 = vmatprep.subr.bf16.mxu0 0
    %3545 = vmatpush2.bf16.msra.mxu0 0
    %3546 = vmatprep.subr.bf16.mxu0 0
    %3547 = vmatpush2.bf16.msra.mxu0 0
    %3548 = vmatprep.subr.bf16.mxu0 0
    %3549 = vmatpush2.bf16.msra.mxu0 0
    %3550 = vmatprep.subr.bf16.mxu0 0
    %3551 = vmatpush2.bf16.msra.mxu0 0
    %3552 = vmatprep.subr.bf16.mxu0 0
    %3553 = vmatpush2.bf16.msra.mxu0 0
    %3554 = vmatprep.subr.bf16.mxu0 0
    %3555 = vmatpush2.bf16.msra.mxu0 0
    %3556 = vmatprep.subr.bf16.mxu0 0
    %3557 = vmatpush2.bf16.msra.mxu0 0
    %3558 = vmatprep.subr.bf16.mxu0 0
    %3559 = vmatpush2.bf16.msra.mxu0 0
    %3560 = vmatprep.mubr.bf16.mxu0 0
    %3561 = vmatmul.mubr.bf16.gmra.mxu0 %v3340
    %v3562 = vpop.f32.mrf.mxu0
    %v3563 = vadd.f32 %v3481, %v3562
    %v3564 = vpop.f32.mrf.mxu0
    %v3565 = vadd.f32 %v3483, %v3564
    %v3566 = vpop.f32.mrf.mxu0
    %v3567 = vpop.f32.mrf.mxu0
    %3568 = vdwg.mxu0
    %3569 = vmatprep.subr.bf16.mxu0 %v1517
    %3570 = vmatpush1.bf16.msra.mxu0 %v1516
    %3571 = vmatprep.subr.bf16.mxu0 %v1513
    %3572 = vmatpush1.bf16.msra.mxu0 %v1512
    %3573 = vmatprep.subr.bf16.mxu0 %v1509
    %3574 = vmatpush1.bf16.msra.mxu0 %v1508
    %3575 = vmatprep.subr.bf16.mxu0 %v1505
    %3576 = vmatpush1.bf16.msra.mxu0 %v1504
    %3577 = vmatprep.subr.bf16.mxu0 %v1501
    %3578 = vmatpush1.bf16.msra.mxu0 %v1500
    %3579 = vmatprep.subr.bf16.mxu0 %v1497
    %3580 = vmatpush1.bf16.msra.mxu0 %v1496
    %3581 = vmatprep.subr.bf16.mxu0 %v1493
    %3582 = vmatpush1.bf16.msra.mxu0 %v1492
    %3583 = vmatprep.subr.bf16.mxu0 %v1489
    %3584 = vmatpush1.bf16.msra.mxu0 %v1488
    %3585 = vmatprep.subr.bf16.mxu0 0
    %3586 = vmatpush2.bf16.msra.mxu0 0
    %3587 = vmatprep.subr.bf16.mxu0 0
    %3588 = vmatpush2.bf16.msra.mxu0 0
    %3589 = vmatprep.subr.bf16.mxu0 0
    %3590 = vmatpush2.bf16.msra.mxu0 0
    %3591 = vmatprep.subr.bf16.mxu0 0
    %3592 = vmatpush2.bf16.msra.mxu0 0
    %3593 = vmatprep.subr.bf16.mxu0 0
    %3594 = vmatpush2.bf16.msra.mxu0 0
    %3595 = vmatprep.subr.bf16.mxu0 0
    %3596 = vmatpush2.bf16.msra.mxu0 0
    %3597 = vmatprep.subr.bf16.mxu0 0
    %3598 = vmatpush2.bf16.msra.mxu0 0
    %3599 = vmatprep.subr.bf16.mxu0 0
    %3600 = vmatpush2.bf16.msra.mxu0 0
    %3601 = vmatprep.mubr.bf16.mxu0 0
    %3602 = vmatmul.mubr.bf16.gmra.mxu0 %v3340
    %v3603 = vpop.f32.mrf.mxu0
    %v3604 = vadd.f32 %v3522, %v3603
    %v3605 = vpop.f32.mrf.mxu0
    %v3606 = vadd.f32 %v3524, %v3605
    %v3607 = vpop.f32.mrf.mxu0
    %v3608 = vpop.f32.mrf.mxu0
    %3609 = vdwg.mxu0
    %v3610 = vadd.f32 %v3563, %v1636
    %v3611 = vadd.f32 %v3565, %v1640
    %v3612 = vadd.f32 %v3604, %v1644
    %v3613 = vadd.f32 %v3606, %v1648
    %v3614 = vmul.f32 %v3610, 0.5
    %v3615 = vmul.f32 %v3611, 0.5
    %v3616 = vmul.f32 %v3612, 0.5
    %v3617 = vtanh.pop %v3614
    %v3618 = vtanh.pop %v3615
    %v3619 = vtanh.pop %v3616
    %v3620 = vmul.f32 %v3617, 0.5
    %v3621 = vmul.f32 %v3618, 0.5
    %v3622 = vmul.f32 %v3619, 0.5
    %v3623 = vadd.f32 %v3620, 0.5
    %v3624 = vadd.f32 %v3621, 0.5
    %v3625 = vadd.f32 %v3622, 0.5
    %v3626 = vtanh.pop %v3613
    %v3627 = vmul.f32 %v3624, %v1964
    %v3628 = vmul.f32 %v3623, %v3626
    %v3629 = vadd.f32 %v3627, %v3628
    %v3630 = vtanh.pop %v3629
    %v3631 = vmul.f32 %v3625, %v3630
    %v3632 = vpack.c.bf16 %v3338, %v3338
    %v3633 = vpack.c.bf16 %v3339, %v3339
    %3634 = vmatprep.subr.bf16.mxu0 %v2408
    %3635 = vmatpush1.bf16.msra.mxu0 %v2407
    %3636 = vmatprep.subr.bf16.mxu0 %v2400
    %3637 = vmatpush1.bf16.msra.mxu0 %v2399
    %3638 = vmatprep.subr.bf16.mxu0 %v2392
    %3639 = vmatpush1.bf16.msra.mxu0 %v2391
    %3640 = vmatprep.subr.bf16.mxu0 %v2384
    %3641 = vmatpush1.bf16.msra.mxu0 %v2383
    %3642 = vmatprep.subr.bf16.mxu0 %v2376
    %3643 = vmatpush1.bf16.msra.mxu0 %v2375
    %3644 = vmatprep.subr.bf16.mxu0 %v2368
    %3645 = vmatpush1.bf16.msra.mxu0 %v2367
    %3646 = vmatprep.subr.bf16.mxu0 %v2360
    %3647 = vmatpush1.bf16.msra.mxu0 %v2359
    %3648 = vmatprep.subr.bf16.mxu0 %v2352
    %3649 = vmatpush1.bf16.msra.mxu0 %v2351
    %3650 = vmatprep.subr.bf16.mxu0 %v2472
    %3651 = vmatpush2.bf16.msra.mxu0 %v2471
    %3652 = vmatprep.subr.bf16.mxu0 %v2464
    %3653 = vmatpush2.bf16.msra.mxu0 %v2463
    %3654 = vmatprep.subr.bf16.mxu0 %v2456
    %3655 = vmatpush2.bf16.msra.mxu0 %v2455
    %3656 = vmatprep.subr.bf16.mxu0 %v2448
    %3657 = vmatpush2.bf16.msra.mxu0 %v2447
    %3658 = vmatprep.subr.bf16.mxu0 %v2440
    %3659 = vmatpush2.bf16.msra.mxu0 %v2439
    %3660 = vmatprep.subr.bf16.mxu0 %v2432
    %3661 = vmatpush2.bf16.msra.mxu0 %v2431
    %3662 = vmatprep.subr.bf16.mxu0 %v2424
    %3663 = vmatpush2.bf16.msra.mxu0 %v2423
    %3664 = vmatprep.subr.bf16.mxu0 %v2416
    %3665 = vmatpush2.bf16.msra.mxu0 %v2415
    %3666 = vmatprep.mubr.bf16.mxu0 %v3633
    %3667 = vmatmul.mubr.bf16.gmra.mxu0 %v3632
    %v3668 = vpop.f32.mrf.mxu0
    %v3669 = vadd.f32 0.0, %v3668
    %v3670 = vpop.f32.mrf.mxu0
    %v3671 = vadd.f32 0.0, %v3670
    %v3672 = vpop.f32.mrf.mxu0
    %v3673 = vpop.f32.mrf.mxu0
    %3674 = vdwg.mxu0
    %3675 = vmatprep.subr.bf16.mxu0 %v2410
    %3676 = vmatpush1.bf16.msra.mxu0 %v2409
    %3677 = vmatprep.subr.bf16.mxu0 %v2402
    %3678 = vmatpush1.bf16.msra.mxu0 %v2401
    %3679 = vmatprep.subr.bf16.mxu0 %v2394
    %3680 = vmatpush1.bf16.msra.mxu0 %v2393
    %3681 = vmatprep.subr.bf16.mxu0 %v2386
    %3682 = vmatpush1.bf16.msra.mxu0 %v2385
    %3683 = vmatprep.subr.bf16.mxu0 %v2378
    %3684 = vmatpush1.bf16.msra.mxu0 %v2377
    %3685 = vmatprep.subr.bf16.mxu0 %v2370
    %3686 = vmatpush1.bf16.msra.mxu0 %v2369
    %3687 = vmatprep.subr.bf16.mxu0 %v2362
    %3688 = vmatpush1.bf16.msra.mxu0 %v2361
    %3689 = vmatprep.subr.bf16.mxu0 %v2354
    %3690 = vmatpush1.bf16.msra.mxu0 %v2353
    %3691 = vmatprep.subr.bf16.mxu0 %v2474
    %3692 = vmatpush2.bf16.msra.mxu0 %v2473
    %3693 = vmatprep.subr.bf16.mxu0 %v2466
    %3694 = vmatpush2.bf16.msra.mxu0 %v2465
    %3695 = vmatprep.subr.bf16.mxu0 %v2458
    %3696 = vmatpush2.bf16.msra.mxu0 %v2457
    %3697 = vmatprep.subr.bf16.mxu0 %v2450
    %3698 = vmatpush2.bf16.msra.mxu0 %v2449
    %3699 = vmatprep.subr.bf16.mxu0 %v2442
    %3700 = vmatpush2.bf16.msra.mxu0 %v2441
    %3701 = vmatprep.subr.bf16.mxu0 %v2434
    %3702 = vmatpush2.bf16.msra.mxu0 %v2433
    %3703 = vmatprep.subr.bf16.mxu0 %v2426
    %3704 = vmatpush2.bf16.msra.mxu0 %v2425
    %3705 = vmatprep.subr.bf16.mxu0 %v2418
    %3706 = vmatpush2.bf16.msra.mxu0 %v2417
    %3707 = vmatprep.mubr.bf16.mxu0 %v3633
    %3708 = vmatmul.mubr.bf16.gmra.mxu0 %v3632
    %v3709 = vpop.f32.mrf.mxu0
    %v3710 = vadd.f32 0.0, %v3709
    %v3711 = vpop.f32.mrf.mxu0
    %v3712 = vadd.f32 0.0, %v3711
    %v3713 = vpop.f32.mrf.mxu0
    %v3714 = vpop.f32.mrf.mxu0
    %3715 = vdwg.mxu0
    %3716 = vmatprep.subr.bf16.mxu0 %v2412
    %3717 = vmatpush1.bf16.msra.mxu0 %v2411
    %3718 = vmatprep.subr.bf16.mxu0 %v2404
    %3719 = vmatpush1.bf16.msra.mxu0 %v2403
    %3720 = vmatprep.subr.bf16.mxu0 %v2396
    %3721 = vmatpush1.bf16.msra.mxu0 %v2395
    %3722 = vmatprep.subr.bf16.mxu0 %v2388
    %3723 = vmatpush1.bf16.msra.mxu0 %v2387
    %3724 = vmatprep.subr.bf16.mxu0 %v2380
    %3725 = vmatpush1.bf16.msra.mxu0 %v2379
    %3726 = vmatprep.subr.bf16.mxu0 %v2372
    %3727 = vmatpush1.bf16.msra.mxu0 %v2371
    %3728 = vmatprep.subr.bf16.mxu0 %v2364
    %3729 = vmatpush1.bf16.msra.mxu0 %v2363
    %3730 = vmatprep.subr.bf16.mxu0 %v2356
    %3731 = vmatpush1.bf16.msra.mxu0 %v2355
    %3732 = vmatprep.subr.bf16.mxu0 %v2476
    %3733 = vmatpush2.bf16.msra.mxu0 %v2475
    %3734 = vmatprep.subr.bf16.mxu0 %v2468
    %3735 = vmatpush2.bf16.msra.mxu0 %v2467
    %3736 = vmatprep.subr.bf16.mxu0 %v2460
    %3737 = vmatpush2.bf16.msra.mxu0 %v2459
    %3738 = vmatprep.subr.bf16.mxu0 %v2452
    %3739 = vmatpush2.bf16.msra.mxu0 %v2451
    %3740 = vmatprep.subr.bf16.mxu0 %v2444
    %3741 = vmatpush2.bf16.msra.mxu0 %v2443
    %3742 = vmatprep.subr.bf16.mxu0 %v2436
    %3743 = vmatpush2.bf16.msra.mxu0 %v2435
    %3744 = vmatprep.subr.bf16.mxu0 %v2428
    %3745 = vmatpush2.bf16.msra.mxu0 %v2427
    %3746 = vmatprep.subr.bf16.mxu0 %v2420
    %3747 = vmatpush2.bf16.msra.mxu0 %v2419
    %3748 = vmatprep.mubr.bf16.mxu0 %v3633
    %3749 = vmatmul.mubr.bf16.gmra.mxu0 %v3632
    %v3750 = vpop.f32.mrf.mxu0
    %v3751 = vadd.f32 0.0, %v3750
    %v3752 = vpop.f32.mrf.mxu0
    %v3753 = vadd.f32 0.0, %v3752
    %v3754 = vpop.f32.mrf.mxu0
    %v3755 = vpop.f32.mrf.mxu0
    %3756 = vdwg.mxu0
    %3757 = vmatprep.subr.bf16.mxu0 %v2414
    %3758 = vmatpush1.bf16.msra.mxu0 %v2413
    %3759 = vmatprep.subr.bf16.mxu0 %v2406
    %3760 = vmatpush1.bf16.msra.mxu0 %v2405
    %3761 = vmatprep.subr.bf16.mxu0 %v2398
    %3762 = vmatpush1.bf16.msra.mxu0 %v2397
    %3763 = vmatprep.subr.bf16.mxu0 %v2390
    %3764 = vmatpush1.bf16.msra.mxu0 %v2389
    %3765 = vmatprep.subr.bf16.mxu0 %v2382
    %3766 = vmatpush1.bf16.msra.mxu0 %v2381
    %3767 = vmatprep.subr.bf16.mxu0 %v2374
    %3768 = vmatpush1.bf16.msra.mxu0 %v2373
    %3769 = vmatprep.subr.bf16.mxu0 %v2366
    %3770 = vmatpush1.bf16.msra.mxu0 %v2365
    %3771 = vmatprep.subr.bf16.mxu0 %v2358
    %3772 = vmatpush1.bf16.msra.mxu0 %v2357
    %3773 = vmatprep.subr.bf16.mxu0 %v2478
    %3774 = vmatpush2.bf16.msra.mxu0 %v2477
    %3775 = vmatprep.subr.bf16.mxu0 %v2470
    %3776 = vmatpush2.bf16.msra.mxu0 %v2469
    %3777 = vmatprep.subr.bf16.mxu0 %v2462
    %3778 = vmatpush2.bf16.msra.mxu0 %v2461
    %3779 = vmatprep.subr.bf16.mxu0 %v2454
    %3780 = vmatpush2.bf16.msra.mxu0 %v2453
    %3781 = vmatprep.subr.bf16.mxu0 %v2446
    %3782 = vmatpush2.bf16.msra.mxu0 %v2445
    %3783 = vmatprep.subr.bf16.mxu0 %v2438
    %3784 = vmatpush2.bf16.msra.mxu0 %v2437
    %3785 = vmatprep.subr.bf16.mxu0 %v2430
    %3786 = vmatpush2.bf16.msra.mxu0 %v2429
    %3787 = vmatprep.subr.bf16.mxu0 %v2422
    %3788 = vmatpush2.bf16.msra.mxu0 %v2421
    %3789 = vmatprep.mubr.bf16.mxu0 %v3633
    %3790 = vmatmul.mubr.bf16.gmra.mxu0 %v3632
    %v3791 = vpop.f32.mrf.mxu0
    %v3792 = vadd.f32 0.0, %v3791
    %v3793 = vpop.f32.mrf.mxu0
    %v3794 = vadd.f32 0.0, %v3793
    %v3795 = vpop.f32.mrf.mxu0
    %v3796 = vpop.f32.mrf.mxu0
    %3797 = vdwg.mxu0
    %3798 = vmatprep.subr.bf16.mxu0 %v3020
    %3799 = vmatpush1.bf16.msra.mxu0 %v3019
    %3800 = vmatprep.subr.bf16.mxu0 %v3012
    %3801 = vmatpush1.bf16.msra.mxu0 %v3011
    %3802 = vmatprep.subr.bf16.mxu0 %v3004
    %3803 = vmatpush1.bf16.msra.mxu0 %v3003
    %3804 = vmatprep.subr.bf16.mxu0 %v2996
    %3805 = vmatpush1.bf16.msra.mxu0 %v2995
    %3806 = vmatprep.subr.bf16.mxu0 %v2988
    %3807 = vmatpush1.bf16.msra.mxu0 %v2987
    %3808 = vmatprep.subr.bf16.mxu0 %v2980
    %3809 = vmatpush1.bf16.msra.mxu0 %v2979
    %3810 = vmatprep.subr.bf16.mxu0 %v2972
    %3811 = vmatpush1.bf16.msra.mxu0 %v2971
    %3812 = vmatprep.subr.bf16.mxu0 %v2964
    %3813 = vmatpush1.bf16.msra.mxu0 %v2963
    %3814 = vmatprep.subr.bf16.mxu0 0
    %3815 = vmatpush2.bf16.msra.mxu0 0
    %3816 = vmatprep.subr.bf16.mxu0 0
    %3817 = vmatpush2.bf16.msra.mxu0 0
    %3818 = vmatprep.subr.bf16.mxu0 0
    %3819 = vmatpush2.bf16.msra.mxu0 0
    %3820 = vmatprep.subr.bf16.mxu0 0
    %3821 = vmatpush2.bf16.msra.mxu0 0
    %3822 = vmatprep.subr.bf16.mxu0 0
    %3823 = vmatpush2.bf16.msra.mxu0 0
    %3824 = vmatprep.subr.bf16.mxu0 0
    %3825 = vmatpush2.bf16.msra.mxu0 0
    %3826 = vmatprep.subr.bf16.mxu0 0
    %3827 = vmatpush2.bf16.msra.mxu0 0
    %3828 = vmatprep.subr.bf16.mxu0 0
    %3829 = vmatpush2.bf16.msra.mxu0 0
    %3830 = vmatprep.mubr.bf16.mxu0 0
    %3831 = vmatmul.mubr.bf16.gmra.mxu0 %v3445
    %v3832 = vpop.f32.mrf.mxu0
    %v3833 = vadd.f32 %v3669, %v3832
    %v3834 = vpop.f32.mrf.mxu0
    %v3835 = vadd.f32 %v3671, %v3834
    %v3836 = vpop.f32.mrf.mxu0
    %v3837 = vpop.f32.mrf.mxu0
    %3838 = vdwg.mxu0
    %3839 = vmatprep.subr.bf16.mxu0 %v3022
    %3840 = vmatpush1.bf16.msra.mxu0 %v3021
    %3841 = vmatprep.subr.bf16.mxu0 %v3014
    %3842 = vmatpush1.bf16.msra.mxu0 %v3013
    %3843 = vmatprep.subr.bf16.mxu0 %v3006
    %3844 = vmatpush1.bf16.msra.mxu0 %v3005
    %3845 = vmatprep.subr.bf16.mxu0 %v2998
    %3846 = vmatpush1.bf16.msra.mxu0 %v2997
    %3847 = vmatprep.subr.bf16.mxu0 %v2990
    %3848 = vmatpush1.bf16.msra.mxu0 %v2989
    %3849 = vmatprep.subr.bf16.mxu0 %v2982
    %3850 = vmatpush1.bf16.msra.mxu0 %v2981
    %3851 = vmatprep.subr.bf16.mxu0 %v2974
    %3852 = vmatpush1.bf16.msra.mxu0 %v2973
    %3853 = vmatprep.subr.bf16.mxu0 %v2966
    %3854 = vmatpush1.bf16.msra.mxu0 %v2965
    %3855 = vmatprep.subr.bf16.mxu0 0
    %3856 = vmatpush2.bf16.msra.mxu0 0
    %3857 = vmatprep.subr.bf16.mxu0 0
    %3858 = vmatpush2.bf16.msra.mxu0 0
    %3859 = vmatprep.subr.bf16.mxu0 0
    %3860 = vmatpush2.bf16.msra.mxu0 0
    %3861 = vmatprep.subr.bf16.mxu0 0
    %3862 = vmatpush2.bf16.msra.mxu0 0
    %3863 = vmatprep.subr.bf16.mxu0 0
    %3864 = vmatpush2.bf16.msra.mxu0 0
    %3865 = vmatprep.subr.bf16.mxu0 0
    %3866 = vmatpush2.bf16.msra.mxu0 0
    %3867 = vmatprep.subr.bf16.mxu0 0
    %3868 = vmatpush2.bf16.msra.mxu0 0
    %3869 = vmatprep.subr.bf16.mxu0 0
    %3870 = vmatpush2.bf16.msra.mxu0 0
    %3871 = vmatprep.mubr.bf16.mxu0 0
    %3872 = vmatmul.mubr.bf16.gmra.mxu0 %v3445
    %v3873 = vpop.f32.mrf.mxu0
    %v3874 = vadd.f32 %v3710, %v3873
    %v3875 = vpop.f32.mrf.mxu0
    %v3876 = vadd.f32 %v3712, %v3875
    %v3877 = vpop.f32.mrf.mxu0
    %v3878 = vpop.f32.mrf.mxu0
    %3879 = vdwg.mxu0
    %3880 = vmatprep.subr.bf16.mxu0 %v3024
    %3881 = vmatpush1.bf16.msra.mxu0 %v3023
    %3882 = vmatprep.subr.bf16.mxu0 %v3016
    %3883 = vmatpush1.bf16.msra.mxu0 %v3015
    %3884 = vmatprep.subr.bf16.mxu0 %v3008
    %3885 = vmatpush1.bf16.msra.mxu0 %v3007
    %3886 = vmatprep.subr.bf16.mxu0 %v3000
    %3887 = vmatpush1.bf16.msra.mxu0 %v2999
    %3888 = vmatprep.subr.bf16.mxu0 %v2992
    %3889 = vmatpush1.bf16.msra.mxu0 %v2991
    %3890 = vmatprep.subr.bf16.mxu0 %v2984
    %3891 = vmatpush1.bf16.msra.mxu0 %v2983
    %3892 = vmatprep.subr.bf16.mxu0 %v2976
    %3893 = vmatpush1.bf16.msra.mxu0 %v2975
    %3894 = vmatprep.subr.bf16.mxu0 %v2968
    %3895 = vmatpush1.bf16.msra.mxu0 %v2967
    %3896 = vmatprep.subr.bf16.mxu0 0
    %3897 = vmatpush2.bf16.msra.mxu0 0
    %3898 = vmatprep.subr.bf16.mxu0 0
    %3899 = vmatpush2.bf16.msra.mxu0 0
    %3900 = vmatprep.subr.bf16.mxu0 0
    %3901 = vmatpush2.bf16.msra.mxu0 0
    %3902 = vmatprep.subr.bf16.mxu0 0
    %3903 = vmatpush2.bf16.msra.mxu0 0
    %3904 = vmatprep.subr.bf16.mxu0 0
    %3905 = vmatpush2.bf16.msra.mxu0 0
    %3906 = vmatprep.subr.bf16.mxu0 0
    %3907 = vmatpush2.bf16.msra.mxu0 0
    %3908 = vmatprep.subr.bf16.mxu0 0
    %3909 = vmatpush2.bf16.msra.mxu0 0
    %3910 = vmatprep.subr.bf16.mxu0 0
    %3911 = vmatpush2.bf16.msra.mxu0 0
    %3912 = vmatprep.mubr.bf16.mxu0 0
    %3913 = vmatmul.mubr.bf16.gmra.mxu0 %v3445
    %v3914 = vpop.f32.mrf.mxu0
    %v3915 = vadd.f32 %v3751, %v3914
    %v3916 = vpop.f32.mrf.mxu0
    %v3917 = vadd.f32 %v3753, %v3916
    %v3918 = vpop.f32.mrf.mxu0
    %v3919 = vpop.f32.mrf.mxu0
    %3920 = vdwg.mxu0
    %3921 = vmatprep.subr.bf16.mxu0 %v3026
    %3922 = vmatpush1.bf16.msra.mxu0 %v3025
    %3923 = vmatprep.subr.bf16.mxu0 %v3018
    %3924 = vmatpush1.bf16.msra.mxu0 %v3017
    %3925 = vmatprep.subr.bf16.mxu0 %v3010
    %3926 = vmatpush1.bf16.msra.mxu0 %v3009
    %3927 = vmatprep.subr.bf16.mxu0 %v3002
    %3928 = vmatpush1.bf16.msra.mxu0 %v3001
    %3929 = vmatprep.subr.bf16.mxu0 %v2994
    %3930 = vmatpush1.bf16.msra.mxu0 %v2993
    %3931 = vmatprep.subr.bf16.mxu0 %v2986
    %3932 = vmatpush1.bf16.msra.mxu0 %v2985
    %3933 = vmatprep.subr.bf16.mxu0 %v2978
    %3934 = vmatpush1.bf16.msra.mxu0 %v2977
    %3935 = vmatprep.subr.bf16.mxu0 %v2970
    %3936 = vmatpush1.bf16.msra.mxu0 %v2969
    %3937 = vmatprep.subr.bf16.mxu0 0
    %3938 = vmatpush2.bf16.msra.mxu0 0
    %3939 = vmatprep.subr.bf16.mxu0 0
    %3940 = vmatpush2.bf16.msra.mxu0 0
    %3941 = vmatprep.subr.bf16.mxu0 0
    %3942 = vmatpush2.bf16.msra.mxu0 0
    %3943 = vmatprep.subr.bf16.mxu0 0
    %3944 = vmatpush2.bf16.msra.mxu0 0
    %3945 = vmatprep.subr.bf16.mxu0 0
    %3946 = vmatpush2.bf16.msra.mxu0 0
    %3947 = vmatprep.subr.bf16.mxu0 0
    %3948 = vmatpush2.bf16.msra.mxu0 0
    %3949 = vmatprep.subr.bf16.mxu0 0
    %3950 = vmatpush2.bf16.msra.mxu0 0
    %3951 = vmatprep.subr.bf16.mxu0 0
    %3952 = vmatpush2.bf16.msra.mxu0 0
    %3953 = vmatprep.mubr.bf16.mxu0 0
    %3954 = vmatmul.mubr.bf16.gmra.mxu0 %v3445
    %v3955 = vpop.f32.mrf.mxu0
    %v3956 = vadd.f32 %v3792, %v3955
    %v3957 = vpop.f32.mrf.mxu0
    %v3958 = vadd.f32 %v3794, %v3957
    %v3959 = vpop.f32.mrf.mxu0
    %v3960 = vpop.f32.mrf.mxu0
    %3961 = vdwg.mxu0
    %v3962 = vadd.f32 %v3833, %v3259
    %v3963 = vadd.f32 %v3835, %v3263
    %v3964 = vadd.f32 %v3874, %v3267
    %v3965 = vadd.f32 %v3876, %v3271
    %v3966 = vadd.f32 %v3915, %v3275
    %v3967 = vadd.f32 %v3917, %v3279
    %v3968 = vadd.f32 %v3956, %v3283
    %v3969 = vadd.f32 %v3958, %v3287
    %v3970 = vmul.f32 %v3962, 0.5
    %v3971 = vmul.f32 %v3963, 0.5
    %v3972 = vmul.f32 %v3964, 0.5
    %v3973 = vmul.f32 %v3965, 0.5
    %v3974 = vmul.f32 %v3966, 0.5
    %v3975 = vmul.f32 %v3967, 0.5
    %v3976 = vtanh.pop %v3970
    %v3977 = vtanh.pop %v3971
    %v3978 = vtanh.pop %v3972
    %v3979 = vtanh.pop %v3973
    %v3980 = vtanh.pop %v3974
    %v3981 = vtanh.pop %v3975
    %v3982 = vmul.f32 %v3976, 0.5
    %v3983 = vmul.f32 %v3977, 0.5
    %v3984 = vmul.f32 %v3978, 0.5
    %v3985 = vmul.f32 %v3979, 0.5
    %v3986 = vmul.f32 %v3980, 0.5
    %v3987 = vmul.f32 %v3981, 0.5
    %v3988 = vadd.f32 %v3982, 0.5
    %v3989 = vadd.f32 %v3983, 0.5
    %v3990 = vadd.f32 %v3984, 0.5
    %v3991 = vadd.f32 %v3985, 0.5
    %v3992 = vadd.f32 %v3986, 0.5
    %v3993 = vadd.f32 %v3987, 0.5
    %v3994 = vtanh.pop %v3968
    %v3995 = vtanh.pop %v3969
    %v3996 = vmul.f32 %v3990, %v3334
    %v3997 = vmul.f32 %v3991, %v3335
    %v3998 = vmul.f32 %v3988, %v3994
    %v3999 = vmul.f32 %v3989, %v3995
    %v4000 = vadd.f32 %v3996, %v3998
    %v4001 = vadd.f32 %v3997, %v3999
    %v4002 = vtanh.pop %v4000
    %v4003 = vtanh.pop %v4001
    %v4004 = vmul.f32 %v3992, %v4002
    %v4005 = vmul.f32 %v3993, %v4003
    %v4006 = vpack.c.bf16 %v3444, %v3444
    %4007 = vmatprep.subr.bf16.mxu0 %v904
    %4008 = vmatpush1.bf16.msra.mxu0 %v903
    %4009 = vmatprep.subr.bf16.mxu0 %v900
    %4010 = vmatpush1.bf16.msra.mxu0 %v899
    %4011 = vmatprep.subr.bf16.mxu0 %v896
    %4012 = vmatpush1.bf16.msra.mxu0 %v895
    %4013 = vmatprep.subr.bf16.mxu0 %v892
    %4014 = vmatpush1.bf16.msra.mxu0 %v891
    %4015 = vmatprep.subr.bf16.mxu0 %v888
    %4016 = vmatpush1.bf16.msra.mxu0 %v887
    %4017 = vmatprep.subr.bf16.mxu0 %v884
    %4018 = vmatpush1.bf16.msra.mxu0 %v883
    %4019 = vmatprep.subr.bf16.mxu0 %v880
    %4020 = vmatpush1.bf16.msra.mxu0 %v879
    %4021 = vmatprep.subr.bf16.mxu0 %v876
    %4022 = vmatpush1.bf16.msra.mxu0 %v875
    %4023 = vmatprep.subr.bf16.mxu0 0
    %4024 = vmatpush2.bf16.msra.mxu0 0
    %4025 = vmatprep.subr.bf16.mxu0 0
    %4026 = vmatpush2.bf16.msra.mxu0 0
    %4027 = vmatprep.subr.bf16.mxu0 0
    %4028 = vmatpush2.bf16.msra.mxu0 0
    %4029 = vmatprep.subr.bf16.mxu0 0
    %4030 = vmatpush2.bf16.msra.mxu0 0
    %4031 = vmatprep.subr.bf16.mxu0 0
    %4032 = vmatpush2.bf16.msra.mxu0 0
    %4033 = vmatprep.subr.bf16.mxu0 0
    %4034 = vmatpush2.bf16.msra.mxu0 0
    %4035 = vmatprep.subr.bf16.mxu0 0
    %4036 = vmatpush2.bf16.msra.mxu0 0
    %4037 = vmatprep.subr.bf16.mxu0 0
    %4038 = vmatpush2.bf16.msra.mxu0 0
    %4039 = vmatprep.mubr.bf16.mxu0 0
    %4040 = vmatmul.mubr.bf16.gmra.mxu0 %v4006
    %v4041 = vpop.f32.mrf.mxu0
    %v4042 = vadd.f32 0.0, %v4041
    %v4043 = vpop.f32.mrf.mxu0
    %v4044 = vadd.f32 0.0, %v4043
    %v4045 = vpop.f32.mrf.mxu0
    %v4046 = vpop.f32.mrf.mxu0
    %4047 = vdwg.mxu0
    %4048 = vmatprep.subr.bf16.mxu0 %v906
    %4049 = vmatpush1.bf16.msra.mxu0 %v905
    %4050 = vmatprep.subr.bf16.mxu0 %v902
    %4051 = vmatpush1.bf16.msra.mxu0 %v901
    %4052 = vmatprep.subr.bf16.mxu0 %v898
    %4053 = vmatpush1.bf16.msra.mxu0 %v897
    %4054 = vmatprep.subr.bf16.mxu0 %v894
    %4055 = vmatpush1.bf16.msra.mxu0 %v893
    %4056 = vmatprep.subr.bf16.mxu0 %v890
    %4057 = vmatpush1.bf16.msra.mxu0 %v889
    %4058 = vmatprep.subr.bf16.mxu0 %v886
    %4059 = vmatpush1.bf16.msra.mxu0 %v885
    %4060 = vmatprep.subr.bf16.mxu0 %v882
    %4061 = vmatpush1.bf16.msra.mxu0 %v881
    %4062 = vmatprep.subr.bf16.mxu0 %v878
    %4063 = vmatpush1.bf16.msra.mxu0 %v877
    %4064 = vmatprep.subr.bf16.mxu0 0
    %4065 = vmatpush2.bf16.msra.mxu0 0
    %4066 = vmatprep.subr.bf16.mxu0 0
    %4067 = vmatpush2.bf16.msra.mxu0 0
    %4068 = vmatprep.subr.bf16.mxu0 0
    %4069 = vmatpush2.bf16.msra.mxu0 0
    %4070 = vmatprep.subr.bf16.mxu0 0
    %4071 = vmatpush2.bf16.msra.mxu0 0
    %4072 = vmatprep.subr.bf16.mxu0 0
    %4073 = vmatpush2.bf16.msra.mxu0 0
    %4074 = vmatprep.subr.bf16.mxu0 0
    %4075 = vmatpush2.bf16.msra.mxu0 0
    %4076 = vmatprep.subr.bf16.mxu0 0
    %4077 = vmatpush2.bf16.msra.mxu0 0
    %4078 = vmatprep.subr.bf16.mxu0 0
    %4079 = vmatpush2.bf16.msra.mxu0 0
    %4080 = vmatprep.mubr.bf16.mxu0 0
    %4081 = vmatmul.mubr.bf16.gmra.mxu0 %v4006
    %v4082 = vpop.f32.mrf.mxu0
    %v4083 = vadd.f32 0.0, %v4082
    %v4084 = vpop.f32.mrf.mxu0
    %v4085 = vadd.f32 0.0, %v4084
    %v4086 = vpop.f32.mrf.mxu0
    %v4087 = vpop.f32.mrf.mxu0
    %4088 = vdwg.mxu0
    %v4089 = vadd.f32 %v398, %v4042
    %v4090 = vadd.f32 %v400, %v4044
    %v4091 = vadd.f32 %v471, %v4083
    %v4092 = vadd.f32 %v473, %v4085
    %v4093 = vmul.f32 %v4089, 0.5
    %v4094 = vmul.f32 %v4090, 0.5
    %v4095 = vmul.f32 %v4091, 0.5
    %v4096 = vtanh.pop %v4093
    %v4097 = vtanh.pop %v4094
    %v4098 = vtanh.pop %v4095
    %v4099 = vmul.f32 %v4096, 0.5
    %v4100 = vmul.f32 %v4097, 0.5
    %v4101 = vmul.f32 %v4098, 0.5
    %v4102 = vadd.f32 %v4099, 0.5
    %v4103 = vadd.f32 %v4100, 0.5
    %v4104 = vadd.f32 %v4101, 0.5
    %v4105 = vtanh.pop %v4092
    %v4106 = vmul.f32 %v4103, %v3442
    %v4107 = vmul.f32 %v4102, %v4105
    %v4108 = vadd.f32 %v4106, %v4107
    %v4109 = vtanh.pop %v4108
    %v4110 = vmul.f32 %v4104, %v4109
    %v4111 = vpack.c.bf16 %v3631, %v3631
    %4112 = vmatprep.subr.bf16.mxu0 %v1273
    %4113 = vmatpush1.bf16.msra.mxu0 %v1272
    %4114 = vmatprep.subr.bf16.mxu0 %v1269
    %4115 = vmatpush1.bf16.msra.mxu0 %v1268
    %4116 = vmatprep.subr.bf16.mxu0 %v1265
    %4117 = vmatpush1.bf16.msra.mxu0 %v1264
    %4118 = vmatprep.subr.bf16.mxu0 %v1261
    %4119 = vmatpush1.bf16.msra.mxu0 %v1260
    %4120 = vmatprep.subr.bf16.mxu0 %v1257
    %4121 = vmatpush1.bf16.msra.mxu0 %v1256
    %4122 = vmatprep.subr.bf16.mxu0 %v1253
    %4123 = vmatpush1.bf16.msra.mxu0 %v1252
    %4124 = vmatprep.subr.bf16.mxu0 %v1249
    %4125 = vmatpush1.bf16.msra.mxu0 %v1248
    %4126 = vmatprep.subr.bf16.mxu0 %v1245
    %4127 = vmatpush1.bf16.msra.mxu0 %v1244
    %4128 = vmatprep.subr.bf16.mxu0 0
    %4129 = vmatpush2.bf16.msra.mxu0 0
    %4130 = vmatprep.subr.bf16.mxu0 0
    %4131 = vmatpush2.bf16.msra.mxu0 0
    %4132 = vmatprep.subr.bf16.mxu0 0
    %4133 = vmatpush2.bf16.msra.mxu0 0
    %4134 = vmatprep.subr.bf16.mxu0 0
    %4135 = vmatpush2.bf16.msra.mxu0 0
    %4136 = vmatprep.subr.bf16.mxu0 0
    %4137 = vmatpush2.bf16.msra.mxu0 0
    %4138 = vmatprep.subr.bf16.mxu0 0
    %4139 = vmatpush2.bf16.msra.mxu0 0
    %4140 = vmatprep.subr.bf16.mxu0 0
    %4141 = vmatpush2.bf16.msra.mxu0 0
    %4142 = vmatprep.subr.bf16.mxu0 0
    %4143 = vmatpush2.bf16.msra.mxu0 0
    %4144 = vmatprep.mubr.bf16.mxu0 0
    %4145 = vmatmul.mubr.bf16.gmra.mxu0 %v4111
    %v4146 = vpop.f32.mrf.mxu0
    %v4147 = vadd.f32 0.0, %v4146
    %v4148 = vpop.f32.mrf.mxu0
    %v4149 = vadd.f32 0.0, %v4148
    %v4150 = vpop.f32.mrf.mxu0
    %v4151 = vpop.f32.mrf.mxu0
    %4152 = vdwg.mxu0
    %4153 = vmatprep.subr.bf16.mxu0 %v1275
    %4154 = vmatpush1.bf16.msra.mxu0 %v1274
    %4155 = vmatprep.subr.bf16.mxu0 %v1271
    %4156 = vmatpush1.bf16.msra.mxu0 %v1270
    %4157 = vmatprep.subr.bf16.mxu0 %v1267
    %4158 = vmatpush1.bf16.msra.mxu0 %v1266
    %4159 = vmatprep.subr.bf16.mxu0 %v1263
    %4160 = vmatpush1.bf16.msra.mxu0 %v1262
    %4161 = vmatprep.subr.bf16.mxu0 %v1259
    %4162 = vmatpush1.bf16.msra.mxu0 %v1258
    %4163 = vmatprep.subr.bf16.mxu0 %v1255
    %4164 = vmatpush1.bf16.msra.mxu0 %v1254
    %4165 = vmatprep.subr.bf16.mxu0 %v1251
    %4166 = vmatpush1.bf16.msra.mxu0 %v1250
    %4167 = vmatprep.subr.bf16.mxu0 %v1247
    %4168 = vmatpush1.bf16.msra.mxu0 %v1246
    %4169 = vmatprep.subr.bf16.mxu0 0
    %4170 = vmatpush2.bf16.msra.mxu0 0
    %4171 = vmatprep.subr.bf16.mxu0 0
    %4172 = vmatpush2.bf16.msra.mxu0 0
    %4173 = vmatprep.subr.bf16.mxu0 0
    %4174 = vmatpush2.bf16.msra.mxu0 0
    %4175 = vmatprep.subr.bf16.mxu0 0
    %4176 = vmatpush2.bf16.msra.mxu0 0
    %4177 = vmatprep.subr.bf16.mxu0 0
    %4178 = vmatpush2.bf16.msra.mxu0 0
    %4179 = vmatprep.subr.bf16.mxu0 0
    %4180 = vmatpush2.bf16.msra.mxu0 0
    %4181 = vmatprep.subr.bf16.mxu0 0
    %4182 = vmatpush2.bf16.msra.mxu0 0
    %4183 = vmatprep.subr.bf16.mxu0 0
    %4184 = vmatpush2.bf16.msra.mxu0 0
    %4185 = vmatprep.mubr.bf16.mxu0 0
    %4186 = vmatmul.mubr.bf16.gmra.mxu0 %v4111
    %v4187 = vpop.f32.mrf.mxu0
    %v4188 = vadd.f32 0.0, %v4187
    %v4189 = vpop.f32.mrf.mxu0
    %v4190 = vadd.f32 0.0, %v4189
    %v4191 = vpop.f32.mrf.mxu0
    %v4192 = vpop.f32.mrf.mxu0
    %4193 = vdwg.mxu0
    %4194 = vmatprep.subr.bf16.mxu0 %v1515
    %4195 = vmatpush1.bf16.msra.mxu0 %v1514
    %4196 = vmatprep.subr.bf16.mxu0 %v1511
    %4197 = vmatpush1.bf16.msra.mxu0 %v1510
    %4198 = vmatprep.subr.bf16.mxu0 %v1507
    %4199 = vmatpush1.bf16.msra.mxu0 %v1506
    %4200 = vmatprep.subr.bf16.mxu0 %v1503
    %4201 = vmatpush1.bf16.msra.mxu0 %v1502
    %4202 = vmatprep.subr.bf16.mxu0 %v1499
    %4203 = vmatpush1.bf16.msra.mxu0 %v1498
    %4204 = vmatprep.subr.bf16.mxu0 %v1495
    %4205 = vmatpush1.bf16.msra.mxu0 %v1494
    %4206 = vmatprep.subr.bf16.mxu0 %v1491
    %4207 = vmatpush1.bf16.msra.mxu0 %v1490
    %4208 = vmatprep.subr.bf16.mxu0 %v1487
    %4209 = vmatpush1.bf16.msra.mxu0 %v1486
    %4210 = vmatprep.subr.bf16.mxu0 0
    %4211 = vmatpush2.bf16.msra.mxu0 0
    %4212 = vmatprep.subr.bf16.mxu0 0
    %4213 = vmatpush2.bf16.msra.mxu0 0
    %4214 = vmatprep.subr.bf16.mxu0 0
    %4215 = vmatpush2.bf16.msra.mxu0 0
    %4216 = vmatprep.subr.bf16.mxu0 0
    %4217 = vmatpush2.bf16.msra.mxu0 0
    %4218 = vmatprep.subr.bf16.mxu0 0
    %4219 = vmatpush2.bf16.msra.mxu0 0
    %4220 = vmatprep.subr.bf16.mxu0 0
    %4221 = vmatpush2.bf16.msra.mxu0 0
    %4222 = vmatprep.subr.bf16.mxu0 0
    %4223 = vmatpush2.bf16.msra.mxu0 0
    %4224 = vmatprep.subr.bf16.mxu0 0
    %4225 = vmatpush2.bf16.msra.mxu0 0
    %4226 = vmatprep.mubr.bf16.mxu0 0
    %4227 = vmatmul.mubr.bf16.gmra.mxu0 %v4006
    %v4228 = vpop.f32.mrf.mxu0
    %v4229 = vadd.f32 %v4147, %v4228
    %v4230 = vpop.f32.mrf.mxu0
    %v4231 = vadd.f32 %v4149, %v4230
    %v4232 = vpop.f32.mrf.mxu0
    %v4233 = vpop.f32.mrf.mxu0
    %4234 = vdwg.mxu0
    %4235 = vmatprep.subr.bf16.mxu0 %v1517
    %4236 = vmatpush1.bf16.msra.mxu0 %v1516
    %4237 = vmatprep.subr.bf16.mxu0 %v1513
    %4238 = vmatpush1.bf16.msra.mxu0 %v1512
    %4239 = vmatprep.subr.bf16.mxu0 %v1509
    %4240 = vmatpush1.bf16.msra.mxu0 %v1508
    %4241 = vmatprep.subr.bf16.mxu0 %v1505
    %4242 = vmatpush1.bf16.msra.mxu0 %v1504
    %4243 = vmatprep.subr.bf16.mxu0 %v1501
    %4244 = vmatpush1.bf16.msra.mxu0 %v1500
    %4245 = vmatprep.subr.bf16.mxu0 %v1497
    %4246 = vmatpush1.bf16.msra.mxu0 %v1496
    %4247 = vmatprep.subr.bf16.mxu0 %v1493
    %4248 = vmatpush1.bf16.msra.mxu0 %v1492
    %4249 = vmatprep.subr.bf16.mxu0 %v1489
    %4250 = vmatpush1.bf16.msra.mxu0 %v1488
    %4251 = vmatprep.subr.bf16.mxu0 0
    %4252 = vmatpush2.bf16.msra.mxu0 0
    %4253 = vmatprep.subr.bf16.mxu0 0
    %4254 = vmatpush2.bf16.msra.mxu0 0
    %4255 = vmatprep.subr.bf16.mxu0 0
    %4256 = vmatpush2.bf16.msra.mxu0 0
    %4257 = vmatprep.subr.bf16.mxu0 0
    %4258 = vmatpush2.bf16.msra.mxu0 0
    %4259 = vmatprep.subr.bf16.mxu0 0
    %4260 = vmatpush2.bf16.msra.mxu0 0
    %4261 = vmatprep.subr.bf16.mxu0 0
    %4262 = vmatpush2.bf16.msra.mxu0 0
    %4263 = vmatprep.subr.bf16.mxu0 0
    %4264 = vmatpush2.bf16.msra.mxu0 0
    %4265 = vmatprep.subr.bf16.mxu0 0
    %4266 = vmatpush2.bf16.msra.mxu0 0
    %4267 = vmatprep.mubr.bf16.mxu0 0
    %4268 = vmatmul.mubr.bf16.gmra.mxu0 %v4006
    %v4269 = vpop.f32.mrf.mxu0
    %v4270 = vadd.f32 %v4188, %v4269
    %v4271 = vpop.f32.mrf.mxu0
    %v4272 = vadd.f32 %v4190, %v4271
    %v4273 = vpop.f32.mrf.mxu0
    %v4274 = vpop.f32.mrf.mxu0
    %4275 = vdwg.mxu0
    %v4276 = vadd.f32 %v4229, %v1636
    %v4277 = vadd.f32 %v4231, %v1640
    %v4278 = vadd.f32 %v4270, %v1644
    %v4279 = vadd.f32 %v4272, %v1648
    %v4280 = vmul.f32 %v4276, 0.5
    %v4281 = vmul.f32 %v4277, 0.5
    %v4282 = vmul.f32 %v4278, 0.5
    %v4283 = vtanh.pop %v4280
    %v4284 = vtanh.pop %v4281
    %v4285 = vtanh.pop %v4282
    %v4286 = vmul.f32 %v4283, 0.5
    %v4287 = vmul.f32 %v4284, 0.5
    %v4288 = vmul.f32 %v4285, 0.5
    %v4289 = vadd.f32 %v4286, 0.5
    %v4290 = vadd.f32 %v4287, 0.5
    %v4291 = vadd.f32 %v4288, 0.5
    %v4292 = vtanh.pop %v4279
    %v4293 = vmul.f32 %v4290, %v3629
    %v4294 = vmul.f32 %v4289, %v4292
    %v4295 = vadd.f32 %v4293, %v4294
    %v4296 = vtanh.pop %v4295
    %v4297 = vmul.f32 %v4291, %v4296
    %v4298 = vpack.c.bf16 %v4004, %v4004
    %v4299 = vpack.c.bf16 %v4005, %v4005
    %4300 = vmatprep.subr.bf16.mxu0 %v2408
    %4301 = vmatpush1.bf16.msra.mxu0 %v2407
    %4302 = vmatprep.subr.bf16.mxu0 %v2400
    %4303 = vmatpush1.bf16.msra.mxu0 %v2399
    %4304 = vmatprep.subr.bf16.mxu0 %v2392
    %4305 = vmatpush1.bf16.msra.mxu0 %v2391
    %4306 = vmatprep.subr.bf16.mxu0 %v2384
    %4307 = vmatpush1.bf16.msra.mxu0 %v2383
    %4308 = vmatprep.subr.bf16.mxu0 %v2376
    %4309 = vmatpush1.bf16.msra.mxu0 %v2375
    %4310 = vmatprep.subr.bf16.mxu0 %v2368
    %4311 = vmatpush1.bf16.msra.mxu0 %v2367
    %4312 = vmatprep.subr.bf16.mxu0 %v2360
    %4313 = vmatpush1.bf16.msra.mxu0 %v2359
    %4314 = vmatprep.subr.bf16.mxu0 %v2352
    %4315 = vmatpush1.bf16.msra.mxu0 %v2351
    %4316 = vmatprep.subr.bf16.mxu0 %v2472
    %4317 = vmatpush2.bf16.msra.mxu0 %v2471
    %4318 = vmatprep.subr.bf16.mxu0 %v2464
    %4319 = vmatpush2.bf16.msra.mxu0 %v2463
    %4320 = vmatprep.subr.bf16.mxu0 %v2456
    %4321 = vmatpush2.bf16.msra.mxu0 %v2455
    %4322 = vmatprep.subr.bf16.mxu0 %v2448
    %4323 = vmatpush2.bf16.msra.mxu0 %v2447
    %4324 = vmatprep.subr.bf16.mxu0 %v2440
    %4325 = vmatpush2.bf16.msra.mxu0 %v2439
    %4326 = vmatprep.subr.bf16.mxu0 %v2432
    %4327 = vmatpush2.bf16.msra.mxu0 %v2431
    %4328 = vmatprep.subr.bf16.mxu0 %v2424
    %4329 = vmatpush2.bf16.msra.mxu0 %v2423
    %4330 = vmatprep.subr.bf16.mxu0 %v2416
    %4331 = vmatpush2.bf16.msra.mxu0 %v2415
    %4332 = vmatprep.mubr.bf16.mxu0 %v4299
    %4333 = vmatmul.mubr.bf16.gmra.mxu0 %v4298
    %v4334 = vpop.f32.mrf.mxu0
    %v4335 = vadd.f32 0.0, %v4334
    %v4336 = vpop.f32.mrf.mxu0
    %v4337 = vadd.f32 0.0, %v4336
    %v4338 = vpop.f32.mrf.mxu0
    %v4339 = vpop.f32.mrf.mxu0
    %4340 = vdwg.mxu0
    %4341 = vmatprep.subr.bf16.mxu0 %v2410
    %4342 = vmatpush1.bf16.msra.mxu0 %v2409
    %4343 = vmatprep.subr.bf16.mxu0 %v2402
    %4344 = vmatpush1.bf16.msra.mxu0 %v2401
    %4345 = vmatprep.subr.bf16.mxu0 %v2394
    %4346 = vmatpush1.bf16.msra.mxu0 %v2393
    %4347 = vmatprep.subr.bf16.mxu0 %v2386
    %4348 = vmatpush1.bf16.msra.mxu0 %v2385
    %4349 = vmatprep.subr.bf16.mxu0 %v2378
    %4350 = vmatpush1.bf16.msra.mxu0 %v2377
    %4351 = vmatprep.subr.bf16.mxu0 %v2370
    %4352 = vmatpush1.bf16.msra.mxu0 %v2369
    %4353 = vmatprep.subr.bf16.mxu0 %v2362
    %4354 = vmatpush1.bf16.msra.mxu0 %v2361
    %4355 = vmatprep.subr.bf16.mxu0 %v2354
    %4356 = vmatpush1.bf16.msra.mxu0 %v2353
    %4357 = vmatprep.subr.bf16.mxu0 %v2474
    %4358 = vmatpush2.bf16.msra.mxu0 %v2473
    %4359 = vmatprep.subr.bf16.mxu0 %v2466
    %4360 = vmatpush2.bf16.msra.mxu0 %v2465
    %4361 = vmatprep.subr.bf16.mxu0 %v2458
    %4362 = vmatpush2.bf16.msra.mxu0 %v2457
    %4363 = vmatprep.subr.bf16.mxu0 %v2450
    %4364 = vmatpush2.bf16.msra.mxu0 %v2449
    %4365 = vmatprep.subr.bf16.mxu0 %v2442
    %4366 = vmatpush2.bf16.msra.mxu0 %v2441
    %4367 = vmatprep.subr.bf16.mxu0 %v2434
    %4368 = vmatpush2.bf16.msra.mxu0 %v2433
    %4369 = vmatprep.subr.bf16.mxu0 %v2426
    %4370 = vmatpush2.bf16.msra.mxu0 %v2425
    %4371 = vmatprep.subr.bf16.mxu0 %v2418
    %4372 = vmatpush2.bf16.msra.mxu0 %v2417
    %4373 = vmatprep.mubr.bf16.mxu0 %v4299
    %4374 = vmatmul.mubr.bf16.gmra.mxu0 %v4298
    %v4375 = vpop.f32.mrf.mxu0
    %v4376 = vadd.f32 0.0, %v4375
    %v4377 = vpop.f32.mrf.mxu0
    %v4378 = vadd.f32 0.0, %v4377
    %v4379 = vpop.f32.mrf.mxu0
    %v4380 = vpop.f32.mrf.mxu0
    %4381 = vdwg.mxu0
    %4382 = vmatprep.subr.bf16.mxu0 %v2412
    %4383 = vmatpush1.bf16.msra.mxu0 %v2411
    %4384 = vmatprep.subr.bf16.mxu0 %v2404
    %4385 = vmatpush1.bf16.msra.mxu0 %v2403
    %4386 = vmatprep.subr.bf16.mxu0 %v2396
    %4387 = vmatpush1.bf16.msra.mxu0 %v2395
    %4388 = vmatprep.subr.bf16.mxu0 %v2388
    %4389 = vmatpush1.bf16.msra.mxu0 %v2387
    %4390 = vmatprep.subr.bf16.mxu0 %v2380
    %4391 = vmatpush1.bf16.msra.mxu0 %v2379
    %4392 = vmatprep.subr.bf16.mxu0 %v2372
    %4393 = vmatpush1.bf16.msra.mxu0 %v2371
    %4394 = vmatprep.subr.bf16.mxu0 %v2364
    %4395 = vmatpush1.bf16.msra.mxu0 %v2363
    %4396 = vmatprep.subr.bf16.mxu0 %v2356
    %4397 = vmatpush1.bf16.msra.mxu0 %v2355
    %4398 = vmatprep.subr.bf16.mxu0 %v2476
    %4399 = vmatpush2.bf16.msra.mxu0 %v2475
    %4400 = vmatprep.subr.bf16.mxu0 %v2468
    %4401 = vmatpush2.bf16.msra.mxu0 %v2467
    %4402 = vmatprep.subr.bf16.mxu0 %v2460
    %4403 = vmatpush2.bf16.msra.mxu0 %v2459
    %4404 = vmatprep.subr.bf16.mxu0 %v2452
    %4405 = vmatpush2.bf16.msra.mxu0 %v2451
    %4406 = vmatprep.subr.bf16.mxu0 %v2444
    %4407 = vmatpush2.bf16.msra.mxu0 %v2443
    %4408 = vmatprep.subr.bf16.mxu0 %v2436
    %4409 = vmatpush2.bf16.msra.mxu0 %v2435
    %4410 = vmatprep.subr.bf16.mxu0 %v2428
    %4411 = vmatpush2.bf16.msra.mxu0 %v2427
    %4412 = vmatprep.subr.bf16.mxu0 %v2420
    %4413 = vmatpush2.bf16.msra.mxu0 %v2419
    %4414 = vmatprep.mubr.bf16.mxu0 %v4299
    %4415 = vmatmul.mubr.bf16.gmra.mxu0 %v4298
    %v4416 = vpop.f32.mrf.mxu0
    %v4417 = vadd.f32 0.0, %v4416
    %v4418 = vpop.f32.mrf.mxu0
    %v4419 = vadd.f32 0.0, %v4418
    %v4420 = vpop.f32.mrf.mxu0
    %v4421 = vpop.f32.mrf.mxu0
    %4422 = vdwg.mxu0
    %4423 = vmatprep.subr.bf16.mxu0 %v2414
    %4424 = vmatpush1.bf16.msra.mxu0 %v2413
    %4425 = vmatprep.subr.bf16.mxu0 %v2406
    %4426 = vmatpush1.bf16.msra.mxu0 %v2405
    %4427 = vmatprep.subr.bf16.mxu0 %v2398
    %4428 = vmatpush1.bf16.msra.mxu0 %v2397
    %4429 = vmatprep.subr.bf16.mxu0 %v2390
    %4430 = vmatpush1.bf16.msra.mxu0 %v2389
    %4431 = vmatprep.subr.bf16.mxu0 %v2382
    %4432 = vmatpush1.bf16.msra.mxu0 %v2381
    %4433 = vmatprep.subr.bf16.mxu0 %v2374
    %4434 = vmatpush1.bf16.msra.mxu0 %v2373
    %4435 = vmatprep.subr.bf16.mxu0 %v2366
    %4436 = vmatpush1.bf16.msra.mxu0 %v2365
    %4437 = vmatprep.subr.bf16.mxu0 %v2358
    %4438 = vmatpush1.bf16.msra.mxu0 %v2357
    %4439 = vmatprep.subr.bf16.mxu0 %v2478
    %4440 = vmatpush2.bf16.msra.mxu0 %v2477
    %4441 = vmatprep.subr.bf16.mxu0 %v2470
    %4442 = vmatpush2.bf16.msra.mxu0 %v2469
    %4443 = vmatprep.subr.bf16.mxu0 %v2462
    %4444 = vmatpush2.bf16.msra.mxu0 %v2461
    %4445 = vmatprep.subr.bf16.mxu0 %v2454
    %4446 = vmatpush2.bf16.msra.mxu0 %v2453
    %4447 = vmatprep.subr.bf16.mxu0 %v2446
    %4448 = vmatpush2.bf16.msra.mxu0 %v2445
    %4449 = vmatprep.subr.bf16.mxu0 %v2438
    %4450 = vmatpush2.bf16.msra.mxu0 %v2437
    %4451 = vmatprep.subr.bf16.mxu0 %v2430
    %4452 = vmatpush2.bf16.msra.mxu0 %v2429
    %4453 = vmatprep.subr.bf16.mxu0 %v2422
    %4454 = vmatpush2.bf16.msra.mxu0 %v2421
    %4455 = vmatprep.mubr.bf16.mxu0 %v4299
    %4456 = vmatmul.mubr.bf16.gmra.mxu0 %v4298
    %v4457 = vpop.f32.mrf.mxu0
    %v4458 = vadd.f32 0.0, %v4457
    %v4459 = vpop.f32.mrf.mxu0
    %v4460 = vadd.f32 0.0, %v4459
    %v4461 = vpop.f32.mrf.mxu0
    %v4462 = vpop.f32.mrf.mxu0
    %4463 = vdwg.mxu0
    %4464 = vmatprep.subr.bf16.mxu0 %v3020
    %4465 = vmatpush1.bf16.msra.mxu0 %v3019
    %4466 = vmatprep.subr.bf16.mxu0 %v3012
    %4467 = vmatpush1.bf16.msra.mxu0 %v3011
    %4468 = vmatprep.subr.bf16.mxu0 %v3004
    %4469 = vmatpush1.bf16.msra.mxu0 %v3003
    %4470 = vmatprep.subr.bf16.mxu0 %v2996
    %4471 = vmatpush1.bf16.msra.mxu0 %v2995
    %4472 = vmatprep.subr.bf16.mxu0 %v2988
    %4473 = vmatpush1.bf16.msra.mxu0 %v2987
    %4474 = vmatprep.subr.bf16.mxu0 %v2980
    %4475 = vmatpush1.bf16.msra.mxu0 %v2979
    %4476 = vmatprep.subr.bf16.mxu0 %v2972
    %4477 = vmatpush1.bf16.msra.mxu0 %v2971
    %4478 = vmatprep.subr.bf16.mxu0 %v2964
    %4479 = vmatpush1.bf16.msra.mxu0 %v2963
    %4480 = vmatprep.subr.bf16.mxu0 0
    %4481 = vmatpush2.bf16.msra.mxu0 0
    %4482 = vmatprep.subr.bf16.mxu0 0
    %4483 = vmatpush2.bf16.msra.mxu0 0
    %4484 = vmatprep.subr.bf16.mxu0 0
    %4485 = vmatpush2.bf16.msra.mxu0 0
    %4486 = vmatprep.subr.bf16.mxu0 0
    %4487 = vmatpush2.bf16.msra.mxu0 0
    %4488 = vmatprep.subr.bf16.mxu0 0
    %4489 = vmatpush2.bf16.msra.mxu0 0
    %4490 = vmatprep.subr.bf16.mxu0 0
    %4491 = vmatpush2.bf16.msra.mxu0 0
    %4492 = vmatprep.subr.bf16.mxu0 0
    %4493 = vmatpush2.bf16.msra.mxu0 0
    %4494 = vmatprep.subr.bf16.mxu0 0
    %4495 = vmatpush2.bf16.msra.mxu0 0
    %4496 = vmatprep.mubr.bf16.mxu0 0
    %4497 = vmatmul.mubr.bf16.gmra.mxu0 %v4111
    %v4498 = vpop.f32.mrf.mxu0
    %v4499 = vadd.f32 %v4335, %v4498
    %v4500 = vpop.f32.mrf.mxu0
    %v4501 = vadd.f32 %v4337, %v4500
    %v4502 = vpop.f32.mrf.mxu0
    %v4503 = vpop.f32.mrf.mxu0
    %4504 = vdwg.mxu0
    %4505 = vmatprep.subr.bf16.mxu0 %v3022
    %4506 = vmatpush1.bf16.msra.mxu0 %v3021
    %4507 = vmatprep.subr.bf16.mxu0 %v3014
    %4508 = vmatpush1.bf16.msra.mxu0 %v3013
    %4509 = vmatprep.subr.bf16.mxu0 %v3006
    %4510 = vmatpush1.bf16.msra.mxu0 %v3005
    %4511 = vmatprep.subr.bf16.mxu0 %v2998
    %4512 = vmatpush1.bf16.msra.mxu0 %v2997
    %4513 = vmatprep.subr.bf16.mxu0 %v2990
    %4514 = vmatpush1.bf16.msra.mxu0 %v2989
    %4515 = vmatprep.subr.bf16.mxu0 %v2982
    %4516 = vmatpush1.bf16.msra.mxu0 %v2981
    %4517 = vmatprep.subr.bf16.mxu0 %v2974
    %4518 = vmatpush1.bf16.msra.mxu0 %v2973
    %4519 = vmatprep.subr.bf16.mxu0 %v2966
    %4520 = vmatpush1.bf16.msra.mxu0 %v2965
    %4521 = vmatprep.subr.bf16.mxu0 0
    %4522 = vmatpush2.bf16.msra.mxu0 0
    %4523 = vmatprep.subr.bf16.mxu0 0
    %4524 = vmatpush2.bf16.msra.mxu0 0
    %4525 = vmatprep.subr.bf16.mxu0 0
    %4526 = vmatpush2.bf16.msra.mxu0 0
    %4527 = vmatprep.subr.bf16.mxu0 0
    %4528 = vmatpush2.bf16.msra.mxu0 0
    %4529 = vmatprep.subr.bf16.mxu0 0
    %4530 = vmatpush2.bf16.msra.mxu0 0
    %4531 = vmatprep.subr.bf16.mxu0 0
    %4532 = vmatpush2.bf16.msra.mxu0 0
    %4533 = vmatprep.subr.bf16.mxu0 0
    %4534 = vmatpush2.bf16.msra.mxu0 0
    %4535 = vmatprep.subr.bf16.mxu0 0
    %4536 = vmatpush2.bf16.msra.mxu0 0
    %4537 = vmatprep.mubr.bf16.mxu0 0
    %4538 = vmatmul.mubr.bf16.gmra.mxu0 %v4111
    %v4539 = vpop.f32.mrf.mxu0
    %v4540 = vadd.f32 %v4376, %v4539
    %v4541 = vpop.f32.mrf.mxu0
    %v4542 = vadd.f32 %v4378, %v4541
    %v4543 = vpop.f32.mrf.mxu0
    %v4544 = vpop.f32.mrf.mxu0
    %4545 = vdwg.mxu0
    %4546 = vmatprep.subr.bf16.mxu0 %v3024
    %4547 = vmatpush1.bf16.msra.mxu0 %v3023
    %4548 = vmatprep.subr.bf16.mxu0 %v3016
    %4549 = vmatpush1.bf16.msra.mxu0 %v3015
    %4550 = vmatprep.subr.bf16.mxu0 %v3008
    %4551 = vmatpush1.bf16.msra.mxu0 %v3007
    %4552 = vmatprep.subr.bf16.mxu0 %v3000
    %4553 = vmatpush1.bf16.msra.mxu0 %v2999
    %4554 = vmatprep.subr.bf16.mxu0 %v2992
    %4555 = vmatpush1.bf16.msra.mxu0 %v2991
    %4556 = vmatprep.subr.bf16.mxu0 %v2984
    %4557 = vmatpush1.bf16.msra.mxu0 %v2983
    %4558 = vmatprep.subr.bf16.mxu0 %v2976
    %4559 = vmatpush1.bf16.msra.mxu0 %v2975
    %4560 = vmatprep.subr.bf16.mxu0 %v2968
    %4561 = vmatpush1.bf16.msra.mxu0 %v2967
    %4562 = vmatprep.subr.bf16.mxu0 0
    %4563 = vmatpush2.bf16.msra.mxu0 0
    %4564 = vmatprep.subr.bf16.mxu0 0
    %4565 = vmatpush2.bf16.msra.mxu0 0
    %4566 = vmatprep.subr.bf16.mxu0 0
    %4567 = vmatpush2.bf16.msra.mxu0 0
    %4568 = vmatprep.subr.bf16.mxu0 0
    %4569 = vmatpush2.bf16.msra.mxu0 0
    %4570 = vmatprep.subr.bf16.mxu0 0
    %4571 = vmatpush2.bf16.msra.mxu0 0
    %4572 = vmatprep.subr.bf16.mxu0 0
    %4573 = vmatpush2.bf16.msra.mxu0 0
    %4574 = vmatprep.subr.bf16.mxu0 0
    %4575 = vmatpush2.bf16.msra.mxu0 0
    %4576 = vmatprep.subr.bf16.mxu0 0
    %4577 = vmatpush2.bf16.msra.mxu0 0
    %4578 = vmatprep.mubr.bf16.mxu0 0
    %4579 = vmatmul.mubr.bf16.gmra.mxu0 %v4111
    %v4580 = vpop.f32.mrf.mxu0
    %v4581 = vadd.f32 %v4417, %v4580
    %v4582 = vpop.f32.mrf.mxu0
    %v4583 = vadd.f32 %v4419, %v4582
    %v4584 = vpop.f32.mrf.mxu0
    %v4585 = vpop.f32.mrf.mxu0
    %4586 = vdwg.mxu0
    %4587 = vmatprep.subr.bf16.mxu0 %v3026
    %4588 = vmatpush1.bf16.msra.mxu0 %v3025
    %4589 = vmatprep.subr.bf16.mxu0 %v3018
    %4590 = vmatpush1.bf16.msra.mxu0 %v3017
    %4591 = vmatprep.subr.bf16.mxu0 %v3010
    %4592 = vmatpush1.bf16.msra.mxu0 %v3009
    %4593 = vmatprep.subr.bf16.mxu0 %v3002
    %4594 = vmatpush1.bf16.msra.mxu0 %v3001
    %4595 = vmatprep.subr.bf16.mxu0 %v2994
    %4596 = vmatpush1.bf16.msra.mxu0 %v2993
    %4597 = vmatprep.subr.bf16.mxu0 %v2986
    %4598 = vmatpush1.bf16.msra.mxu0 %v2985
    %4599 = vmatprep.subr.bf16.mxu0 %v2978
    %4600 = vmatpush1.bf16.msra.mxu0 %v2977
    %4601 = vmatprep.subr.bf16.mxu0 %v2970
    %4602 = vmatpush1.bf16.msra.mxu0 %v2969
    %4603 = vmatprep.subr.bf16.mxu0 0
    %4604 = vmatpush2.bf16.msra.mxu0 0
    %4605 = vmatprep.subr.bf16.mxu0 0
    %4606 = vmatpush2.bf16.msra.mxu0 0
    %4607 = vmatprep.subr.bf16.mxu0 0
    %4608 = vmatpush2.bf16.msra.mxu0 0
    %4609 = vmatprep.subr.bf16.mxu0 0
    %4610 = vmatpush2.bf16.msra.mxu0 0
    %4611 = vmatprep.subr.bf16.mxu0 0
    %4612 = vmatpush2.bf16.msra.mxu0 0
    %4613 = vmatprep.subr.bf16.mxu0 0
    %4614 = vmatpush2.bf16.msra.mxu0 0
    %4615 = vmatprep.subr.bf16.mxu0 0
    %4616 = vmatpush2.bf16.msra.mxu0 0
    %4617 = vmatprep.subr.bf16.mxu0 0
    %4618 = vmatpush2.bf16.msra.mxu0 0
    %4619 = vmatprep.mubr.bf16.mxu0 0
    %4620 = vmatmul.mubr.bf16.gmra.mxu0 %v4111
    %v4621 = vpop.f32.mrf.mxu0
    %v4622 = vadd.f32 %v4458, %v4621
    %v4623 = vpop.f32.mrf.mxu0
    %v4624 = vadd.f32 %v4460, %v4623
    %v4625 = vpop.f32.mrf.mxu0
    %v4626 = vpop.f32.mrf.mxu0
    %4627 = vdwg.mxu0
    %v4628 = vadd.f32 %v4499, %v3259
    %v4629 = vadd.f32 %v4501, %v3263
    %v4630 = vadd.f32 %v4540, %v3267
    %v4631 = vadd.f32 %v4542, %v3271
    %v4632 = vadd.f32 %v4581, %v3275
    %v4633 = vadd.f32 %v4583, %v3279
    %v4634 = vadd.f32 %v4622, %v3283
    %v4635 = vadd.f32 %v4624, %v3287
    %v4636 = vmul.f32 %v4628, 0.5
    %v4637 = vmul.f32 %v4629, 0.5
    %v4638 = vmul.f32 %v4630, 0.5
    %v4639 = vmul.f32 %v4631, 0.5
    %v4640 = vmul.f32 %v4632, 0.5
    %v4641 = vmul.f32 %v4633, 0.5
    %v4642 = vtanh.pop %v4636
    %v4643 = vtanh.pop %v4637
    %v4644 = vtanh.pop %v4638
    %v4645 = vtanh.pop %v4639
    %v4646 = vtanh.pop %v4640
    %v4647 = vtanh.pop %v4641
    %v4648 = vmul.f32 %v4642, 0.5
    %v4649 = vmul.f32 %v4643, 0.5
    %v4650 = vmul.f32 %v4644, 0.5
    %v4651 = vmul.f32 %v4645, 0.5
    %v4652 = vmul.f32 %v4646, 0.5
    %v4653 = vmul.f32 %v4647, 0.5
    %v4654 = vadd.f32 %v4648, 0.5
    %v4655 = vadd.f32 %v4649, 0.5
    %v4656 = vadd.f32 %v4650, 0.5
    %v4657 = vadd.f32 %v4651, 0.5
    %v4658 = vadd.f32 %v4652, 0.5
    %v4659 = vadd.f32 %v4653, 0.5
    %v4660 = vtanh.pop %v4634
    %v4661 = vtanh.pop %v4635
    %v4662 = vmul.f32 %v4656, %v4000
    %v4663 = vmul.f32 %v4657, %v4001
    %v4664 = vmul.f32 %v4654, %v4660
    %v4665 = vmul.f32 %v4655, %v4661
    %v4666 = vadd.f32 %v4662, %v4664
    %v4667 = vadd.f32 %v4663, %v4665
    %v4668 = vtanh.pop %v4666
    %v4669 = vtanh.pop %v4667
    %v4670 = vmul.f32 %v4658, %v4668
    %v4671 = vmul.f32 %v4659, %v4669
    %v4672 = vpack.c.bf16 %v4110, %v4110
    %4673 = vmatprep.subr.bf16.mxu0 %v904
    %4674 = vmatpush1.bf16.msra.mxu0 %v903
    %4675 = vmatprep.subr.bf16.mxu0 %v900
    %4676 = vmatpush1.bf16.msra.mxu0 %v899
    %4677 = vmatprep.subr.bf16.mxu0 %v896
    %4678 = vmatpush1.bf16.msra.mxu0 %v895
    %4679 = vmatprep.subr.bf16.mxu0 %v892
    %4680 = vmatpush1.bf16.msra.mxu0 %v891
    %4681 = vmatprep.subr.bf16.mxu0 %v888
    %4682 = vmatpush1.bf16.msra.mxu0 %v887
    %4683 = vmatprep.subr.bf16.mxu0 %v884
    %4684 = vmatpush1.bf16.msra.mxu0 %v883
    %4685 = vmatprep.subr.bf16.mxu0 %v880
    %4686 = vmatpush1.bf16.msra.mxu0 %v879
    %4687 = vmatprep.subr.bf16.mxu0 %v876
    %4688 = vmatpush1.bf16.msra.mxu0 %v875
    %4689 = vmatprep.subr.bf16.mxu0 0
    %4690 = vmatpush2.bf16.msra.mxu0 0
    %4691 = vmatprep.subr.bf16.mxu0 0
    %4692 = vmatpush2.bf16.msra.mxu0 0
    %4693 = vmatprep.subr.bf16.mxu0 0
    %4694 = vmatpush2.bf16.msra.mxu0 0
    %4695 = vmatprep.subr.bf16.mxu0 0
    %4696 = vmatpush2.bf16.msra.mxu0 0
    %4697 = vmatprep.subr.bf16.mxu0 0
    %4698 = vmatpush2.bf16.msra.mxu0 0
    %4699 = vmatprep.subr.bf16.mxu0 0
    %4700 = vmatpush2.bf16.msra.mxu0 0
    %4701 = vmatprep.subr.bf16.mxu0 0
    %4702 = vmatpush2.bf16.msra.mxu0 0
    %4703 = vmatprep.subr.bf16.mxu0 0
    %4704 = vmatpush2.bf16.msra.mxu0 0
    %4705 = vmatprep.mubr.bf16.mxu0 0
    %4706 = vmatmul.mubr.bf16.gmra.mxu0 %v4672
    %v4707 = vpop.f32.mrf.mxu0
    %v4708 = vadd.f32 0.0, %v4707
    %v4709 = vpop.f32.mrf.mxu0
    %v4710 = vadd.f32 0.0, %v4709
    %v4711 = vpop.f32.mrf.mxu0
    %v4712 = vpop.f32.mrf.mxu0
    %4713 = vdwg.mxu0
    %4714 = vmatprep.subr.bf16.mxu0 %v906
    %4715 = vmatpush1.bf16.msra.mxu0 %v905
    %4716 = vmatprep.subr.bf16.mxu0 %v902
    %4717 = vmatpush1.bf16.msra.mxu0 %v901
    %4718 = vmatprep.subr.bf16.mxu0 %v898
    %4719 = vmatpush1.bf16.msra.mxu0 %v897
    %4720 = vmatprep.subr.bf16.mxu0 %v894
    %4721 = vmatpush1.bf16.msra.mxu0 %v893
    %4722 = vmatprep.subr.bf16.mxu0 %v890
    %4723 = vmatpush1.bf16.msra.mxu0 %v889
    %4724 = vmatprep.subr.bf16.mxu0 %v886
    %4725 = vmatpush1.bf16.msra.mxu0 %v885
    %4726 = vmatprep.subr.bf16.mxu0 %v882
    %4727 = vmatpush1.bf16.msra.mxu0 %v881
    %4728 = vmatprep.subr.bf16.mxu0 %v878
    %4729 = vmatpush1.bf16.msra.mxu0 %v877
    %4730 = vmatprep.subr.bf16.mxu0 0
    %4731 = vmatpush2.bf16.msra.mxu0 0
    %4732 = vmatprep.subr.bf16.mxu0 0
    %4733 = vmatpush2.bf16.msra.mxu0 0
    %4734 = vmatprep.subr.bf16.mxu0 0
    %4735 = vmatpush2.bf16.msra.mxu0 0
    %4736 = vmatprep.subr.bf16.mxu0 0
    %4737 = vmatpush2.bf16.msra.mxu0 0
    %4738 = vmatprep.subr.bf16.mxu0 0
    %4739 = vmatpush2.bf16.msra.mxu0 0
    %4740 = vmatprep.subr.bf16.mxu0 0
    %4741 = vmatpush2.bf16.msra.mxu0 0
    %4742 = vmatprep.subr.bf16.mxu0 0
    %4743 = vmatpush2.bf16.msra.mxu0 0
    %4744 = vmatprep.subr.bf16.mxu0 0
    %4745 = vmatpush2.bf16.msra.mxu0 0
    %4746 = vmatprep.mubr.bf16.mxu0 0
    %4747 = vmatmul.mubr.bf16.gmra.mxu0 %v4672
    %v4748 = vpop.f32.mrf.mxu0
    %v4749 = vadd.f32 0.0, %v4748
    %v4750 = vpop.f32.mrf.mxu0
    %v4751 = vadd.f32 0.0, %v4750
    %v4752 = vpop.f32.mrf.mxu0
    %v4753 = vpop.f32.mrf.mxu0
    %4754 = vdwg.mxu0
    %v4755 = vadd.f32 %v402, %v4708
    %v4756 = vadd.f32 %v404, %v4710
    %v4757 = vadd.f32 %v475, %v4749
    %v4758 = vadd.f32 %v477, %v4751
    %v4759 = vmul.f32 %v4755, 0.5
    %v4760 = vmul.f32 %v4756, 0.5
    %v4761 = vmul.f32 %v4757, 0.5
    %v4762 = vtanh.pop %v4759
    %v4763 = vtanh.pop %v4760
    %v4764 = vtanh.pop %v4761
    %v4765 = vmul.f32 %v4762, 0.5
    %v4766 = vmul.f32 %v4763, 0.5
    %v4767 = vmul.f32 %v4764, 0.5
    %v4768 = vadd.f32 %v4765, 0.5
    %v4769 = vadd.f32 %v4766, 0.5
    %v4770 = vadd.f32 %v4767, 0.5
    %v4771 = vtanh.pop %v4758
    %v4772 = vmul.f32 %v4769, %v4108
    %v4773 = vmul.f32 %v4768, %v4771
    %v4774 = vadd.f32 %v4772, %v4773
    %v4775 = vtanh.pop %v4774
    %v4776 = vmul.f32 %v4770, %v4775
    %v4777 = vpack.c.bf16 %v4297, %v4297
    %4778 = vmatprep.subr.bf16.mxu0 %v1273
    %4779 = vmatpush1.bf16.msra.mxu0 %v1272
    %4780 = vmatprep.subr.bf16.mxu0 %v1269
    %4781 = vmatpush1.bf16.msra.mxu0 %v1268
    %4782 = vmatprep.subr.bf16.mxu0 %v1265
    %4783 = vmatpush1.bf16.msra.mxu0 %v1264
    %4784 = vmatprep.subr.bf16.mxu0 %v1261
    %4785 = vmatpush1.bf16.msra.mxu0 %v1260
    %4786 = vmatprep.subr.bf16.mxu0 %v1257
    %4787 = vmatpush1.bf16.msra.mxu0 %v1256
    %4788 = vmatprep.subr.bf16.mxu0 %v1253
    %4789 = vmatpush1.bf16.msra.mxu0 %v1252
    %4790 = vmatprep.subr.bf16.mxu0 %v1249
    %4791 = vmatpush1.bf16.msra.mxu0 %v1248
    %4792 = vmatprep.subr.bf16.mxu0 %v1245
    %4793 = vmatpush1.bf16.msra.mxu0 %v1244
    %4794 = vmatprep.subr.bf16.mxu0 0
    %4795 = vmatpush2.bf16.msra.mxu0 0
    %4796 = vmatprep.subr.bf16.mxu0 0
    %4797 = vmatpush2.bf16.msra.mxu0 0
    %4798 = vmatprep.subr.bf16.mxu0 0
    %4799 = vmatpush2.bf16.msra.mxu0 0
    %4800 = vmatprep.subr.bf16.mxu0 0
    %4801 = vmatpush2.bf16.msra.mxu0 0
    %4802 = vmatprep.subr.bf16.mxu0 0
    %4803 = vmatpush2.bf16.msra.mxu0 0
    %4804 = vmatprep.subr.bf16.mxu0 0
    %4805 = vmatpush2.bf16.msra.mxu0 0
    %4806 = vmatprep.subr.bf16.mxu0 0
    %4807 = vmatpush2.bf16.msra.mxu0 0
    %4808 = vmatprep.subr.bf16.mxu0 0
    %4809 = vmatpush2.bf16.msra.mxu0 0
    %4810 = vmatprep.mubr.bf16.mxu0 0
    %4811 = vmatmul.mubr.bf16.gmra.mxu0 %v4777
    %v4812 = vpop.f32.mrf.mxu0
    %v4813 = vadd.f32 0.0, %v4812
    %v4814 = vpop.f32.mrf.mxu0
    %v4815 = vadd.f32 0.0, %v4814
    %v4816 = vpop.f32.mrf.mxu0
    %v4817 = vpop.f32.mrf.mxu0
    %4818 = vdwg.mxu0
    %4819 = vmatprep.subr.bf16.mxu0 %v1275
    %4820 = vmatpush1.bf16.msra.mxu0 %v1274
    %4821 = vmatprep.subr.bf16.mxu0 %v1271
    %4822 = vmatpush1.bf16.msra.mxu0 %v1270
    %4823 = vmatprep.subr.bf16.mxu0 %v1267
    %4824 = vmatpush1.bf16.msra.mxu0 %v1266
    %4825 = vmatprep.subr.bf16.mxu0 %v1263
    %4826 = vmatpush1.bf16.msra.mxu0 %v1262
    %4827 = vmatprep.subr.bf16.mxu0 %v1259
    %4828 = vmatpush1.bf16.msra.mxu0 %v1258
    %4829 = vmatprep.subr.bf16.mxu0 %v1255
    %4830 = vmatpush1.bf16.msra.mxu0 %v1254
    %4831 = vmatprep.subr.bf16.mxu0 %v1251
    %4832 = vmatpush1.bf16.msra.mxu0 %v1250
    %4833 = vmatprep.subr.bf16.mxu0 %v1247
    %4834 = vmatpush1.bf16.msra.mxu0 %v1246
    %4835 = vmatprep.subr.bf16.mxu0 0
    %4836 = vmatpush2.bf16.msra.mxu0 0
    %4837 = vmatprep.subr.bf16.mxu0 0
    %4838 = vmatpush2.bf16.msra.mxu0 0
    %4839 = vmatprep.subr.bf16.mxu0 0
    %4840 = vmatpush2.bf16.msra.mxu0 0
    %4841 = vmatprep.subr.bf16.mxu0 0
    %4842 = vmatpush2.bf16.msra.mxu0 0
    %4843 = vmatprep.subr.bf16.mxu0 0
    %4844 = vmatpush2.bf16.msra.mxu0 0
    %4845 = vmatprep.subr.bf16.mxu0 0
    %4846 = vmatpush2.bf16.msra.mxu0 0
    %4847 = vmatprep.subr.bf16.mxu0 0
    %4848 = vmatpush2.bf16.msra.mxu0 0
    %4849 = vmatprep.subr.bf16.mxu0 0
    %4850 = vmatpush2.bf16.msra.mxu0 0
    %4851 = vmatprep.mubr.bf16.mxu0 0
    %4852 = vmatmul.mubr.bf16.gmra.mxu0 %v4777
    %v4853 = vpop.f32.mrf.mxu0
    %v4854 = vadd.f32 0.0, %v4853
    %v4855 = vpop.f32.mrf.mxu0
    %v4856 = vadd.f32 0.0, %v4855
    %v4857 = vpop.f32.mrf.mxu0
    %v4858 = vpop.f32.mrf.mxu0
    %4859 = vdwg.mxu0
    %4860 = vmatprep.subr.bf16.mxu0 %v1515
    %4861 = vmatpush1.bf16.msra.mxu0 %v1514
    %4862 = vmatprep.subr.bf16.mxu0 %v1511
    %4863 = vmatpush1.bf16.msra.mxu0 %v1510
    %4864 = vmatprep.subr.bf16.mxu0 %v1507
    %4865 = vmatpush1.bf16.msra.mxu0 %v1506
    %4866 = vmatprep.subr.bf16.mxu0 %v1503
    %4867 = vmatpush1.bf16.msra.mxu0 %v1502
    %4868 = vmatprep.subr.bf16.mxu0 %v1499
    %4869 = vmatpush1.bf16.msra.mxu0 %v1498
    %4870 = vmatprep.subr.bf16.mxu0 %v1495
    %4871 = vmatpush1.bf16.msra.mxu0 %v1494
    %4872 = vmatprep.subr.bf16.mxu0 %v1491
    %4873 = vmatpush1.bf16.msra.mxu0 %v1490
    %4874 = vmatprep.subr.bf16.mxu0 %v1487
    %4875 = vmatpush1.bf16.msra.mxu0 %v1486
    %4876 = vmatprep.subr.bf16.mxu0 0
    %4877 = vmatpush2.bf16.msra.mxu0 0
    %4878 = vmatprep.subr.bf16.mxu0 0
    %4879 = vmatpush2.bf16.msra.mxu0 0
    %4880 = vmatprep.subr.bf16.mxu0 0
    %4881 = vmatpush2.bf16.msra.mxu0 0
    %4882 = vmatprep.subr.bf16.mxu0 0
    %4883 = vmatpush2.bf16.msra.mxu0 0
    %4884 = vmatprep.subr.bf16.mxu0 0
    %4885 = vmatpush2.bf16.msra.mxu0 0
    %4886 = vmatprep.subr.bf16.mxu0 0
    %4887 = vmatpush2.bf16.msra.mxu0 0
    %4888 = vmatprep.subr.bf16.mxu0 0
    %4889 = vmatpush2.bf16.msra.mxu0 0
    %4890 = vmatprep.subr.bf16.mxu0 0
    %4891 = vmatpush2.bf16.msra.mxu0 0
    %4892 = vmatprep.mubr.bf16.mxu0 0
    %4893 = vmatmul.mubr.bf16.gmra.mxu0 %v4672
    %v4894 = vpop.f32.mrf.mxu0
    %v4895 = vadd.f32 %v4813, %v4894
    %v4896 = vpop.f32.mrf.mxu0
    %v4897 = vadd.f32 %v4815, %v4896
    %v4898 = vpop.f32.mrf.mxu0
    %v4899 = vpop.f32.mrf.mxu0
    %4900 = vdwg.mxu0
    %4901 = vmatprep.subr.bf16.mxu0 %v1517
    %4902 = vmatpush1.bf16.msra.mxu0 %v1516
    %4903 = vmatprep.subr.bf16.mxu0 %v1513
    %4904 = vmatpush1.bf16.msra.mxu0 %v1512
    %4905 = vmatprep.subr.bf16.mxu0 %v1509
    %4906 = vmatpush1.bf16.msra.mxu0 %v1508
    %4907 = vmatprep.subr.bf16.mxu0 %v1505
    %4908 = vmatpush1.bf16.msra.mxu0 %v1504
    %4909 = vmatprep.subr.bf16.mxu0 %v1501
    %4910 = vmatpush1.bf16.msra.mxu0 %v1500
    %4911 = vmatprep.subr.bf16.mxu0 %v1497
    %4912 = vmatpush1.bf16.msra.mxu0 %v1496
    %4913 = vmatprep.subr.bf16.mxu0 %v1493
    %4914 = vmatpush1.bf16.msra.mxu0 %v1492
    %4915 = vmatprep.subr.bf16.mxu0 %v1489
    %4916 = vmatpush1.bf16.msra.mxu0 %v1488
    %4917 = vmatprep.subr.bf16.mxu0 0
    %4918 = vmatpush2.bf16.msra.mxu0 0
    %4919 = vmatprep.subr.bf16.mxu0 0
    %4920 = vmatpush2.bf16.msra.mxu0 0
    %4921 = vmatprep.subr.bf16.mxu0 0
    %4922 = vmatpush2.bf16.msra.mxu0 0
    %4923 = vmatprep.subr.bf16.mxu0 0
    %4924 = vmatpush2.bf16.msra.mxu0 0
    %4925 = vmatprep.subr.bf16.mxu0 0
    %4926 = vmatpush2.bf16.msra.mxu0 0
    %4927 = vmatprep.subr.bf16.mxu0 0
    %4928 = vmatpush2.bf16.msra.mxu0 0
    %4929 = vmatprep.subr.bf16.mxu0 0
    %4930 = vmatpush2.bf16.msra.mxu0 0
    %4931 = vmatprep.subr.bf16.mxu0 0
    %4932 = vmatpush2.bf16.msra.mxu0 0
    %4933 = vmatprep.mubr.bf16.mxu0 0
    %4934 = vmatmul.mubr.bf16.gmra.mxu0 %v4672
    %v4935 = vpop.f32.mrf.mxu0
    %v4936 = vadd.f32 %v4854, %v4935
    %v4937 = vpop.f32.mrf.mxu0
    %v4938 = vadd.f32 %v4856, %v4937
    %v4939 = vpop.f32.mrf.mxu0
    %v4940 = vpop.f32.mrf.mxu0
    %4941 = vdwg.mxu0
    %v4942 = vadd.f32 %v4895, %v1636
    %v4943 = vadd.f32 %v4897, %v1640
    %v4944 = vadd.f32 %v4936, %v1644
    %v4945 = vadd.f32 %v4938, %v1648
    %v4946 = vmul.f32 %v4942, 0.5
    %v4947 = vmul.f32 %v4943, 0.5
    %v4948 = vmul.f32 %v4944, 0.5
    %v4949 = vtanh.pop %v4946
    %v4950 = vtanh.pop %v4947
    %v4951 = vtanh.pop %v4948
    %v4952 = vmul.f32 %v4949, 0.5
    %v4953 = vmul.f32 %v4950, 0.5
    %v4954 = vmul.f32 %v4951, 0.5
    %v4955 = vadd.f32 %v4952, 0.5
    %v4956 = vadd.f32 %v4953, 0.5
    %v4957 = vadd.f32 %v4954, 0.5
    %v4958 = vtanh.pop %v4945
    %v4959 = vmul.f32 %v4956, %v4295
    %v4960 = vmul.f32 %v4955, %v4958
    %v4961 = vadd.f32 %v4959, %v4960
    %v4962 = vtanh.pop %v4961
    %v4963 = vmul.f32 %v4957, %v4962
    %v4964 = vpack.c.bf16 %v4670, %v4670
    %v4965 = vpack.c.bf16 %v4671, %v4671
    %4966 = vmatprep.subr.bf16.mxu0 %v2408
    %4967 = vmatpush1.bf16.msra.mxu0 %v2407
    %4968 = vmatprep.subr.bf16.mxu0 %v2400
    %4969 = vmatpush1.bf16.msra.mxu0 %v2399
    %4970 = vmatprep.subr.bf16.mxu0 %v2392
    %4971 = vmatpush1.bf16.msra.mxu0 %v2391
    %4972 = vmatprep.subr.bf16.mxu0 %v2384
    %4973 = vmatpush1.bf16.msra.mxu0 %v2383
    %4974 = vmatprep.subr.bf16.mxu0 %v2376
    %4975 = vmatpush1.bf16.msra.mxu0 %v2375
    %4976 = vmatprep.subr.bf16.mxu0 %v2368
    %4977 = vmatpush1.bf16.msra.mxu0 %v2367
    %4978 = vmatprep.subr.bf16.mxu0 %v2360
    %4979 = vmatpush1.bf16.msra.mxu0 %v2359
    %4980 = vmatprep.subr.bf16.mxu0 %v2352
    %4981 = vmatpush1.bf16.msra.mxu0 %v2351
    %4982 = vmatprep.subr.bf16.mxu0 %v2472
    %4983 = vmatpush2.bf16.msra.mxu0 %v2471
    %4984 = vmatprep.subr.bf16.mxu0 %v2464
    %4985 = vmatpush2.bf16.msra.mxu0 %v2463
    %4986 = vmatprep.subr.bf16.mxu0 %v2456
    %4987 = vmatpush2.bf16.msra.mxu0 %v2455
    %4988 = vmatprep.subr.bf16.mxu0 %v2448
    %4989 = vmatpush2.bf16.msra.mxu0 %v2447
    %4990 = vmatprep.subr.bf16.mxu0 %v2440
    %4991 = vmatpush2.bf16.msra.mxu0 %v2439
    %4992 = vmatprep.subr.bf16.mxu0 %v2432
    %4993 = vmatpush2.bf16.msra.mxu0 %v2431
    %4994 = vmatprep.subr.bf16.mxu0 %v2424
    %4995 = vmatpush2.bf16.msra.mxu0 %v2423
    %4996 = vmatprep.subr.bf16.mxu0 %v2416
    %4997 = vmatpush2.bf16.msra.mxu0 %v2415
    %4998 = vmatprep.mubr.bf16.mxu0 %v4965
    %4999 = vmatmul.mubr.bf16.gmra.mxu0 %v4964
    %v5000 = vpop.f32.mrf.mxu0
    %v5001 = vadd.f32 0.0, %v5000
    %v5002 = vpop.f32.mrf.mxu0
    %v5003 = vadd.f32 0.0, %v5002
    %v5004 = vpop.f32.mrf.mxu0
    %v5005 = vpop.f32.mrf.mxu0
    %5006 = vdwg.mxu0
    %5007 = vmatprep.subr.bf16.mxu0 %v2410
    %5008 = vmatpush1.bf16.msra.mxu0 %v2409
    %5009 = vmatprep.subr.bf16.mxu0 %v2402
    %5010 = vmatpush1.bf16.msra.mxu0 %v2401
    %5011 = vmatprep.subr.bf16.mxu0 %v2394
    %5012 = vmatpush1.bf16.msra.mxu0 %v2393
    %5013 = vmatprep.subr.bf16.mxu0 %v2386
    %5014 = vmatpush1.bf16.msra.mxu0 %v2385
    %5015 = vmatprep.subr.bf16.mxu0 %v2378
    %5016 = vmatpush1.bf16.msra.mxu0 %v2377
    %5017 = vmatprep.subr.bf16.mxu0 %v2370
    %5018 = vmatpush1.bf16.msra.mxu0 %v2369
    %5019 = vmatprep.subr.bf16.mxu0 %v2362
    %5020 = vmatpush1.bf16.msra.mxu0 %v2361
    %5021 = vmatprep.subr.bf16.mxu0 %v2354
    %5022 = vmatpush1.bf16.msra.mxu0 %v2353
    %5023 = vmatprep.subr.bf16.mxu0 %v2474
    %5024 = vmatpush2.bf16.msra.mxu0 %v2473
    %5025 = vmatprep.subr.bf16.mxu0 %v2466
    %5026 = vmatpush2.bf16.msra.mxu0 %v2465
    %5027 = vmatprep.subr.bf16.mxu0 %v2458
    %5028 = vmatpush2.bf16.msra.mxu0 %v2457
    %5029 = vmatprep.subr.bf16.mxu0 %v2450
    %5030 = vmatpush2.bf16.msra.mxu0 %v2449
    %5031 = vmatprep.subr.bf16.mxu0 %v2442
    %5032 = vmatpush2.bf16.msra.mxu0 %v2441
    %5033 = vmatprep.subr.bf16.mxu0 %v2434
    %5034 = vmatpush2.bf16.msra.mxu0 %v2433
    %5035 = vmatprep.subr.bf16.mxu0 %v2426
    %5036 = vmatpush2.bf16.msra.mxu0 %v2425
    %5037 = vmatprep.subr.bf16.mxu0 %v2418
    %5038 = vmatpush2.bf16.msra.mxu0 %v2417
    %5039 = vmatprep.mubr.bf16.mxu0 %v4965
    %5040 = vmatmul.mubr.bf16.gmra.mxu0 %v4964
    %v5041 = vpop.f32.mrf.mxu0
    %v5042 = vadd.f32 0.0, %v5041
    %v5043 = vpop.f32.mrf.mxu0
    %v5044 = vadd.f32 0.0, %v5043
    %v5045 = vpop.f32.mrf.mxu0
    %v5046 = vpop.f32.mrf.mxu0
    %5047 = vdwg.mxu0
    %5048 = vmatprep.subr.bf16.mxu0 %v2412
    %5049 = vmatpush1.bf16.msra.mxu0 %v2411
    %5050 = vmatprep.subr.bf16.mxu0 %v2404
    %5051 = vmatpush1.bf16.msra.mxu0 %v2403
    %5052 = vmatprep.subr.bf16.mxu0 %v2396
    %5053 = vmatpush1.bf16.msra.mxu0 %v2395
    %5054 = vmatprep.subr.bf16.mxu0 %v2388
    %5055 = vmatpush1.bf16.msra.mxu0 %v2387
    %5056 = vmatprep.subr.bf16.mxu0 %v2380
    %5057 = vmatpush1.bf16.msra.mxu0 %v2379
    %5058 = vmatprep.subr.bf16.mxu0 %v2372
    %5059 = vmatpush1.bf16.msra.mxu0 %v2371
    %5060 = vmatprep.subr.bf16.mxu0 %v2364
    %5061 = vmatpush1.bf16.msra.mxu0 %v2363
    %5062 = vmatprep.subr.bf16.mxu0 %v2356
    %5063 = vmatpush1.bf16.msra.mxu0 %v2355
    %5064 = vmatprep.subr.bf16.mxu0 %v2476
    %5065 = vmatpush2.bf16.msra.mxu0 %v2475
    %5066 = vmatprep.subr.bf16.mxu0 %v2468
    %5067 = vmatpush2.bf16.msra.mxu0 %v2467
    %5068 = vmatprep.subr.bf16.mxu0 %v2460
    %5069 = vmatpush2.bf16.msra.mxu0 %v2459
    %5070 = vmatprep.subr.bf16.mxu0 %v2452
    %5071 = vmatpush2.bf16.msra.mxu0 %v2451
    %5072 = vmatprep.subr.bf16.mxu0 %v2444
    %5073 = vmatpush2.bf16.msra.mxu0 %v2443
    %5074 = vmatprep.subr.bf16.mxu0 %v2436
    %5075 = vmatpush2.bf16.msra.mxu0 %v2435
    %5076 = vmatprep.subr.bf16.mxu0 %v2428
    %5077 = vmatpush2.bf16.msra.mxu0 %v2427
    %5078 = vmatprep.subr.bf16.mxu0 %v2420
    %5079 = vmatpush2.bf16.msra.mxu0 %v2419
    %5080 = vmatprep.mubr.bf16.mxu0 %v4965
    %5081 = vmatmul.mubr.bf16.gmra.mxu0 %v4964
    %v5082 = vpop.f32.mrf.mxu0
    %v5083 = vadd.f32 0.0, %v5082
    %v5084 = vpop.f32.mrf.mxu0
    %v5085 = vadd.f32 0.0, %v5084
    %v5086 = vpop.f32.mrf.mxu0
    %v5087 = vpop.f32.mrf.mxu0
    %5088 = vdwg.mxu0
    %5089 = vmatprep.subr.bf16.mxu0 %v2414
    %5090 = vmatpush1.bf16.msra.mxu0 %v2413
    %5091 = vmatprep.subr.bf16.mxu0 %v2406
    %5092 = vmatpush1.bf16.msra.mxu0 %v2405
    %5093 = vmatprep.subr.bf16.mxu0 %v2398
    %5094 = vmatpush1.bf16.msra.mxu0 %v2397
    %5095 = vmatprep.subr.bf16.mxu0 %v2390
    %5096 = vmatpush1.bf16.msra.mxu0 %v2389
    %5097 = vmatprep.subr.bf16.mxu0 %v2382
    %5098 = vmatpush1.bf16.msra.mxu0 %v2381
    %5099 = vmatprep.subr.bf16.mxu0 %v2374
    %5100 = vmatpush1.bf16.msra.mxu0 %v2373
    %5101 = vmatprep.subr.bf16.mxu0 %v2366
    %5102 = vmatpush1.bf16.msra.mxu0 %v2365
    %5103 = vmatprep.subr.bf16.mxu0 %v2358
    %5104 = vmatpush1.bf16.msra.mxu0 %v2357
    %5105 = vmatprep.subr.bf16.mxu0 %v2478
    %5106 = vmatpush2.bf16.msra.mxu0 %v2477
    %5107 = vmatprep.subr.bf16.mxu0 %v2470
    %5108 = vmatpush2.bf16.msra.mxu0 %v2469
    %5109 = vmatprep.subr.bf16.mxu0 %v2462
    %5110 = vmatpush2.bf16.msra.mxu0 %v2461
    %5111 = vmatprep.subr.bf16.mxu0 %v2454
    %5112 = vmatpush2.bf16.msra.mxu0 %v2453
    %5113 = vmatprep.subr.bf16.mxu0 %v2446
    %5114 = vmatpush2.bf16.msra.mxu0 %v2445
    %5115 = vmatprep.subr.bf16.mxu0 %v2438
    %5116 = vmatpush2.bf16.msra.mxu0 %v2437
    %5117 = vmatprep.subr.bf16.mxu0 %v2430
    %5118 = vmatpush2.bf16.msra.mxu0 %v2429
    %5119 = vmatprep.subr.bf16.mxu0 %v2422
    %5120 = vmatpush2.bf16.msra.mxu0 %v2421
    %5121 = vmatprep.mubr.bf16.mxu0 %v4965
    %5122 = vmatmul.mubr.bf16.gmra.mxu0 %v4964
    %v5123 = vpop.f32.mrf.mxu0
    %v5124 = vadd.f32 0.0, %v5123
    %v5125 = vpop.f32.mrf.mxu0
    %v5126 = vadd.f32 0.0, %v5125
    %v5127 = vpop.f32.mrf.mxu0
    %v5128 = vpop.f32.mrf.mxu0
    %5129 = vdwg.mxu0
    %5130 = vmatprep.subr.bf16.mxu0 %v3020
    %5131 = vmatpush1.bf16.msra.mxu0 %v3019
    %5132 = vmatprep.subr.bf16.mxu0 %v3012
    %5133 = vmatpush1.bf16.msra.mxu0 %v3011
    %5134 = vmatprep.subr.bf16.mxu0 %v3004
    %5135 = vmatpush1.bf16.msra.mxu0 %v3003
    %5136 = vmatprep.subr.bf16.mxu0 %v2996
    %5137 = vmatpush1.bf16.msra.mxu0 %v2995
    %5138 = vmatprep.subr.bf16.mxu0 %v2988
    %5139 = vmatpush1.bf16.msra.mxu0 %v2987
    %5140 = vmatprep.subr.bf16.mxu0 %v2980
    %5141 = vmatpush1.bf16.msra.mxu0 %v2979
    %5142 = vmatprep.subr.bf16.mxu0 %v2972
    %5143 = vmatpush1.bf16.msra.mxu0 %v2971
    %5144 = vmatprep.subr.bf16.mxu0 %v2964
    %5145 = vmatpush1.bf16.msra.mxu0 %v2963
    %5146 = vmatprep.subr.bf16.mxu0 0
    %5147 = vmatpush2.bf16.msra.mxu0 0
    %5148 = vmatprep.subr.bf16.mxu0 0
    %5149 = vmatpush2.bf16.msra.mxu0 0
    %5150 = vmatprep.subr.bf16.mxu0 0
    %5151 = vmatpush2.bf16.msra.mxu0 0
    %5152 = vmatprep.subr.bf16.mxu0 0
    %5153 = vmatpush2.bf16.msra.mxu0 0
    %5154 = vmatprep.subr.bf16.mxu0 0
    %5155 = vmatpush2.bf16.msra.mxu0 0
    %5156 = vmatprep.subr.bf16.mxu0 0
    %5157 = vmatpush2.bf16.msra.mxu0 0
    %5158 = vmatprep.subr.bf16.mxu0 0
    %5159 = vmatpush2.bf16.msra.mxu0 0
    %5160 = vmatprep.subr.bf16.mxu0 0
    %5161 = vmatpush2.bf16.msra.mxu0 0
    %5162 = vmatprep.mubr.bf16.mxu0 0
    %5163 = vmatmul.mubr.bf16.gmra.mxu0 %v4777
    %v5164 = vpop.f32.mrf.mxu0
    %v5165 = vadd.f32 %v5001, %v5164
    %v5166 = vpop.f32.mrf.mxu0
    %v5167 = vadd.f32 %v5003, %v5166
    %v5168 = vpop.f32.mrf.mxu0
    %v5169 = vpop.f32.mrf.mxu0
    %5170 = vdwg.mxu0
    %5171 = vmatprep.subr.bf16.mxu0 %v3022
    %5172 = vmatpush1.bf16.msra.mxu0 %v3021
    %5173 = vmatprep.subr.bf16.mxu0 %v3014
    %5174 = vmatpush1.bf16.msra.mxu0 %v3013
    %5175 = vmatprep.subr.bf16.mxu0 %v3006
    %5176 = vmatpush1.bf16.msra.mxu0 %v3005
    %5177 = vmatprep.subr.bf16.mxu0 %v2998
    %5178 = vmatpush1.bf16.msra.mxu0 %v2997
    %5179 = vmatprep.subr.bf16.mxu0 %v2990
    %5180 = vmatpush1.bf16.msra.mxu0 %v2989
    %5181 = vmatprep.subr.bf16.mxu0 %v2982
    %5182 = vmatpush1.bf16.msra.mxu0 %v2981
    %5183 = vmatprep.subr.bf16.mxu0 %v2974
    %5184 = vmatpush1.bf16.msra.mxu0 %v2973
    %5185 = vmatprep.subr.bf16.mxu0 %v2966
    %5186 = vmatpush1.bf16.msra.mxu0 %v2965
    %5187 = vmatprep.subr.bf16.mxu0 0
    %5188 = vmatpush2.bf16.msra.mxu0 0
    %5189 = vmatprep.subr.bf16.mxu0 0
    %5190 = vmatpush2.bf16.msra.mxu0 0
    %5191 = vmatprep.subr.bf16.mxu0 0
    %5192 = vmatpush2.bf16.msra.mxu0 0
    %5193 = vmatprep.subr.bf16.mxu0 0
    %5194 = vmatpush2.bf16.msra.mxu0 0
    %5195 = vmatprep.subr.bf16.mxu0 0
    %5196 = vmatpush2.bf16.msra.mxu0 0
    %5197 = vmatprep.subr.bf16.mxu0 0
    %5198 = vmatpush2.bf16.msra.mxu0 0
    %5199 = vmatprep.subr.bf16.mxu0 0
    %5200 = vmatpush2.bf16.msra.mxu0 0
    %5201 = vmatprep.subr.bf16.mxu0 0
    %5202 = vmatpush2.bf16.msra.mxu0 0
    %5203 = vmatprep.mubr.bf16.mxu0 0
    %5204 = vmatmul.mubr.bf16.gmra.mxu0 %v4777
    %v5205 = vpop.f32.mrf.mxu0
    %v5206 = vadd.f32 %v5042, %v5205
    %v5207 = vpop.f32.mrf.mxu0
    %v5208 = vadd.f32 %v5044, %v5207
    %v5209 = vpop.f32.mrf.mxu0
    %v5210 = vpop.f32.mrf.mxu0
    %5211 = vdwg.mxu0
    %5212 = vmatprep.subr.bf16.mxu0 %v3024
    %5213 = vmatpush1.bf16.msra.mxu0 %v3023
    %5214 = vmatprep.subr.bf16.mxu0 %v3016
    %5215 = vmatpush1.bf16.msra.mxu0 %v3015
    %5216 = vmatprep.subr.bf16.mxu0 %v3008
    %5217 = vmatpush1.bf16.msra.mxu0 %v3007
    %5218 = vmatprep.subr.bf16.mxu0 %v3000
    %5219 = vmatpush1.bf16.msra.mxu0 %v2999
    %5220 = vmatprep.subr.bf16.mxu0 %v2992
    %5221 = vmatpush1.bf16.msra.mxu0 %v2991
    %5222 = vmatprep.subr.bf16.mxu0 %v2984
    %5223 = vmatpush1.bf16.msra.mxu0 %v2983
    %5224 = vmatprep.subr.bf16.mxu0 %v2976
    %5225 = vmatpush1.bf16.msra.mxu0 %v2975
    %5226 = vmatprep.subr.bf16.mxu0 %v2968
    %5227 = vmatpush1.bf16.msra.mxu0 %v2967
    %5228 = vmatprep.subr.bf16.mxu0 0
    %5229 = vmatpush2.bf16.msra.mxu0 0
    %5230 = vmatprep.subr.bf16.mxu0 0
    %5231 = vmatpush2.bf16.msra.mxu0 0
    %5232 = vmatprep.subr.bf16.mxu0 0
    %5233 = vmatpush2.bf16.msra.mxu0 0
    %5234 = vmatprep.subr.bf16.mxu0 0
    %5235 = vmatpush2.bf16.msra.mxu0 0
    %5236 = vmatprep.subr.bf16.mxu0 0
    %5237 = vmatpush2.bf16.msra.mxu0 0
    %5238 = vmatprep.subr.bf16.mxu0 0
    %5239 = vmatpush2.bf16.msra.mxu0 0
    %5240 = vmatprep.subr.bf16.mxu0 0
    %5241 = vmatpush2.bf16.msra.mxu0 0
    %5242 = vmatprep.subr.bf16.mxu0 0
    %5243 = vmatpush2.bf16.msra.mxu0 0
    %5244 = vmatprep.mubr.bf16.mxu0 0
    %5245 = vmatmul.mubr.bf16.gmra.mxu0 %v4777
    %v5246 = vpop.f32.mrf.mxu0
    %v5247 = vadd.f32 %v5083, %v5246
    %v5248 = vpop.f32.mrf.mxu0
    %v5249 = vadd.f32 %v5085, %v5248
    %v5250 = vpop.f32.mrf.mxu0
    %v5251 = vpop.f32.mrf.mxu0
    %5252 = vdwg.mxu0
    %5253 = vmatprep.subr.bf16.mxu0 %v3026
    %5254 = vmatpush1.bf16.msra.mxu0 %v3025
    %5255 = vmatprep.subr.bf16.mxu0 %v3018
    %5256 = vmatpush1.bf16.msra.mxu0 %v3017
    %5257 = vmatprep.subr.bf16.mxu0 %v3010
    %5258 = vmatpush1.bf16.msra.mxu0 %v3009
    %5259 = vmatprep.subr.bf16.mxu0 %v3002
    %5260 = vmatpush1.bf16.msra.mxu0 %v3001
    %5261 = vmatprep.subr.bf16.mxu0 %v2994
    %5262 = vmatpush1.bf16.msra.mxu0 %v2993
    %5263 = vmatprep.subr.bf16.mxu0 %v2986
    %5264 = vmatpush1.bf16.msra.mxu0 %v2985
    %5265 = vmatprep.subr.bf16.mxu0 %v2978
    %5266 = vmatpush1.bf16.msra.mxu0 %v2977
    %5267 = vmatprep.subr.bf16.mxu0 %v2970
    %5268 = vmatpush1.bf16.msra.mxu0 %v2969
    %5269 = vmatprep.subr.bf16.mxu0 0
    %5270 = vmatpush2.bf16.msra.mxu0 0
    %5271 = vmatprep.subr.bf16.mxu0 0
    %5272 = vmatpush2.bf16.msra.mxu0 0
    %5273 = vmatprep.subr.bf16.mxu0 0
    %5274 = vmatpush2.bf16.msra.mxu0 0
    %5275 = vmatprep.subr.bf16.mxu0 0
    %5276 = vmatpush2.bf16.msra.mxu0 0
    %5277 = vmatprep.subr.bf16.mxu0 0
    %5278 = vmatpush2.bf16.msra.mxu0 0
    %5279 = vmatprep.subr.bf16.mxu0 0
    %5280 = vmatpush2.bf16.msra.mxu0 0
    %5281 = vmatprep.subr.bf16.mxu0 0
    %5282 = vmatpush2.bf16.msra.mxu0 0
    %5283 = vmatprep.subr.bf16.mxu0 0
    %5284 = vmatpush2.bf16.msra.mxu0 0
    %5285 = vmatprep.mubr.bf16.mxu0 0
    %5286 = vmatmul.mubr.bf16.gmra.mxu0 %v4777
    %v5287 = vpop.f32.mrf.mxu0
    %v5288 = vadd.f32 %v5124, %v5287
    %v5289 = vpop.f32.mrf.mxu0
    %v5290 = vadd.f32 %v5126, %v5289
    %v5291 = vpop.f32.mrf.mxu0
    %v5292 = vpop.f32.mrf.mxu0
    %5293 = vdwg.mxu0
    %v5294 = vadd.f32 %v5165, %v3259
    %v5295 = vadd.f32 %v5167, %v3263
    %v5296 = vadd.f32 %v5206, %v3267
    %v5297 = vadd.f32 %v5208, %v3271
    %v5298 = vadd.f32 %v5247, %v3275
    %v5299 = vadd.f32 %v5249, %v3279
    %v5300 = vadd.f32 %v5288, %v3283
    %v5301 = vadd.f32 %v5290, %v3287
    %v5302 = vmul.f32 %v5294, 0.5
    %v5303 = vmul.f32 %v5295, 0.5
    %v5304 = vmul.f32 %v5296, 0.5
    %v5305 = vmul.f32 %v5297, 0.5
    %v5306 = vmul.f32 %v5298, 0.5
    %v5307 = vmul.f32 %v5299, 0.5
    %v5308 = vtanh.pop %v5302
    %v5309 = vtanh.pop %v5303
    %v5310 = vtanh.pop %v5304
    %v5311 = vtanh.pop %v5305
    %v5312 = vtanh.pop %v5306
    %v5313 = vtanh.pop %v5307
    %v5314 = vmul.f32 %v5308, 0.5
    %v5315 = vmul.f32 %v5309, 0.5
    %v5316 = vmul.f32 %v5310, 0.5
    %v5317 = vmul.f32 %v5311, 0.5
    %v5318 = vmul.f32 %v5312, 0.5
    %v5319 = vmul.f32 %v5313, 0.5
    %v5320 = vadd.f32 %v5314, 0.5
    %v5321 = vadd.f32 %v5315, 0.5
    %v5322 = vadd.f32 %v5316, 0.5
    %v5323 = vadd.f32 %v5317, 0.5
    %v5324 = vadd.f32 %v5318, 0.5
    %v5325 = vadd.f32 %v5319, 0.5
    %v5326 = vtanh.pop %v5300
    %v5327 = vtanh.pop %v5301
    %v5328 = vmul.f32 %v5322, %v4666
    %v5329 = vmul.f32 %v5323, %v4667
    %v5330 = vmul.f32 %v5320, %v5326
    %v5331 = vmul.f32 %v5321, %v5327
    %v5332 = vadd.f32 %v5328, %v5330
    %v5333 = vadd.f32 %v5329, %v5331
    %v5334 = vtanh.pop %v5332
    %v5335 = vtanh.pop %v5333
    %v5336 = vmul.f32 %v5324, %v5334
    %v5337 = vmul.f32 %v5325, %v5335
    %v5338 = vpack.c.bf16 %v4776, %v4776
    %5339 = vmatprep.subr.bf16.mxu0 %v904
    %5340 = vmatpush1.bf16.msra.mxu0 %v903
    %5341 = vmatprep.subr.bf16.mxu0 %v900
    %5342 = vmatpush1.bf16.msra.mxu0 %v899
    %5343 = vmatprep.subr.bf16.mxu0 %v896
    %5344 = vmatpush1.bf16.msra.mxu0 %v895
    %5345 = vmatprep.subr.bf16.mxu0 %v892
    %5346 = vmatpush1.bf16.msra.mxu0 %v891
    %5347 = vmatprep.subr.bf16.mxu0 %v888
    %5348 = vmatpush1.bf16.msra.mxu0 %v887
    %5349 = vmatprep.subr.bf16.mxu0 %v884
    %5350 = vmatpush1.bf16.msra.mxu0 %v883
    %5351 = vmatprep.subr.bf16.mxu0 %v880
    %5352 = vmatpush1.bf16.msra.mxu0 %v879
    %5353 = vmatprep.subr.bf16.mxu0 %v876
    %5354 = vmatpush1.bf16.msra.mxu0 %v875
    %5355 = vmatprep.subr.bf16.mxu0 0
    %5356 = vmatpush2.bf16.msra.mxu0 0
    %5357 = vmatprep.subr.bf16.mxu0 0
    %5358 = vmatpush2.bf16.msra.mxu0 0
    %5359 = vmatprep.subr.bf16.mxu0 0
    %5360 = vmatpush2.bf16.msra.mxu0 0
    %5361 = vmatprep.subr.bf16.mxu0 0
    %5362 = vmatpush2.bf16.msra.mxu0 0
    %5363 = vmatprep.subr.bf16.mxu0 0
    %5364 = vmatpush2.bf16.msra.mxu0 0
    %5365 = vmatprep.subr.bf16.mxu0 0
    %5366 = vmatpush2.bf16.msra.mxu0 0
    %5367 = vmatprep.subr.bf16.mxu0 0
    %5368 = vmatpush2.bf16.msra.mxu0 0
    %5369 = vmatprep.subr.bf16.mxu0 0
    %5370 = vmatpush2.bf16.msra.mxu0 0
    %5371 = vmatprep.mubr.bf16.mxu0 0
    %5372 = vmatmul.mubr.bf16.gmra.mxu0 %v5338
    %v5373 = vpop.f32.mrf.mxu0
    %v5374 = vadd.f32 0.0, %v5373
    %v5375 = vpop.f32.mrf.mxu0
    %v5376 = vadd.f32 0.0, %v5375
    %v5377 = vpop.f32.mrf.mxu0
    %v5378 = vpop.f32.mrf.mxu0
    %5379 = vdwg.mxu0
    %5380 = vmatprep.subr.bf16.mxu0 %v906
    %5381 = vmatpush1.bf16.msra.mxu0 %v905
    %5382 = vmatprep.subr.bf16.mxu0 %v902
    %5383 = vmatpush1.bf16.msra.mxu0 %v901
    %5384 = vmatprep.subr.bf16.mxu0 %v898
    %5385 = vmatpush1.bf16.msra.mxu0 %v897
    %5386 = vmatprep.subr.bf16.mxu0 %v894
    %5387 = vmatpush1.bf16.msra.mxu0 %v893
    %5388 = vmatprep.subr.bf16.mxu0 %v890
    %5389 = vmatpush1.bf16.msra.mxu0 %v889
    %5390 = vmatprep.subr.bf16.mxu0 %v886
    %5391 = vmatpush1.bf16.msra.mxu0 %v885
    %5392 = vmatprep.subr.bf16.mxu0 %v882
    %5393 = vmatpush1.bf16.msra.mxu0 %v881
    %5394 = vmatprep.subr.bf16.mxu0 %v878
    %5395 = vmatpush1.bf16.msra.mxu0 %v877
    %5396 = vmatprep.subr.bf16.mxu0 0
    %5397 = vmatpush2.bf16.msra.mxu0 0
    %5398 = vmatprep.subr.bf16.mxu0 0
    %5399 = vmatpush2.bf16.msra.mxu0 0
    %5400 = vmatprep.subr.bf16.mxu0 0
    %5401 = vmatpush2.bf16.msra.mxu0 0
    %5402 = vmatprep.subr.bf16.mxu0 0
    %5403 = vmatpush2.bf16.msra.mxu0 0
    %5404 = vmatprep.subr.bf16.mxu0 0
    %5405 = vmatpush2.bf16.msra.mxu0 0
    %5406 = vmatprep.subr.bf16.mxu0 0
    %5407 = vmatpush2.bf16.msra.mxu0 0
    %5408 = vmatprep.subr.bf16.mxu0 0
    %5409 = vmatpush2.bf16.msra.mxu0 0
    %5410 = vmatprep.subr.bf16.mxu0 0
    %5411 = vmatpush2.bf16.msra.mxu0 0
    %5412 = vmatprep.mubr.bf16.mxu0 0
    %5413 = vmatmul.mubr.bf16.gmra.mxu0 %v5338
    %v5414 = vpop.f32.mrf.mxu0
    %v5415 = vadd.f32 0.0, %v5414
    %v5416 = vpop.f32.mrf.mxu0
    %v5417 = vadd.f32 0.0, %v5416
    %v5418 = vpop.f32.mrf.mxu0
    %v5419 = vpop.f32.mrf.mxu0
    %5420 = vdwg.mxu0
    %v5421 = vadd.f32 %v408, %v5374
    %v5422 = vadd.f32 %v410, %v5376
    %v5423 = vadd.f32 %v481, %v5415
    %v5424 = vadd.f32 %v483, %v5417
    %v5425 = vmul.f32 %v5421, 0.5
    %v5426 = vmul.f32 %v5422, 0.5
    %v5427 = vmul.f32 %v5423, 0.5
    %v5428 = vtanh.pop %v5425
    %v5429 = vtanh.pop %v5426
    %v5430 = vtanh.pop %v5427
    %v5431 = vmul.f32 %v5428, 0.5
    %v5432 = vmul.f32 %v5429, 0.5
    %v5433 = vmul.f32 %v5430, 0.5
    %v5434 = vadd.f32 %v5431, 0.5
    %v5435 = vadd.f32 %v5432, 0.5
    %v5436 = vadd.f32 %v5433, 0.5
    %v5437 = vtanh.pop %v5424
    %v5438 = vmul.f32 %v5435, %v4774
    %v5439 = vmul.f32 %v5434, %v5437
    %v5440 = vadd.f32 %v5438, %v5439
    %v5441 = vtanh.pop %v5440
    %v5442 = vmul.f32 %v5436, %v5441
    %v5443 = vpack.c.bf16 %v4963, %v4963
    %5444 = vmatprep.subr.bf16.mxu0 %v1273
    %5445 = vmatpush1.bf16.msra.mxu0 %v1272
    %5446 = vmatprep.subr.bf16.mxu0 %v1269
    %5447 = vmatpush1.bf16.msra.mxu0 %v1268
    %5448 = vmatprep.subr.bf16.mxu0 %v1265
    %5449 = vmatpush1.bf16.msra.mxu0 %v1264
    %5450 = vmatprep.subr.bf16.mxu0 %v1261
    %5451 = vmatpush1.bf16.msra.mxu0 %v1260
    %5452 = vmatprep.subr.bf16.mxu0 %v1257
    %5453 = vmatpush1.bf16.msra.mxu0 %v1256
    %5454 = vmatprep.subr.bf16.mxu0 %v1253
    %5455 = vmatpush1.bf16.msra.mxu0 %v1252
    %5456 = vmatprep.subr.bf16.mxu0 %v1249
    %5457 = vmatpush1.bf16.msra.mxu0 %v1248
    %5458 = vmatprep.subr.bf16.mxu0 %v1245
    %5459 = vmatpush1.bf16.msra.mxu0 %v1244
    %5460 = vmatprep.subr.bf16.mxu0 0
    %5461 = vmatpush2.bf16.msra.mxu0 0
    %5462 = vmatprep.subr.bf16.mxu0 0
    %5463 = vmatpush2.bf16.msra.mxu0 0
    %5464 = vmatprep.subr.bf16.mxu0 0
    %5465 = vmatpush2.bf16.msra.mxu0 0
    %5466 = vmatprep.subr.bf16.mxu0 0
    %5467 = vmatpush2.bf16.msra.mxu0 0
    %5468 = vmatprep.subr.bf16.mxu0 0
    %5469 = vmatpush2.bf16.msra.mxu0 0
    %5470 = vmatprep.subr.bf16.mxu0 0
    %5471 = vmatpush2.bf16.msra.mxu0 0
    %5472 = vmatprep.subr.bf16.mxu0 0
    %5473 = vmatpush2.bf16.msra.mxu0 0
    %5474 = vmatprep.subr.bf16.mxu0 0
    %5475 = vmatpush2.bf16.msra.mxu0 0
    %5476 = vmatprep.mubr.bf16.mxu0 0
    %5477 = vmatmul.mubr.bf16.gmra.mxu0 %v5443
    %v5478 = vpop.f32.mrf.mxu0
    %v5479 = vadd.f32 0.0, %v5478
    %v5480 = vpop.f32.mrf.mxu0
    %v5481 = vadd.f32 0.0, %v5480
    %v5482 = vpop.f32.mrf.mxu0
    %v5483 = vpop.f32.mrf.mxu0
    %5484 = vdwg.mxu0
    %5485 = vmatprep.subr.bf16.mxu0 %v1275
    %5486 = vmatpush1.bf16.msra.mxu0 %v1274
    %5487 = vmatprep.subr.bf16.mxu0 %v1271
    %5488 = vmatpush1.bf16.msra.mxu0 %v1270
    %5489 = vmatprep.subr.bf16.mxu0 %v1267
    %5490 = vmatpush1.bf16.msra.mxu0 %v1266
    %5491 = vmatprep.subr.bf16.mxu0 %v1263
    %5492 = vmatpush1.bf16.msra.mxu0 %v1262
    %5493 = vmatprep.subr.bf16.mxu0 %v1259
    %5494 = vmatpush1.bf16.msra.mxu0 %v1258
    %5495 = vmatprep.subr.bf16.mxu0 %v1255
    %5496 = vmatpush1.bf16.msra.mxu0 %v1254
    %5497 = vmatprep.subr.bf16.mxu0 %v1251
    %5498 = vmatpush1.bf16.msra.mxu0 %v1250
    %5499 = vmatprep.subr.bf16.mxu0 %v1247
    %5500 = vmatpush1.bf16.msra.mxu0 %v1246
    %5501 = vmatprep.subr.bf16.mxu0 0
    %5502 = vmatpush2.bf16.msra.mxu0 0
    %5503 = vmatprep.subr.bf16.mxu0 0
    %5504 = vmatpush2.bf16.msra.mxu0 0
    %5505 = vmatprep.subr.bf16.mxu0 0
    %5506 = vmatpush2.bf16.msra.mxu0 0
    %5507 = vmatprep.subr.bf16.mxu0 0
    %5508 = vmatpush2.bf16.msra.mxu0 0
    %5509 = vmatprep.subr.bf16.mxu0 0
    %5510 = vmatpush2.bf16.msra.mxu0 0
    %5511 = vmatprep.subr.bf16.mxu0 0
    %5512 = vmatpush2.bf16.msra.mxu0 0
    %5513 = vmatprep.subr.bf16.mxu0 0
    %5514 = vmatpush2.bf16.msra.mxu0 0
    %5515 = vmatprep.subr.bf16.mxu0 0
    %5516 = vmatpush2.bf16.msra.mxu0 0
    %5517 = vmatprep.mubr.bf16.mxu0 0
    %5518 = vmatmul.mubr.bf16.gmra.mxu0 %v5443
    %v5519 = vpop.f32.mrf.mxu0
    %v5520 = vadd.f32 0.0, %v5519
    %v5521 = vpop.f32.mrf.mxu0
    %v5522 = vadd.f32 0.0, %v5521
    %v5523 = vpop.f32.mrf.mxu0
    %v5524 = vpop.f32.mrf.mxu0
    %5525 = vdwg.mxu0
    %5526 = vmatprep.subr.bf16.mxu0 %v1515
    %5527 = vmatpush1.bf16.msra.mxu0 %v1514
    %5528 = vmatprep.subr.bf16.mxu0 %v1511
    %5529 = vmatpush1.bf16.msra.mxu0 %v1510
    %5530 = vmatprep.subr.bf16.mxu0 %v1507
    %5531 = vmatpush1.bf16.msra.mxu0 %v1506
    %5532 = vmatprep.subr.bf16.mxu0 %v1503
    %5533 = vmatpush1.bf16.msra.mxu0 %v1502
    %5534 = vmatprep.subr.bf16.mxu0 %v1499
    %5535 = vmatpush1.bf16.msra.mxu0 %v1498
    %5536 = vmatprep.subr.bf16.mxu0 %v1495
    %5537 = vmatpush1.bf16.msra.mxu0 %v1494
    %5538 = vmatprep.subr.bf16.mxu0 %v1491
    %5539 = vmatpush1.bf16.msra.mxu0 %v1490
    %5540 = vmatprep.subr.bf16.mxu0 %v1487
    %5541 = vmatpush1.bf16.msra.mxu0 %v1486
    %5542 = vmatprep.subr.bf16.mxu0 0
    %5543 = vmatpush2.bf16.msra.mxu0 0
    %5544 = vmatprep.subr.bf16.mxu0 0
    %5545 = vmatpush2.bf16.msra.mxu0 0
    %5546 = vmatprep.subr.bf16.mxu0 0
    %5547 = vmatpush2.bf16.msra.mxu0 0
    %5548 = vmatprep.subr.bf16.mxu0 0
    %5549 = vmatpush2.bf16.msra.mxu0 0
    %5550 = vmatprep.subr.bf16.mxu0 0
    %5551 = vmatpush2.bf16.msra.mxu0 0
    %5552 = vmatprep.subr.bf16.mxu0 0
    %5553 = vmatpush2.bf16.msra.mxu0 0
    %5554 = vmatprep.subr.bf16.mxu0 0
    %5555 = vmatpush2.bf16.msra.mxu0 0
    %5556 = vmatprep.subr.bf16.mxu0 0
    %5557 = vmatpush2.bf16.msra.mxu0 0
    %5558 = vmatprep.mubr.bf16.mxu0 0
    %5559 = vmatmul.mubr.bf16.gmra.mxu0 %v5338
    %v5560 = vpop.f32.mrf.mxu0
    %v5561 = vadd.f32 %v5479, %v5560
    %v5562 = vpop.f32.mrf.mxu0
    %v5563 = vadd.f32 %v5481, %v5562
    %v5564 = vpop.f32.mrf.mxu0
    %v5565 = vpop.f32.mrf.mxu0
    %5566 = vdwg.mxu0
    %5567 = vmatprep.subr.bf16.mxu0 %v1517
    %5568 = vmatpush1.bf16.msra.mxu0 %v1516
    %5569 = vmatprep.subr.bf16.mxu0 %v1513
    %5570 = vmatpush1.bf16.msra.mxu0 %v1512
    %5571 = vmatprep.subr.bf16.mxu0 %v1509
    %5572 = vmatpush1.bf16.msra.mxu0 %v1508
    %5573 = vmatprep.subr.bf16.mxu0 %v1505
    %5574 = vmatpush1.bf16.msra.mxu0 %v1504
    %5575 = vmatprep.subr.bf16.mxu0 %v1501
    %5576 = vmatpush1.bf16.msra.mxu0 %v1500
    %5577 = vmatprep.subr.bf16.mxu0 %v1497
    %5578 = vmatpush1.bf16.msra.mxu0 %v1496
    %5579 = vmatprep.subr.bf16.mxu0 %v1493
    %5580 = vmatpush1.bf16.msra.mxu0 %v1492
    %5581 = vmatprep.subr.bf16.mxu0 %v1489
    %5582 = vmatpush1.bf16.msra.mxu0 %v1488
    %5583 = vmatprep.subr.bf16.mxu0 0
    %5584 = vmatpush2.bf16.msra.mxu0 0
    %5585 = vmatprep.subr.bf16.mxu0 0
    %5586 = vmatpush2.bf16.msra.mxu0 0
    %5587 = vmatprep.subr.bf16.mxu0 0
    %5588 = vmatpush2.bf16.msra.mxu0 0
    %5589 = vmatprep.subr.bf16.mxu0 0
    %5590 = vmatpush2.bf16.msra.mxu0 0
    %5591 = vmatprep.subr.bf16.mxu0 0
    %5592 = vmatpush2.bf16.msra.mxu0 0
    %5593 = vmatprep.subr.bf16.mxu0 0
    %5594 = vmatpush2.bf16.msra.mxu0 0
    %5595 = vmatprep.subr.bf16.mxu0 0
    %5596 = vmatpush2.bf16.msra.mxu0 0
    %5597 = vmatprep.subr.bf16.mxu0 0
    %5598 = vmatpush2.bf16.msra.mxu0 0
    %5599 = vmatprep.mubr.bf16.mxu0 0
    %5600 = vmatmul.mubr.bf16.gmra.mxu0 %v5338
    %v5601 = vpop.f32.mrf.mxu0
    %v5602 = vadd.f32 %v5520, %v5601
    %v5603 = vpop.f32.mrf.mxu0
    %v5604 = vadd.f32 %v5522, %v5603
    %v5605 = vpop.f32.mrf.mxu0
    %v5606 = vpop.f32.mrf.mxu0
    %5607 = vdwg.mxu0
    %v5608 = vadd.f32 %v5561, %v1636
    %v5609 = vadd.f32 %v5563, %v1640
    %v5610 = vadd.f32 %v5602, %v1644
    %v5611 = vadd.f32 %v5604, %v1648
    %v5612 = vmul.f32 %v5608, 0.5
    %v5613 = vmul.f32 %v5609, 0.5
    %v5614 = vmul.f32 %v5610, 0.5
    %v5615 = vtanh.pop %v5612
    %v5616 = vtanh.pop %v5613
    %v5617 = vtanh.pop %v5614
    %v5618 = vmul.f32 %v5615, 0.5
    %v5619 = vmul.f32 %v5616, 0.5
    %v5620 = vmul.f32 %v5617, 0.5
    %v5621 = vadd.f32 %v5618, 0.5
    %v5622 = vadd.f32 %v5619, 0.5
    %v5623 = vadd.f32 %v5620, 0.5
    %v5624 = vtanh.pop %v5611
    %v5625 = vmul.f32 %v5622, %v4961
    %v5626 = vmul.f32 %v5621, %v5624
    %v5627 = vadd.f32 %v5625, %v5626
    %v5628 = vtanh.pop %v5627
    %v5629 = vmul.f32 %v5623, %v5628
    %v5630 = vpack.c.bf16 %v5336, %v5336
    %v5631 = vpack.c.bf16 %v5337, %v5337
    %5632 = vmatprep.subr.bf16.mxu0 %v2408
    %5633 = vmatpush1.bf16.msra.mxu0 %v2407
    %5634 = vmatprep.subr.bf16.mxu0 %v2400
    %5635 = vmatpush1.bf16.msra.mxu0 %v2399
    %5636 = vmatprep.subr.bf16.mxu0 %v2392
    %5637 = vmatpush1.bf16.msra.mxu0 %v2391
    %5638 = vmatprep.subr.bf16.mxu0 %v2384
    %5639 = vmatpush1.bf16.msra.mxu0 %v2383
    %5640 = vmatprep.subr.bf16.mxu0 %v2376
    %5641 = vmatpush1.bf16.msra.mxu0 %v2375
    %5642 = vmatprep.subr.bf16.mxu0 %v2368
    %5643 = vmatpush1.bf16.msra.mxu0 %v2367
    %5644 = vmatprep.subr.bf16.mxu0 %v2360
    %5645 = vmatpush1.bf16.msra.mxu0 %v2359
    %5646 = vmatprep.subr.bf16.mxu0 %v2352
    %5647 = vmatpush1.bf16.msra.mxu0 %v2351
    %5648 = vmatprep.subr.bf16.mxu0 %v2472
    %5649 = vmatpush2.bf16.msra.mxu0 %v2471
    %5650 = vmatprep.subr.bf16.mxu0 %v2464
    %5651 = vmatpush2.bf16.msra.mxu0 %v2463
    %5652 = vmatprep.subr.bf16.mxu0 %v2456
    %5653 = vmatpush2.bf16.msra.mxu0 %v2455
    %5654 = vmatprep.subr.bf16.mxu0 %v2448
    %5655 = vmatpush2.bf16.msra.mxu0 %v2447
    %5656 = vmatprep.subr.bf16.mxu0 %v2440
    %5657 = vmatpush2.bf16.msra.mxu0 %v2439
    %5658 = vmatprep.subr.bf16.mxu0 %v2432
    %5659 = vmatpush2.bf16.msra.mxu0 %v2431
    %5660 = vmatprep.subr.bf16.mxu0 %v2424
    %5661 = vmatpush2.bf16.msra.mxu0 %v2423
    %5662 = vmatprep.subr.bf16.mxu0 %v2416
    %5663 = vmatpush2.bf16.msra.mxu0 %v2415
    %5664 = vmatprep.mubr.bf16.mxu0 %v5631
    %5665 = vmatmul.mubr.bf16.gmra.mxu0 %v5630
    %v5666 = vpop.f32.mrf.mxu0
    %v5667 = vadd.f32 0.0, %v5666
    %v5668 = vpop.f32.mrf.mxu0
    %v5669 = vadd.f32 0.0, %v5668
    %v5670 = vpop.f32.mrf.mxu0
    %v5671 = vpop.f32.mrf.mxu0
    %5672 = vdwg.mxu0
    %5673 = vmatprep.subr.bf16.mxu0 %v2410
    %5674 = vmatpush1.bf16.msra.mxu0 %v2409
    %5675 = vmatprep.subr.bf16.mxu0 %v2402
    %5676 = vmatpush1.bf16.msra.mxu0 %v2401
    %5677 = vmatprep.subr.bf16.mxu0 %v2394
    %5678 = vmatpush1.bf16.msra.mxu0 %v2393
    %5679 = vmatprep.subr.bf16.mxu0 %v2386
    %5680 = vmatpush1.bf16.msra.mxu0 %v2385
    %5681 = vmatprep.subr.bf16.mxu0 %v2378
    %5682 = vmatpush1.bf16.msra.mxu0 %v2377
    %5683 = vmatprep.subr.bf16.mxu0 %v2370
    %5684 = vmatpush1.bf16.msra.mxu0 %v2369
    %5685 = vmatprep.subr.bf16.mxu0 %v2362
    %5686 = vmatpush1.bf16.msra.mxu0 %v2361
    %5687 = vmatprep.subr.bf16.mxu0 %v2354
    %5688 = vmatpush1.bf16.msra.mxu0 %v2353
    %5689 = vmatprep.subr.bf16.mxu0 %v2474
    %5690 = vmatpush2.bf16.msra.mxu0 %v2473
    %5691 = vmatprep.subr.bf16.mxu0 %v2466
    %5692 = vmatpush2.bf16.msra.mxu0 %v2465
    %5693 = vmatprep.subr.bf16.mxu0 %v2458
    %5694 = vmatpush2.bf16.msra.mxu0 %v2457
    %5695 = vmatprep.subr.bf16.mxu0 %v2450
    %5696 = vmatpush2.bf16.msra.mxu0 %v2449
    %5697 = vmatprep.subr.bf16.mxu0 %v2442
    %5698 = vmatpush2.bf16.msra.mxu0 %v2441
    %5699 = vmatprep.subr.bf16.mxu0 %v2434
    %5700 = vmatpush2.bf16.msra.mxu0 %v2433
    %5701 = vmatprep.subr.bf16.mxu0 %v2426
    %5702 = vmatpush2.bf16.msra.mxu0 %v2425
    %5703 = vmatprep.subr.bf16.mxu0 %v2418
    %5704 = vmatpush2.bf16.msra.mxu0 %v2417
    %5705 = vmatprep.mubr.bf16.mxu0 %v5631
    %5706 = vmatmul.mubr.bf16.gmra.mxu0 %v5630
    %v5707 = vpop.f32.mrf.mxu0
    %v5708 = vadd.f32 0.0, %v5707
    %v5709 = vpop.f32.mrf.mxu0
    %v5710 = vadd.f32 0.0, %v5709
    %v5711 = vpop.f32.mrf.mxu0
    %v5712 = vpop.f32.mrf.mxu0
    %5713 = vdwg.mxu0
    %5714 = vmatprep.subr.bf16.mxu0 %v2412
    %5715 = vmatpush1.bf16.msra.mxu0 %v2411
    %5716 = vmatprep.subr.bf16.mxu0 %v2404
    %5717 = vmatpush1.bf16.msra.mxu0 %v2403
    %5718 = vmatprep.subr.bf16.mxu0 %v2396
    %5719 = vmatpush1.bf16.msra.mxu0 %v2395
    %5720 = vmatprep.subr.bf16.mxu0 %v2388
    %5721 = vmatpush1.bf16.msra.mxu0 %v2387
    %5722 = vmatprep.subr.bf16.mxu0 %v2380
    %5723 = vmatpush1.bf16.msra.mxu0 %v2379
    %5724 = vmatprep.subr.bf16.mxu0 %v2372
    %5725 = vmatpush1.bf16.msra.mxu0 %v2371
    %5726 = vmatprep.subr.bf16.mxu0 %v2364
    %5727 = vmatpush1.bf16.msra.mxu0 %v2363
    %5728 = vmatprep.subr.bf16.mxu0 %v2356
    %5729 = vmatpush1.bf16.msra.mxu0 %v2355
    %5730 = vmatprep.subr.bf16.mxu0 %v2476
    %5731 = vmatpush2.bf16.msra.mxu0 %v2475
    %5732 = vmatprep.subr.bf16.mxu0 %v2468
    %5733 = vmatpush2.bf16.msra.mxu0 %v2467
    %5734 = vmatprep.subr.bf16.mxu0 %v2460
    %5735 = vmatpush2.bf16.msra.mxu0 %v2459
    %5736 = vmatprep.subr.bf16.mxu0 %v2452
    %5737 = vmatpush2.bf16.msra.mxu0 %v2451
    %5738 = vmatprep.subr.bf16.mxu0 %v2444
    %5739 = vmatpush2.bf16.msra.mxu0 %v2443
    %5740 = vmatprep.subr.bf16.mxu0 %v2436
    %5741 = vmatpush2.bf16.msra.mxu0 %v2435
    %5742 = vmatprep.subr.bf16.mxu0 %v2428
    %5743 = vmatpush2.bf16.msra.mxu0 %v2427
    %5744 = vmatprep.subr.bf16.mxu0 %v2420
    %5745 = vmatpush2.bf16.msra.mxu0 %v2419
    %5746 = vmatprep.mubr.bf16.mxu0 %v5631
    %5747 = vmatmul.mubr.bf16.gmra.mxu0 %v5630
    %v5748 = vpop.f32.mrf.mxu0
    %v5749 = vadd.f32 0.0, %v5748
    %v5750 = vpop.f32.mrf.mxu0
    %v5751 = vadd.f32 0.0, %v5750
    %v5752 = vpop.f32.mrf.mxu0
    %v5753 = vpop.f32.mrf.mxu0
    %5754 = vdwg.mxu0
    %5755 = vmatprep.subr.bf16.mxu0 %v2414
    %5756 = vmatpush1.bf16.msra.mxu0 %v2413
    %5757 = vmatprep.subr.bf16.mxu0 %v2406
    %5758 = vmatpush1.bf16.msra.mxu0 %v2405
    %5759 = vmatprep.subr.bf16.mxu0 %v2398
    %5760 = vmatpush1.bf16.msra.mxu0 %v2397
    %5761 = vmatprep.subr.bf16.mxu0 %v2390
    %5762 = vmatpush1.bf16.msra.mxu0 %v2389
    %5763 = vmatprep.subr.bf16.mxu0 %v2382
    %5764 = vmatpush1.bf16.msra.mxu0 %v2381
    %5765 = vmatprep.subr.bf16.mxu0 %v2374
    %5766 = vmatpush1.bf16.msra.mxu0 %v2373
    %5767 = vmatprep.subr.bf16.mxu0 %v2366
    %5768 = vmatpush1.bf16.msra.mxu0 %v2365
    %5769 = vmatprep.subr.bf16.mxu0 %v2358
    %5770 = vmatpush1.bf16.msra.mxu0 %v2357
    %5771 = vmatprep.subr.bf16.mxu0 %v2478
    %5772 = vmatpush2.bf16.msra.mxu0 %v2477
    %5773 = vmatprep.subr.bf16.mxu0 %v2470
    %5774 = vmatpush2.bf16.msra.mxu0 %v2469
    %5775 = vmatprep.subr.bf16.mxu0 %v2462
    %5776 = vmatpush2.bf16.msra.mxu0 %v2461
    %5777 = vmatprep.subr.bf16.mxu0 %v2454
    %5778 = vmatpush2.bf16.msra.mxu0 %v2453
    %5779 = vmatprep.subr.bf16.mxu0 %v2446
    %5780 = vmatpush2.bf16.msra.mxu0 %v2445
    %5781 = vmatprep.subr.bf16.mxu0 %v2438
    %5782 = vmatpush2.bf16.msra.mxu0 %v2437
    %5783 = vmatprep.subr.bf16.mxu0 %v2430
    %5784 = vmatpush2.bf16.msra.mxu0 %v2429
    %5785 = vmatprep.subr.bf16.mxu0 %v2422
    %5786 = vmatpush2.bf16.msra.mxu0 %v2421
    %5787 = vmatprep.mubr.bf16.mxu0 %v5631
    %5788 = vmatmul.mubr.bf16.gmra.mxu0 %v5630
    %v5789 = vpop.f32.mrf.mxu0
    %v5790 = vadd.f32 0.0, %v5789
    %v5791 = vpop.f32.mrf.mxu0
    %v5792 = vadd.f32 0.0, %v5791
    %v5793 = vpop.f32.mrf.mxu0
    %v5794 = vpop.f32.mrf.mxu0
    %5795 = vdwg.mxu0
    %5796 = vmatprep.subr.bf16.mxu0 %v3020
    %5797 = vmatpush1.bf16.msra.mxu0 %v3019
    %5798 = vmatprep.subr.bf16.mxu0 %v3012
    %5799 = vmatpush1.bf16.msra.mxu0 %v3011
    %5800 = vmatprep.subr.bf16.mxu0 %v3004
    %5801 = vmatpush1.bf16.msra.mxu0 %v3003
    %5802 = vmatprep.subr.bf16.mxu0 %v2996
    %5803 = vmatpush1.bf16.msra.mxu0 %v2995
    %5804 = vmatprep.subr.bf16.mxu0 %v2988
    %5805 = vmatpush1.bf16.msra.mxu0 %v2987
    %5806 = vmatprep.subr.bf16.mxu0 %v2980
    %5807 = vmatpush1.bf16.msra.mxu0 %v2979
    %5808 = vmatprep.subr.bf16.mxu0 %v2972
    %5809 = vmatpush1.bf16.msra.mxu0 %v2971
    %5810 = vmatprep.subr.bf16.mxu0 %v2964
    %5811 = vmatpush1.bf16.msra.mxu0 %v2963
    %5812 = vmatprep.subr.bf16.mxu0 0
    %5813 = vmatpush2.bf16.msra.mxu0 0
    %5814 = vmatprep.subr.bf16.mxu0 0
    %5815 = vmatpush2.bf16.msra.mxu0 0
    %5816 = vmatprep.subr.bf16.mxu0 0
    %5817 = vmatpush2.bf16.msra.mxu0 0
    %5818 = vmatprep.subr.bf16.mxu0 0
    %5819 = vmatpush2.bf16.msra.mxu0 0
    %5820 = vmatprep.subr.bf16.mxu0 0
    %5821 = vmatpush2.bf16.msra.mxu0 0
    %5822 = vmatprep.subr.bf16.mxu0 0
    %5823 = vmatpush2.bf16.msra.mxu0 0
    %5824 = vmatprep.subr.bf16.mxu0 0
    %5825 = vmatpush2.bf16.msra.mxu0 0
    %5826 = vmatprep.subr.bf16.mxu0 0
    %5827 = vmatpush2.bf16.msra.mxu0 0
    %5828 = vmatprep.mubr.bf16.mxu0 0
    %5829 = vmatmul.mubr.bf16.gmra.mxu0 %v5443
    %v5830 = vpop.f32.mrf.mxu0
    %v5831 = vadd.f32 %v5667, %v5830
    %v5832 = vpop.f32.mrf.mxu0
    %v5833 = vadd.f32 %v5669, %v5832
    %v5834 = vpop.f32.mrf.mxu0
    %v5835 = vpop.f32.mrf.mxu0
    %5836 = vdwg.mxu0
    %5837 = vmatprep.subr.bf16.mxu0 %v3022
    %5838 = vmatpush1.bf16.msra.mxu0 %v3021
    %5839 = vmatprep.subr.bf16.mxu0 %v3014
    %5840 = vmatpush1.bf16.msra.mxu0 %v3013
    %5841 = vmatprep.subr.bf16.mxu0 %v3006
    %5842 = vmatpush1.bf16.msra.mxu0 %v3005
    %5843 = vmatprep.subr.bf16.mxu0 %v2998
    %5844 = vmatpush1.bf16.msra.mxu0 %v2997
    %5845 = vmatprep.subr.bf16.mxu0 %v2990
    %5846 = vmatpush1.bf16.msra.mxu0 %v2989
    %5847 = vmatprep.subr.bf16.mxu0 %v2982
    %5848 = vmatpush1.bf16.msra.mxu0 %v2981
    %5849 = vmatprep.subr.bf16.mxu0 %v2974
    %5850 = vmatpush1.bf16.msra.mxu0 %v2973
    %5851 = vmatprep.subr.bf16.mxu0 %v2966
    %5852 = vmatpush1.bf16.msra.mxu0 %v2965
    %5853 = vmatprep.subr.bf16.mxu0 0
    %5854 = vmatpush2.bf16.msra.mxu0 0
    %5855 = vmatprep.subr.bf16.mxu0 0
    %5856 = vmatpush2.bf16.msra.mxu0 0
    %5857 = vmatprep.subr.bf16.mxu0 0
    %5858 = vmatpush2.bf16.msra.mxu0 0
    %5859 = vmatprep.subr.bf16.mxu0 0
    %5860 = vmatpush2.bf16.msra.mxu0 0
    %5861 = vmatprep.subr.bf16.mxu0 0
    %5862 = vmatpush2.bf16.msra.mxu0 0
    %5863 = vmatprep.subr.bf16.mxu0 0
    %5864 = vmatpush2.bf16.msra.mxu0 0
    %5865 = vmatprep.subr.bf16.mxu0 0
    %5866 = vmatpush2.bf16.msra.mxu0 0
    %5867 = vmatprep.subr.bf16.mxu0 0
    %5868 = vmatpush2.bf16.msra.mxu0 0
    %5869 = vmatprep.mubr.bf16.mxu0 0
    %5870 = vmatmul.mubr.bf16.gmra.mxu0 %v5443
    %v5871 = vpop.f32.mrf.mxu0
    %v5872 = vadd.f32 %v5708, %v5871
    %v5873 = vpop.f32.mrf.mxu0
    %v5874 = vadd.f32 %v5710, %v5873
    %v5875 = vpop.f32.mrf.mxu0
    %v5876 = vpop.f32.mrf.mxu0
    %5877 = vdwg.mxu0
    %5878 = vmatprep.subr.bf16.mxu0 %v3024
    %5879 = vmatpush1.bf16.msra.mxu0 %v3023
    %5880 = vmatprep.subr.bf16.mxu0 %v3016
    %5881 = vmatpush1.bf16.msra.mxu0 %v3015
    %5882 = vmatprep.subr.bf16.mxu0 %v3008
    %5883 = vmatpush1.bf16.msra.mxu0 %v3007
    %5884 = vmatprep.subr.bf16.mxu0 %v3000
    %5885 = vmatpush1.bf16.msra.mxu0 %v2999
    %5886 = vmatprep.subr.bf16.mxu0 %v2992
    %5887 = vmatpush1.bf16.msra.mxu0 %v2991
    %5888 = vmatprep.subr.bf16.mxu0 %v2984
    %5889 = vmatpush1.bf16.msra.mxu0 %v2983
    %5890 = vmatprep.subr.bf16.mxu0 %v2976
    %5891 = vmatpush1.bf16.msra.mxu0 %v2975
    %5892 = vmatprep.subr.bf16.mxu0 %v2968
    %5893 = vmatpush1.bf16.msra.mxu0 %v2967
    %5894 = vmatprep.subr.bf16.mxu0 0
    %5895 = vmatpush2.bf16.msra.mxu0 0
    %5896 = vmatprep.subr.bf16.mxu0 0
    %5897 = vmatpush2.bf16.msra.mxu0 0
    %5898 = vmatprep.subr.bf16.mxu0 0
    %5899 = vmatpush2.bf16.msra.mxu0 0
    %5900 = vmatprep.subr.bf16.mxu0 0
    %5901 = vmatpush2.bf16.msra.mxu0 0
    %5902 = vmatprep.subr.bf16.mxu0 0
    %5903 = vmatpush2.bf16.msra.mxu0 0
    %5904 = vmatprep.subr.bf16.mxu0 0
    %5905 = vmatpush2.bf16.msra.mxu0 0
    %5906 = vmatprep.subr.bf16.mxu0 0
    %5907 = vmatpush2.bf16.msra.mxu0 0
    %5908 = vmatprep.subr.bf16.mxu0 0
    %5909 = vmatpush2.bf16.msra.mxu0 0
    %5910 = vmatprep.mubr.bf16.mxu0 0
    %5911 = vmatmul.mubr.bf16.gmra.mxu0 %v5443
    %v5912 = vpop.f32.mrf.mxu0
    %v5913 = vadd.f32 %v5749, %v5912
    %v5914 = vpop.f32.mrf.mxu0
    %v5915 = vadd.f32 %v5751, %v5914
    %v5916 = vpop.f32.mrf.mxu0
    %v5917 = vpop.f32.mrf.mxu0
    %5918 = vdwg.mxu0
    %5919 = vmatprep.subr.bf16.mxu0 %v3026
    %5920 = vmatpush1.bf16.msra.mxu0 %v3025
    %5921 = vmatprep.subr.bf16.mxu0 %v3018
    %5922 = vmatpush1.bf16.msra.mxu0 %v3017
    %5923 = vmatprep.subr.bf16.mxu0 %v3010
    %5924 = vmatpush1.bf16.msra.mxu0 %v3009
    %5925 = vmatprep.subr.bf16.mxu0 %v3002
    %5926 = vmatpush1.bf16.msra.mxu0 %v3001
    %5927 = vmatprep.subr.bf16.mxu0 %v2994
    %5928 = vmatpush1.bf16.msra.mxu0 %v2993
    %5929 = vmatprep.subr.bf16.mxu0 %v2986
    %5930 = vmatpush1.bf16.msra.mxu0 %v2985
    %5931 = vmatprep.subr.bf16.mxu0 %v2978
    %5932 = vmatpush1.bf16.msra.mxu0 %v2977
    %5933 = vmatprep.subr.bf16.mxu0 %v2970
    %5934 = vmatpush1.bf16.msra.mxu0 %v2969
    %5935 = vmatprep.subr.bf16.mxu0 0
    %5936 = vmatpush2.bf16.msra.mxu0 0
    %5937 = vmatprep.subr.bf16.mxu0 0
    %5938 = vmatpush2.bf16.msra.mxu0 0
    %5939 = vmatprep.subr.bf16.mxu0 0
    %5940 = vmatpush2.bf16.msra.mxu0 0
    %5941 = vmatprep.subr.bf16.mxu0 0
    %5942 = vmatpush2.bf16.msra.mxu0 0
    %5943 = vmatprep.subr.bf16.mxu0 0
    %5944 = vmatpush2.bf16.msra.mxu0 0
    %5945 = vmatprep.subr.bf16.mxu0 0
    %5946 = vmatpush2.bf16.msra.mxu0 0
    %5947 = vmatprep.subr.bf16.mxu0 0
    %5948 = vmatpush2.bf16.msra.mxu0 0
    %5949 = vmatprep.subr.bf16.mxu0 0
    %5950 = vmatpush2.bf16.msra.mxu0 0
    %5951 = vmatprep.mubr.bf16.mxu0 0
    %5952 = vmatmul.mubr.bf16.gmra.mxu0 %v5443
    %v5953 = vpop.f32.mrf.mxu0
    %v5954 = vadd.f32 %v5790, %v5953
    %v5955 = vpop.f32.mrf.mxu0
    %v5956 = vadd.f32 %v5792, %v5955
    %v5957 = vpop.f32.mrf.mxu0
    %v5958 = vpop.f32.mrf.mxu0
    %5959 = vdwg.mxu0
    %v5960 = vadd.f32 %v5831, %v3259
    %v5961 = vadd.f32 %v5833, %v3263
    %v5962 = vadd.f32 %v5872, %v3267
    %v5963 = vadd.f32 %v5874, %v3271
    %v5964 = vadd.f32 %v5913, %v3275
    %v5965 = vadd.f32 %v5915, %v3279
    %v5966 = vadd.f32 %v5954, %v3283
    %v5967 = vadd.f32 %v5956, %v3287
    %v5968 = vmul.f32 %v5960, 0.5
    %v5969 = vmul.f32 %v5961, 0.5
    %v5970 = vmul.f32 %v5962, 0.5
    %v5971 = vmul.f32 %v5963, 0.5
    %v5972 = vmul.f32 %v5964, 0.5
    %v5973 = vmul.f32 %v5965, 0.5
    %v5974 = vtanh.pop %v5968
    %v5975 = vtanh.pop %v5969
    %v5976 = vtanh.pop %v5970
    %v5977 = vtanh.pop %v5971
    %v5978 = vtanh.pop %v5972
    %v5979 = vtanh.pop %v5973
    %v5980 = vmul.f32 %v5974, 0.5
    %v5981 = vmul.f32 %v5975, 0.5
    %v5982 = vmul.f32 %v5976, 0.5
    %v5983 = vmul.f32 %v5977, 0.5
    %v5984 = vmul.f32 %v5978, 0.5
    %v5985 = vmul.f32 %v5979, 0.5
    %v5986 = vadd.f32 %v5980, 0.5
    %v5987 = vadd.f32 %v5981, 0.5
    %v5988 = vadd.f32 %v5982, 0.5
    %v5989 = vadd.f32 %v5983, 0.5
    %v5990 = vadd.f32 %v5984, 0.5
    %v5991 = vadd.f32 %v5985, 0.5
    %v5992 = vtanh.pop %v5966
    %v5993 = vtanh.pop %v5967
    %v5994 = vmul.f32 %v5988, %v5332
    %v5995 = vmul.f32 %v5989, %v5333
    %v5996 = vmul.f32 %v5986, %v5992
    %v5997 = vmul.f32 %v5987, %v5993
    %v5998 = vadd.f32 %v5994, %v5996
    %v5999 = vadd.f32 %v5995, %v5997
    %v6000 = vtanh.pop %v5998
    %v6001 = vtanh.pop %v5999
    %v6002 = vmul.f32 %v5990, %v6000
    %v6003 = vmul.f32 %v5991, %v6001
    %v6004 = vpack.c.bf16 %v5442, %v5442
    %6005 = vmatprep.subr.bf16.mxu0 %v904
    %6006 = vmatpush1.bf16.msra.mxu0 %v903
    %6007 = vmatprep.subr.bf16.mxu0 %v900
    %6008 = vmatpush1.bf16.msra.mxu0 %v899
    %6009 = vmatprep.subr.bf16.mxu0 %v896
    %6010 = vmatpush1.bf16.msra.mxu0 %v895
    %6011 = vmatprep.subr.bf16.mxu0 %v892
    %6012 = vmatpush1.bf16.msra.mxu0 %v891
    %6013 = vmatprep.subr.bf16.mxu0 %v888
    %6014 = vmatpush1.bf16.msra.mxu0 %v887
    %6015 = vmatprep.subr.bf16.mxu0 %v884
    %6016 = vmatpush1.bf16.msra.mxu0 %v883
    %6017 = vmatprep.subr.bf16.mxu0 %v880
    %6018 = vmatpush1.bf16.msra.mxu0 %v879
    %6019 = vmatprep.subr.bf16.mxu0 %v876
    %6020 = vmatpush1.bf16.msra.mxu0 %v875
    %6021 = vmatprep.subr.bf16.mxu0 0
    %6022 = vmatpush2.bf16.msra.mxu0 0
    %6023 = vmatprep.subr.bf16.mxu0 0
    %6024 = vmatpush2.bf16.msra.mxu0 0
    %6025 = vmatprep.subr.bf16.mxu0 0
    %6026 = vmatpush2.bf16.msra.mxu0 0
    %6027 = vmatprep.subr.bf16.mxu0 0
    %6028 = vmatpush2.bf16.msra.mxu0 0
    %6029 = vmatprep.subr.bf16.mxu0 0
    %6030 = vmatpush2.bf16.msra.mxu0 0
    %6031 = vmatprep.subr.bf16.mxu0 0
    %6032 = vmatpush2.bf16.msra.mxu0 0
    %6033 = vmatprep.subr.bf16.mxu0 0
    %6034 = vmatpush2.bf16.msra.mxu0 0
    %6035 = vmatprep.subr.bf16.mxu0 0
    %6036 = vmatpush2.bf16.msra.mxu0 0
    %6037 = vmatprep.mubr.bf16.mxu0 0
    %6038 = vmatmul.mubr.bf16.gmra.mxu0 %v6004
    %v6039 = vpop.f32.mrf.mxu0
    %v6040 = vadd.f32 0.0, %v6039
    %v6041 = vpop.f32.mrf.mxu0
    %v6042 = vadd.f32 0.0, %v6041
    %v6043 = vpop.f32.mrf.mxu0
    %v6044 = vpop.f32.mrf.mxu0
    %6045 = vdwg.mxu0
    %6046 = vmatprep.subr.bf16.mxu0 %v906
    %6047 = vmatpush1.bf16.msra.mxu0 %v905
    %6048 = vmatprep.subr.bf16.mxu0 %v902
    %6049 = vmatpush1.bf16.msra.mxu0 %v901
    %6050 = vmatprep.subr.bf16.mxu0 %v898
    %6051 = vmatpush1.bf16.msra.mxu0 %v897
    %6052 = vmatprep.subr.bf16.mxu0 %v894
    %6053 = vmatpush1.bf16.msra.mxu0 %v893
    %6054 = vmatprep.subr.bf16.mxu0 %v890
    %6055 = vmatpush1.bf16.msra.mxu0 %v889
    %6056 = vmatprep.subr.bf16.mxu0 %v886
    %6057 = vmatpush1.bf16.msra.mxu0 %v885
    %6058 = vmatprep.subr.bf16.mxu0 %v882
    %6059 = vmatpush1.bf16.msra.mxu0 %v881
    %6060 = vmatprep.subr.bf16.mxu0 %v878
    %6061 = vmatpush1.bf16.msra.mxu0 %v877
    %6062 = vmatprep.subr.bf16.mxu0 0
    %6063 = vmatpush2.bf16.msra.mxu0 0
    %6064 = vmatprep.subr.bf16.mxu0 0
    %6065 = vmatpush2.bf16.msra.mxu0 0
    %6066 = vmatprep.subr.bf16.mxu0 0
    %6067 = vmatpush2.bf16.msra.mxu0 0
    %6068 = vmatprep.subr.bf16.mxu0 0
    %6069 = vmatpush2.bf16.msra.mxu0 0
    %6070 = vmatprep.subr.bf16.mxu0 0
    %6071 = vmatpush2.bf16.msra.mxu0 0
    %6072 = vmatprep.subr.bf16.mxu0 0
    %6073 = vmatpush2.bf16.msra.mxu0 0
    %6074 = vmatprep.subr.bf16.mxu0 0
    %6075 = vmatpush2.bf16.msra.mxu0 0
    %6076 = vmatprep.subr.bf16.mxu0 0
    %6077 = vmatpush2.bf16.msra.mxu0 0
    %6078 = vmatprep.mubr.bf16.mxu0 0
    %6079 = vmatmul.mubr.bf16.gmra.mxu0 %v6004
    %v6080 = vpop.f32.mrf.mxu0
    %v6081 = vadd.f32 0.0, %v6080
    %v6082 = vpop.f32.mrf.mxu0
    %v6083 = vadd.f32 0.0, %v6082
    %v6084 = vpop.f32.mrf.mxu0
    %v6085 = vpop.f32.mrf.mxu0
    %6086 = vdwg.mxu0
    %v6087 = vadd.f32 %v412, %v6040
    %v6088 = vadd.f32 %v414, %v6042
    %v6089 = vadd.f32 %v485, %v6081
    %v6090 = vadd.f32 %v487, %v6083
    %v6091 = vmul.f32 %v6087, 0.5
    %v6092 = vmul.f32 %v6088, 0.5
    %v6093 = vmul.f32 %v6089, 0.5
    %v6094 = vtanh.pop %v6091
    %v6095 = vtanh.pop %v6092
    %v6096 = vtanh.pop %v6093
    %v6097 = vmul.f32 %v6094, 0.5
    %v6098 = vmul.f32 %v6095, 0.5
    %v6099 = vmul.f32 %v6096, 0.5
    %v6100 = vadd.f32 %v6097, 0.5
    %v6101 = vadd.f32 %v6098, 0.5
    %v6102 = vadd.f32 %v6099, 0.5
    %v6103 = vtanh.pop %v6090
    %v6104 = vmul.f32 %v6101, %v5440
    %v6105 = vmul.f32 %v6100, %v6103
    %v6106 = vadd.f32 %v6104, %v6105
    %v6107 = vtanh.pop %v6106
    %v6108 = vmul.f32 %v6102, %v6107
    %v6109 = vpack.c.bf16 %v5629, %v5629
    %6110 = vmatprep.subr.bf16.mxu0 %v1273
    %6111 = vmatpush1.bf16.msra.mxu0 %v1272
    %6112 = vmatprep.subr.bf16.mxu0 %v1269
    %6113 = vmatpush1.bf16.msra.mxu0 %v1268
    %6114 = vmatprep.subr.bf16.mxu0 %v1265
    %6115 = vmatpush1.bf16.msra.mxu0 %v1264
    %6116 = vmatprep.subr.bf16.mxu0 %v1261
    %6117 = vmatpush1.bf16.msra.mxu0 %v1260
    %6118 = vmatprep.subr.bf16.mxu0 %v1257
    %6119 = vmatpush1.bf16.msra.mxu0 %v1256
    %6120 = vmatprep.subr.bf16.mxu0 %v1253
    %6121 = vmatpush1.bf16.msra.mxu0 %v1252
    %6122 = vmatprep.subr.bf16.mxu0 %v1249
    %6123 = vmatpush1.bf16.msra.mxu0 %v1248
    %6124 = vmatprep.subr.bf16.mxu0 %v1245
    %6125 = vmatpush1.bf16.msra.mxu0 %v1244
    %6126 = vmatprep.subr.bf16.mxu0 0
    %6127 = vmatpush2.bf16.msra.mxu0 0
    %6128 = vmatprep.subr.bf16.mxu0 0
    %6129 = vmatpush2.bf16.msra.mxu0 0
    %6130 = vmatprep.subr.bf16.mxu0 0
    %6131 = vmatpush2.bf16.msra.mxu0 0
    %6132 = vmatprep.subr.bf16.mxu0 0
    %6133 = vmatpush2.bf16.msra.mxu0 0
    %6134 = vmatprep.subr.bf16.mxu0 0
    %6135 = vmatpush2.bf16.msra.mxu0 0
    %6136 = vmatprep.subr.bf16.mxu0 0
    %6137 = vmatpush2.bf16.msra.mxu0 0
    %6138 = vmatprep.subr.bf16.mxu0 0
    %6139 = vmatpush2.bf16.msra.mxu0 0
    %6140 = vmatprep.subr.bf16.mxu0 0
    %6141 = vmatpush2.bf16.msra.mxu0 0
    %6142 = vmatprep.mubr.bf16.mxu0 0
    %6143 = vmatmul.mubr.bf16.gmra.mxu0 %v6109
    %v6144 = vpop.f32.mrf.mxu0
    %v6145 = vadd.f32 0.0, %v6144
    %v6146 = vpop.f32.mrf.mxu0
    %v6147 = vadd.f32 0.0, %v6146
    %v6148 = vpop.f32.mrf.mxu0
    %v6149 = vpop.f32.mrf.mxu0
    %6150 = vdwg.mxu0
    %6151 = vmatprep.subr.bf16.mxu0 %v1275
    %6152 = vmatpush1.bf16.msra.mxu0 %v1274
    %6153 = vmatprep.subr.bf16.mxu0 %v1271
    %6154 = vmatpush1.bf16.msra.mxu0 %v1270
    %6155 = vmatprep.subr.bf16.mxu0 %v1267
    %6156 = vmatpush1.bf16.msra.mxu0 %v1266
    %6157 = vmatprep.subr.bf16.mxu0 %v1263
    %6158 = vmatpush1.bf16.msra.mxu0 %v1262
    %6159 = vmatprep.subr.bf16.mxu0 %v1259
    %6160 = vmatpush1.bf16.msra.mxu0 %v1258
    %6161 = vmatprep.subr.bf16.mxu0 %v1255
    %6162 = vmatpush1.bf16.msra.mxu0 %v1254
    %6163 = vmatprep.subr.bf16.mxu0 %v1251
    %6164 = vmatpush1.bf16.msra.mxu0 %v1250
    %6165 = vmatprep.subr.bf16.mxu0 %v1247
    %6166 = vmatpush1.bf16.msra.mxu0 %v1246
    %6167 = vmatprep.subr.bf16.mxu0 0
    %6168 = vmatpush2.bf16.msra.mxu0 0
    %6169 = vmatprep.subr.bf16.mxu0 0
    %6170 = vmatpush2.bf16.msra.mxu0 0
    %6171 = vmatprep.subr.bf16.mxu0 0
    %6172 = vmatpush2.bf16.msra.mxu0 0
    %6173 = vmatprep.subr.bf16.mxu0 0
    %6174 = vmatpush2.bf16.msra.mxu0 0
    %6175 = vmatprep.subr.bf16.mxu0 0
    %6176 = vmatpush2.bf16.msra.mxu0 0
    %6177 = vmatprep.subr.bf16.mxu0 0
    %6178 = vmatpush2.bf16.msra.mxu0 0
    %6179 = vmatprep.subr.bf16.mxu0 0
    %6180 = vmatpush2.bf16.msra.mxu0 0
    %6181 = vmatprep.subr.bf16.mxu0 0
    %6182 = vmatpush2.bf16.msra.mxu0 0
    %6183 = vmatprep.mubr.bf16.mxu0 0
    %6184 = vmatmul.mubr.bf16.gmra.mxu0 %v6109
    %v6185 = vpop.f32.mrf.mxu0
    %v6186 = vadd.f32 0.0, %v6185
    %v6187 = vpop.f32.mrf.mxu0
    %v6188 = vadd.f32 0.0, %v6187
    %v6189 = vpop.f32.mrf.mxu0
    %v6190 = vpop.f32.mrf.mxu0
    %6191 = vdwg.mxu0
    %6192 = vmatprep.subr.bf16.mxu0 %v1515
    %6193 = vmatpush1.bf16.msra.mxu0 %v1514
    %6194 = vmatprep.subr.bf16.mxu0 %v1511
    %6195 = vmatpush1.bf16.msra.mxu0 %v1510
    %6196 = vmatprep.subr.bf16.mxu0 %v1507
    %6197 = vmatpush1.bf16.msra.mxu0 %v1506
    %6198 = vmatprep.subr.bf16.mxu0 %v1503
    %6199 = vmatpush1.bf16.msra.mxu0 %v1502
    %6200 = vmatprep.subr.bf16.mxu0 %v1499
    %6201 = vmatpush1.bf16.msra.mxu0 %v1498
    %6202 = vmatprep.subr.bf16.mxu0 %v1495
    %6203 = vmatpush1.bf16.msra.mxu0 %v1494
    %6204 = vmatprep.subr.bf16.mxu0 %v1491
    %6205 = vmatpush1.bf16.msra.mxu0 %v1490
    %6206 = vmatprep.subr.bf16.mxu0 %v1487
    %6207 = vmatpush1.bf16.msra.mxu0 %v1486
    %6208 = vmatprep.subr.bf16.mxu0 0
    %6209 = vmatpush2.bf16.msra.mxu0 0
    %6210 = vmatprep.subr.bf16.mxu0 0
    %6211 = vmatpush2.bf16.msra.mxu0 0
    %6212 = vmatprep.subr.bf16.mxu0 0
    %6213 = vmatpush2.bf16.msra.mxu0 0
    %6214 = vmatprep.subr.bf16.mxu0 0
    %6215 = vmatpush2.bf16.msra.mxu0 0
    %6216 = vmatprep.subr.bf16.mxu0 0
    %6217 = vmatpush2.bf16.msra.mxu0 0
    %6218 = vmatprep.subr.bf16.mxu0 0
    %6219 = vmatpush2.bf16.msra.mxu0 0
    %6220 = vmatprep.subr.bf16.mxu0 0
    %6221 = vmatpush2.bf16.msra.mxu0 0
    %6222 = vmatprep.subr.bf16.mxu0 0
    %6223 = vmatpush2.bf16.msra.mxu0 0
    %6224 = vmatprep.mubr.bf16.mxu0 0
    %6225 = vmatmul.mubr.bf16.gmra.mxu0 %v6004
    %v6226 = vpop.f32.mrf.mxu0
    %v6227 = vadd.f32 %v6145, %v6226
    %v6228 = vpop.f32.mrf.mxu0
    %v6229 = vadd.f32 %v6147, %v6228
    %v6230 = vpop.f32.mrf.mxu0
    %v6231 = vpop.f32.mrf.mxu0
    %6232 = vdwg.mxu0
    %6233 = vmatprep.subr.bf16.mxu0 %v1517
    %6234 = vmatpush1.bf16.msra.mxu0 %v1516
    %6235 = vmatprep.subr.bf16.mxu0 %v1513
    %6236 = vmatpush1.bf16.msra.mxu0 %v1512
    %6237 = vmatprep.subr.bf16.mxu0 %v1509
    %6238 = vmatpush1.bf16.msra.mxu0 %v1508
    %6239 = vmatprep.subr.bf16.mxu0 %v1505
    %6240 = vmatpush1.bf16.msra.mxu0 %v1504
    %6241 = vmatprep.subr.bf16.mxu0 %v1501
    %6242 = vmatpush1.bf16.msra.mxu0 %v1500
    %6243 = vmatprep.subr.bf16.mxu0 %v1497
    %6244 = vmatpush1.bf16.msra.mxu0 %v1496
    %6245 = vmatprep.subr.bf16.mxu0 %v1493
    %6246 = vmatpush1.bf16.msra.mxu0 %v1492
    %6247 = vmatprep.subr.bf16.mxu0 %v1489
    %6248 = vmatpush1.bf16.msra.mxu0 %v1488
    %6249 = vmatprep.subr.bf16.mxu0 0
    %6250 = vmatpush2.bf16.msra.mxu0 0
    %6251 = vmatprep.subr.bf16.mxu0 0
    %6252 = vmatpush2.bf16.msra.mxu0 0
    %6253 = vmatprep.subr.bf16.mxu0 0
    %6254 = vmatpush2.bf16.msra.mxu0 0
    %6255 = vmatprep.subr.bf16.mxu0 0
    %6256 = vmatpush2.bf16.msra.mxu0 0
    %6257 = vmatprep.subr.bf16.mxu0 0
    %6258 = vmatpush2.bf16.msra.mxu0 0
    %6259 = vmatprep.subr.bf16.mxu0 0
    %6260 = vmatpush2.bf16.msra.mxu0 0
    %6261 = vmatprep.subr.bf16.mxu0 0
    %6262 = vmatpush2.bf16.msra.mxu0 0
    %6263 = vmatprep.subr.bf16.mxu0 0
    %6264 = vmatpush2.bf16.msra.mxu0 0
    %6265 = vmatprep.mubr.bf16.mxu0 0
    %6266 = vmatmul.mubr.bf16.gmra.mxu0 %v6004
    %v6267 = vpop.f32.mrf.mxu0
    %v6268 = vadd.f32 %v6186, %v6267
    %v6269 = vpop.f32.mrf.mxu0
    %v6270 = vadd.f32 %v6188, %v6269
    %v6271 = vpop.f32.mrf.mxu0
    %v6272 = vpop.f32.mrf.mxu0
    %6273 = vdwg.mxu0
    %v6274 = vadd.f32 %v6227, %v1636
    %v6275 = vadd.f32 %v6229, %v1640
    %v6276 = vadd.f32 %v6268, %v1644
    %v6277 = vadd.f32 %v6270, %v1648
    %v6278 = vmul.f32 %v6274, 0.5
    %v6279 = vmul.f32 %v6275, 0.5
    %v6280 = vmul.f32 %v6276, 0.5
    %v6281 = vtanh.pop %v6278
    %v6282 = vtanh.pop %v6279
    %v6283 = vtanh.pop %v6280
    %v6284 = vmul.f32 %v6281, 0.5
    %v6285 = vmul.f32 %v6282, 0.5
    %v6286 = vmul.f32 %v6283, 0.5
    %v6287 = vadd.f32 %v6284, 0.5
    %v6288 = vadd.f32 %v6285, 0.5
    %v6289 = vadd.f32 %v6286, 0.5
    %v6290 = vtanh.pop %v6277
    %v6291 = vmul.f32 %v6288, %v5627
    %v6292 = vmul.f32 %v6287, %v6290
    %v6293 = vadd.f32 %v6291, %v6292
    %v6294 = vtanh.pop %v6293
    %v6295 = vmul.f32 %v6289, %v6294
    %v6296 = vpack.c.bf16 %v6002, %v6002
    %v6297 = vpack.c.bf16 %v6003, %v6003
    %6298 = vmatprep.subr.bf16.mxu0 %v2408
    %6299 = vmatpush1.bf16.msra.mxu0 %v2407
    %6300 = vmatprep.subr.bf16.mxu0 %v2400
    %6301 = vmatpush1.bf16.msra.mxu0 %v2399
    %6302 = vmatprep.subr.bf16.mxu0 %v2392
    %6303 = vmatpush1.bf16.msra.mxu0 %v2391
    %6304 = vmatprep.subr.bf16.mxu0 %v2384
    %6305 = vmatpush1.bf16.msra.mxu0 %v2383
    %6306 = vmatprep.subr.bf16.mxu0 %v2376
    %6307 = vmatpush1.bf16.msra.mxu0 %v2375
    %6308 = vmatprep.subr.bf16.mxu0 %v2368
    %6309 = vmatpush1.bf16.msra.mxu0 %v2367
    %6310 = vmatprep.subr.bf16.mxu0 %v2360
    %6311 = vmatpush1.bf16.msra.mxu0 %v2359
    %6312 = vmatprep.subr.bf16.mxu0 %v2352
    %6313 = vmatpush1.bf16.msra.mxu0 %v2351
    %6314 = vmatprep.subr.bf16.mxu0 %v2472
    %6315 = vmatpush2.bf16.msra.mxu0 %v2471
    %6316 = vmatprep.subr.bf16.mxu0 %v2464
    %6317 = vmatpush2.bf16.msra.mxu0 %v2463
    %6318 = vmatprep.subr.bf16.mxu0 %v2456
    %6319 = vmatpush2.bf16.msra.mxu0 %v2455
    %6320 = vmatprep.subr.bf16.mxu0 %v2448
    %6321 = vmatpush2.bf16.msra.mxu0 %v2447
    %6322 = vmatprep.subr.bf16.mxu0 %v2440
    %6323 = vmatpush2.bf16.msra.mxu0 %v2439
    %6324 = vmatprep.subr.bf16.mxu0 %v2432
    %6325 = vmatpush2.bf16.msra.mxu0 %v2431
    %6326 = vmatprep.subr.bf16.mxu0 %v2424
    %6327 = vmatpush2.bf16.msra.mxu0 %v2423
    %6328 = vmatprep.subr.bf16.mxu0 %v2416
    %6329 = vmatpush2.bf16.msra.mxu0 %v2415
    %6330 = vmatprep.mubr.bf16.mxu0 %v6297
    %6331 = vmatmul.mubr.bf16.gmra.mxu0 %v6296
    %v6332 = vpop.f32.mrf.mxu0
    %v6333 = vadd.f32 0.0, %v6332
    %v6334 = vpop.f32.mrf.mxu0
    %v6335 = vadd.f32 0.0, %v6334
    %v6336 = vpop.f32.mrf.mxu0
    %v6337 = vpop.f32.mrf.mxu0
    %6338 = vdwg.mxu0
    %6339 = vmatprep.subr.bf16.mxu0 %v2410
    %6340 = vmatpush1.bf16.msra.mxu0 %v2409
    %6341 = vmatprep.subr.bf16.mxu0 %v2402
    %6342 = vmatpush1.bf16.msra.mxu0 %v2401
    %6343 = vmatprep.subr.bf16.mxu0 %v2394
    %6344 = vmatpush1.bf16.msra.mxu0 %v2393
    %6345 = vmatprep.subr.bf16.mxu0 %v2386
    %6346 = vmatpush1.bf16.msra.mxu0 %v2385
    %6347 = vmatprep.subr.bf16.mxu0 %v2378
    %6348 = vmatpush1.bf16.msra.mxu0 %v2377
    %6349 = vmatprep.subr.bf16.mxu0 %v2370
    %6350 = vmatpush1.bf16.msra.mxu0 %v2369
    %6351 = vmatprep.subr.bf16.mxu0 %v2362
    %6352 = vmatpush1.bf16.msra.mxu0 %v2361
    %6353 = vmatprep.subr.bf16.mxu0 %v2354
    %6354 = vmatpush1.bf16.msra.mxu0 %v2353
    %6355 = vmatprep.subr.bf16.mxu0 %v2474
    %6356 = vmatpush2.bf16.msra.mxu0 %v2473
    %6357 = vmatprep.subr.bf16.mxu0 %v2466
    %6358 = vmatpush2.bf16.msra.mxu0 %v2465
    %6359 = vmatprep.subr.bf16.mxu0 %v2458
    %6360 = vmatpush2.bf16.msra.mxu0 %v2457
    %6361 = vmatprep.subr.bf16.mxu0 %v2450
    %6362 = vmatpush2.bf16.msra.mxu0 %v2449
    %6363 = vmatprep.subr.bf16.mxu0 %v2442
    %6364 = vmatpush2.bf16.msra.mxu0 %v2441
    %6365 = vmatprep.subr.bf16.mxu0 %v2434
    %6366 = vmatpush2.bf16.msra.mxu0 %v2433
    %6367 = vmatprep.subr.bf16.mxu0 %v2426
    %6368 = vmatpush2.bf16.msra.mxu0 %v2425
    %6369 = vmatprep.subr.bf16.mxu0 %v2418
    %6370 = vmatpush2.bf16.msra.mxu0 %v2417
    %6371 = vmatprep.mubr.bf16.mxu0 %v6297
    %6372 = vmatmul.mubr.bf16.gmra.mxu0 %v6296
    %v6373 = vpop.f32.mrf.mxu0
    %v6374 = vadd.f32 0.0, %v6373
    %v6375 = vpop.f32.mrf.mxu0
    %v6376 = vadd.f32 0.0, %v6375
    %v6377 = vpop.f32.mrf.mxu0
    %v6378 = vpop.f32.mrf.mxu0
    %6379 = vdwg.mxu0
    %6380 = vmatprep.subr.bf16.mxu0 %v2412
    %6381 = vmatpush1.bf16.msra.mxu0 %v2411
    %6382 = vmatprep.subr.bf16.mxu0 %v2404
    %6383 = vmatpush1.bf16.msra.mxu0 %v2403
    %6384 = vmatprep.subr.bf16.mxu0 %v2396
    %6385 = vmatpush1.bf16.msra.mxu0 %v2395
    %6386 = vmatprep.subr.bf16.mxu0 %v2388
    %6387 = vmatpush1.bf16.msra.mxu0 %v2387
    %6388 = vmatprep.subr.bf16.mxu0 %v2380
    %6389 = vmatpush1.bf16.msra.mxu0 %v2379
    %6390 = vmatprep.subr.bf16.mxu0 %v2372
    %6391 = vmatpush1.bf16.msra.mxu0 %v2371
    %6392 = vmatprep.subr.bf16.mxu0 %v2364
    %6393 = vmatpush1.bf16.msra.mxu0 %v2363
    %6394 = vmatprep.subr.bf16.mxu0 %v2356
    %6395 = vmatpush1.bf16.msra.mxu0 %v2355
    %6396 = vmatprep.subr.bf16.mxu0 %v2476
    %6397 = vmatpush2.bf16.msra.mxu0 %v2475
    %6398 = vmatprep.subr.bf16.mxu0 %v2468
    %6399 = vmatpush2.bf16.msra.mxu0 %v2467
    %6400 = vmatprep.subr.bf16.mxu0 %v2460
    %6401 = vmatpush2.bf16.msra.mxu0 %v2459
    %6402 = vmatprep.subr.bf16.mxu0 %v2452
    %6403 = vmatpush2.bf16.msra.mxu0 %v2451
    %6404 = vmatprep.subr.bf16.mxu0 %v2444
    %6405 = vmatpush2.bf16.msra.mxu0 %v2443
    %6406 = vmatprep.subr.bf16.mxu0 %v2436
    %6407 = vmatpush2.bf16.msra.mxu0 %v2435
    %6408 = vmatprep.subr.bf16.mxu0 %v2428
    %6409 = vmatpush2.bf16.msra.mxu0 %v2427
    %6410 = vmatprep.subr.bf16.mxu0 %v2420
    %6411 = vmatpush2.bf16.msra.mxu0 %v2419
    %6412 = vmatprep.mubr.bf16.mxu0 %v6297
    %6413 = vmatmul.mubr.bf16.gmra.mxu0 %v6296
    %v6414 = vpop.f32.mrf.mxu0
    %v6415 = vadd.f32 0.0, %v6414
    %v6416 = vpop.f32.mrf.mxu0
    %v6417 = vadd.f32 0.0, %v6416
    %v6418 = vpop.f32.mrf.mxu0
    %v6419 = vpop.f32.mrf.mxu0
    %6420 = vdwg.mxu0
    %6421 = vmatprep.subr.bf16.mxu0 %v2414
    %6422 = vmatpush1.bf16.msra.mxu0 %v2413
    %6423 = vmatprep.subr.bf16.mxu0 %v2406
    %6424 = vmatpush1.bf16.msra.mxu0 %v2405
    %6425 = vmatprep.subr.bf16.mxu0 %v2398
    %6426 = vmatpush1.bf16.msra.mxu0 %v2397
    %6427 = vmatprep.subr.bf16.mxu0 %v2390
    %6428 = vmatpush1.bf16.msra.mxu0 %v2389
    %6429 = vmatprep.subr.bf16.mxu0 %v2382
    %6430 = vmatpush1.bf16.msra.mxu0 %v2381
    %6431 = vmatprep.subr.bf16.mxu0 %v2374
    %6432 = vmatpush1.bf16.msra.mxu0 %v2373
    %6433 = vmatprep.subr.bf16.mxu0 %v2366
    %6434 = vmatpush1.bf16.msra.mxu0 %v2365
    %6435 = vmatprep.subr.bf16.mxu0 %v2358
    %6436 = vmatpush1.bf16.msra.mxu0 %v2357
    %6437 = vmatprep.subr.bf16.mxu0 %v2478
    %6438 = vmatpush2.bf16.msra.mxu0 %v2477
    %6439 = vmatprep.subr.bf16.mxu0 %v2470
    %6440 = vmatpush2.bf16.msra.mxu0 %v2469
    %6441 = vmatprep.subr.bf16.mxu0 %v2462
    %6442 = vmatpush2.bf16.msra.mxu0 %v2461
    %6443 = vmatprep.subr.bf16.mxu0 %v2454
    %6444 = vmatpush2.bf16.msra.mxu0 %v2453
    %6445 = vmatprep.subr.bf16.mxu0 %v2446
    %6446 = vmatpush2.bf16.msra.mxu0 %v2445
    %6447 = vmatprep.subr.bf16.mxu0 %v2438
    %6448 = vmatpush2.bf16.msra.mxu0 %v2437
    %6449 = vmatprep.subr.bf16.mxu0 %v2430
    %6450 = vmatpush2.bf16.msra.mxu0 %v2429
    %6451 = vmatprep.subr.bf16.mxu0 %v2422
    %6452 = vmatpush2.bf16.msra.mxu0 %v2421
    %6453 = vmatprep.mubr.bf16.mxu0 %v6297
    %6454 = vmatmul.mubr.bf16.gmra.mxu0 %v6296
    %v6455 = vpop.f32.mrf.mxu0
    %v6456 = vadd.f32 0.0, %v6455
    %v6457 = vpop.f32.mrf.mxu0
    %v6458 = vadd.f32 0.0, %v6457
    %v6459 = vpop.f32.mrf.mxu0
    %v6460 = vpop.f32.mrf.mxu0
    %6461 = vdwg.mxu0
    %6462 = vmatprep.subr.bf16.mxu0 %v3020
    %6463 = vmatpush1.bf16.msra.mxu0 %v3019
    %6464 = vmatprep.subr.bf16.mxu0 %v3012
    %6465 = vmatpush1.bf16.msra.mxu0 %v3011
    %6466 = vmatprep.subr.bf16.mxu0 %v3004
    %6467 = vmatpush1.bf16.msra.mxu0 %v3003
    %6468 = vmatprep.subr.bf16.mxu0 %v2996
    %6469 = vmatpush1.bf16.msra.mxu0 %v2995
    %6470 = vmatprep.subr.bf16.mxu0 %v2988
    %6471 = vmatpush1.bf16.msra.mxu0 %v2987
    %6472 = vmatprep.subr.bf16.mxu0 %v2980
    %6473 = vmatpush1.bf16.msra.mxu0 %v2979
    %6474 = vmatprep.subr.bf16.mxu0 %v2972
    %6475 = vmatpush1.bf16.msra.mxu0 %v2971
    %6476 = vmatprep.subr.bf16.mxu0 %v2964
    %6477 = vmatpush1.bf16.msra.mxu0 %v2963
    %6478 = vmatprep.subr.bf16.mxu0 0
    %6479 = vmatpush2.bf16.msra.mxu0 0
    %6480 = vmatprep.subr.bf16.mxu0 0
    %6481 = vmatpush2.bf16.msra.mxu0 0
    %6482 = vmatprep.subr.bf16.mxu0 0
    %6483 = vmatpush2.bf16.msra.mxu0 0
    %6484 = vmatprep.subr.bf16.mxu0 0
    %6485 = vmatpush2.bf16.msra.mxu0 0
    %6486 = vmatprep.subr.bf16.mxu0 0
    %6487 = vmatpush2.bf16.msra.mxu0 0
    %6488 = vmatprep.subr.bf16.mxu0 0
    %6489 = vmatpush2.bf16.msra.mxu0 0
    %6490 = vmatprep.subr.bf16.mxu0 0
    %6491 = vmatpush2.bf16.msra.mxu0 0
    %6492 = vmatprep.subr.bf16.mxu0 0
    %6493 = vmatpush2.bf16.msra.mxu0 0
    %6494 = vmatprep.mubr.bf16.mxu0 0
    %6495 = vmatmul.mubr.bf16.gmra.mxu0 %v6109
    %v6496 = vpop.f32.mrf.mxu0
    %v6497 = vadd.f32 %v6333, %v6496
    %v6498 = vpop.f32.mrf.mxu0
    %v6499 = vadd.f32 %v6335, %v6498
    %v6500 = vpop.f32.mrf.mxu0
    %v6501 = vpop.f32.mrf.mxu0
    %6502 = vdwg.mxu0
    %6503 = vmatprep.subr.bf16.mxu0 %v3022
    %6504 = vmatpush1.bf16.msra.mxu0 %v3021
    %6505 = vmatprep.subr.bf16.mxu0 %v3014
    %6506 = vmatpush1.bf16.msra.mxu0 %v3013
    %6507 = vmatprep.subr.bf16.mxu0 %v3006
    %6508 = vmatpush1.bf16.msra.mxu0 %v3005
    %6509 = vmatprep.subr.bf16.mxu0 %v2998
    %6510 = vmatpush1.bf16.msra.mxu0 %v2997
    %6511 = vmatprep.subr.bf16.mxu0 %v2990
    %6512 = vmatpush1.bf16.msra.mxu0 %v2989
    %6513 = vmatprep.subr.bf16.mxu0 %v2982
    %6514 = vmatpush1.bf16.msra.mxu0 %v2981
    %6515 = vmatprep.subr.bf16.mxu0 %v2974
    %6516 = vmatpush1.bf16.msra.mxu0 %v2973
    %6517 = vmatprep.subr.bf16.mxu0 %v2966
    %6518 = vmatpush1.bf16.msra.mxu0 %v2965
    %6519 = vmatprep.subr.bf16.mxu0 0
    %6520 = vmatpush2.bf16.msra.mxu0 0
    %6521 = vmatprep.subr.bf16.mxu0 0
    %6522 = vmatpush2.bf16.msra.mxu0 0
    %6523 = vmatprep.subr.bf16.mxu0 0
    %6524 = vmatpush2.bf16.msra.mxu0 0
    %6525 = vmatprep.subr.bf16.mxu0 0
    %6526 = vmatpush2.bf16.msra.mxu0 0
    %6527 = vmatprep.subr.bf16.mxu0 0
    %6528 = vmatpush2.bf16.msra.mxu0 0
    %6529 = vmatprep.subr.bf16.mxu0 0
    %6530 = vmatpush2.bf16.msra.mxu0 0
    %6531 = vmatprep.subr.bf16.mxu0 0
    %6532 = vmatpush2.bf16.msra.mxu0 0
    %6533 = vmatprep.subr.bf16.mxu0 0
    %6534 = vmatpush2.bf16.msra.mxu0 0
    %6535 = vmatprep.mubr.bf16.mxu0 0
    %6536 = vmatmul.mubr.bf16.gmra.mxu0 %v6109
    %v6537 = vpop.f32.mrf.mxu0
    %v6538 = vadd.f32 %v6374, %v6537
    %v6539 = vpop.f32.mrf.mxu0
    %v6540 = vadd.f32 %v6376, %v6539
    %v6541 = vpop.f32.mrf.mxu0
    %v6542 = vpop.f32.mrf.mxu0
    %6543 = vdwg.mxu0
    %6544 = vmatprep.subr.bf16.mxu0 %v3024
    %6545 = vmatpush1.bf16.msra.mxu0 %v3023
    %6546 = vmatprep.subr.bf16.mxu0 %v3016
    %6547 = vmatpush1.bf16.msra.mxu0 %v3015
    %6548 = vmatprep.subr.bf16.mxu0 %v3008
    %6549 = vmatpush1.bf16.msra.mxu0 %v3007
    %6550 = vmatprep.subr.bf16.mxu0 %v3000
    %6551 = vmatpush1.bf16.msra.mxu0 %v2999
    %6552 = vmatprep.subr.bf16.mxu0 %v2992
    %6553 = vmatpush1.bf16.msra.mxu0 %v2991
    %6554 = vmatprep.subr.bf16.mxu0 %v2984
    %6555 = vmatpush1.bf16.msra.mxu0 %v2983
    %6556 = vmatprep.subr.bf16.mxu0 %v2976
    %6557 = vmatpush1.bf16.msra.mxu0 %v2975
    %6558 = vmatprep.subr.bf16.mxu0 %v2968
    %6559 = vmatpush1.bf16.msra.mxu0 %v2967
    %6560 = vmatprep.subr.bf16.mxu0 0
    %6561 = vmatpush2.bf16.msra.mxu0 0
    %6562 = vmatprep.subr.bf16.mxu0 0
    %6563 = vmatpush2.bf16.msra.mxu0 0
    %6564 = vmatprep.subr.bf16.mxu0 0
    %6565 = vmatpush2.bf16.msra.mxu0 0
    %6566 = vmatprep.subr.bf16.mxu0 0
    %6567 = vmatpush2.bf16.msra.mxu0 0
    %6568 = vmatprep.subr.bf16.mxu0 0
    %6569 = vmatpush2.bf16.msra.mxu0 0
    %6570 = vmatprep.subr.bf16.mxu0 0
    %6571 = vmatpush2.bf16.msra.mxu0 0
    %6572 = vmatprep.subr.bf16.mxu0 0
    %6573 = vmatpush2.bf16.msra.mxu0 0
    %6574 = vmatprep.subr.bf16.mxu0 0
    %6575 = vmatpush2.bf16.msra.mxu0 0
    %6576 = vmatprep.mubr.bf16.mxu0 0
    %6577 = vmatmul.mubr.bf16.gmra.mxu0 %v6109
    %v6578 = vpop.f32.mrf.mxu0
    %v6579 = vadd.f32 %v6415, %v6578
    %v6580 = vpop.f32.mrf.mxu0
    %v6581 = vadd.f32 %v6417, %v6580
    %v6582 = vpop.f32.mrf.mxu0
    %v6583 = vpop.f32.mrf.mxu0
    %6584 = vdwg.mxu0
    %6585 = vmatprep.subr.bf16.mxu0 %v3026
    %6586 = vmatpush1.bf16.msra.mxu0 %v3025
    %6587 = vmatprep.subr.bf16.mxu0 %v3018
    %6588 = vmatpush1.bf16.msra.mxu0 %v3017
    %6589 = vmatprep.subr.bf16.mxu0 %v3010
    %6590 = vmatpush1.bf16.msra.mxu0 %v3009
    %6591 = vmatprep.subr.bf16.mxu0 %v3002
    %6592 = vmatpush1.bf16.msra.mxu0 %v3001
    %6593 = vmatprep.subr.bf16.mxu0 %v2994
    %6594 = vmatpush1.bf16.msra.mxu0 %v2993
    %6595 = vmatprep.subr.bf16.mxu0 %v2986
    %6596 = vmatpush1.bf16.msra.mxu0 %v2985
    %6597 = vmatprep.subr.bf16.mxu0 %v2978
    %6598 = vmatpush1.bf16.msra.mxu0 %v2977
    %6599 = vmatprep.subr.bf16.mxu0 %v2970
    %6600 = vmatpush1.bf16.msra.mxu0 %v2969
    %6601 = vmatprep.subr.bf16.mxu0 0
    %6602 = vmatpush2.bf16.msra.mxu0 0
    %6603 = vmatprep.subr.bf16.mxu0 0
    %6604 = vmatpush2.bf16.msra.mxu0 0
    %6605 = vmatprep.subr.bf16.mxu0 0
    %6606 = vmatpush2.bf16.msra.mxu0 0
    %6607 = vmatprep.subr.bf16.mxu0 0
    %6608 = vmatpush2.bf16.msra.mxu0 0
    %6609 = vmatprep.subr.bf16.mxu0 0
    %6610 = vmatpush2.bf16.msra.mxu0 0
    %6611 = vmatprep.subr.bf16.mxu0 0
    %6612 = vmatpush2.bf16.msra.mxu0 0
    %6613 = vmatprep.subr.bf16.mxu0 0
    %6614 = vmatpush2.bf16.msra.mxu0 0
    %6615 = vmatprep.subr.bf16.mxu0 0
    %6616 = vmatpush2.bf16.msra.mxu0 0
    %6617 = vmatprep.mubr.bf16.mxu0 0
    %6618 = vmatmul.mubr.bf16.gmra.mxu0 %v6109
    %v6619 = vpop.f32.mrf.mxu0
    %v6620 = vadd.f32 %v6456, %v6619
    %v6621 = vpop.f32.mrf.mxu0
    %v6622 = vadd.f32 %v6458, %v6621
    %v6623 = vpop.f32.mrf.mxu0
    %v6624 = vpop.f32.mrf.mxu0
    %6625 = vdwg.mxu0
    %v6626 = vadd.f32 %v6497, %v3259
    %v6627 = vadd.f32 %v6499, %v3263
    %v6628 = vadd.f32 %v6538, %v3267
    %v6629 = vadd.f32 %v6540, %v3271
    %v6630 = vadd.f32 %v6579, %v3275
    %v6631 = vadd.f32 %v6581, %v3279
    %v6632 = vadd.f32 %v6620, %v3283
    %v6633 = vadd.f32 %v6622, %v3287
    %v6634 = vmul.f32 %v6626, 0.5
    %v6635 = vmul.f32 %v6627, 0.5
    %v6636 = vmul.f32 %v6628, 0.5
    %v6637 = vmul.f32 %v6629, 0.5
    %v6638 = vmul.f32 %v6630, 0.5
    %v6639 = vmul.f32 %v6631, 0.5
    %v6640 = vtanh.pop %v6634
    %v6641 = vtanh.pop %v6635
    %v6642 = vtanh.pop %v6636
    %v6643 = vtanh.pop %v6637
    %v6644 = vtanh.pop %v6638
    %v6645 = vtanh.pop %v6639
    %v6646 = vmul.f32 %v6640, 0.5
    %v6647 = vmul.f32 %v6641, 0.5
    %v6648 = vmul.f32 %v6642, 0.5
    %v6649 = vmul.f32 %v6643, 0.5
    %v6650 = vmul.f32 %v6644, 0.5
    %v6651 = vmul.f32 %v6645, 0.5
    %v6652 = vadd.f32 %v6646, 0.5
    %v6653 = vadd.f32 %v6647, 0.5
    %v6654 = vadd.f32 %v6648, 0.5
    %v6655 = vadd.f32 %v6649, 0.5
    %v6656 = vadd.f32 %v6650, 0.5
    %v6657 = vadd.f32 %v6651, 0.5
    %v6658 = vtanh.pop %v6632
    %v6659 = vtanh.pop %v6633
    %v6660 = vmul.f32 %v6654, %v5998
    %v6661 = vmul.f32 %v6655, %v5999
    %v6662 = vmul.f32 %v6652, %v6658
    %v6663 = vmul.f32 %v6653, %v6659
    %v6664 = vadd.f32 %v6660, %v6662
    %v6665 = vadd.f32 %v6661, %v6663
    %v6666 = vtanh.pop %v6664
    %v6667 = vtanh.pop %v6665
    %v6668 = vmul.f32 %v6656, %v6666
    %v6669 = vmul.f32 %v6657, %v6667
    %v6670 = vpack.c.bf16 %v6108, %v6108
    %v6671 = vpack.c.bf16 %v6295, %v6295
    %6672 = vmatprep.subr.bf16.mxu0 %v1273
    %6673 = vmatpush1.bf16.msra.mxu0 %v1272
    %6674 = vmatprep.subr.bf16.mxu0 %v1269
    %6675 = vmatpush1.bf16.msra.mxu0 %v1268
    %6676 = vmatprep.subr.bf16.mxu0 %v1265
    %6677 = vmatpush1.bf16.msra.mxu0 %v1264
    %6678 = vmatprep.subr.bf16.mxu0 %v1261
    %6679 = vmatpush1.bf16.msra.mxu0 %v1260
    %6680 = vmatprep.subr.bf16.mxu0 %v1257
    %6681 = vmatpush1.bf16.msra.mxu0 %v1256
    %6682 = vmatprep.subr.bf16.mxu0 %v1253
    %6683 = vmatpush1.bf16.msra.mxu0 %v1252
    %6684 = vmatprep.subr.bf16.mxu0 %v1249
    %6685 = vmatpush1.bf16.msra.mxu0 %v1248
    %6686 = vmatprep.subr.bf16.mxu0 %v1245
    %6687 = vmatpush1.bf16.msra.mxu0 %v1244
    %6688 = vmatprep.subr.bf16.mxu0 0
    %6689 = vmatpush2.bf16.msra.mxu0 0
    %6690 = vmatprep.subr.bf16.mxu0 0
    %6691 = vmatpush2.bf16.msra.mxu0 0
    %6692 = vmatprep.subr.bf16.mxu0 0
    %6693 = vmatpush2.bf16.msra.mxu0 0
    %6694 = vmatprep.subr.bf16.mxu0 0
    %6695 = vmatpush2.bf16.msra.mxu0 0
    %6696 = vmatprep.subr.bf16.mxu0 0
    %6697 = vmatpush2.bf16.msra.mxu0 0
    %6698 = vmatprep.subr.bf16.mxu0 0
    %6699 = vmatpush2.bf16.msra.mxu0 0
    %6700 = vmatprep.subr.bf16.mxu0 0
    %6701 = vmatpush2.bf16.msra.mxu0 0
    %6702 = vmatprep.subr.bf16.mxu0 0
    %6703 = vmatpush2.bf16.msra.mxu0 0
    %6704 = vmatprep.mubr.bf16.mxu0 0
    %6705 = vmatmul.mubr.bf16.gmra.mxu0 %v6671
    %v6706 = vpop.f32.mrf.mxu0
    %v6707 = vadd.f32 0.0, %v6706
    %v6708 = vpop.f32.mrf.mxu0
    %v6709 = vadd.f32 0.0, %v6708
    %v6710 = vpop.f32.mrf.mxu0
    %v6711 = vpop.f32.mrf.mxu0
    %6712 = vdwg.mxu0
    %6713 = vmatprep.subr.bf16.mxu0 %v1275
    %6714 = vmatpush1.bf16.msra.mxu0 %v1274
    %6715 = vmatprep.subr.bf16.mxu0 %v1271
    %6716 = vmatpush1.bf16.msra.mxu0 %v1270
    %6717 = vmatprep.subr.bf16.mxu0 %v1267
    %6718 = vmatpush1.bf16.msra.mxu0 %v1266
    %6719 = vmatprep.subr.bf16.mxu0 %v1263
    %6720 = vmatpush1.bf16.msra.mxu0 %v1262
    %6721 = vmatprep.subr.bf16.mxu0 %v1259
    %6722 = vmatpush1.bf16.msra.mxu0 %v1258
    %6723 = vmatprep.subr.bf16.mxu0 %v1255
    %6724 = vmatpush1.bf16.msra.mxu0 %v1254
    %6725 = vmatprep.subr.bf16.mxu0 %v1251
    %6726 = vmatpush1.bf16.msra.mxu0 %v1250
    %6727 = vmatprep.subr.bf16.mxu0 %v1247
    %6728 = vmatpush1.bf16.msra.mxu0 %v1246
    %6729 = vmatprep.subr.bf16.mxu0 0
    %6730 = vmatpush2.bf16.msra.mxu0 0
    %6731 = vmatprep.subr.bf16.mxu0 0
    %6732 = vmatpush2.bf16.msra.mxu0 0
    %6733 = vmatprep.subr.bf16.mxu0 0
    %6734 = vmatpush2.bf16.msra.mxu0 0
    %6735 = vmatprep.subr.bf16.mxu0 0
    %6736 = vmatpush2.bf16.msra.mxu0 0
    %6737 = vmatprep.subr.bf16.mxu0 0
    %6738 = vmatpush2.bf16.msra.mxu0 0
    %6739 = vmatprep.subr.bf16.mxu0 0
    %6740 = vmatpush2.bf16.msra.mxu0 0
    %6741 = vmatprep.subr.bf16.mxu0 0
    %6742 = vmatpush2.bf16.msra.mxu0 0
    %6743 = vmatprep.subr.bf16.mxu0 0
    %6744 = vmatpush2.bf16.msra.mxu0 0
    %6745 = vmatprep.mubr.bf16.mxu0 0
    %6746 = vmatmul.mubr.bf16.gmra.mxu0 %v6671
    %v6747 = vpop.f32.mrf.mxu0
    %v6748 = vadd.f32 0.0, %v6747
    %v6749 = vpop.f32.mrf.mxu0
    %v6750 = vadd.f32 0.0, %v6749
    %v6751 = vpop.f32.mrf.mxu0
    %v6752 = vpop.f32.mrf.mxu0
    %6753 = vdwg.mxu0
    %6754 = vmatprep.subr.bf16.mxu0 %v1515
    %6755 = vmatpush1.bf16.msra.mxu0 %v1514
    %6756 = vmatprep.subr.bf16.mxu0 %v1511
    %6757 = vmatpush1.bf16.msra.mxu0 %v1510
    %6758 = vmatprep.subr.bf16.mxu0 %v1507
    %6759 = vmatpush1.bf16.msra.mxu0 %v1506
    %6760 = vmatprep.subr.bf16.mxu0 %v1503
    %6761 = vmatpush1.bf16.msra.mxu0 %v1502
    %6762 = vmatprep.subr.bf16.mxu0 %v1499
    %6763 = vmatpush1.bf16.msra.mxu0 %v1498
    %6764 = vmatprep.subr.bf16.mxu0 %v1495
    %6765 = vmatpush1.bf16.msra.mxu0 %v1494
    %6766 = vmatprep.subr.bf16.mxu0 %v1491
    %6767 = vmatpush1.bf16.msra.mxu0 %v1490
    %6768 = vmatprep.subr.bf16.mxu0 %v1487
    %6769 = vmatpush1.bf16.msra.mxu0 %v1486
    %6770 = vmatprep.subr.bf16.mxu0 0
    %6771 = vmatpush2.bf16.msra.mxu0 0
    %6772 = vmatprep.subr.bf16.mxu0 0
    %6773 = vmatpush2.bf16.msra.mxu0 0
    %6774 = vmatprep.subr.bf16.mxu0 0
    %6775 = vmatpush2.bf16.msra.mxu0 0
    %6776 = vmatprep.subr.bf16.mxu0 0
    %6777 = vmatpush2.bf16.msra.mxu0 0
    %6778 = vmatprep.subr.bf16.mxu0 0
    %6779 = vmatpush2.bf16.msra.mxu0 0
    %6780 = vmatprep.subr.bf16.mxu0 0
    %6781 = vmatpush2.bf16.msra.mxu0 0
    %6782 = vmatprep.subr.bf16.mxu0 0
    %6783 = vmatpush2.bf16.msra.mxu0 0
    %6784 = vmatprep.subr.bf16.mxu0 0
    %6785 = vmatpush2.bf16.msra.mxu0 0
    %6786 = vmatprep.mubr.bf16.mxu0 0
    %6787 = vmatmul.mubr.bf16.gmra.mxu0 %v6670
    %v6788 = vpop.f32.mrf.mxu0
    %v6789 = vadd.f32 %v6707, %v6788
    %v6790 = vpop.f32.mrf.mxu0
    %v6791 = vadd.f32 %v6709, %v6790
    %v6792 = vpop.f32.mrf.mxu0
    %v6793 = vpop.f32.mrf.mxu0
    %6794 = vdwg.mxu0
    %6795 = vmatprep.subr.bf16.mxu0 %v1517
    %6796 = vmatpush1.bf16.msra.mxu0 %v1516
    %6797 = vmatprep.subr.bf16.mxu0 %v1513
    %6798 = vmatpush1.bf16.msra.mxu0 %v1512
    %6799 = vmatprep.subr.bf16.mxu0 %v1509
    %6800 = vmatpush1.bf16.msra.mxu0 %v1508
    %6801 = vmatprep.subr.bf16.mxu0 %v1505
    %6802 = vmatpush1.bf16.msra.mxu0 %v1504
    %6803 = vmatprep.subr.bf16.mxu0 %v1501
    %6804 = vmatpush1.bf16.msra.mxu0 %v1500
    %6805 = vmatprep.subr.bf16.mxu0 %v1497
    %6806 = vmatpush1.bf16.msra.mxu0 %v1496
    %6807 = vmatprep.subr.bf16.mxu0 %v1493
    %6808 = vmatpush1.bf16.msra.mxu0 %v1492
    %6809 = vmatprep.subr.bf16.mxu0 %v1489
    %6810 = vmatpush1.bf16.msra.mxu0 %v1488
    %6811 = vmatprep.subr.bf16.mxu0 0
    %6812 = vmatpush2.bf16.msra.mxu0 0
    %6813 = vmatprep.subr.bf16.mxu0 0
    %6814 = vmatpush2.bf16.msra.mxu0 0
    %6815 = vmatprep.subr.bf16.mxu0 0
    %6816 = vmatpush2.bf16.msra.mxu0 0
    %6817 = vmatprep.subr.bf16.mxu0 0
    %6818 = vmatpush2.bf16.msra.mxu0 0
    %6819 = vmatprep.subr.bf16.mxu0 0
    %6820 = vmatpush2.bf16.msra.mxu0 0
    %6821 = vmatprep.subr.bf16.mxu0 0
    %6822 = vmatpush2.bf16.msra.mxu0 0
    %6823 = vmatprep.subr.bf16.mxu0 0
    %6824 = vmatpush2.bf16.msra.mxu0 0
    %6825 = vmatprep.subr.bf16.mxu0 0
    %6826 = vmatpush2.bf16.msra.mxu0 0
    %6827 = vmatprep.mubr.bf16.mxu0 0
    %6828 = vmatmul.mubr.bf16.gmra.mxu0 %v6670
    %v6829 = vpop.f32.mrf.mxu0
    %v6830 = vadd.f32 %v6748, %v6829
    %v6831 = vpop.f32.mrf.mxu0
    %v6832 = vadd.f32 %v6750, %v6831
    %v6833 = vpop.f32.mrf.mxu0
    %v6834 = vpop.f32.mrf.mxu0
    %6835 = vdwg.mxu0
    %v6836 = vadd.f32 %v6789, %v1636
    %v6837 = vadd.f32 %v6791, %v1640
    %v6838 = vadd.f32 %v6830, %v1644
    %v6839 = vadd.f32 %v6832, %v1648
    %v6840 = vmul.f32 %v6836, 0.5
    %v6841 = vmul.f32 %v6837, 0.5
    %v6842 = vmul.f32 %v6838, 0.5
    %v6843 = vtanh.pop %v6840
    %v6844 = vtanh.pop %v6841
    %v6845 = vtanh.pop %v6842
    %v6846 = vmul.f32 %v6843, 0.5
    %v6847 = vmul.f32 %v6844, 0.5
    %v6848 = vmul.f32 %v6845, 0.5
    %v6849 = vadd.f32 %v6846, 0.5
    %v6850 = vadd.f32 %v6847, 0.5
    %v6851 = vadd.f32 %v6848, 0.5
    %v6852 = vtanh.pop %v6839
    %v6853 = vmul.f32 %v6850, %v6293
    %v6854 = vmul.f32 %v6849, %v6852
    %v6855 = vadd.f32 %v6853, %v6854
    %v6856 = vtanh.pop %v6855
    %v6857 = vmul.f32 %v6851, %v6856
    %v6858 = vpack.c.bf16 %v6668, %v6668
    %v6859 = vpack.c.bf16 %v6669, %v6669
    %6860 = vmatprep.subr.bf16.mxu0 %v2408
    %6861 = vmatpush1.bf16.msra.mxu0 %v2407
    %6862 = vmatprep.subr.bf16.mxu0 %v2400
    %6863 = vmatpush1.bf16.msra.mxu0 %v2399
    %6864 = vmatprep.subr.bf16.mxu0 %v2392
    %6865 = vmatpush1.bf16.msra.mxu0 %v2391
    %6866 = vmatprep.subr.bf16.mxu0 %v2384
    %6867 = vmatpush1.bf16.msra.mxu0 %v2383
    %6868 = vmatprep.subr.bf16.mxu0 %v2376
    %6869 = vmatpush1.bf16.msra.mxu0 %v2375
    %6870 = vmatprep.subr.bf16.mxu0 %v2368
    %6871 = vmatpush1.bf16.msra.mxu0 %v2367
    %6872 = vmatprep.subr.bf16.mxu0 %v2360
    %6873 = vmatpush1.bf16.msra.mxu0 %v2359
    %6874 = vmatprep.subr.bf16.mxu0 %v2352
    %6875 = vmatpush1.bf16.msra.mxu0 %v2351
    %6876 = vmatprep.subr.bf16.mxu0 %v2472
    %6877 = vmatpush2.bf16.msra.mxu0 %v2471
    %6878 = vmatprep.subr.bf16.mxu0 %v2464
    %6879 = vmatpush2.bf16.msra.mxu0 %v2463
    %6880 = vmatprep.subr.bf16.mxu0 %v2456
    %6881 = vmatpush2.bf16.msra.mxu0 %v2455
    %6882 = vmatprep.subr.bf16.mxu0 %v2448
    %6883 = vmatpush2.bf16.msra.mxu0 %v2447
    %6884 = vmatprep.subr.bf16.mxu0 %v2440
    %6885 = vmatpush2.bf16.msra.mxu0 %v2439
    %6886 = vmatprep.subr.bf16.mxu0 %v2432
    %6887 = vmatpush2.bf16.msra.mxu0 %v2431
    %6888 = vmatprep.subr.bf16.mxu0 %v2424
    %6889 = vmatpush2.bf16.msra.mxu0 %v2423
    %6890 = vmatprep.subr.bf16.mxu0 %v2416
    %6891 = vmatpush2.bf16.msra.mxu0 %v2415
    %6892 = vmatprep.mubr.bf16.mxu0 %v6859
    %6893 = vmatmul.mubr.bf16.gmra.mxu0 %v6858
    %v6894 = vpop.f32.mrf.mxu0
    %v6895 = vadd.f32 0.0, %v6894
    %v6896 = vpop.f32.mrf.mxu0
    %v6897 = vadd.f32 0.0, %v6896
    %v6898 = vpop.f32.mrf.mxu0
    %v6899 = vpop.f32.mrf.mxu0
    %6900 = vdwg.mxu0
    %6901 = vmatprep.subr.bf16.mxu0 %v2410
    %6902 = vmatpush1.bf16.msra.mxu0 %v2409
    %6903 = vmatprep.subr.bf16.mxu0 %v2402
    %6904 = vmatpush1.bf16.msra.mxu0 %v2401
    %6905 = vmatprep.subr.bf16.mxu0 %v2394
    %6906 = vmatpush1.bf16.msra.mxu0 %v2393
    %6907 = vmatprep.subr.bf16.mxu0 %v2386
    %6908 = vmatpush1.bf16.msra.mxu0 %v2385
    %6909 = vmatprep.subr.bf16.mxu0 %v2378
    %6910 = vmatpush1.bf16.msra.mxu0 %v2377
    %6911 = vmatprep.subr.bf16.mxu0 %v2370
    %6912 = vmatpush1.bf16.msra.mxu0 %v2369
    %6913 = vmatprep.subr.bf16.mxu0 %v2362
    %6914 = vmatpush1.bf16.msra.mxu0 %v2361
    %6915 = vmatprep.subr.bf16.mxu0 %v2354
    %6916 = vmatpush1.bf16.msra.mxu0 %v2353
    %6917 = vmatprep.subr.bf16.mxu0 %v2474
    %6918 = vmatpush2.bf16.msra.mxu0 %v2473
    %6919 = vmatprep.subr.bf16.mxu0 %v2466
    %6920 = vmatpush2.bf16.msra.mxu0 %v2465
    %6921 = vmatprep.subr.bf16.mxu0 %v2458
    %6922 = vmatpush2.bf16.msra.mxu0 %v2457
    %6923 = vmatprep.subr.bf16.mxu0 %v2450
    %6924 = vmatpush2.bf16.msra.mxu0 %v2449
    %6925 = vmatprep.subr.bf16.mxu0 %v2442
    %6926 = vmatpush2.bf16.msra.mxu0 %v2441
    %6927 = vmatprep.subr.bf16.mxu0 %v2434
    %6928 = vmatpush2.bf16.msra.mxu0 %v2433
    %6929 = vmatprep.subr.bf16.mxu0 %v2426
    %6930 = vmatpush2.bf16.msra.mxu0 %v2425
    %6931 = vmatprep.subr.bf16.mxu0 %v2418
    %6932 = vmatpush2.bf16.msra.mxu0 %v2417
    %6933 = vmatprep.mubr.bf16.mxu0 %v6859
    %6934 = vmatmul.mubr.bf16.gmra.mxu0 %v6858
    %v6935 = vpop.f32.mrf.mxu0
    %v6936 = vadd.f32 0.0, %v6935
    %v6937 = vpop.f32.mrf.mxu0
    %v6938 = vadd.f32 0.0, %v6937
    %v6939 = vpop.f32.mrf.mxu0
    %v6940 = vpop.f32.mrf.mxu0
    %6941 = vdwg.mxu0
    %6942 = vmatprep.subr.bf16.mxu0 %v2412
    %6943 = vmatpush1.bf16.msra.mxu0 %v2411
    %6944 = vmatprep.subr.bf16.mxu0 %v2404
    %6945 = vmatpush1.bf16.msra.mxu0 %v2403
    %6946 = vmatprep.subr.bf16.mxu0 %v2396
    %6947 = vmatpush1.bf16.msra.mxu0 %v2395
    %6948 = vmatprep.subr.bf16.mxu0 %v2388
    %6949 = vmatpush1.bf16.msra.mxu0 %v2387
    %6950 = vmatprep.subr.bf16.mxu0 %v2380
    %6951 = vmatpush1.bf16.msra.mxu0 %v2379
    %6952 = vmatprep.subr.bf16.mxu0 %v2372
    %6953 = vmatpush1.bf16.msra.mxu0 %v2371
    %6954 = vmatprep.subr.bf16.mxu0 %v2364
    %6955 = vmatpush1.bf16.msra.mxu0 %v2363
    %6956 = vmatprep.subr.bf16.mxu0 %v2356
    %6957 = vmatpush1.bf16.msra.mxu0 %v2355
    %6958 = vmatprep.subr.bf16.mxu0 %v2476
    %6959 = vmatpush2.bf16.msra.mxu0 %v2475
    %6960 = vmatprep.subr.bf16.mxu0 %v2468
    %6961 = vmatpush2.bf16.msra.mxu0 %v2467
    %6962 = vmatprep.subr.bf16.mxu0 %v2460
    %6963 = vmatpush2.bf16.msra.mxu0 %v2459
    %6964 = vmatprep.subr.bf16.mxu0 %v2452
    %6965 = vmatpush2.bf16.msra.mxu0 %v2451
    %6966 = vmatprep.subr.bf16.mxu0 %v2444
    %6967 = vmatpush2.bf16.msra.mxu0 %v2443
    %6968 = vmatprep.subr.bf16.mxu0 %v2436
    %6969 = vmatpush2.bf16.msra.mxu0 %v2435
    %6970 = vmatprep.subr.bf16.mxu0 %v2428
    %6971 = vmatpush2.bf16.msra.mxu0 %v2427
    %6972 = vmatprep.subr.bf16.mxu0 %v2420
    %6973 = vmatpush2.bf16.msra.mxu0 %v2419
    %6974 = vmatprep.mubr.bf16.mxu0 %v6859
    %6975 = vmatmul.mubr.bf16.gmra.mxu0 %v6858
    %v6976 = vpop.f32.mrf.mxu0
    %v6977 = vadd.f32 0.0, %v6976
    %v6978 = vpop.f32.mrf.mxu0
    %v6979 = vadd.f32 0.0, %v6978
    %v6980 = vpop.f32.mrf.mxu0
    %v6981 = vpop.f32.mrf.mxu0
    %6982 = vdwg.mxu0
    %6983 = vmatprep.subr.bf16.mxu0 %v2414
    %6984 = vmatpush1.bf16.msra.mxu0 %v2413
    %6985 = vmatprep.subr.bf16.mxu0 %v2406
    %6986 = vmatpush1.bf16.msra.mxu0 %v2405
    %6987 = vmatprep.subr.bf16.mxu0 %v2398
    %6988 = vmatpush1.bf16.msra.mxu0 %v2397
    %6989 = vmatprep.subr.bf16.mxu0 %v2390
    %6990 = vmatpush1.bf16.msra.mxu0 %v2389
    %6991 = vmatprep.subr.bf16.mxu0 %v2382
    %6992 = vmatpush1.bf16.msra.mxu0 %v2381
    %6993 = vmatprep.subr.bf16.mxu0 %v2374
    %6994 = vmatpush1.bf16.msra.mxu0 %v2373
    %6995 = vmatprep.subr.bf16.mxu0 %v2366
    %6996 = vmatpush1.bf16.msra.mxu0 %v2365
    %6997 = vmatprep.subr.bf16.mxu0 %v2358
    %6998 = vmatpush1.bf16.msra.mxu0 %v2357
    %6999 = vmatprep.subr.bf16.mxu0 %v2478
    %7000 = vmatpush2.bf16.msra.mxu0 %v2477
    %7001 = vmatprep.subr.bf16.mxu0 %v2470
    %7002 = vmatpush2.bf16.msra.mxu0 %v2469
    %7003 = vmatprep.subr.bf16.mxu0 %v2462
    %7004 = vmatpush2.bf16.msra.mxu0 %v2461
    %7005 = vmatprep.subr.bf16.mxu0 %v2454
    %7006 = vmatpush2.bf16.msra.mxu0 %v2453
    %7007 = vmatprep.subr.bf16.mxu0 %v2446
    %7008 = vmatpush2.bf16.msra.mxu0 %v2445
    %7009 = vmatprep.subr.bf16.mxu0 %v2438
    %7010 = vmatpush2.bf16.msra.mxu0 %v2437
    %7011 = vmatprep.subr.bf16.mxu0 %v2430
    %7012 = vmatpush2.bf16.msra.mxu0 %v2429
    %7013 = vmatprep.subr.bf16.mxu0 %v2422
    %7014 = vmatpush2.bf16.msra.mxu0 %v2421
    %7015 = vmatprep.mubr.bf16.mxu0 %v6859
    %7016 = vmatmul.mubr.bf16.gmra.mxu0 %v6858
    %v7017 = vpop.f32.mrf.mxu0
    %v7018 = vadd.f32 0.0, %v7017
    %v7019 = vpop.f32.mrf.mxu0
    %v7020 = vadd.f32 0.0, %v7019
    %v7021 = vpop.f32.mrf.mxu0
    %v7022 = vpop.f32.mrf.mxu0
    %7023 = vdwg.mxu0
    %7024 = vmatprep.subr.bf16.mxu0 %v3020
    %7025 = vmatpush1.bf16.msra.mxu0 %v3019
    %7026 = vmatprep.subr.bf16.mxu0 %v3012
    %7027 = vmatpush1.bf16.msra.mxu0 %v3011
    %7028 = vmatprep.subr.bf16.mxu0 %v3004
    %7029 = vmatpush1.bf16.msra.mxu0 %v3003
    %7030 = vmatprep.subr.bf16.mxu0 %v2996
    %7031 = vmatpush1.bf16.msra.mxu0 %v2995
    %7032 = vmatprep.subr.bf16.mxu0 %v2988
    %7033 = vmatpush1.bf16.msra.mxu0 %v2987
    %7034 = vmatprep.subr.bf16.mxu0 %v2980
    %7035 = vmatpush1.bf16.msra.mxu0 %v2979
    %7036 = vmatprep.subr.bf16.mxu0 %v2972
    %7037 = vmatpush1.bf16.msra.mxu0 %v2971
    %7038 = vmatprep.subr.bf16.mxu0 %v2964
    %7039 = vmatpush1.bf16.msra.mxu0 %v2963
    %7040 = vmatprep.subr.bf16.mxu0 0
    %7041 = vmatpush2.bf16.msra.mxu0 0
    %7042 = vmatprep.subr.bf16.mxu0 0
    %7043 = vmatpush2.bf16.msra.mxu0 0
    %7044 = vmatprep.subr.bf16.mxu0 0
    %7045 = vmatpush2.bf16.msra.mxu0 0
    %7046 = vmatprep.subr.bf16.mxu0 0
    %7047 = vmatpush2.bf16.msra.mxu0 0
    %7048 = vmatprep.subr.bf16.mxu0 0
    %7049 = vmatpush2.bf16.msra.mxu0 0
    %7050 = vmatprep.subr.bf16.mxu0 0
    %7051 = vmatpush2.bf16.msra.mxu0 0
    %7052 = vmatprep.subr.bf16.mxu0 0
    %7053 = vmatpush2.bf16.msra.mxu0 0
    %7054 = vmatprep.subr.bf16.mxu0 0
    %7055 = vmatpush2.bf16.msra.mxu0 0
    %7056 = vmatprep.mubr.bf16.mxu0 0
    %7057 = vmatmul.mubr.bf16.gmra.mxu0 %v6671
    %v7058 = vpop.f32.mrf.mxu0
    %v7059 = vadd.f32 %v6895, %v7058
    %v7060 = vpop.f32.mrf.mxu0
    %v7061 = vadd.f32 %v6897, %v7060
    %v7062 = vpop.f32.mrf.mxu0
    %v7063 = vpop.f32.mrf.mxu0
    %7064 = vdwg.mxu0
    %7065 = vmatprep.subr.bf16.mxu0 %v3022
    %7066 = vmatpush1.bf16.msra.mxu0 %v3021
    %7067 = vmatprep.subr.bf16.mxu0 %v3014
    %7068 = vmatpush1.bf16.msra.mxu0 %v3013
    %7069 = vmatprep.subr.bf16.mxu0 %v3006
    %7070 = vmatpush1.bf16.msra.mxu0 %v3005
    %7071 = vmatprep.subr.bf16.mxu0 %v2998
    %7072 = vmatpush1.bf16.msra.mxu0 %v2997
    %7073 = vmatprep.subr.bf16.mxu0 %v2990
    %7074 = vmatpush1.bf16.msra.mxu0 %v2989
    %7075 = vmatprep.subr.bf16.mxu0 %v2982
    %7076 = vmatpush1.bf16.msra.mxu0 %v2981
    %7077 = vmatprep.subr.bf16.mxu0 %v2974
    %7078 = vmatpush1.bf16.msra.mxu0 %v2973
    %7079 = vmatprep.subr.bf16.mxu0 %v2966
    %7080 = vmatpush1.bf16.msra.mxu0 %v2965
    %7081 = vmatprep.subr.bf16.mxu0 0
    %7082 = vmatpush2.bf16.msra.mxu0 0
    %7083 = vmatprep.subr.bf16.mxu0 0
    %7084 = vmatpush2.bf16.msra.mxu0 0
    %7085 = vmatprep.subr.bf16.mxu0 0
    %7086 = vmatpush2.bf16.msra.mxu0 0
    %7087 = vmatprep.subr.bf16.mxu0 0
    %7088 = vmatpush2.bf16.msra.mxu0 0
    %7089 = vmatprep.subr.bf16.mxu0 0
    %7090 = vmatpush2.bf16.msra.mxu0 0
    %7091 = vmatprep.subr.bf16.mxu0 0
    %7092 = vmatpush2.bf16.msra.mxu0 0
    %7093 = vmatprep.subr.bf16.mxu0 0
    %7094 = vmatpush2.bf16.msra.mxu0 0
    %7095 = vmatprep.subr.bf16.mxu0 0
    %7096 = vmatpush2.bf16.msra.mxu0 0
    %7097 = vmatprep.mubr.bf16.mxu0 0
    %7098 = vmatmul.mubr.bf16.gmra.mxu0 %v6671
    %v7099 = vpop.f32.mrf.mxu0
    %v7100 = vadd.f32 %v6936, %v7099
    %v7101 = vpop.f32.mrf.mxu0
    %v7102 = vadd.f32 %v6938, %v7101
    %v7103 = vpop.f32.mrf.mxu0
    %v7104 = vpop.f32.mrf.mxu0
    %7105 = vdwg.mxu0
    %7106 = vmatprep.subr.bf16.mxu0 %v3024
    %7107 = vmatpush1.bf16.msra.mxu0 %v3023
    %7108 = vmatprep.subr.bf16.mxu0 %v3016
    %7109 = vmatpush1.bf16.msra.mxu0 %v3015
    %7110 = vmatprep.subr.bf16.mxu0 %v3008
    %7111 = vmatpush1.bf16.msra.mxu0 %v3007
    %7112 = vmatprep.subr.bf16.mxu0 %v3000
    %7113 = vmatpush1.bf16.msra.mxu0 %v2999
    %7114 = vmatprep.subr.bf16.mxu0 %v2992
    %7115 = vmatpush1.bf16.msra.mxu0 %v2991
    %7116 = vmatprep.subr.bf16.mxu0 %v2984
    %7117 = vmatpush1.bf16.msra.mxu0 %v2983
    %7118 = vmatprep.subr.bf16.mxu0 %v2976
    %7119 = vmatpush1.bf16.msra.mxu0 %v2975
    %7120 = vmatprep.subr.bf16.mxu0 %v2968
    %7121 = vmatpush1.bf16.msra.mxu0 %v2967
    %7122 = vmatprep.subr.bf16.mxu0 0
    %7123 = vmatpush2.bf16.msra.mxu0 0
    %7124 = vmatprep.subr.bf16.mxu0 0
    %7125 = vmatpush2.bf16.msra.mxu0 0
    %7126 = vmatprep.subr.bf16.mxu0 0
    %7127 = vmatpush2.bf16.msra.mxu0 0
    %7128 = vmatprep.subr.bf16.mxu0 0
    %7129 = vmatpush2.bf16.msra.mxu0 0
    %7130 = vmatprep.subr.bf16.mxu0 0
    %7131 = vmatpush2.bf16.msra.mxu0 0
    %7132 = vmatprep.subr.bf16.mxu0 0
    %7133 = vmatpush2.bf16.msra.mxu0 0
    %7134 = vmatprep.subr.bf16.mxu0 0
    %7135 = vmatpush2.bf16.msra.mxu0 0
    %7136 = vmatprep.subr.bf16.mxu0 0
    %7137 = vmatpush2.bf16.msra.mxu0 0
    %7138 = vmatprep.mubr.bf16.mxu0 0
    %7139 = vmatmul.mubr.bf16.gmra.mxu0 %v6671
    %v7140 = vpop.f32.mrf.mxu0
    %v7141 = vadd.f32 %v6977, %v7140
    %v7142 = vpop.f32.mrf.mxu0
    %v7143 = vadd.f32 %v6979, %v7142
    %v7144 = vpop.f32.mrf.mxu0
    %v7145 = vpop.f32.mrf.mxu0
    %7146 = vdwg.mxu0
    %7147 = vmatprep.subr.bf16.mxu0 %v3026
    %7148 = vmatpush1.bf16.msra.mxu0 %v3025
    %7149 = vmatprep.subr.bf16.mxu0 %v3018
    %7150 = vmatpush1.bf16.msra.mxu0 %v3017
    %7151 = vmatprep.subr.bf16.mxu0 %v3010
    %7152 = vmatpush1.bf16.msra.mxu0 %v3009
    %7153 = vmatprep.subr.bf16.mxu0 %v3002
    %7154 = vmatpush1.bf16.msra.mxu0 %v3001
    %7155 = vmatprep.subr.bf16.mxu0 %v2994
    %7156 = vmatpush1.bf16.msra.mxu0 %v2993
    %7157 = vmatprep.subr.bf16.mxu0 %v2986
    %7158 = vmatpush1.bf16.msra.mxu0 %v2985
    %7159 = vmatprep.subr.bf16.mxu0 %v2978
    %7160 = vmatpush1.bf16.msra.mxu0 %v2977
    %7161 = vmatprep.subr.bf16.mxu0 %v2970
    %7162 = vmatpush1.bf16.msra.mxu0 %v2969
    %7163 = vmatprep.subr.bf16.mxu0 0
    %7164 = vmatpush2.bf16.msra.mxu0 0
    %7165 = vmatprep.subr.bf16.mxu0 0
    %7166 = vmatpush2.bf16.msra.mxu0 0
    %7167 = vmatprep.subr.bf16.mxu0 0
    %7168 = vmatpush2.bf16.msra.mxu0 0
    %7169 = vmatprep.subr.bf16.mxu0 0
    %7170 = vmatpush2.bf16.msra.mxu0 0
    %7171 = vmatprep.subr.bf16.mxu0 0
    %7172 = vmatpush2.bf16.msra.mxu0 0
    %7173 = vmatprep.subr.bf16.mxu0 0
    %7174 = vmatpush2.bf16.msra.mxu0 0
    %7175 = vmatprep.subr.bf16.mxu0 0
    %7176 = vmatpush2.bf16.msra.mxu0 0
    %7177 = vmatprep.subr.bf16.mxu0 0
    %7178 = vmatpush2.bf16.msra.mxu0 0
    %7179 = vmatprep.mubr.bf16.mxu0 0
    %7180 = vmatmul.mubr.bf16.gmra.mxu0 %v6671
    %v7181 = vpop.f32.mrf.mxu0
    %v7182 = vadd.f32 %v7018, %v7181
    %v7183 = vpop.f32.mrf.mxu0
    %v7184 = vadd.f32 %v7020, %v7183
    %v7185 = vpop.f32.mrf.mxu0
    %v7186 = vpop.f32.mrf.mxu0
    %7187 = vdwg.mxu0
    %v7188 = vadd.f32 %v7059, %v3259
    %v7189 = vadd.f32 %v7061, %v3263
    %v7190 = vadd.f32 %v7100, %v3267
    %v7191 = vadd.f32 %v7102, %v3271
    %v7192 = vadd.f32 %v7141, %v3275
    %v7193 = vadd.f32 %v7143, %v3279
    %v7194 = vadd.f32 %v7182, %v3283
    %v7195 = vadd.f32 %v7184, %v3287
    %v7196 = vmul.f32 %v7188, 0.5
    %v7197 = vmul.f32 %v7189, 0.5
    %v7198 = vmul.f32 %v7190, 0.5
    %v7199 = vmul.f32 %v7191, 0.5
    %v7200 = vmul.f32 %v7192, 0.5
    %v7201 = vmul.f32 %v7193, 0.5
    %v7202 = vtanh.pop %v7196
    %v7203 = vtanh.pop %v7197
    %v7204 = vtanh.pop %v7198
    %v7205 = vtanh.pop %v7199
    %v7206 = vtanh.pop %v7200
    %v7207 = vtanh.pop %v7201
    %v7208 = vmul.f32 %v7202, 0.5
    %v7209 = vmul.f32 %v7203, 0.5
    %v7210 = vmul.f32 %v7204, 0.5
    %v7211 = vmul.f32 %v7205, 0.5
    %v7212 = vmul.f32 %v7206, 0.5
    %v7213 = vmul.f32 %v7207, 0.5
    %v7214 = vadd.f32 %v7208, 0.5
    %v7215 = vadd.f32 %v7209, 0.5
    %v7216 = vadd.f32 %v7210, 0.5
    %v7217 = vadd.f32 %v7211, 0.5
    %v7218 = vadd.f32 %v7212, 0.5
    %v7219 = vadd.f32 %v7213, 0.5
    %v7220 = vtanh.pop %v7194
    %v7221 = vtanh.pop %v7195
    %v7222 = vmul.f32 %v7216, %v6664
    %v7223 = vmul.f32 %v7217, %v6665
    %v7224 = vmul.f32 %v7214, %v7220
    %v7225 = vmul.f32 %v7215, %v7221
    %v7226 = vadd.f32 %v7222, %v7224
    %v7227 = vadd.f32 %v7223, %v7225
    %v7228 = vtanh.pop %v7226
    %v7229 = vtanh.pop %v7227
    %v7230 = vmul.f32 %v7218, %v7228
    %v7231 = vmul.f32 %v7219, %v7229
    %v7232 = vpack.c.bf16 %v6857, %v6857
    %v7233 = vpack.c.bf16 %v7230, %v7230
    %v7234 = vpack.c.bf16 %v7231, %v7231
    %7235 = vmatprep.subr.bf16.mxu0 %v2408
    %7236 = vmatpush1.bf16.msra.mxu0 %v2407
    %7237 = vmatprep.subr.bf16.mxu0 %v2400
    %7238 = vmatpush1.bf16.msra.mxu0 %v2399
    %7239 = vmatprep.subr.bf16.mxu0 %v2392
    %7240 = vmatpush1.bf16.msra.mxu0 %v2391
    %7241 = vmatprep.subr.bf16.mxu0 %v2384
    %7242 = vmatpush1.bf16.msra.mxu0 %v2383
    %7243 = vmatprep.subr.bf16.mxu0 %v2376
    %7244 = vmatpush1.bf16.msra.mxu0 %v2375
    %7245 = vmatprep.subr.bf16.mxu0 %v2368
    %7246 = vmatpush1.bf16.msra.mxu0 %v2367
    %7247 = vmatprep.subr.bf16.mxu0 %v2360
    %7248 = vmatpush1.bf16.msra.mxu0 %v2359
    %7249 = vmatprep.subr.bf16.mxu0 %v2352
    %7250 = vmatpush1.bf16.msra.mxu0 %v2351
    %7251 = vmatprep.subr.bf16.mxu0 %v2472
    %7252 = vmatpush2.bf16.msra.mxu0 %v2471
    %7253 = vmatprep.subr.bf16.mxu0 %v2464
    %7254 = vmatpush2.bf16.msra.mxu0 %v2463
    %7255 = vmatprep.subr.bf16.mxu0 %v2456
    %7256 = vmatpush2.bf16.msra.mxu0 %v2455
    %7257 = vmatprep.subr.bf16.mxu0 %v2448
    %7258 = vmatpush2.bf16.msra.mxu0 %v2447
    %7259 = vmatprep.subr.bf16.mxu0 %v2440
    %7260 = vmatpush2.bf16.msra.mxu0 %v2439
    %7261 = vmatprep.subr.bf16.mxu0 %v2432
    %7262 = vmatpush2.bf16.msra.mxu0 %v2431
    %7263 = vmatprep.subr.bf16.mxu0 %v2424
    %7264 = vmatpush2.bf16.msra.mxu0 %v2423
    %7265 = vmatprep.subr.bf16.mxu0 %v2416
    %7266 = vmatpush2.bf16.msra.mxu0 %v2415
    %7267 = vmatprep.mubr.bf16.mxu0 %v7234
    %7268 = vmatmul.mubr.bf16.gmra.mxu0 %v7233
    %v7269 = vpop.f32.mrf.mxu0
    %v7270 = vadd.f32 0.0, %v7269
    %v7271 = vpop.f32.mrf.mxu0
    %v7272 = vadd.f32 0.0, %v7271
    %v7273 = vpop.f32.mrf.mxu0
    %v7274 = vpop.f32.mrf.mxu0
    %7275 = vdwg.mxu0
    %7276 = vmatprep.subr.bf16.mxu0 %v2410
    %7277 = vmatpush1.bf16.msra.mxu0 %v2409
    %7278 = vmatprep.subr.bf16.mxu0 %v2402
    %7279 = vmatpush1.bf16.msra.mxu0 %v2401
    %7280 = vmatprep.subr.bf16.mxu0 %v2394
    %7281 = vmatpush1.bf16.msra.mxu0 %v2393
    %7282 = vmatprep.subr.bf16.mxu0 %v2386
    %7283 = vmatpush1.bf16.msra.mxu0 %v2385
    %7284 = vmatprep.subr.bf16.mxu0 %v2378
    %7285 = vmatpush1.bf16.msra.mxu0 %v2377
    %7286 = vmatprep.subr.bf16.mxu0 %v2370
    %7287 = vmatpush1.bf16.msra.mxu0 %v2369
    %7288 = vmatprep.subr.bf16.mxu0 %v2362
    %7289 = vmatpush1.bf16.msra.mxu0 %v2361
    %7290 = vmatprep.subr.bf16.mxu0 %v2354
    %7291 = vmatpush1.bf16.msra.mxu0 %v2353
    %7292 = vmatprep.subr.bf16.mxu0 %v2474
    %7293 = vmatpush2.bf16.msra.mxu0 %v2473
    %7294 = vmatprep.subr.bf16.mxu0 %v2466
    %7295 = vmatpush2.bf16.msra.mxu0 %v2465
    %7296 = vmatprep.subr.bf16.mxu0 %v2458
    %7297 = vmatpush2.bf16.msra.mxu0 %v2457
    %7298 = vmatprep.subr.bf16.mxu0 %v2450
    %7299 = vmatpush2.bf16.msra.mxu0 %v2449
    %7300 = vmatprep.subr.bf16.mxu0 %v2442
    %7301 = vmatpush2.bf16.msra.mxu0 %v2441
    %7302 = vmatprep.subr.bf16.mxu0 %v2434
    %7303 = vmatpush2.bf16.msra.mxu0 %v2433
    %7304 = vmatprep.subr.bf16.mxu0 %v2426
    %7305 = vmatpush2.bf16.msra.mxu0 %v2425
    %7306 = vmatprep.subr.bf16.mxu0 %v2418
    %7307 = vmatpush2.bf16.msra.mxu0 %v2417
    %7308 = vmatprep.mubr.bf16.mxu0 %v7234
    %7309 = vmatmul.mubr.bf16.gmra.mxu0 %v7233
    %v7310 = vpop.f32.mrf.mxu0
    %v7311 = vadd.f32 0.0, %v7310
    %v7312 = vpop.f32.mrf.mxu0
    %v7313 = vadd.f32 0.0, %v7312
    %v7314 = vpop.f32.mrf.mxu0
    %v7315 = vpop.f32.mrf.mxu0
    %7316 = vdwg.mxu0
    %7317 = vmatprep.subr.bf16.mxu0 %v2412
    %7318 = vmatpush1.bf16.msra.mxu0 %v2411
    %7319 = vmatprep.subr.bf16.mxu0 %v2404
    %7320 = vmatpush1.bf16.msra.mxu0 %v2403
    %7321 = vmatprep.subr.bf16.mxu0 %v2396
    %7322 = vmatpush1.bf16.msra.mxu0 %v2395
    %7323 = vmatprep.subr.bf16.mxu0 %v2388
    %7324 = vmatpush1.bf16.msra.mxu0 %v2387
    %7325 = vmatprep.subr.bf16.mxu0 %v2380
    %7326 = vmatpush1.bf16.msra.mxu0 %v2379
    %7327 = vmatprep.subr.bf16.mxu0 %v2372
    %7328 = vmatpush1.bf16.msra.mxu0 %v2371
    %7329 = vmatprep.subr.bf16.mxu0 %v2364
    %7330 = vmatpush1.bf16.msra.mxu0 %v2363
    %7331 = vmatprep.subr.bf16.mxu0 %v2356
    %7332 = vmatpush1.bf16.msra.mxu0 %v2355
    %7333 = vmatprep.subr.bf16.mxu0 %v2476
    %7334 = vmatpush2.bf16.msra.mxu0 %v2475
    %7335 = vmatprep.subr.bf16.mxu0 %v2468
    %7336 = vmatpush2.bf16.msra.mxu0 %v2467
    %7337 = vmatprep.subr.bf16.mxu0 %v2460
    %7338 = vmatpush2.bf16.msra.mxu0 %v2459
    %7339 = vmatprep.subr.bf16.mxu0 %v2452
    %7340 = vmatpush2.bf16.msra.mxu0 %v2451
    %7341 = vmatprep.subr.bf16.mxu0 %v2444
    %7342 = vmatpush2.bf16.msra.mxu0 %v2443
    %7343 = vmatprep.subr.bf16.mxu0 %v2436
    %7344 = vmatpush2.bf16.msra.mxu0 %v2435
    %7345 = vmatprep.subr.bf16.mxu0 %v2428
    %7346 = vmatpush2.bf16.msra.mxu0 %v2427
    %7347 = vmatprep.subr.bf16.mxu0 %v2420
    %7348 = vmatpush2.bf16.msra.mxu0 %v2419
    %7349 = vmatprep.mubr.bf16.mxu0 %v7234
    %7350 = vmatmul.mubr.bf16.gmra.mxu0 %v7233
    %v7351 = vpop.f32.mrf.mxu0
    %v7352 = vadd.f32 0.0, %v7351
    %v7353 = vpop.f32.mrf.mxu0
    %v7354 = vadd.f32 0.0, %v7353
    %v7355 = vpop.f32.mrf.mxu0
    %v7356 = vpop.f32.mrf.mxu0
    %7357 = vdwg.mxu0
    %7358 = vmatprep.subr.bf16.mxu0 %v2414
    %7359 = vmatpush1.bf16.msra.mxu0 %v2413
    %7360 = vmatprep.subr.bf16.mxu0 %v2406
    %7361 = vmatpush1.bf16.msra.mxu0 %v2405
    %7362 = vmatprep.subr.bf16.mxu0 %v2398
    %7363 = vmatpush1.bf16.msra.mxu0 %v2397
    %7364 = vmatprep.subr.bf16.mxu0 %v2390
    %7365 = vmatpush1.bf16.msra.mxu0 %v2389
    %7366 = vmatprep.subr.bf16.mxu0 %v2382
    %7367 = vmatpush1.bf16.msra.mxu0 %v2381
    %7368 = vmatprep.subr.bf16.mxu0 %v2374
    %7369 = vmatpush1.bf16.msra.mxu0 %v2373
    %7370 = vmatprep.subr.bf16.mxu0 %v2366
    %7371 = vmatpush1.bf16.msra.mxu0 %v2365
    %7372 = vmatprep.subr.bf16.mxu0 %v2358
    %7373 = vmatpush1.bf16.msra.mxu0 %v2357
    %7374 = vmatprep.subr.bf16.mxu0 %v2478
    %7375 = vmatpush2.bf16.msra.mxu0 %v2477
    %7376 = vmatprep.subr.bf16.mxu0 %v2470
    %7377 = vmatpush2.bf16.msra.mxu0 %v2469
    %7378 = vmatprep.subr.bf16.mxu0 %v2462
    %7379 = vmatpush2.bf16.msra.mxu0 %v2461
    %7380 = vmatprep.subr.bf16.mxu0 %v2454
    %7381 = vmatpush2.bf16.msra.mxu0 %v2453
    %7382 = vmatprep.subr.bf16.mxu0 %v2446
    %7383 = vmatpush2.bf16.msra.mxu0 %v2445
    %7384 = vmatprep.subr.bf16.mxu0 %v2438
    %7385 = vmatpush2.bf16.msra.mxu0 %v2437
    %7386 = vmatprep.subr.bf16.mxu0 %v2430
    %7387 = vmatpush2.bf16.msra.mxu0 %v2429
    %7388 = vmatprep.subr.bf16.mxu0 %v2422
    %7389 = vmatpush2.bf16.msra.mxu0 %v2421
    %7390 = vmatprep.mubr.bf16.mxu0 %v7234
    %7391 = vmatmul.mubr.bf16.gmra.mxu0 %v7233
    %v7392 = vpop.f32.mrf.mxu0
    %v7393 = vadd.f32 0.0, %v7392
    %v7394 = vpop.f32.mrf.mxu0
    %v7395 = vadd.f32 0.0, %v7394
    %v7396 = vpop.f32.mrf.mxu0
    %v7397 = vpop.f32.mrf.mxu0
    %7398 = vdwg.mxu0
    %7399 = vmatprep.subr.bf16.mxu0 %v3020
    %7400 = vmatpush1.bf16.msra.mxu0 %v3019
    %7401 = vmatprep.subr.bf16.mxu0 %v3012
    %7402 = vmatpush1.bf16.msra.mxu0 %v3011
    %7403 = vmatprep.subr.bf16.mxu0 %v3004
    %7404 = vmatpush1.bf16.msra.mxu0 %v3003
    %7405 = vmatprep.subr.bf16.mxu0 %v2996
    %7406 = vmatpush1.bf16.msra.mxu0 %v2995
    %7407 = vmatprep.subr.bf16.mxu0 %v2988
    %7408 = vmatpush1.bf16.msra.mxu0 %v2987
    %7409 = vmatprep.subr.bf16.mxu0 %v2980
    %7410 = vmatpush1.bf16.msra.mxu0 %v2979
    %7411 = vmatprep.subr.bf16.mxu0 %v2972
    %7412 = vmatpush1.bf16.msra.mxu0 %v2971
    %7413 = vmatprep.subr.bf16.mxu0 %v2964
    %7414 = vmatpush1.bf16.msra.mxu0 %v2963
    %7415 = vmatprep.subr.bf16.mxu0 0
    %7416 = vmatpush2.bf16.msra.mxu0 0
    %7417 = vmatprep.subr.bf16.mxu0 0
    %7418 = vmatpush2.bf16.msra.mxu0 0
    %7419 = vmatprep.subr.bf16.mxu0 0
    %7420 = vmatpush2.bf16.msra.mxu0 0
    %7421 = vmatprep.subr.bf16.mxu0 0
    %7422 = vmatpush2.bf16.msra.mxu0 0
    %7423 = vmatprep.subr.bf16.mxu0 0
    %7424 = vmatpush2.bf16.msra.mxu0 0
    %7425 = vmatprep.subr.bf16.mxu0 0
    %7426 = vmatpush2.bf16.msra.mxu0 0
    %7427 = vmatprep.subr.bf16.mxu0 0
    %7428 = vmatpush2.bf16.msra.mxu0 0
    %7429 = vmatprep.subr.bf16.mxu0 0
    %7430 = vmatpush2.bf16.msra.mxu0 0
    %7431 = vmatprep.mubr.bf16.mxu0 0
    %7432 = vmatmul.mubr.bf16.gmra.mxu0 %v7232
    %v7433 = vpop.f32.mrf.mxu0
    %v7434 = vadd.f32 %v7270, %v7433
    %v7435 = vpop.f32.mrf.mxu0
    %v7436 = vadd.f32 %v7272, %v7435
    %v7437 = vpop.f32.mrf.mxu0
    %v7438 = vpop.f32.mrf.mxu0
    %7439 = vdwg.mxu0
    %7440 = vmatprep.subr.bf16.mxu0 %v3022
    %7441 = vmatpush1.bf16.msra.mxu0 %v3021
    %7442 = vmatprep.subr.bf16.mxu0 %v3014
    %7443 = vmatpush1.bf16.msra.mxu0 %v3013
    %7444 = vmatprep.subr.bf16.mxu0 %v3006
    %7445 = vmatpush1.bf16.msra.mxu0 %v3005
    %7446 = vmatprep.subr.bf16.mxu0 %v2998
    %7447 = vmatpush1.bf16.msra.mxu0 %v2997
    %7448 = vmatprep.subr.bf16.mxu0 %v2990
    %7449 = vmatpush1.bf16.msra.mxu0 %v2989
    %7450 = vmatprep.subr.bf16.mxu0 %v2982
    %7451 = vmatpush1.bf16.msra.mxu0 %v2981
    %7452 = vmatprep.subr.bf16.mxu0 %v2974
    %7453 = vmatpush1.bf16.msra.mxu0 %v2973
    %7454 = vmatprep.subr.bf16.mxu0 %v2966
    %7455 = vmatpush1.bf16.msra.mxu0 %v2965
    %7456 = vmatprep.subr.bf16.mxu0 0
    %7457 = vmatpush2.bf16.msra.mxu0 0
    %7458 = vmatprep.subr.bf16.mxu0 0
    %7459 = vmatpush2.bf16.msra.mxu0 0
    %7460 = vmatprep.subr.bf16.mxu0 0
    %7461 = vmatpush2.bf16.msra.mxu0 0
    %7462 = vmatprep.subr.bf16.mxu0 0
    %7463 = vmatpush2.bf16.msra.mxu0 0
    %7464 = vmatprep.subr.bf16.mxu0 0
    %7465 = vmatpush2.bf16.msra.mxu0 0
    %7466 = vmatprep.subr.bf16.mxu0 0
    %7467 = vmatpush2.bf16.msra.mxu0 0
    %7468 = vmatprep.subr.bf16.mxu0 0
    %7469 = vmatpush2.bf16.msra.mxu0 0
    %7470 = vmatprep.subr.bf16.mxu0 0
    %7471 = vmatpush2.bf16.msra.mxu0 0
    %7472 = vmatprep.mubr.bf16.mxu0 0
    %7473 = vmatmul.mubr.bf16.gmra.mxu0 %v7232
    %v7474 = vpop.f32.mrf.mxu0
    %v7475 = vadd.f32 %v7311, %v7474
    %v7476 = vpop.f32.mrf.mxu0
    %v7477 = vadd.f32 %v7313, %v7476
    %v7478 = vpop.f32.mrf.mxu0
    %v7479 = vpop.f32.mrf.mxu0
    %7480 = vdwg.mxu0
    %7481 = vmatprep.subr.bf16.mxu0 %v3024
    %7482 = vmatpush1.bf16.msra.mxu0 %v3023
    %7483 = vmatprep.subr.bf16.mxu0 %v3016
    %7484 = vmatpush1.bf16.msra.mxu0 %v3015
    %7485 = vmatprep.subr.bf16.mxu0 %v3008
    %7486 = vmatpush1.bf16.msra.mxu0 %v3007
    %7487 = vmatprep.subr.bf16.mxu0 %v3000
    %7488 = vmatpush1.bf16.msra.mxu0 %v2999
    %7489 = vmatprep.subr.bf16.mxu0 %v2992
    %7490 = vmatpush1.bf16.msra.mxu0 %v2991
    %7491 = vmatprep.subr.bf16.mxu0 %v2984
    %7492 = vmatpush1.bf16.msra.mxu0 %v2983
    %7493 = vmatprep.subr.bf16.mxu0 %v2976
    %7494 = vmatpush1.bf16.msra.mxu0 %v2975
    %7495 = vmatprep.subr.bf16.mxu0 %v2968
    %7496 = vmatpush1.bf16.msra.mxu0 %v2967
    %7497 = vmatprep.subr.bf16.mxu0 0
    %7498 = vmatpush2.bf16.msra.mxu0 0
    %7499 = vmatprep.subr.bf16.mxu0 0
    %7500 = vmatpush2.bf16.msra.mxu0 0
    %7501 = vmatprep.subr.bf16.mxu0 0
    %7502 = vmatpush2.bf16.msra.mxu0 0
    %7503 = vmatprep.subr.bf16.mxu0 0
    %7504 = vmatpush2.bf16.msra.mxu0 0
    %7505 = vmatprep.subr.bf16.mxu0 0
    %7506 = vmatpush2.bf16.msra.mxu0 0
    %7507 = vmatprep.subr.bf16.mxu0 0
    %7508 = vmatpush2.bf16.msra.mxu0 0
    %7509 = vmatprep.subr.bf16.mxu0 0
    %7510 = vmatpush2.bf16.msra.mxu0 0
    %7511 = vmatprep.subr.bf16.mxu0 0
    %7512 = vmatpush2.bf16.msra.mxu0 0
    %7513 = vmatprep.mubr.bf16.mxu0 0
    %7514 = vmatmul.mubr.bf16.gmra.mxu0 %v7232
    %v7515 = vpop.f32.mrf.mxu0
    %v7516 = vadd.f32 %v7352, %v7515
    %v7517 = vpop.f32.mrf.mxu0
    %v7518 = vadd.f32 %v7354, %v7517
    %v7519 = vpop.f32.mrf.mxu0
    %v7520 = vpop.f32.mrf.mxu0
    %7521 = vdwg.mxu0
    %7522 = vmatprep.subr.bf16.mxu0 %v3026
    %7523 = vmatpush1.bf16.msra.mxu0 %v3025
    %7524 = vmatprep.subr.bf16.mxu0 %v3018
    %7525 = vmatpush1.bf16.msra.mxu0 %v3017
    %7526 = vmatprep.subr.bf16.mxu0 %v3010
    %7527 = vmatpush1.bf16.msra.mxu0 %v3009
    %7528 = vmatprep.subr.bf16.mxu0 %v3002
    %7529 = vmatpush1.bf16.msra.mxu0 %v3001
    %7530 = vmatprep.subr.bf16.mxu0 %v2994
    %7531 = vmatpush1.bf16.msra.mxu0 %v2993
    %7532 = vmatprep.subr.bf16.mxu0 %v2986
    %7533 = vmatpush1.bf16.msra.mxu0 %v2985
    %7534 = vmatprep.subr.bf16.mxu0 %v2978
    %7535 = vmatpush1.bf16.msra.mxu0 %v2977
    %7536 = vmatprep.subr.bf16.mxu0 %v2970
    %7537 = vmatpush1.bf16.msra.mxu0 %v2969
    %7538 = vmatprep.subr.bf16.mxu0 0
    %7539 = vmatpush2.bf16.msra.mxu0 0
    %7540 = vmatprep.subr.bf16.mxu0 0
    %7541 = vmatpush2.bf16.msra.mxu0 0
    %7542 = vmatprep.subr.bf16.mxu0 0
    %7543 = vmatpush2.bf16.msra.mxu0 0
    %7544 = vmatprep.subr.bf16.mxu0 0
    %7545 = vmatpush2.bf16.msra.mxu0 0
    %7546 = vmatprep.subr.bf16.mxu0 0
    %7547 = vmatpush2.bf16.msra.mxu0 0
    %7548 = vmatprep.subr.bf16.mxu0 0
    %7549 = vmatpush2.bf16.msra.mxu0 0
    %7550 = vmatprep.subr.bf16.mxu0 0
    %7551 = vmatpush2.bf16.msra.mxu0 0
    %7552 = vmatprep.subr.bf16.mxu0 0
    %7553 = vmatpush2.bf16.msra.mxu0 0
    %7554 = vmatprep.mubr.bf16.mxu0 0
    %7555 = vmatmul.mubr.bf16.gmra.mxu0 %v7232
    %v7556 = vpop.f32.mrf.mxu0
    %v7557 = vadd.f32 %v7393, %v7556
    %v7558 = vpop.f32.mrf.mxu0
    %v7559 = vadd.f32 %v7395, %v7558
    %v7560 = vpop.f32.mrf.mxu0
    %v7561 = vpop.f32.mrf.mxu0
    %7562 = vdwg.mxu0
    %v7563 = vadd.f32 %v7434, %v3259
    %v7564 = vadd.f32 %v7436, %v3263
    %v7565 = vadd.f32 %v7475, %v3267
    %v7566 = vadd.f32 %v7477, %v3271
    %v7567 = vadd.f32 %v7516, %v3275
    %v7568 = vadd.f32 %v7518, %v3279
    %v7569 = vadd.f32 %v7557, %v3283
    %v7570 = vadd.f32 %v7559, %v3287
    %v7571 = vmul.f32 %v7563, 0.5
    %v7572 = vmul.f32 %v7564, 0.5
    %v7573 = vmul.f32 %v7565, 0.5
    %v7574 = vmul.f32 %v7566, 0.5
    %v7575 = vmul.f32 %v7567, 0.5
    %v7576 = vmul.f32 %v7568, 0.5
    %v7577 = vtanh.pop %v7571
    %v7578 = vtanh.pop %v7572
    %v7579 = vtanh.pop %v7573
    %v7580 = vtanh.pop %v7574
    %v7581 = vtanh.pop %v7575
    %v7582 = vtanh.pop %v7576
    %v7583 = vmul.f32 %v7577, 0.5
    %v7584 = vmul.f32 %v7578, 0.5
    %v7585 = vmul.f32 %v7579, 0.5
    %v7586 = vmul.f32 %v7580, 0.5
    %v7587 = vmul.f32 %v7581, 0.5
    %v7588 = vmul.f32 %v7582, 0.5
    %v7589 = vadd.f32 %v7583, 0.5
    %v7590 = vadd.f32 %v7584, 0.5
    %v7591 = vadd.f32 %v7585, 0.5
    %v7592 = vadd.f32 %v7586, 0.5
    %v7593 = vadd.f32 %v7587, 0.5
    %v7594 = vadd.f32 %v7588, 0.5
    %v7595 = vtanh.pop %v7569
    %v7596 = vtanh.pop %v7570
    %v7597 = vmul.f32 %v7591, %v7226
    %v7598 = vmul.f32 %v7592, %v7227
    %v7599 = vmul.f32 %v7589, %v7595
    %v7600 = vmul.f32 %v7590, %v7596
    %v7601 = vadd.f32 %v7597, %v7599
    %v7602 = vadd.f32 %v7598, %v7600
    %v7603 = vtanh.pop %v7601
    %v7604 = vtanh.pop %v7602
    %v7605 = vmul.f32 %v7593, %v7603
    %v7606 = vmul.f32 %v7594, %v7604
    %v7607 = vpack.c.bf16 %v7605, %v7605
    %v7608 = vpack.c.bf16 %v7606, %v7606
    %v7609 = vld [vmem:[%s10] sm:$0xf]
    %v7610 = vld [vmem:[%s10 + $0x4] sm:$0xf]
    %v7611 = vld [vmem:[%s10 + $0x8] sm:$0xf]
    %v7612 = vld [vmem:[%s10 + $0xc] sm:$0xf]
    %v7613 = vld [vmem:[%s10 + $0x10] sm:$0xf]
    %v7614 = vld [vmem:[%s10 + $0x14] sm:$0xf]
    %v7615 = vld [vmem:[%s10 + $0x18] sm:$0xf]
    %v7616 = vld [vmem:[%s10 + $0x1c] sm:$0xf]
    %v7617 = vld [vmem:[%s10 + $0x20] sm:$0xf]
    %v7618 = vld [vmem:[%s10 + $0x24] sm:$0xf]
    %v7619 = vld [vmem:[%s10 + $0x28] sm:$0xf]
    %v7620 = vld [vmem:[%s10 + $0x2c] sm:$0xf]
    %v7621 = vld [vmem:[%s10 + $0x30] sm:$0xf]
    %v7622 = vld [vmem:[%s10 + $0x34] sm:$0xf]
    %v7623 = vld [vmem:[%s10 + $0x38] sm:$0xf]
    %v7624 = vld [vmem:[%s10 + $0x3c] sm:$0xf]
    %v7625 = vld [vmem:[%s10 + $0x40] sm:$0xf]
    %v7626 = vld [vmem:[%s10 + $0x44] sm:$0xf]
    %v7627 = vld [vmem:[%s10 + $0x48] sm:$0xf]
    %v7628 = vld [vmem:[%s10 + $0x4c] sm:$0xf]
    %v7629 = vld [vmem:[%s10 + $0x50] sm:$0xf]
    %v7630 = vld [vmem:[%s10 + $0x54] sm:$0xf]
    %v7631 = vld [vmem:[%s10 + $0x58] sm:$0xf]
    %v7632 = vld [vmem:[%s10 + $0x5c] sm:$0xf]
    %v7633 = vld [vmem:[%s10 + $0x60] sm:$0xf]
    %v7634 = vld [vmem:[%s10 + $0x64] sm:$0xf]
    %v7635 = vld [vmem:[%s10 + $0x68] sm:$0xf]
    %v7636 = vld [vmem:[%s10 + $0x6c] sm:$0xf]
    %v7637 = vld [vmem:[%s10 + $0x70] sm:$0xf]
    %v7638 = vld [vmem:[%s10 + $0x74] sm:$0xf]
    %v7639 = vld [vmem:[%s10 + $0x78] sm:$0xf]
    %v7640 = vld [vmem:[%s10 + $0x7c] sm:$0xf]
    %v7641 = vld [vmem:[%s11] sm:$0x1]
    %v7643 = vlaneseq
    %v7644 = vshrl.u32 %v7643, 7
    %v7645 = vsub.s32 0, %v7644
    %v7646 = vrot.slane %v7641, %v7645
    %v7680 = vunpack.c.l.b16 %v7609
    %v7681 = vunpack.c.l.b16 %v7610
    %v7682 = vunpack.c.l.b16 %v7611
    %v7683 = vunpack.c.l.b16 %v7612
    %v7684 = vunpack.c.l.b16 %v7613
    %v7685 = vunpack.c.l.b16 %v7614
    %v7686 = vunpack.c.l.b16 %v7615
    %v7687 = vunpack.c.l.b16 %v7616
    %v7688 = vunpack.c.l.b16 %v7617
    %v7689 = vunpack.c.l.b16 %v7618
    %v7690 = vunpack.c.l.b16 %v7619
    %v7691 = vunpack.c.l.b16 %v7620
    %v7692 = vunpack.c.l.b16 %v7621
    %v7693 = vunpack.c.l.b16 %v7622
    %v7694 = vunpack.c.l.b16 %v7623
    %v7695 = vunpack.c.l.b16 %v7624
    %v7696 = vunpack.c.l.b16 %v7625
    %v7697 = vunpack.c.l.b16 %v7626
    %v7698 = vunpack.c.l.b16 %v7627
    %v7699 = vunpack.c.l.b16 %v7628
    %v7700 = vunpack.c.l.b16 %v7629
    %v7701 = vunpack.c.l.b16 %v7630
    %v7702 = vunpack.c.l.b16 %v7631
    %v7703 = vunpack.c.l.b16 %v7632
    %v7704 = vunpack.c.l.b16 %v7633
    %v7705 = vunpack.c.l.b16 %v7634
    %v7706 = vunpack.c.l.b16 %v7635
    %v7707 = vunpack.c.l.b16 %v7636
    %v7708 = vunpack.c.l.b16 %v7637
    %v7709 = vunpack.c.l.b16 %v7638
    %v7710 = vunpack.c.l.b16 %v7639
    %v7711 = vunpack.c.l.b16 %v7640
    %v7712 = vpack.c.b16 %v7681, %v7680
    %v7713 = vpack.c.b16 %v7683, %v7682
    %v7714 = vpack.c.b16 %v7685, %v7684
    %v7715 = vpack.c.b16 %v7687, %v7686
    %v7716 = vpack.c.b16 %v7689, %v7688
    %v7717 = vpack.c.b16 %v7691, %v7690
    %v7718 = vpack.c.b16 %v7693, %v7692
    %v7719 = vpack.c.b16 %v7695, %v7694
    %v7720 = vpack.c.b16 %v7697, %v7696
    %v7721 = vpack.c.b16 %v7699, %v7698
    %v7722 = vpack.c.b16 %v7701, %v7700
    %v7723 = vpack.c.b16 %v7703, %v7702
    %v7724 = vpack.c.b16 %v7705, %v7704
    %v7725 = vpack.c.b16 %v7707, %v7706
    %v7726 = vpack.c.b16 %v7709, %v7708
    %v7727 = vpack.c.b16 %v7711, %v7710
    %7744 = vmatprep.subr.bf16.mxu0 0
    %7745 = vmatpush1.bf16.msra.mxu0 %v7719
    %7746 = vmatprep.subr.bf16.mxu0 0
    %7747 = vmatpush1.bf16.msra.mxu0 %v7718
    %7748 = vmatprep.subr.bf16.mxu0 0
    %7749 = vmatpush1.bf16.msra.mxu0 %v7717
    %7750 = vmatprep.subr.bf16.mxu0 0
    %7751 = vmatpush1.bf16.msra.mxu0 %v7716
    %7752 = vmatprep.subr.bf16.mxu0 0
    %7753 = vmatpush1.bf16.msra.mxu0 %v7715
    %7754 = vmatprep.subr.bf16.mxu0 0
    %7755 = vmatpush1.bf16.msra.mxu0 %v7714
    %7756 = vmatprep.subr.bf16.mxu0 0
    %7757 = vmatpush1.bf16.msra.mxu0 %v7713
    %7758 = vmatprep.subr.bf16.mxu0 0
    %7759 = vmatpush1.bf16.msra.mxu0 %v7712
    %7760 = vmatprep.subr.bf16.mxu0 0
    %7761 = vmatpush2.bf16.msra.mxu0 %v7727
    %7762 = vmatprep.subr.bf16.mxu0 0
    %7763 = vmatpush2.bf16.msra.mxu0 %v7726
    %7764 = vmatprep.subr.bf16.mxu0 0
    %7765 = vmatpush2.bf16.msra.mxu0 %v7725
    %7766 = vmatprep.subr.bf16.mxu0 0
    %7767 = vmatpush2.bf16.msra.mxu0 %v7724
    %7768 = vmatprep.subr.bf16.mxu0 0
    %7769 = vmatpush2.bf16.msra.mxu0 %v7723
    %7770 = vmatprep.subr.bf16.mxu0 0
    %7771 = vmatpush2.bf16.msra.mxu0 %v7722
    %7772 = vmatprep.subr.bf16.mxu0 0
    %7773 = vmatpush2.bf16.msra.mxu0 %v7721
    %7774 = vmatprep.subr.bf16.mxu0 0
    %7775 = vmatpush2.bf16.msra.mxu0 %v7720
    %7776 = vmatprep.mubr.bf16.mxu0 %v7608
    %7777 = vmatmul.mubr.bf16.gmra.mxu0 %v7607
    %v7778 = vpop.f32.mrf.mxu0
    %v7779 = vadd.f32 %v7646, %v7778
    %v7780 = vpop.f32.mrf.mxu0
    %v7781 = vpop.f32.mrf.mxu0
    %v7782 = vpop.f32.mrf.mxu0
    %7783 = vdwg.mxu0
    %7784 = vst [vmem:[%s12] sm:$0xff] %v7779
    // Predicated region
    $region66: #{decoder_forward.1} parent=1 // pred_check
      _
    $region67: #{decoder_forward.1} parent=1 // pred_check_branch
      %7786 = sbr.rel (0) target = $region69
    $region68: #{decoder_forward.1} parent=1 // pred_region
      _
    $region69: #{decoder_forward.1} parent=1 // pred_fallthru
      _
    // Predicated region
    $region70: #{decoder_forward.1} parent=1 // pred_check
      _
    $region71: #{decoder_forward.1} parent=1 // pred_check_branch
      %7788 = sbr.rel (0) target = $region73
    $region72: #{decoder_forward.1} parent=1 // pred_region
      _
    $region73: #{decoder_forward.1} parent=1 // pred_fallthru
      _
    %7789 = vsyncpa [#allocation3], 1
    %7790 = vsyncpa [#allocation5], 1
    %7791 = vsyncpa [#allocation8], 1

</llo_original>
